<compile_context>
chip_gen: v6e
topology: v6e:2x2x1
jax: 0.10.0
libtpu: 0.0.40
codegen_flags: <defaults>
</compile_context>

<pallas_src>
import functools

import jax
import jax.numpy as jnp
from jax.experimental import pallas as pl
from jax.experimental.pallas import tpu as pltpu

C_REAL = 100          # real channel count of the PyTorch model
C_PAD = 128           # lane-padded channel count
L3 = 66               # sequence length after conv2 (528 -> 264 -> 132 -> 66)
BN_EPS = 1e-5
VMEM_LIMIT = 64 * 1024 * 1024


def _vmem():
    return pl.BlockSpec(memory_space=pltpu.MemorySpace.VMEM)


def _bn_train(y, gamma, beta, n_rows):
    """PyTorch BatchNorm1d training-mode semantics, single-pass sum / sum-of-squares."""
    s1 = jnp.sum(y, axis=0, keepdims=True)
    s2 = jnp.sum(y * y, axis=0, keepdims=True)
    inv_n = 1.0 / n_rows
    mean = s1 * inv_n
    var = jnp.maximum(s2 * inv_n - mean * mean, 0.0)   # clamp f32 cancellation
    scale = gamma * jax.lax.rsqrt(var + BN_EPS)
    return y * scale + (beta - mean * scale)


# ---------------------------------------------------------------------------
# Kernel A: conv1 + ReLU + MaxPool1d(2,2) + BN1 + conv2 + ReLU + BN2  (fully fused)
# ---------------------------------------------------------------------------
def encoder_kernel(G, p_ref, w1_ref, b1_ref, g1_ref, be1_ref,
                   w2_ref, b2_ref, g2_ref, be2_ref, lmask_ref, o_ref):
    # conv1: one matmul over the whole (4G, 21) tap slab (one MXU fill/drain).
    y_all = jnp.dot(p_ref[...], w1_ref[...], preferred_element_type=jnp.float32)
    # MaxPool1d(2,2): slab halves hold the two conv taps of every pool window, in
    # order [even pool positions ; odd pool positions].  relu/max/bias commute.
    y_pool = jnp.maximum(y_all[0:2 * G, :], y_all[2 * G:4 * G, :]) + b1_ref[...]
    y_pool = jnp.maximum(y_pool, 0.0)                                    # ReLU
    y2 = _bn_train(y_pool, g1_ref[...], be1_ref[...], 2.0 * G)           # BN1 over N*132 rows

    # conv2 (k=3, s=2, p=1) directly on the BN1 output, no im2col materialization:
    #   center tap -> even pool positions, right tap -> odd, left tap -> odd shifted
    #   down one row with the first output position of every sample zeroed.
    y2e = y2[0:G, :]                 # pool positions 0,2,...,130 of each sample
    y2o = y2[G:2 * G, :]             # pool positions 1,3,...,131 of each sample
    left = jnp.concatenate(
        [jnp.zeros((1, C_PAD), jnp.float32), y2o[0:G - 1, :]], axis=0)
    left = left * lmask_ref[...]     # zero rows at sample boundaries (r % 66 == 0)

    z = jnp.dot(left.astype(jnp.bfloat16), w2_ref[0],
                preferred_element_type=jnp.float32)
    z = z + jnp.dot(y2e.astype(jnp.bfloat16), w2_ref[1],
                    preferred_element_type=jnp.float32)
    z = z + jnp.dot(y2o.astype(jnp.bfloat16), w2_ref[2],
                    preferred_element_type=jnp.float32)
    z = jnp.maximum(z + b2_ref[...], 0.0)                                # ReLU
    y4 = _bn_train(z, g2_ref[...], be2_ref[...], 1.0 * G)                # BN2 over N*66 rows
    o_ref[...] = y4.astype(o_ref.dtype)                                  # bf16 out (fc1 operand)


def encoder(p_all, lmask, w1, b1, g1, be1, w2, b2, g2, be2, G):
    return pl.pallas_call(
        functools.partial(encoder_kernel, G),
        out_shape=jax.ShapeDtypeStruct((G, C_PAD), jnp.bfloat16),
        in_specs=[_vmem()] * 10,
        out_specs=_vmem(),
        compiler_params=pltpu.CompilerParams(vmem_limit_bytes=VMEM_LIMIT),
    )(p_all, w1, b1, g1, be1, w2, b2, g2, be2, lmask)


# ---------------------------------------------------------------------------
# Kernel B: fc1+ReLU -> fc2+ReLU -> fc3+Sigmoid (lane-dense, bf16 fc1 weight)
# ---------------------------------------------------------------------------
def fc_tail_kernel(x_ref, f1_ref, fb1_ref, f2_ref, fb2_ref, f3_ref, fb3_ref, o_ref):
    h = jnp.dot(x_ref[...], f1_ref[...], preferred_element_type=jnp.float32)
    h = jnp.maximum(h + fb1_ref[...], 0.0)
    h = jnp.dot(h, f2_ref[...], preferred_element_type=jnp.float32)
    h = jnp.maximum(h + fb2_ref[...], 0.0)
    y = jnp.dot(h, f3_ref[...], preferred_element_type=jnp.float32) + fb3_ref[...]
    o_ref[...] = (1.0 / (1.0 + jnp.exp(-y))).astype(o_ref.dtype)         # sigmoid


def fc_tail(x, f1, fb1, f2, fb2, f3, fb3):
    N = x.shape[0]
    return pl.pallas_call(
        fc_tail_kernel,
        out_shape=jax.ShapeDtypeStruct((N, 128), jnp.float32),
        in_specs=[_vmem()] * 7,
        out_specs=_vmem(),
        compiler_params=pltpu.CompilerParams(vmem_limit_bytes=VMEM_LIMIT),
    )(x, f1, fb1, f2, fb2, f3, fb3)


# ---------------------------------------------------------------------------
# Thin JAX glue: conv1 im2col (static strided slices on the tiny raw input only)
# ---------------------------------------------------------------------------
def im2col_1d(x_nlc, kernel_size, stride, padding):
    """(N, L, C) channels-last -> (N, L_out, C*K), feature index = c*K + k."""
    N, L, C = x_nlc.shape
    L_out = (L + 2 * padding - kernel_size) // stride + 1
    x_pad = jnp.pad(x_nlc, ((0, 0), (padding, padding), (0, 0)))
    cols = []
    for k in range(kernel_size):
        sl = jax.lax.slice(
            x_pad, (0, k, 0),
            (N, k + stride * (L_out - 1) + 1, C),
            (1, stride, 1))                               # (N, L_out, C)
        cols.append(sl)
    patches = jnp.stack(cols, axis=-1)                    # (N, L_out, C, K)
    return patches.reshape(N, L_out, C * kernel_size)


def prepare_params(p):
    """One-time prep: pad channels 100->128, bf16 the big matmul weights, permute fc1
    rows so the NCL flatten is a free reshape, pad fc2/fc3 to 128 output lanes."""
    pad_c = C_PAD - C_REAL
    # conv1: (100, 7, 3) -> (21, 128), row index = c*3 + k
    w1 = jnp.pad(p["conv1_w"].reshape(C_REAL, 7 * 3).T, ((0, 0), (0, pad_c)))
    b1 = jnp.pad(p["conv1_b"], (0, pad_c)).reshape(1, C_PAD)
    g1 = jnp.pad(p["bn1_g"], (0, pad_c)).reshape(1, C_PAD)
    be1 = jnp.pad(p["bn1_b"], (0, pad_c)).reshape(1, C_PAD)
    # conv2: (100, 100, 3) -> (3, 128, 128) bf16 indexed [k, c_in, c_out]
    w2 = jnp.pad(p["conv2_w"], ((0, pad_c), (0, pad_c), (0, 0)))      # (128,128,3)
    w2 = jnp.transpose(w2, (2, 1, 0)).astype(jnp.bfloat16)            # (3,128,128)
    b2 = jnp.pad(p["conv2_b"], (0, pad_c)).reshape(1, C_PAD)
    g2 = jnp.pad(p["bn2_g"], (0, pad_c)).reshape(1, C_PAD)
    be2 = jnp.pad(p["bn2_b"], (0, pad_c)).reshape(1, C_PAD)
    # fc1: (128, 6600) col index c*66+l  ->  bf16 rows ordered l*128 + c (padded)
    f1 = p["fc1_w"].reshape(128, C_REAL, L3)                          # (128,100,66)
    f1 = jnp.pad(f1, ((0, 0), (0, pad_c), (0, 0)))                    # (128,128,66)
    f1 = jnp.transpose(f1, (2, 1, 0)).reshape(L3 * C_PAD, 128)        # (8448,128)
    f1 = f1.astype(jnp.bfloat16)
    fb1 = p["fc1_b"].reshape(1, 128)
    # fc2 / fc3: pad to 128 output lanes (lane-dense MXU + unmasked stores)
    f2p = jnp.pad(p["fc2_w"].T, ((0, 0), (0, 128 - 16)))              # (128,128)
    fb2p = jnp.pad(p["fc2_b"], (0, 128 - 16)).reshape(1, 128)
    f3p = jnp.pad(p["fc3_w"].T, ((0, 128 - 16), (0, 128 - 1)))        # (128,128)
    fb3p = jnp.pad(p["fc3_b"], (0, 128 - 1)).reshape(1, 128)
    return dict(w1=w1, b1=b1, g1=g1, be1=be1,
                w2=w2, b2=b2, g2=g2, be2=be2,
                f1=f1, fb1=fb1, f2p=f2p, fb2p=fb2p, f3p=f3p, fb3p=fb3p)


def net_forward(x_ncl, pp):
    N = x_ncl.shape[0]
    x = jnp.transpose(x_ncl, (0, 2, 1))                   # (N, 528, 7) channels-last

    # conv1 im2col on the tiny raw input; 4 tap slabs ordered so that maxpool becomes
    # an elementwise max of the slab halves inside the kernel.
    p1 = im2col_1d(x, 3, 2, 1)                            # (N, 264, 21)
    G = N * L3
    pe0 = p1[:, 0::4, :].reshape(G, 21)                   # conv pos 4q   (even pools, tap 1)
    po0 = p1[:, 2::4, :].reshape(G, 21)                   # conv pos 4q+2 (odd  pools, tap 1)
    pe1 = p1[:, 1::4, :].reshape(G, 21)                   # conv pos 4q+1 (even pools, tap 2)
    po1 = p1[:, 3::4, :].reshape(G, 21)                   # conv pos 4q+3 (odd  pools, tap 2)
    p_all = jnp.concatenate([pe0, po0, pe1, po1], axis=0)  # (4G, 21)
    # zero mask for conv2's left tap at every sample's first output position
    lmask = (jnp.arange(G) % L3 != 0).astype(jnp.float32).reshape(G, 1)

    # Kernel A: conv1 + ReLU + maxpool + BN1 + conv2 + ReLU + BN2 (all fused)
    y4 = encoder(p_all, lmask, pp["w1"], pp["b1"], pp["g1"], pp["be1"],
                 pp["w2"], pp["b2"], pp["g2"], pp["be2"], G)    # (N*66, 128) bf16

    # PyTorch Flatten: free row-major reshape (fc1 rows were permuted at prep time).
    y4_flat = y4.reshape(N, L3 * C_PAD)                   # (N, 8448) bf16

    # Kernel B: fc1+ReLU -> fc2+ReLU -> fc3+Sigmoid (lane-dense, col 0 is the logit)
    out = fc_tail(y4_flat, pp["f1"], pp["fb1"], pp["f2p"], pp["fb2p"],
                  pp["f3p"], pp["fb3p"])                  # (N, 128)
    return out[:, :1]                                     # (N, 1)


def init_params(key):
    ks = jax.random.split(key, 10)

    def u(k, shape, fan_in):
        bound = 1.0 / jnp.sqrt(jnp.float32(fan_in))
        return jax.random.uniform(k, shape, jnp.float32, -bound, bound)

    return {
        "conv1_w": u(ks[0], (100, 7, 3), 7 * 3),
        "conv1_b": u(ks[1], (100,), 7 * 3),
        "bn1_g": jnp.ones((100,), jnp.float32),
        "bn1_b": jnp.zeros((100,), jnp.float32),
        "conv2_w": u(ks[2], (100, 100, 3), 100 * 3),
        "conv2_b": u(ks[3], (100,), 100 * 3),
        "bn2_g": jnp.ones((100,), jnp.float32),
        "bn2_b": jnp.zeros((100,), jnp.float32),
        "fc1_w": u(ks[4], (128, 6600), 6600),
        "fc1_b": u(ks[5], (128,), 6600),
        "fc2_w": u(ks[6], (16, 128), 128),
        "fc2_b": u(ks[7], (16,), 128),
        "fc3_w": u(ks[8], (1, 16), 16),
        "fc3_b": u(ks[9], (1,), 16),
    }


if __name__ == "__main__":
    key = jax.random.PRNGKey(0)
    kx, kp = jax.random.split(key)
    # L=528 is forced by Linear(6600,128): 528 -conv1-> 264 -pool-> 132 -conv2-> 66; 100*66=6600.
    N, Cin, L = 2, 7, 528
    x = jax.random.normal(kx, (N, Cin, L), jnp.float32)
    params = init_params(kp)
    prepped = prepare_params(params)                      # one-time pad/permute/bf16 of weights
    out = jax.jit(net_forward)(x, prepped)
    out = jax.block_until_ready(out)
    assert out.shape == (N, 1)
    assert bool(jnp.all(jnp.isfinite(out)))
    assert bool(jnp.all((out >= 0.0) & (out <= 1.0)))     # sigmoid range sanity check
    print("KERNEL_OK")
</pallas_src>

<mosaic_0001>
module attributes {stable_mosaic.version = 11 : i64} {
  func.func @encoder_kernel(%arg0: memref<528x21xf32, #tpu.memory_space<vmem>>, %arg1: memref<21x128xf32, #tpu.memory_space<vmem>>, %arg2: memref<1x128xf32, #tpu.memory_space<vmem>>, %arg3: memref<1x128xf32, #tpu.memory_space<vmem>>, %arg4: memref<1x128xf32, #tpu.memory_space<vmem>>, %arg5: memref<3x128x128xbf16, #tpu.memory_space<vmem>>, %arg6: memref<1x128xf32, #tpu.memory_space<vmem>>, %arg7: memref<1x128xf32, #tpu.memory_space<vmem>>, %arg8: memref<1x128xf32, #tpu.memory_space<vmem>>, %arg9: memref<132x1xf32, #tpu.memory_space<vmem>>, %arg10: memref<132x128xbf16, #tpu.memory_space<vmem>>) attributes {dimension_semantics = [], scalar_prefetch = 0 : i64, scratch_operands = 0 : i64, tpu.core_type = #tpu.core_type<tc>} {
    %c0 = arith.constant 0 : index
    %c0_0 = arith.constant 0 : index
    %0 = vector.load %arg0[%c0, %c0_0] : memref<528x21xf32, #tpu.memory_space<vmem>>, vector<528x21xf32>
    %c0_1 = arith.constant 0 : index
    %c0_2 = arith.constant 0 : index
    %1 = vector.load %arg1[%c0_1, %c0_2] : memref<21x128xf32, #tpu.memory_space<vmem>>, vector<21x128xf32>
    %cst = arith.constant dense<0.000000e+00> : vector<528x128xf32>
    %2 = tpu.matmul %0, %1, %cst {dimension_numbers = #tpu.dot_dimension_numbers<[1], [0], [0], [1], [0, 0, 1, 1], [], []>} : vector<528x21xf32>, vector<21x128xf32>, vector<528x128xf32> -> vector<528x128xf32>
    %3 = vector.extract_strided_slice %2 {offsets = [0, 0], sizes = [264, 128], strides = [1, 1]} : vector<528x128xf32> to vector<264x128xf32>
    %4 = vector.extract_strided_slice %2 {offsets = [264, 0], sizes = [264, 128], strides = [1, 1]} : vector<528x128xf32> to vector<264x128xf32>
    %5 = arith.maximumf %3, %4 : vector<264x128xf32>
    %c0_3 = arith.constant 0 : index
    %c0_4 = arith.constant 0 : index
    %6 = vector.load %arg2[%c0_3, %c0_4] : memref<1x128xf32, #tpu.memory_space<vmem>>, vector<1x128xf32>
    %7 = vector.broadcast %6 : vector<1x128xf32> to vector<264x128xf32>
    %8 = arith.addf %5, %7 : vector<264x128xf32>
    %cst_5 = arith.constant 0.000000e+00 : f32
    %9 = vector.broadcast %cst_5 : f32 to vector<264x128xf32>
    %10 = arith.maximumf %8, %9 : vector<264x128xf32>
    %c0_6 = arith.constant 0 : index
    %c0_7 = arith.constant 0 : index
    %11 = vector.load %arg3[%c0_6, %c0_7] : memref<1x128xf32, #tpu.memory_space<vmem>>, vector<1x128xf32>
    %c0_8 = arith.constant 0 : index
    %c0_9 = arith.constant 0 : index
    %12 = vector.load %arg4[%c0_8, %c0_9] : memref<1x128xf32, #tpu.memory_space<vmem>>, vector<1x128xf32>
    %cst_10 = arith.constant dense<0.000000e+00> : vector<128xf32>
    %13 = vector.multi_reduction <add>, %10, %cst_10 [0] : vector<264x128xf32> to vector<128xf32>
    %14 = vector.shape_cast %13 : vector<128xf32> to vector<1x128xf32>
    %15 = arith.mulf %10, %10 : vector<264x128xf32>
    %cst_11 = arith.constant dense<0.000000e+00> : vector<128xf32>
    %16 = vector.multi_reduction <add>, %15, %cst_11 [0] : vector<264x128xf32> to vector<128xf32>
    %17 = vector.shape_cast %16 : vector<128xf32> to vector<1x128xf32>
    %cst_12 = arith.constant 0.0037878789 : f32
    %18 = vector.broadcast %cst_12 : f32 to vector<1x128xf32>
    %19 = arith.mulf %14, %18 : vector<1x128xf32>
    %cst_13 = arith.constant 0.0037878789 : f32
    %20 = vector.broadcast %cst_13 : f32 to vector<1x128xf32>
    %21 = arith.mulf %17, %20 : vector<1x128xf32>
    %22 = arith.mulf %19, %19 : vector<1x128xf32>
    %23 = arith.subf %21, %22 : vector<1x128xf32>
    %cst_14 = arith.constant 0.000000e+00 : f32
    %24 = vector.broadcast %cst_14 : f32 to vector<1x128xf32>
    %25 = arith.maximumf %23, %24 : vector<1x128xf32>
    %cst_15 = arith.constant 9.99999974E-6 : f32
    %26 = vector.broadcast %cst_15 : f32 to vector<1x128xf32>
    %27 = arith.addf %25, %26 : vector<1x128xf32>
    %28 = math.rsqrt %27 : vector<1x128xf32>
    %29 = arith.mulf %11, %28 : vector<1x128xf32>
    %30 = vector.broadcast %29 : vector<1x128xf32> to vector<264x128xf32>
    %31 = arith.mulf %10, %30 : vector<264x128xf32>
    %32 = arith.mulf %19, %29 : vector<1x128xf32>
    %33 = arith.subf %12, %32 : vector<1x128xf32>
    %34 = vector.broadcast %33 : vector<1x128xf32> to vector<264x128xf32>
    %35 = arith.addf %31, %34 : vector<264x128xf32>
    %36 = vector.extract_strided_slice %35 {offsets = [0, 0], sizes = [132, 128], strides = [1, 1]} : vector<264x128xf32> to vector<132x128xf32>
    %37 = vector.extract_strided_slice %35 {offsets = [132, 0], sizes = [132, 128], strides = [1, 1]} : vector<264x128xf32> to vector<132x128xf32>
    %cst_16 = arith.constant 0.000000e+00 : f32
    %38 = vector.broadcast %cst_16 : f32 to vector<1x128xf32>
    %39 = vector.extract_strided_slice %37 {offsets = [0, 0], sizes = [131, 128], strides = [1, 1]} : vector<132x128xf32> to vector<131x128xf32>
    %40 = tpu.concatenate %38, %39 in 0 : vector<1x128xf32>, vector<131x128xf32> -> vector<132x128xf32>
    %c0_17 = arith.constant 0 : index
    %c0_18 = arith.constant 0 : index
    %41 = vector.load %arg9[%c0_17, %c0_18] : memref<132x1xf32, #tpu.memory_space<vmem>>, vector<132x1xf32>
    %42 = vector.broadcast %41 : vector<132x1xf32> to vector<132x128xf32>
    %43 = arith.mulf %40, %42 : vector<132x128xf32>
    %44 = arith.truncf %43 : vector<132x128xf32> to vector<132x128xbf16>
    %c0_19 = arith.constant 0 : index
    %c0_20 = arith.constant 0 : index
    %c0_21 = arith.constant 0 : index
    %45 = vector.load %arg5[%c0_19, %c0_20, %c0_21] : memref<3x128x128xbf16, #tpu.memory_space<vmem>>, vector<1x128x128xbf16>
    %46 = vector.shape_cast %45 : vector<1x128x128xbf16> to vector<128x128xbf16>
    %cst_22 = arith.constant dense<0.000000e+00> : vector<132x128xf32>
    %47 = tpu.matmul %44, %46, %cst_22 {dimension_numbers = #tpu.dot_dimension_numbers<[1], [0], [0], [1], [0, 0, 1, 1], [], []>} : vector<132x128xbf16>, vector<128x128xbf16>, vector<132x128xf32> -> vector<132x128xf32>
    %48 = arith.truncf %36 : vector<132x128xf32> to vector<132x128xbf16>
    %c1 = arith.constant 1 : index
    %c0_23 = arith.constant 0 : index
    %c0_24 = arith.constant 0 : index
    %49 = vector.load %arg5[%c1, %c0_23, %c0_24] : memref<3x128x128xbf16, #tpu.memory_space<vmem>>, vector<1x128x128xbf16>
    %50 = vector.shape_cast %49 : vector<1x128x128xbf16> to vector<128x128xbf16>
    %cst_25 = arith.constant dense<0.000000e+00> : vector<132x128xf32>
    %51 = tpu.matmul %48, %50, %cst_25 {dimension_numbers = #tpu.dot_dimension_numbers<[1], [0], [0], [1], [0, 0, 1, 1], [], []>} : vector<132x128xbf16>, vector<128x128xbf16>, vector<132x128xf32> -> vector<132x128xf32>
    %52 = arith.addf %47, %51 : vector<132x128xf32>
    %53 = arith.truncf %37 : vector<132x128xf32> to vector<132x128xbf16>
    %c2 = arith.constant 2 : index
    %c0_26 = arith.constant 0 : index
    %c0_27 = arith.constant 0 : index
    %54 = vector.load %arg5[%c2, %c0_26, %c0_27] : memref<3x128x128xbf16, #tpu.memory_space<vmem>>, vector<1x128x128xbf16>
    %55 = vector.shape_cast %54 : vector<1x128x128xbf16> to vector<128x128xbf16>
    %cst_28 = arith.constant dense<0.000000e+00> : vector<132x128xf32>
    %56 = tpu.matmul %53, %55, %cst_28 {dimension_numbers = #tpu.dot_dimension_numbers<[1], [0], [0], [1], [0, 0, 1, 1], [], []>} : vector<132x128xbf16>, vector<128x128xbf16>, vector<132x128xf32> -> vector<132x128xf32>
    %57 = arith.addf %52, %56 : vector<132x128xf32>
    %c0_29 = arith.constant 0 : index
    %c0_30 = arith.constant 0 : index
    %58 = vector.load %arg6[%c0_29, %c0_30] : memref<1x128xf32, #tpu.memory_space<vmem>>, vector<1x128xf32>
    %59 = vector.broadcast %58 : vector<1x128xf32> to vector<132x128xf32>
    %60 = arith.addf %57, %59 : vector<132x128xf32>
    %cst_31 = arith.constant 0.000000e+00 : f32
    %61 = vector.broadcast %cst_31 : f32 to vector<132x128xf32>
    %62 = arith.maximumf %60, %61 : vector<132x128xf32>
    %c0_32 = arith.constant 0 : index
    %c0_33 = arith.constant 0 : index
    %63 = vector.load %arg7[%c0_32, %c0_33] : memref<1x128xf32, #tpu.memory_space<vmem>>, vector<1x128xf32>
    %c0_34 = arith.constant 0 : index
    %c0_35 = arith.constant 0 : index
    %64 = vector.load %arg8[%c0_34, %c0_35] : memref<1x128xf32, #tpu.memory_space<vmem>>, vector<1x128xf32>
    %cst_36 = arith.constant dense<0.000000e+00> : vector<128xf32>
    %65 = vector.multi_reduction <add>, %62, %cst_36 [0] : vector<132x128xf32> to vector<128xf32>
    %66 = vector.shape_cast %65 : vector<128xf32> to vector<1x128xf32>
    %67 = arith.mulf %62, %62 : vector<132x128xf32>
    %cst_37 = arith.constant dense<0.000000e+00> : vector<128xf32>
    %68 = vector.multi_reduction <add>, %67, %cst_37 [0] : vector<132x128xf32> to vector<128xf32>
    %69 = vector.shape_cast %68 : vector<128xf32> to vector<1x128xf32>
    %cst_38 = arith.constant 0.0075757578 : f32
    %70 = vector.broadcast %cst_38 : f32 to vector<1x128xf32>
    %71 = arith.mulf %66, %70 : vector<1x128xf32>
    %cst_39 = arith.constant 0.0075757578 : f32
    %72 = vector.broadcast %cst_39 : f32 to vector<1x128xf32>
    %73 = arith.mulf %69, %72 : vector<1x128xf32>
    %74 = arith.mulf %71, %71 : vector<1x128xf32>
    %75 = arith.subf %73, %74 : vector<1x128xf32>
    %cst_40 = arith.constant 0.000000e+00 : f32
    %76 = vector.broadcast %cst_40 : f32 to vector<1x128xf32>
    %77 = arith.maximumf %75, %76 : vector<1x128xf32>
    %cst_41 = arith.constant 9.99999974E-6 : f32
    %78 = vector.broadcast %cst_41 : f32 to vector<1x128xf32>
    %79 = arith.addf %77, %78 : vector<1x128xf32>
    %80 = math.rsqrt %79 : vector<1x128xf32>
    %81 = arith.mulf %63, %80 : vector<1x128xf32>
    %82 = vector.broadcast %81 : vector<1x128xf32> to vector<132x128xf32>
    %83 = arith.mulf %62, %82 : vector<132x128xf32>
    %84 = arith.mulf %71, %81 : vector<1x128xf32>
    %85 = arith.subf %64, %84 : vector<1x128xf32>
    %86 = vector.broadcast %85 : vector<1x128xf32> to vector<132x128xf32>
    %87 = arith.addf %83, %86 : vector<132x128xf32>
    %88 = arith.truncf %87 : vector<132x128xf32> to vector<132x128xbf16>
    %c0_42 = arith.constant 0 : index
    %c0_43 = arith.constant 0 : index
    %89 = vector.load %arg10[%c0_42, %c0_43] : memref<132x128xbf16, #tpu.memory_space<vmem>>, vector<132x128xbf16>
    tpu.vector_store %arg10[%c0_42, %c0_43], %88 {strides = array<i32>} : memref<132x128xbf16, #tpu.memory_space<vmem>>, vector<132x128xbf16>,
    return
  }
}

module attributes {stable_mosaic.version = 11 : i64} {
  func.func @fc_tail_kernel(%arg0: memref<2x8448xbf16, #tpu.memory_space<vmem>>, %arg1: memref<8448x128xbf16, #tpu.memory_space<vmem>>, %arg2: memref<1x128xf32, #tpu.memory_space<vmem>>, %arg3: memref<128x128xf32, #tpu.memory_space<vmem>>, %arg4: memref<1x128xf32, #tpu.memory_space<vmem>>, %arg5: memref<128x128xf32, #tpu.memory_space<vmem>>, %arg6: memref<1x128xf32, #tpu.memory_space<vmem>>, %arg7: memref<2x128xf32, #tpu.memory_space<vmem>>) attributes {dimension_semantics = [], scalar_prefetch = 0 : i64, scratch_operands = 0 : i64, tpu.core_type = #tpu.core_type<tc>} {
    %c0 = arith.constant 0 : index
    %c0_0 = arith.constant 0 : index
    %0 = vector.load %arg0[%c0, %c0_0] : memref<2x8448xbf16, #tpu.memory_space<vmem>>, vector<2x8448xbf16>
    %c0_1 = arith.constant 0 : index
    %c0_2 = arith.constant 0 : index
    %1 = vector.load %arg1[%c0_1, %c0_2] : memref<8448x128xbf16, #tpu.memory_space<vmem>>, vector<8448x128xbf16>
    %cst = arith.constant dense<0.000000e+00> : vector<2x128xf32>
    %2 = tpu.matmul %0, %1, %cst {dimension_numbers = #tpu.dot_dimension_numbers<[1], [0], [0], [1], [0, 0, 1, 1], [], []>} : vector<2x8448xbf16>, vector<8448x128xbf16>, vector<2x128xf32> -> vector<2x128xf32>
    %c0_3 = arith.constant 0 : index
    %c0_4 = arith.constant 0 : index
    %3 = vector.load %arg2[%c0_3, %c0_4] : memref<1x128xf32, #tpu.memory_space<vmem>>, vector<1x128xf32>
    %4 = vector.broadcast %3 : vector<1x128xf32> to vector<2x128xf32>
    %5 = arith.addf %2, %4 : vector<2x128xf32>
    %cst_5 = arith.constant 0.000000e+00 : f32
    %6 = vector.broadcast %cst_5 : f32 to vector<2x128xf32>
    %7 = arith.maximumf %5, %6 : vector<2x128xf32>
    %c0_6 = arith.constant 0 : index
    %c0_7 = arith.constant 0 : index
    %8 = vector.load %arg3[%c0_6, %c0_7] : memref<128x128xf32, #tpu.memory_space<vmem>>, vector<128x128xf32>
    %cst_8 = arith.constant dense<0.000000e+00> : vector<2x128xf32>
    %9 = tpu.matmul %7, %8, %cst_8 {dimension_numbers = #tpu.dot_dimension_numbers<[1], [0], [0], [1], [0, 0, 1, 1], [], []>} : vector<2x128xf32>, vector<128x128xf32>, vector<2x128xf32> -> vector<2x128xf32>
    %c0_9 = arith.constant 0 : index
    %c0_10 = arith.constant 0 : index
    %10 = vector.load %arg4[%c0_9, %c0_10] : memref<1x128xf32, #tpu.memory_space<vmem>>, vector<1x128xf32>
    %11 = vector.broadcast %10 : vector<1x128xf32> to vector<2x128xf32>
    %12 = arith.addf %9, %11 : vector<2x128xf32>
    %cst_11 = arith.constant 0.000000e+00 : f32
    %13 = vector.broadcast %cst_11 : f32 to vector<2x128xf32>
    %14 = arith.maximumf %12, %13 : vector<2x128xf32>
    %c0_12 = arith.constant 0 : index
    %c0_13 = arith.constant 0 : index
    %15 = vector.load %arg5[%c0_12, %c0_13] : memref<128x128xf32, #tpu.memory_space<vmem>>, vector<128x128xf32>
    %cst_14 = arith.constant dense<0.000000e+00> : vector<2x128xf32>
    %16 = tpu.matmul %14, %15, %cst_14 {dimension_numbers = #tpu.dot_dimension_numbers<[1], [0], [0], [1], [0, 0, 1, 1], [], []>} : vector<2x128xf32>, vector<128x128xf32>, vector<2x128xf32> -> vector<2x128xf32>
    %c0_15 = arith.constant 0 : index
    %c0_16 = arith.constant 0 : index
    %17 = vector.load %arg6[%c0_15, %c0_16] : memref<1x128xf32, #tpu.memory_space<vmem>>, vector<1x128xf32>
    %18 = vector.broadcast %17 : vector<1x128xf32> to vector<2x128xf32>
    %19 = arith.addf %16, %18 : vector<2x128xf32>
    %cst_17 = arith.constant 0.000000e+00 : f32
    %20 = vector.broadcast %cst_17 : f32 to vector<2x128xf32>
    %21 = arith.subf %20, %19 : vector<2x128xf32>
    %22 = math.exp %21 : vector<2x128xf32>
    %cst_18 = arith.constant 1.000000e+00 : f32
    %23 = vector.broadcast %cst_18 : f32 to vector<2x128xf32>
    %24 = arith.addf %23, %22 : vector<2x128xf32>
    %cst_19 = arith.constant 1.000000e+00 : f32
    %25 = vector.broadcast %cst_19 : f32 to vector<2x128xf32>
    %26 = arith.divf %25, %24 : vector<2x128xf32>
    %c0_20 = arith.constant 0 : index
    %c0_21 = arith.constant 0 : index
    %27 = vector.load %arg7[%c0_20, %c0_21] : memref<2x128xf32, #tpu.memory_space<vmem>>, vector<2x128xf32>
    tpu.vector_store %arg7[%c0_20, %c0_21], %26 {strides = array<i32>} : memref<2x128xf32, #tpu.memory_space<vmem>>, vector<2x128xf32>,
    return
  }
}

</mosaic_0001>

<llo_original>
// kernel: net_forward.2
$region0: #{net_forward.2}
  #allocation0 [shape = 'u32[]', space=smem, size = 0x4, offset = 0x4, fixed_abs, tag = 'smem constant byte address 0x4 - core index']
  #allocation1 [shape = 'u32[144,128]{1,0:T(1,128)}', space=vmem, size = 0x12000, scoped, tag = 'internal scratch']
  %s0 = inlined_call_operand.vmem [shape: f32[528,21], index: 0, kind: input, shape index: {}]
  %s1 = inlined_call_operand.hbm [shape: f32[21,128], index: 1, kind: input, shape index: {}]
  %s2 = inlined_call_operand.hbm [shape: f32[1,128], index: 2, kind: input, shape index: {}]
  %s3 = inlined_call_operand.hbm [shape: f32[1,128], index: 3, kind: input, shape index: {}]
  %s4 = inlined_call_operand.hbm [shape: f32[1,128], index: 4, kind: input, shape index: {}]
  %s5 = inlined_call_operand.hbm [shape: bf16[3,128,128], index: 5, kind: input, shape index: {}]
  %s6 = inlined_call_operand.hbm [shape: f32[1,128], index: 6, kind: input, shape index: {}]
  %s7 = inlined_call_operand.hbm [shape: f32[1,128], index: 7, kind: input, shape index: {}]
  %s8 = inlined_call_operand.hbm [shape: f32[1,128], index: 8, kind: input, shape index: {}]
  %s9 = inlined_call_operand.vmem [shape: f32[132,1], index: 9, kind: input, shape index: {}]
  %s10 = inlined_call_operand.vmem [shape: bf16[132,128], index: 10, kind: output, shape index: {}]
  %s11 = sld [smem:[#allocation0]]
  $region82: #{net_forward.2} parent=0
    _
  %s13 = ssub.s32 1, %s11
  %s14 = scalar_select 0, %s13, %s11
  $region1: #{net_forward.2} parent=0
    #allocation2 [shape = 'u8[12288]{0}', space=vmem, size = 0x3000, scoped, tag = 'input window, operand 1, single buffered']
    #allocation3 [shape = 's32[1]{0}', space=sflag, size = 0x4, scoped, tag = 'scoped memory for net_forward.2']
    #allocation4 [shape = 'u8[512]{0}', space=vmem, size = 0x400, scoped, tag = 'input window, operand 2, single buffered']
    #allocation5 [shape = 's32[1]{0}', space=sflag, size = 0x4, scoped, tag = 'scoped memory for net_forward.2']
    #allocation6 [shape = 'u8[512]{0}', space=vmem, size = 0x400, scoped, tag = 'input window, operand 3, single buffered']
    #allocation7 [shape = 'u8[512]{0}', space=vmem, size = 0x400, scoped, tag = 'input window, operand 4, single buffered']
    #allocation8 [shape = 's32[1]{0}', space=sflag, size = 0x4, scoped, tag = 'scoped memory for net_forward.2']
    #allocation9 [shape = 'u8[98304]{0}', space=vmem, size = 0x18000, scoped, tag = 'input window, operand 5, single buffered']
    #allocation10 [shape = 'u8[512]{0}', space=vmem, size = 0x400, scoped, tag = 'input window, operand 6, single buffered']
    #allocation11 [shape = 's32[1]{0}', space=sflag, size = 0x4, scoped, tag = 'scoped memory for net_forward.2']
    #allocation12 [shape = 'u8[512]{0}', space=vmem, size = 0x400, scoped, tag = 'input window, operand 7, single buffered']
    #allocation13 [shape = 'u8[512]{0}', space=vmem, size = 0x400, scoped, tag = 'input window, operand 8, single buffered']
    #allocation14 [shape = 's32[1]{0}', space=sflag, size = 0x4, scoped, tag = 'scoped memory for net_forward.2']
    %15 = vsyncpa [#allocation3], 0
    %16 = vsyncpa [#allocation5], 0
    %17 = vsyncpa [#allocation8], 0
    %18 = vsyncpa [#allocation11], 0
    %19 = vsyncpa [#allocation14], 0
    // Predicated region
    $region2: #{net_forward.2} parent=1 // pred_check
      _
    $region3: #{net_forward.2} parent=1 // pred_check_branch
      %21 = sbr.rel (0) target = $region5
    $region4: #{net_forward.2} parent=1 // pred_region
      _
    $region5: #{net_forward.2} parent=1 // pred_fallthru
      _
    // Predicated region
    $region6: #{net_forward.2} parent=1 // pred_check
      _
    $region7: #{net_forward.2} parent=1 // pred_check_branch
      %23 = sbr.rel (0) target = $region9
    $region8: #{net_forward.2} parent=1 // pred_region
      %s25 = ssub.s32 384, 384
      %26 = vsyncadd [#allocation3], %s25
      %s27 = sshll.u32 [#allocation2], 4
      %s28 = int_to_ptr.vmem [resolvable:$true] %s27
      %33 = dma.hbm_to_vmem [thread:$0]  %s1, 384, %s28, [#allocation3], 128, 128, 8
    $region9: #{net_forward.2} parent=1 // pred_fallthru
      _
    // Predicated region
    $region10: #{net_forward.2} parent=1 // pred_check
      _
    $region11: #{net_forward.2} parent=1 // pred_check_branch
      %35 = sbr.rel (0) target = $region13
    $region12: #{net_forward.2} parent=1 // pred_region
      %s37 = ssub.s32 16, 16
      %38 = vsyncadd [#allocation5], %s37
      %s40 = sshll.u32 [#allocation4], 4
      %s41 = int_to_ptr.vmem [resolvable:$true] %s40
      %43 = dma.hbm_to_vmem [thread:$0]  %s2, 16, %s41, [#allocation5]
    $region13: #{net_forward.2} parent=1 // pred_fallthru
      _
    // Predicated region
    $region14: #{net_forward.2} parent=1 // pred_check
      _
    $region15: #{net_forward.2} parent=1 // pred_check_branch
      %45 = sbr.rel (0) target = $region17
    $region16: #{net_forward.2} parent=1 // pred_region
      %s47 = ssub.s32 16, 16
      %48 = vsyncadd [#allocation5], %s47
      %s50 = sshll.u32 [#allocation6], 4
      %s51 = int_to_ptr.vmem [resolvable:$true] %s50
      %53 = dma.hbm_to_vmem [thread:$0]  %s3, 16, %s51, [#allocation5]
    $region17: #{net_forward.2} parent=1 // pred_fallthru
      _
    // Predicated region
    $region18: #{net_forward.2} parent=1 // pred_check
      _
    $region19: #{net_forward.2} parent=1 // pred_check_branch
      %55 = sbr.rel (0) target = $region21
    $region20: #{net_forward.2} parent=1 // pred_region
      %s57 = ssub.s32 16, 16
      %58 = vsyncadd [#allocation8], %s57
      %s60 = sshll.u32 [#allocation7], 4
      %s61 = int_to_ptr.vmem [resolvable:$true] %s60
      %63 = dma.hbm_to_vmem [thread:$0]  %s4, 16, %s61, [#allocation8]
    $region21: #{net_forward.2} parent=1 // pred_fallthru
      _
    // Predicated region
    $region22: #{net_forward.2} parent=1 // pred_check
      _
    $region23: #{net_forward.2} parent=1 // pred_check_branch
      %65 = sbr.rel (0) target = $region25
    $region24: #{net_forward.2} parent=1 // pred_region
      %s67 = ssub.s32 3072, 3072
      %68 = vsyncadd [#allocation8], %s67
      %s69 = sshll.u32 [#allocation9], 4
      %s70 = int_to_ptr.vmem [resolvable:$true] %s69
      %75 = dma.hbm_to_vmem [thread:$0]  %s5, 3072, %s70, [#allocation8], 64, 64, 4
    $region25: #{net_forward.2} parent=1 // pred_fallthru
      _
    // Predicated region
    $region26: #{net_forward.2} parent=1 // pred_check
      _
    $region27: #{net_forward.2} parent=1 // pred_check_branch
      %77 = sbr.rel (0) target = $region29
    $region28: #{net_forward.2} parent=1 // pred_region
      %s79 = ssub.s32 16, 16
      %80 = vsyncadd [#allocation11], %s79
      %s82 = sshll.u32 [#allocation10], 4
      %s83 = int_to_ptr.vmem [resolvable:$true] %s82
      %85 = dma.hbm_to_vmem [thread:$0]  %s6, 16, %s83, [#allocation11]
    $region29: #{net_forward.2} parent=1 // pred_fallthru
      _
    // Predicated region
    $region30: #{net_forward.2} parent=1 // pred_check
      _
    $region31: #{net_forward.2} parent=1 // pred_check_branch
      %87 = sbr.rel (0) target = $region33
    $region32: #{net_forward.2} parent=1 // pred_region
      %s89 = ssub.s32 16, 16
      %90 = vsyncadd [#allocation11], %s89
      %s92 = sshll.u32 [#allocation12], 4
      %s93 = int_to_ptr.vmem [resolvable:$true] %s92
      %95 = dma.hbm_to_vmem [thread:$0]  %s7, 16, %s93, [#allocation11]
    $region33: #{net_forward.2} parent=1 // pred_fallthru
      _
    // Predicated region
    $region34: #{net_forward.2} parent=1 // pred_check
      _
    $region35: #{net_forward.2} parent=1 // pred_check_branch
      %97 = sbr.rel (0) target = $region37
    $region36: #{net_forward.2} parent=1 // pred_region
      %s99 = ssub.s32 16, 16
      %100 = vsyncadd [#allocation14], %s99
      %s102 = sshll.u32 [#allocation13], 4
      %s103 = int_to_ptr.vmem [resolvable:$true] %s102
      %105 = dma.hbm_to_vmem [thread:$0]  %s8, 16, %s103, [#allocation14]
    $region37: #{net_forward.2} parent=1 // pred_fallthru
      _
    // Predicated region
    $region38: #{net_forward.2} parent=1 // pred_check
      _
    $region39: #{net_forward.2} parent=1 // pred_check_branch
      %107 = sbr.rel (0) target = $region41
    $region40: #{net_forward.2} parent=1 // pred_region
      _
    $region41: #{net_forward.2} parent=1 // pred_fallthru
      _
    // Predicated region
    $region42: #{net_forward.2} parent=1 // pred_check
      _
    $region43: #{net_forward.2} parent=1 // pred_check_branch
      %109 = sbr.rel (0) target = $region45
    $region44: #{net_forward.2} parent=1 // pred_region
      %110 = dma.done [#allocation3], 384
    $region45: #{net_forward.2} parent=1 // pred_fallthru
      _
    // Predicated region
    $region46: #{net_forward.2} parent=1 // pred_check
      _
    $region47: #{net_forward.2} parent=1 // pred_check_branch
      %112 = sbr.rel (0) target = $region49
    $region48: #{net_forward.2} parent=1 // pred_region
      %113 = dma.done [#allocation5], 16
    $region49: #{net_forward.2} parent=1 // pred_fallthru
      _
    // Predicated region
    $region50: #{net_forward.2} parent=1 // pred_check
      _
    $region51: #{net_forward.2} parent=1 // pred_check_branch
      %115 = sbr.rel (0) target = $region53
    $region52: #{net_forward.2} parent=1 // pred_region
      %116 = dma.done [#allocation5], 16
    $region53: #{net_forward.2} parent=1 // pred_fallthru
      _
    // Predicated region
    $region54: #{net_forward.2} parent=1 // pred_check
      _
    $region55: #{net_forward.2} parent=1 // pred_check_branch
      %118 = sbr.rel (0) target = $region57
    $region56: #{net_forward.2} parent=1 // pred_region
      %119 = dma.done [#allocation8], 16
    $region57: #{net_forward.2} parent=1 // pred_fallthru
      _
    // Predicated region
    $region58: #{net_forward.2} parent=1 // pred_check
      _
    $region59: #{net_forward.2} parent=1 // pred_check_branch
      %121 = sbr.rel (0) target = $region61
    $region60: #{net_forward.2} parent=1 // pred_region
      %122 = dma.done [#allocation8], 3072
    $region61: #{net_forward.2} parent=1 // pred_fallthru
      _
    // Predicated region
    $region62: #{net_forward.2} parent=1 // pred_check
      _
    $region63: #{net_forward.2} parent=1 // pred_check_branch
      %124 = sbr.rel (0) target = $region65
    $region64: #{net_forward.2} parent=1 // pred_region
      %125 = dma.done [#allocation11], 16
    $region65: #{net_forward.2} parent=1 // pred_fallthru
      _
    // Predicated region
    $region66: #{net_forward.2} parent=1 // pred_check
      _
    $region67: #{net_forward.2} parent=1 // pred_check_branch
      %127 = sbr.rel (0) target = $region69
    $region68: #{net_forward.2} parent=1 // pred_region
      %128 = dma.done [#allocation11], 16
    $region69: #{net_forward.2} parent=1 // pred_fallthru
      _
    // Predicated region
    $region70: #{net_forward.2} parent=1 // pred_check
      _
    $region71: #{net_forward.2} parent=1 // pred_check_branch
      %130 = sbr.rel (0) target = $region73
    $region72: #{net_forward.2} parent=1 // pred_region
      %131 = dma.done [#allocation14], 16
    $region73: #{net_forward.2} parent=1 // pred_fallthru
      _
    %v133 = vld [vmem:[%s0] sm:$0xff]
    %v134 = vld [vmem:[%s0 + $0x8] sm:$0xff]
    %v135 = vld [vmem:[%s0 + $0x10] sm:$0xff]
    %v136 = vld [vmem:[%s0 + $0x18] sm:$0xff]
    %v137 = vld [vmem:[%s0 + $0x20] sm:$0xff]
    %v138 = vld [vmem:[%s0 + $0x28] sm:$0xff]
    %v139 = vld [vmem:[%s0 + $0x30] sm:$0xff]
    %v140 = vld [vmem:[%s0 + $0x38] sm:$0xff]
    %v141 = vld [vmem:[%s0 + $0x40] sm:$0xff]
    %v142 = vld [vmem:[%s0 + $0x48] sm:$0xff]
    %v143 = vld [vmem:[%s0 + $0x50] sm:$0xff]
    %v144 = vld [vmem:[%s0 + $0x58] sm:$0xff]
    %v145 = vld [vmem:[%s0 + $0x60] sm:$0xff]
    %v146 = vld [vmem:[%s0 + $0x68] sm:$0xff]
    %v147 = vld [vmem:[%s0 + $0x70] sm:$0xff]
    %v148 = vld [vmem:[%s0 + $0x78] sm:$0xff]
    %v149 = vld [vmem:[%s0 + $0x80] sm:$0xff]
    %v150 = vld [vmem:[%s0 + $0x88] sm:$0xff]
    %v151 = vld [vmem:[%s0 + $0x90] sm:$0xff]
    %v152 = vld [vmem:[%s0 + $0x98] sm:$0xff]
    %v153 = vld [vmem:[%s0 + $0xa0] sm:$0xff]
    %v154 = vld [vmem:[%s0 + $0xa8] sm:$0xff]
    %v155 = vld [vmem:[%s0 + $0xb0] sm:$0xff]
    %v156 = vld [vmem:[%s0 + $0xb8] sm:$0xff]
    %v157 = vld [vmem:[%s0 + $0xc0] sm:$0xff]
    %v158 = vld [vmem:[%s0 + $0xc8] sm:$0xff]
    %v159 = vld [vmem:[%s0 + $0xd0] sm:$0xff]
    %v160 = vld [vmem:[%s0 + $0xd8] sm:$0xff]
    %v161 = vld [vmem:[%s0 + $0xe0] sm:$0xff]
    %v162 = vld [vmem:[%s0 + $0xe8] sm:$0xff]
    %v163 = vld [vmem:[%s0 + $0xf0] sm:$0xff]
    %v164 = vld [vmem:[%s0 + $0xf8] sm:$0xff]
    %v165 = vld [vmem:[%s0 + $0x100] sm:$0xff]
    %v166 = vld [vmem:[%s0 + $0x108] sm:$0xff]
    %v167 = vld [vmem:[%s0 + $0x110] sm:$0xff]
    %v168 = vld [vmem:[%s0 + $0x118] sm:$0xff]
    %v169 = vld [vmem:[%s0 + $0x120] sm:$0xff]
    %v170 = vld [vmem:[%s0 + $0x128] sm:$0xff]
    %v171 = vld [vmem:[%s0 + $0x130] sm:$0xff]
    %v172 = vld [vmem:[%s0 + $0x138] sm:$0xff]
    %v173 = vld [vmem:[%s0 + $0x140] sm:$0xff]
    %v174 = vld [vmem:[%s0 + $0x148] sm:$0xff]
    %v175 = vld [vmem:[%s0 + $0x150] sm:$0xff]
    %v176 = vld [vmem:[%s0 + $0x158] sm:$0xff]
    %v177 = vld [vmem:[%s0 + $0x160] sm:$0xff]
    %v178 = vld [vmem:[%s0 + $0x168] sm:$0xff]
    %v179 = vld [vmem:[%s0 + $0x170] sm:$0xff]
    %v180 = vld [vmem:[%s0 + $0x178] sm:$0xff]
    %v181 = vld [vmem:[%s0 + $0x180] sm:$0xff]
    %v182 = vld [vmem:[%s0 + $0x188] sm:$0xff]
    %v183 = vld [vmem:[%s0 + $0x190] sm:$0xff]
    %v184 = vld [vmem:[%s0 + $0x198] sm:$0xff]
    %v185 = vld [vmem:[%s0 + $0x1a0] sm:$0xff]
    %v186 = vld [vmem:[%s0 + $0x1a8] sm:$0xff]
    %v187 = vld [vmem:[%s0 + $0x1b0] sm:$0xff]
    %v188 = vld [vmem:[%s0 + $0x1b8] sm:$0xff]
    %v189 = vld [vmem:[%s0 + $0x1c0] sm:$0xff]
    %v190 = vld [vmem:[%s0 + $0x1c8] sm:$0xff]
    %v191 = vld [vmem:[%s0 + $0x1d0] sm:$0xff]
    %v192 = vld [vmem:[%s0 + $0x1d8] sm:$0xff]
    %v193 = vld [vmem:[%s0 + $0x1e0] sm:$0xff]
    %v194 = vld [vmem:[%s0 + $0x1e8] sm:$0xff]
    %v195 = vld [vmem:[%s0 + $0x1f0] sm:$0xff]
    %v196 = vld [vmem:[%s0 + $0x1f8] sm:$0xff]
    %v197 = vld [vmem:[%s0 + $0x200] sm:$0xff]
    %v198 = vld [vmem:[%s0 + $0x208] sm:$0xff]
    %v199 = vld [vmem:[#allocation2] sm:$0xff]
    %v200 = vld [vmem:[#allocation2 + $0x8] sm:$0xff]
    %v201 = vld [vmem:[#allocation2 + $0x10] sm:$0x1f]
    %vm202 = vcmask 171008
    %v204 = vsel %vm202, %v133, 0
    %v207 = vsel %vm202, %v134, 0
    %v210 = vsel %vm202, %v135, 0
    %v213 = vsel %vm202, %v136, 0
    %v216 = vsel %vm202, %v137, 0
    %v219 = vsel %vm202, %v138, 0
    %v222 = vsel %vm202, %v139, 0
    %v225 = vsel %vm202, %v140, 0
    %v228 = vsel %vm202, %v141, 0
    %v231 = vsel %vm202, %v142, 0
    %v234 = vsel %vm202, %v143, 0
    %v237 = vsel %vm202, %v144, 0
    %v240 = vsel %vm202, %v145, 0
    %v243 = vsel %vm202, %v146, 0
    %v246 = vsel %vm202, %v147, 0
    %v249 = vsel %vm202, %v148, 0
    %v252 = vsel %vm202, %v149, 0
    %v255 = vsel %vm202, %v150, 0
    %v258 = vsel %vm202, %v151, 0
    %v261 = vsel %vm202, %v152, 0
    %v264 = vsel %vm202, %v153, 0
    %v267 = vsel %vm202, %v154, 0
    %v270 = vsel %vm202, %v155, 0
    %v273 = vsel %vm202, %v156, 0
    %v276 = vsel %vm202, %v157, 0
    %v279 = vsel %vm202, %v158, 0
    %v282 = vsel %vm202, %v159, 0
    %v285 = vsel %vm202, %v160, 0
    %v288 = vsel %vm202, %v161, 0
    %v291 = vsel %vm202, %v162, 0
    %v294 = vsel %vm202, %v163, 0
    %v297 = vsel %vm202, %v164, 0
    %v300 = vsel %vm202, %v165, 0
    %v303 = vsel %vm202, %v166, 0
    %v306 = vsel %vm202, %v167, 0
    %v309 = vsel %vm202, %v168, 0
    %v312 = vsel %vm202, %v169, 0
    %v315 = vsel %vm202, %v170, 0
    %v318 = vsel %vm202, %v171, 0
    %v321 = vsel %vm202, %v172, 0
    %v324 = vsel %vm202, %v173, 0
    %v327 = vsel %vm202, %v174, 0
    %v330 = vsel %vm202, %v175, 0
    %v333 = vsel %vm202, %v176, 0
    %v336 = vsel %vm202, %v177, 0
    %v339 = vsel %vm202, %v178, 0
    %v342 = vsel %vm202, %v179, 0
    %v345 = vsel %vm202, %v180, 0
    %v348 = vsel %vm202, %v181, 0
    %v351 = vsel %vm202, %v182, 0
    %v354 = vsel %vm202, %v183, 0
    %v357 = vsel %vm202, %v184, 0
    %v360 = vsel %vm202, %v185, 0
    %v363 = vsel %vm202, %v186, 0
    %v366 = vsel %vm202, %v187, 0
    %v369 = vsel %vm202, %v188, 0
    %v372 = vsel %vm202, %v189, 0
    %v375 = vsel %vm202, %v190, 0
    %v378 = vsel %vm202, %v191, 0
    %v381 = vsel %vm202, %v192, 0
    %v384 = vsel %vm202, %v193, 0
    %v387 = vsel %vm202, %v194, 0
    %v390 = vsel %vm202, %v195, 0
    %v393 = vsel %vm202, %v196, 0
    %v396 = vsel %vm202, %v197, 0
    %v399 = vsel %vm202, %v198, 0
    %vm401 = vcmask 1044480
    %v403 = vsel %vm401, %v201, 0
    %405 = vmatprep.subr.mxu0 0.0
    %406 = vmatpush1.msra.mxu0 0.0
    %407 = vmatprep.subr.mxu0 0.0
    %408 = vmatpush1.msra.mxu0 0.0
    %409 = vmatprep.subr.mxu0 0.0
    %410 = vmatpush1.msra.mxu0 0.0
    %411 = vmatprep.subr.mxu0 0.0
    %412 = vmatpush1.msra.mxu0 0.0
    %413 = vmatprep.subr.mxu0 0.0
    %414 = vmatpush1.msra.mxu0 0.0
    %415 = vmatprep.subr.mxu0 0.0
    %416 = vmatpush1.msra.mxu0 0.0
    %417 = vmatprep.subr.mxu0 0.0
    %418 = vmatpush1.msra.mxu0 0.0
    %419 = vmatprep.subr.mxu0 0.0
    %420 = vmatpush1.msra.mxu0 0.0
    %421 = vmatprep.subr.mxu0 0.0
    %422 = vmatpush1.msra.mxu0 0.0
    %423 = vmatprep.subr.mxu0 0.0
    %424 = vmatpush1.msra.mxu0 0.0
    %425 = vmatprep.subr.mxu0 0.0
    %426 = vmatpush1.msra.mxu0 0.0
    %427 = vmatprep.subr.mxu0 0.0
    %428 = vmatpush1.msra.mxu0 0.0
    %429 = vmatprep.subr.mxu0 0.0
    %430 = vmatpush1.msra.mxu0 0.0
    %431 = vmatprep.subr.mxu0 0.0
    %432 = vmatpush1.msra.mxu0 %v403
    %433 = vmatprep.subr.mxu0 0.0
    %434 = vmatpush1.msra.mxu0 %v200
    %435 = vmatprep.subr.mxu0 0.0
    %436 = vmatpush1.msra.mxu0 %v199
    %437 = vmatprep.subr.mxu0 0.0
    %438 = vmatpush2.msra.mxu0 0.0
    %439 = vmatprep.subr.mxu0 0.0
    %440 = vmatpush2.msra.mxu0 0.0
    %441 = vmatprep.subr.mxu0 0.0
    %442 = vmatpush2.msra.mxu0 0.0
    %443 = vmatprep.subr.mxu0 0.0
    %444 = vmatpush2.msra.mxu0 0.0
    %445 = vmatprep.subr.mxu0 0.0
    %446 = vmatpush2.msra.mxu0 0.0
    %447 = vmatprep.subr.mxu0 0.0
    %448 = vmatpush2.msra.mxu0 0.0
    %449 = vmatprep.subr.mxu0 0.0
    %450 = vmatpush2.msra.mxu0 0.0
    %451 = vmatprep.subr.mxu0 0.0
    %452 = vmatpush2.msra.mxu0 0.0
    %453 = vmatprep.subr.mxu0 0.0
    %454 = vmatpush2.msra.mxu0 0.0
    %455 = vmatprep.subr.mxu0 0.0
    %456 = vmatpush2.msra.mxu0 0.0
    %457 = vmatprep.subr.mxu0 0.0
    %458 = vmatpush2.msra.mxu0 0.0
    %459 = vmatprep.subr.mxu0 0.0
    %460 = vmatpush2.msra.mxu0 0.0
    %461 = vmatprep.subr.mxu0 0.0
    %462 = vmatpush2.msra.mxu0 0.0
    %463 = vmatprep.subr.mxu0 0.0
    %464 = vmatpush2.msra.mxu0 0.0
    %465 = vmatprep.subr.mxu0 0.0
    %466 = vmatpush2.msra.mxu0 0.0
    %467 = vmatprep.subr.mxu0 0.0
    %468 = vmatpush2.msra.mxu0 0.0
    %469 = vmatprep.mubr.f32.mxu0 0.0
    %470 = vmatmul.mubr.f32.gmra.mxu0 %v204
    %v471 = vpop.f32.mrf.mxu0
    %v472 = vadd.f32 0.0, %v471
    %v473 = vpop.f32.mrf.mxu0
    %474 = vmatprep.mubr.f32.mxu0 0.0
    %475 = vmatmul.mubr.f32.gmra.mxu0 %v207
    %v476 = vpop.f32.mrf.mxu0
    %v477 = vadd.f32 0.0, %v476
    %v478 = vpop.f32.mrf.mxu0
    %479 = vmatprep.mubr.f32.mxu0 0.0
    %480 = vmatmul.mubr.f32.gmra.mxu0 %v210
    %v481 = vpop.f32.mrf.mxu0
    %v482 = vadd.f32 0.0, %v481
    %v483 = vpop.f32.mrf.mxu0
    %484 = vmatprep.mubr.f32.mxu0 0.0
    %485 = vmatmul.mubr.f32.gmra.mxu0 %v213
    %v486 = vpop.f32.mrf.mxu0
    %v487 = vadd.f32 0.0, %v486
    %v488 = vpop.f32.mrf.mxu0
    %489 = vmatprep.mubr.f32.mxu0 0.0
    %490 = vmatmul.mubr.f32.gmra.mxu0 %v216
    %v491 = vpop.f32.mrf.mxu0
    %v492 = vadd.f32 0.0, %v491
    %v493 = vpop.f32.mrf.mxu0
    %494 = vmatprep.mubr.f32.mxu0 0.0
    %495 = vmatmul.mubr.f32.gmra.mxu0 %v219
    %v496 = vpop.f32.mrf.mxu0
    %v497 = vadd.f32 0.0, %v496
    %v498 = vpop.f32.mrf.mxu0
    %499 = vmatprep.mubr.f32.mxu0 0.0
    %500 = vmatmul.mubr.f32.gmra.mxu0 %v222
    %v501 = vpop.f32.mrf.mxu0
    %v502 = vadd.f32 0.0, %v501
    %v503 = vpop.f32.mrf.mxu0
    %504 = vmatprep.mubr.f32.mxu0 0.0
    %505 = vmatmul.mubr.f32.gmra.mxu0 %v225
    %v506 = vpop.f32.mrf.mxu0
    %v507 = vadd.f32 0.0, %v506
    %v508 = vpop.f32.mrf.mxu0
    %509 = vmatprep.mubr.f32.mxu0 0.0
    %510 = vmatmul.mubr.f32.gmra.mxu0 %v228
    %v511 = vpop.f32.mrf.mxu0
    %v512 = vadd.f32 0.0, %v511
    %v513 = vpop.f32.mrf.mxu0
    %514 = vmatprep.mubr.f32.mxu0 0.0
    %515 = vmatmul.mubr.f32.gmra.mxu0 %v231
    %v516 = vpop.f32.mrf.mxu0
    %v517 = vadd.f32 0.0, %v516
    %v518 = vpop.f32.mrf.mxu0
    %519 = vmatprep.mubr.f32.mxu0 0.0
    %520 = vmatmul.mubr.f32.gmra.mxu0 %v234
    %v521 = vpop.f32.mrf.mxu0
    %v522 = vadd.f32 0.0, %v521
    %v523 = vpop.f32.mrf.mxu0
    %524 = vmatprep.mubr.f32.mxu0 0.0
    %525 = vmatmul.mubr.f32.gmra.mxu0 %v237
    %v526 = vpop.f32.mrf.mxu0
    %v527 = vadd.f32 0.0, %v526
    %v528 = vpop.f32.mrf.mxu0
    %529 = vmatprep.mubr.f32.mxu0 0.0
    %530 = vmatmul.mubr.f32.gmra.mxu0 %v240
    %v531 = vpop.f32.mrf.mxu0
    %v532 = vadd.f32 0.0, %v531
    %v533 = vpop.f32.mrf.mxu0
    %534 = vmatprep.mubr.f32.mxu0 0.0
    %535 = vmatmul.mubr.f32.gmra.mxu0 %v243
    %v536 = vpop.f32.mrf.mxu0
    %v537 = vadd.f32 0.0, %v536
    %v538 = vpop.f32.mrf.mxu0
    %539 = vmatprep.mubr.f32.mxu0 0.0
    %540 = vmatmul.mubr.f32.gmra.mxu0 %v246
    %v541 = vpop.f32.mrf.mxu0
    %v542 = vadd.f32 0.0, %v541
    %v543 = vpop.f32.mrf.mxu0
    %544 = vmatprep.mubr.f32.mxu0 0.0
    %545 = vmatmul.mubr.f32.gmra.mxu0 %v249
    %v546 = vpop.f32.mrf.mxu0
    %v547 = vadd.f32 0.0, %v546
    %v548 = vpop.f32.mrf.mxu0
    %549 = vmatprep.mubr.f32.mxu0 0.0
    %550 = vmatmul.mubr.f32.gmra.mxu0 %v252
    %v551 = vpop.f32.mrf.mxu0
    %v552 = vadd.f32 0.0, %v551
    %v553 = vpop.f32.mrf.mxu0
    %554 = vmatprep.mubr.f32.mxu0 0.0
    %555 = vmatmul.mubr.f32.gmra.mxu0 %v255
    %v556 = vpop.f32.mrf.mxu0
    %v557 = vadd.f32 0.0, %v556
    %v558 = vpop.f32.mrf.mxu0
    %559 = vmatprep.mubr.f32.mxu0 0.0
    %560 = vmatmul.mubr.f32.gmra.mxu0 %v258
    %v561 = vpop.f32.mrf.mxu0
    %v562 = vadd.f32 0.0, %v561
    %v563 = vpop.f32.mrf.mxu0
    %564 = vmatprep.mubr.f32.mxu0 0.0
    %565 = vmatmul.mubr.f32.gmra.mxu0 %v261
    %v566 = vpop.f32.mrf.mxu0
    %v567 = vadd.f32 0.0, %v566
    %v568 = vpop.f32.mrf.mxu0
    %569 = vmatprep.mubr.f32.mxu0 0.0
    %570 = vmatmul.mubr.f32.gmra.mxu0 %v264
    %v571 = vpop.f32.mrf.mxu0
    %v572 = vadd.f32 0.0, %v571
    %v573 = vpop.f32.mrf.mxu0
    %574 = vmatprep.mubr.f32.mxu0 0.0
    %575 = vmatmul.mubr.f32.gmra.mxu0 %v267
    %v576 = vpop.f32.mrf.mxu0
    %v577 = vadd.f32 0.0, %v576
    %v578 = vpop.f32.mrf.mxu0
    %579 = vmatprep.mubr.f32.mxu0 0.0
    %580 = vmatmul.mubr.f32.gmra.mxu0 %v270
    %v581 = vpop.f32.mrf.mxu0
    %v582 = vadd.f32 0.0, %v581
    %v583 = vpop.f32.mrf.mxu0
    %584 = vmatprep.mubr.f32.mxu0 0.0
    %585 = vmatmul.mubr.f32.gmra.mxu0 %v273
    %v586 = vpop.f32.mrf.mxu0
    %v587 = vadd.f32 0.0, %v586
    %v588 = vpop.f32.mrf.mxu0
    %589 = vmatprep.mubr.f32.mxu0 0.0
    %590 = vmatmul.mubr.f32.gmra.mxu0 %v276
    %v591 = vpop.f32.mrf.mxu0
    %v592 = vadd.f32 0.0, %v591
    %v593 = vpop.f32.mrf.mxu0
    %594 = vmatprep.mubr.f32.mxu0 0.0
    %595 = vmatmul.mubr.f32.gmra.mxu0 %v279
    %v596 = vpop.f32.mrf.mxu0
    %v597 = vadd.f32 0.0, %v596
    %v598 = vpop.f32.mrf.mxu0
    %599 = vmatprep.mubr.f32.mxu0 0.0
    %600 = vmatmul.mubr.f32.gmra.mxu0 %v282
    %v601 = vpop.f32.mrf.mxu0
    %v602 = vadd.f32 0.0, %v601
    %v603 = vpop.f32.mrf.mxu0
    %604 = vmatprep.mubr.f32.mxu0 0.0
    %605 = vmatmul.mubr.f32.gmra.mxu0 %v285
    %v606 = vpop.f32.mrf.mxu0
    %v607 = vadd.f32 0.0, %v606
    %v608 = vpop.f32.mrf.mxu0
    %609 = vmatprep.mubr.f32.mxu0 0.0
    %610 = vmatmul.mubr.f32.gmra.mxu0 %v288
    %v611 = vpop.f32.mrf.mxu0
    %v612 = vadd.f32 0.0, %v611
    %v613 = vpop.f32.mrf.mxu0
    %614 = vmatprep.mubr.f32.mxu0 0.0
    %615 = vmatmul.mubr.f32.gmra.mxu0 %v291
    %v616 = vpop.f32.mrf.mxu0
    %v617 = vadd.f32 0.0, %v616
    %v618 = vpop.f32.mrf.mxu0
    %619 = vmatprep.mubr.f32.mxu0 0.0
    %620 = vmatmul.mubr.f32.gmra.mxu0 %v294
    %v621 = vpop.f32.mrf.mxu0
    %v622 = vadd.f32 0.0, %v621
    %v623 = vpop.f32.mrf.mxu0
    %624 = vmatprep.mubr.f32.mxu0 0.0
    %625 = vmatmul.mubr.f32.gmra.mxu0 %v297
    %v626 = vpop.f32.mrf.mxu0
    %v627 = vadd.f32 0.0, %v626
    %v628 = vpop.f32.mrf.mxu0
    %629 = vmatprep.mubr.f32.mxu0 0.0
    %630 = vmatmul.mubr.f32.gmra.mxu0 %v300
    %v631 = vpop.f32.mrf.mxu0
    %v632 = vadd.f32 0.0, %v631
    %v633 = vpop.f32.mrf.mxu0
    %634 = vmatprep.mubr.f32.mxu0 0.0
    %635 = vmatmul.mubr.f32.gmra.mxu0 %v303
    %v636 = vpop.f32.mrf.mxu0
    %v637 = vadd.f32 0.0, %v636
    %v638 = vpop.f32.mrf.mxu0
    %639 = vmatprep.mubr.f32.mxu0 0.0
    %640 = vmatmul.mubr.f32.gmra.mxu0 %v306
    %v641 = vpop.f32.mrf.mxu0
    %v642 = vadd.f32 0.0, %v641
    %v643 = vpop.f32.mrf.mxu0
    %644 = vmatprep.mubr.f32.mxu0 0.0
    %645 = vmatmul.mubr.f32.gmra.mxu0 %v309
    %v646 = vpop.f32.mrf.mxu0
    %v647 = vadd.f32 0.0, %v646
    %v648 = vpop.f32.mrf.mxu0
    %649 = vmatprep.mubr.f32.mxu0 0.0
    %650 = vmatmul.mubr.f32.gmra.mxu0 %v312
    %v651 = vpop.f32.mrf.mxu0
    %v652 = vadd.f32 0.0, %v651
    %v653 = vpop.f32.mrf.mxu0
    %654 = vmatprep.mubr.f32.mxu0 0.0
    %655 = vmatmul.mubr.f32.gmra.mxu0 %v315
    %v656 = vpop.f32.mrf.mxu0
    %v657 = vadd.f32 0.0, %v656
    %v658 = vpop.f32.mrf.mxu0
    %659 = vmatprep.mubr.f32.mxu0 0.0
    %660 = vmatmul.mubr.f32.gmra.mxu0 %v318
    %v661 = vpop.f32.mrf.mxu0
    %v662 = vadd.f32 0.0, %v661
    %v663 = vpop.f32.mrf.mxu0
    %664 = vmatprep.mubr.f32.mxu0 0.0
    %665 = vmatmul.mubr.f32.gmra.mxu0 %v321
    %v666 = vpop.f32.mrf.mxu0
    %v667 = vadd.f32 0.0, %v666
    %v668 = vpop.f32.mrf.mxu0
    %669 = vmatprep.mubr.f32.mxu0 0.0
    %670 = vmatmul.mubr.f32.gmra.mxu0 %v324
    %v671 = vpop.f32.mrf.mxu0
    %v672 = vadd.f32 0.0, %v671
    %v673 = vpop.f32.mrf.mxu0
    %674 = vmatprep.mubr.f32.mxu0 0.0
    %675 = vmatmul.mubr.f32.gmra.mxu0 %v327
    %v676 = vpop.f32.mrf.mxu0
    %v677 = vadd.f32 0.0, %v676
    %v678 = vpop.f32.mrf.mxu0
    %679 = vmatprep.mubr.f32.mxu0 0.0
    %680 = vmatmul.mubr.f32.gmra.mxu0 %v330
    %v681 = vpop.f32.mrf.mxu0
    %v682 = vadd.f32 0.0, %v681
    %v683 = vpop.f32.mrf.mxu0
    %684 = vmatprep.mubr.f32.mxu0 0.0
    %685 = vmatmul.mubr.f32.gmra.mxu0 %v333
    %v686 = vpop.f32.mrf.mxu0
    %v687 = vadd.f32 0.0, %v686
    %v688 = vpop.f32.mrf.mxu0
    %689 = vmatprep.mubr.f32.mxu0 0.0
    %690 = vmatmul.mubr.f32.gmra.mxu0 %v336
    %v691 = vpop.f32.mrf.mxu0
    %v692 = vadd.f32 0.0, %v691
    %v693 = vpop.f32.mrf.mxu0
    %694 = vmatprep.mubr.f32.mxu0 0.0
    %695 = vmatmul.mubr.f32.gmra.mxu0 %v339
    %v696 = vpop.f32.mrf.mxu0
    %v697 = vadd.f32 0.0, %v696
    %v698 = vpop.f32.mrf.mxu0
    %699 = vmatprep.mubr.f32.mxu0 0.0
    %700 = vmatmul.mubr.f32.gmra.mxu0 %v342
    %v701 = vpop.f32.mrf.mxu0
    %v702 = vadd.f32 0.0, %v701
    %v703 = vpop.f32.mrf.mxu0
    %704 = vmatprep.mubr.f32.mxu0 0.0
    %705 = vmatmul.mubr.f32.gmra.mxu0 %v345
    %v706 = vpop.f32.mrf.mxu0
    %v707 = vadd.f32 0.0, %v706
    %v708 = vpop.f32.mrf.mxu0
    %709 = vmatprep.mubr.f32.mxu0 0.0
    %710 = vmatmul.mubr.f32.gmra.mxu0 %v348
    %v711 = vpop.f32.mrf.mxu0
    %v712 = vadd.f32 0.0, %v711
    %v713 = vpop.f32.mrf.mxu0
    %714 = vmatprep.mubr.f32.mxu0 0.0
    %715 = vmatmul.mubr.f32.gmra.mxu0 %v351
    %v716 = vpop.f32.mrf.mxu0
    %v717 = vadd.f32 0.0, %v716
    %v718 = vpop.f32.mrf.mxu0
    %719 = vmatprep.mubr.f32.mxu0 0.0
    %720 = vmatmul.mubr.f32.gmra.mxu0 %v354
    %v721 = vpop.f32.mrf.mxu0
    %v722 = vadd.f32 0.0, %v721
    %v723 = vpop.f32.mrf.mxu0
    %724 = vmatprep.mubr.f32.mxu0 0.0
    %725 = vmatmul.mubr.f32.gmra.mxu0 %v357
    %v726 = vpop.f32.mrf.mxu0
    %v727 = vadd.f32 0.0, %v726
    %v728 = vpop.f32.mrf.mxu0
    %729 = vmatprep.mubr.f32.mxu0 0.0
    %730 = vmatmul.mubr.f32.gmra.mxu0 %v360
    %v731 = vpop.f32.mrf.mxu0
    %v732 = vadd.f32 0.0, %v731
    %v733 = vpop.f32.mrf.mxu0
    %734 = vmatprep.mubr.f32.mxu0 0.0
    %735 = vmatmul.mubr.f32.gmra.mxu0 %v363
    %v736 = vpop.f32.mrf.mxu0
    %v737 = vadd.f32 0.0, %v736
    %v738 = vpop.f32.mrf.mxu0
    %739 = vmatprep.mubr.f32.mxu0 0.0
    %740 = vmatmul.mubr.f32.gmra.mxu0 %v366
    %v741 = vpop.f32.mrf.mxu0
    %v742 = vadd.f32 0.0, %v741
    %v743 = vpop.f32.mrf.mxu0
    %744 = vmatprep.mubr.f32.mxu0 0.0
    %745 = vmatmul.mubr.f32.gmra.mxu0 %v369
    %v746 = vpop.f32.mrf.mxu0
    %v747 = vadd.f32 0.0, %v746
    %v748 = vpop.f32.mrf.mxu0
    %749 = vmatprep.mubr.f32.mxu0 0.0
    %750 = vmatmul.mubr.f32.gmra.mxu0 %v372
    %v751 = vpop.f32.mrf.mxu0
    %v752 = vadd.f32 0.0, %v751
    %v753 = vpop.f32.mrf.mxu0
    %754 = vmatprep.mubr.f32.mxu0 0.0
    %755 = vmatmul.mubr.f32.gmra.mxu0 %v375
    %v756 = vpop.f32.mrf.mxu0
    %v757 = vadd.f32 0.0, %v756
    %v758 = vpop.f32.mrf.mxu0
    %759 = vmatprep.mubr.f32.mxu0 0.0
    %760 = vmatmul.mubr.f32.gmra.mxu0 %v378
    %v761 = vpop.f32.mrf.mxu0
    %v762 = vadd.f32 0.0, %v761
    %v763 = vpop.f32.mrf.mxu0
    %764 = vmatprep.mubr.f32.mxu0 0.0
    %765 = vmatmul.mubr.f32.gmra.mxu0 %v381
    %v766 = vpop.f32.mrf.mxu0
    %v767 = vadd.f32 0.0, %v766
    %v768 = vpop.f32.mrf.mxu0
    %769 = vmatprep.mubr.f32.mxu0 0.0
    %770 = vmatmul.mubr.f32.gmra.mxu0 %v384
    %v771 = vpop.f32.mrf.mxu0
    %v772 = vadd.f32 0.0, %v771
    %v773 = vpop.f32.mrf.mxu0
    %774 = vmatprep.mubr.f32.mxu0 0.0
    %775 = vmatmul.mubr.f32.gmra.mxu0 %v387
    %v776 = vpop.f32.mrf.mxu0
    %v777 = vadd.f32 0.0, %v776
    %v778 = vpop.f32.mrf.mxu0
    %779 = vmatprep.mubr.f32.mxu0 0.0
    %780 = vmatmul.mubr.f32.gmra.mxu0 %v390
    %v781 = vpop.f32.mrf.mxu0
    %v782 = vadd.f32 0.0, %v781
    %v783 = vpop.f32.mrf.mxu0
    %784 = vmatprep.mubr.f32.mxu0 0.0
    %785 = vmatmul.mubr.f32.gmra.mxu0 %v393
    %v786 = vpop.f32.mrf.mxu0
    %v787 = vadd.f32 0.0, %v786
    %v788 = vpop.f32.mrf.mxu0
    %789 = vmatprep.mubr.f32.mxu0 0.0
    %790 = vmatmul.mubr.f32.gmra.mxu0 %v396
    %v791 = vpop.f32.mrf.mxu0
    %v792 = vadd.f32 0.0, %v791
    %v793 = vpop.f32.mrf.mxu0
    %794 = vmatprep.mubr.f32.mxu0 0.0
    %795 = vmatmul.mubr.f32.gmra.mxu0 %v399
    %v796 = vpop.f32.mrf.mxu0
    %v797 = vadd.f32 0.0, %v796
    %v798 = vpop.f32.mrf.mxu0
    %799 = vdwg.mxu0
    %v800 = vmax.f32 %v472, %v637
    %v801 = vmax.f32 %v477, %v642
    %v802 = vmax.f32 %v482, %v647
    %v803 = vmax.f32 %v487, %v652
    %v804 = vmax.f32 %v492, %v657
    %v805 = vmax.f32 %v497, %v662
    %v806 = vmax.f32 %v502, %v667
    %v807 = vmax.f32 %v507, %v672
    %v808 = vmax.f32 %v512, %v677
    %v809 = vmax.f32 %v517, %v682
    %v810 = vmax.f32 %v522, %v687
    %v811 = vmax.f32 %v527, %v692
    %v812 = vmax.f32 %v532, %v697
    %v813 = vmax.f32 %v537, %v702
    %v814 = vmax.f32 %v542, %v707
    %v815 = vmax.f32 %v547, %v712
    %v816 = vmax.f32 %v552, %v717
    %v817 = vmax.f32 %v557, %v722
    %v818 = vmax.f32 %v562, %v727
    %v819 = vmax.f32 %v567, %v732
    %v820 = vmax.f32 %v572, %v737
    %v821 = vmax.f32 %v577, %v742
    %v822 = vmax.f32 %v582, %v747
    %v823 = vmax.f32 %v587, %v752
    %v824 = vmax.f32 %v592, %v757
    %v825 = vmax.f32 %v597, %v762
    %v826 = vmax.f32 %v602, %v767
    %v827 = vmax.f32 %v607, %v772
    %v828 = vmax.f32 %v612, %v777
    %v829 = vmax.f32 %v617, %v782
    %v830 = vmax.f32 %v622, %v787
    %v831 = vmax.f32 %v627, %v792
    %v832 = vmax.f32 %v632, %v797
    %v833 = vld [vmem:[#allocation4] sm:$0x1]
    %v835 = vlaneseq
    %v836 = vshrl.u32 %v835, 7
    %v837 = vsub.s32 0, %v836
    %v838 = vrot.slane %v833, %v837
    %v840 = vadd.f32 %v800, %v838
    %v841 = vadd.f32 %v801, %v838
    %v842 = vadd.f32 %v802, %v838
    %v843 = vadd.f32 %v803, %v838
    %v844 = vadd.f32 %v804, %v838
    %v845 = vadd.f32 %v805, %v838
    %v846 = vadd.f32 %v806, %v838
    %v847 = vadd.f32 %v807, %v838
    %v848 = vadd.f32 %v808, %v838
    %v849 = vadd.f32 %v809, %v838
    %v850 = vadd.f32 %v810, %v838
    %v851 = vadd.f32 %v811, %v838
    %v852 = vadd.f32 %v812, %v838
    %v853 = vadd.f32 %v813, %v838
    %v854 = vadd.f32 %v814, %v838
    %v855 = vadd.f32 %v815, %v838
    %v856 = vadd.f32 %v816, %v838
    %v857 = vadd.f32 %v817, %v838
    %v858 = vadd.f32 %v818, %v838
    %v859 = vadd.f32 %v819, %v838
    %v860 = vadd.f32 %v820, %v838
    %v861 = vadd.f32 %v821, %v838
    %v862 = vadd.f32 %v822, %v838
    %v863 = vadd.f32 %v823, %v838
    %v864 = vadd.f32 %v824, %v838
    %v865 = vadd.f32 %v825, %v838
    %v866 = vadd.f32 %v826, %v838
    %v867 = vadd.f32 %v827, %v838
    %v868 = vadd.f32 %v828, %v838
    %v869 = vadd.f32 %v829, %v838
    %v870 = vadd.f32 %v830, %v838
    %v871 = vadd.f32 %v831, %v838
    %v872 = vadd.f32 %v832, %v838
    %v873 = vmax.f32 %v840, 0.0
    %v874 = vmax.f32 %v841, 0.0
    %v875 = vmax.f32 %v842, 0.0
    %v876 = vmax.f32 %v843, 0.0
    %v877 = vmax.f32 %v844, 0.0
    %v878 = vmax.f32 %v845, 0.0
    %v879 = vmax.f32 %v846, 0.0
    %v880 = vmax.f32 %v847, 0.0
    %v881 = vmax.f32 %v848, 0.0
    %v882 = vmax.f32 %v849, 0.0
    %v883 = vmax.f32 %v850, 0.0
    %v884 = vmax.f32 %v851, 0.0
    %v885 = vmax.f32 %v852, 0.0
    %v886 = vmax.f32 %v853, 0.0
    %v887 = vmax.f32 %v854, 0.0
    %v888 = vmax.f32 %v855, 0.0
    %v889 = vmax.f32 %v856, 0.0
    %v890 = vmax.f32 %v857, 0.0
    %v891 = vmax.f32 %v858, 0.0
    %v892 = vmax.f32 %v859, 0.0
    %v893 = vmax.f32 %v860, 0.0
    %v894 = vmax.f32 %v861, 0.0
    %v895 = vmax.f32 %v862, 0.0
    %v896 = vmax.f32 %v863, 0.0
    %v897 = vmax.f32 %v864, 0.0
    %v898 = vmax.f32 %v865, 0.0
    %v899 = vmax.f32 %v866, 0.0
    %v900 = vmax.f32 %v867, 0.0
    %v901 = vmax.f32 %v868, 0.0
    %v902 = vmax.f32 %v869, 0.0
    %v903 = vmax.f32 %v870, 0.0
    %v904 = vmax.f32 %v871, 0.0
    %v905 = vmax.f32 %v872, 0.0
    %v906 = vld [vmem:[#allocation6] sm:$0x1]
    %v907 = vld [vmem:[#allocation7] sm:$0x1]
    %v908 = vadd.f32 %v873, %v874
    %v909 = vadd.f32 %v908, %v875
    %v910 = vadd.f32 %v909, %v876
    %v911 = vadd.f32 %v910, %v877
    %v912 = vadd.f32 %v911, %v878
    %v913 = vadd.f32 %v912, %v879
    %v914 = vadd.f32 %v913, %v880
    %v915 = vadd.f32 %v914, %v881
    %v916 = vadd.f32 %v915, %v882
    %v917 = vadd.f32 %v916, %v883
    %v918 = vadd.f32 %v917, %v884
    %v919 = vadd.f32 %v918, %v885
    %v920 = vadd.f32 %v919, %v886
    %v921 = vadd.f32 %v920, %v887
    %v922 = vadd.f32 %v921, %v888
    %v923 = vadd.f32 %v922, %v889
    %v924 = vadd.f32 %v923, %v890
    %v925 = vadd.f32 %v924, %v891
    %v926 = vadd.f32 %v925, %v892
    %v927 = vadd.f32 %v926, %v893
    %v928 = vadd.f32 %v927, %v894
    %v929 = vadd.f32 %v928, %v895
    %v930 = vadd.f32 %v929, %v896
    %v931 = vadd.f32 %v930, %v897
    %v932 = vadd.f32 %v931, %v898
    %v933 = vadd.f32 %v932, %v899
    %v934 = vadd.f32 %v933, %v900
    %v935 = vadd.f32 %v934, %v901
    %v936 = vadd.f32 %v935, %v902
    %v937 = vadd.f32 %v936, %v903
    %v938 = vadd.f32 %v937, %v904
    %v939 = vadd.f32 %v938, %v905
    %v940 = vrot.slane %v939, 4
    %v941 = vadd.f32 %v939, %v940
    %v942 = vrot.slane %v941, 2
    %v943 = vadd.f32 %v941, %v942
    %v944 = vrot.slane %v943, 1
    %v945 = vadd.f32 %v943, %v944
    %v946 = vmul.f32 %v873, %v873
    %v947 = vmul.f32 %v874, %v874
    %v948 = vmul.f32 %v875, %v875
    %v949 = vmul.f32 %v876, %v876
    %v950 = vmul.f32 %v877, %v877
    %v951 = vmul.f32 %v878, %v878
    %v952 = vmul.f32 %v879, %v879
    %v953 = vmul.f32 %v880, %v880
    %v954 = vmul.f32 %v881, %v881
    %v955 = vmul.f32 %v882, %v882
    %v956 = vmul.f32 %v883, %v883
    %v957 = vmul.f32 %v884, %v884
    %v958 = vmul.f32 %v885, %v885
    %v959 = vmul.f32 %v886, %v886
    %v960 = vmul.f32 %v887, %v887
    %v961 = vmul.f32 %v888, %v888
    %v962 = vmul.f32 %v889, %v889
    %v963 = vmul.f32 %v890, %v890
    %v964 = vmul.f32 %v891, %v891
    %v965 = vmul.f32 %v892, %v892
    %v966 = vmul.f32 %v893, %v893
    %v967 = vmul.f32 %v894, %v894
    %v968 = vmul.f32 %v895, %v895
    %v969 = vmul.f32 %v896, %v896
    %v970 = vmul.f32 %v897, %v897
    %v971 = vmul.f32 %v898, %v898
    %v972 = vmul.f32 %v899, %v899
    %v973 = vmul.f32 %v900, %v900
    %v974 = vmul.f32 %v901, %v901
    %v975 = vmul.f32 %v902, %v902
    %v976 = vmul.f32 %v903, %v903
    %v977 = vmul.f32 %v904, %v904
    %v978 = vmul.f32 %v905, %v905
    %v979 = vadd.f32 %v946, %v947
    %v980 = vadd.f32 %v979, %v948
    %v981 = vadd.f32 %v980, %v949
    %v982 = vadd.f32 %v981, %v950
    %v983 = vadd.f32 %v982, %v951
    %v984 = vadd.f32 %v983, %v952
    %v985 = vadd.f32 %v984, %v953
    %v986 = vadd.f32 %v985, %v954
    %v987 = vadd.f32 %v986, %v955
    %v988 = vadd.f32 %v987, %v956
    %v989 = vadd.f32 %v988, %v957
    %v990 = vadd.f32 %v989, %v958
    %v991 = vadd.f32 %v990, %v959
    %v992 = vadd.f32 %v991, %v960
    %v993 = vadd.f32 %v992, %v961
    %v994 = vadd.f32 %v993, %v962
    %v995 = vadd.f32 %v994, %v963
    %v996 = vadd.f32 %v995, %v964
    %v997 = vadd.f32 %v996, %v965
    %v998 = vadd.f32 %v997, %v966
    %v999 = vadd.f32 %v998, %v967
    %v1000 = vadd.f32 %v999, %v968
    %v1001 = vadd.f32 %v1000, %v969
    %v1002 = vadd.f32 %v1001, %v970
    %v1003 = vadd.f32 %v1002, %v971
    %v1004 = vadd.f32 %v1003, %v972
    %v1005 = vadd.f32 %v1004, %v973
    %v1006 = vadd.f32 %v1005, %v974
    %v1007 = vadd.f32 %v1006, %v975
    %v1008 = vadd.f32 %v1007, %v976
    %v1009 = vadd.f32 %v1008, %v977
    %v1010 = vadd.f32 %v1009, %v978
    %v1011 = vrot.slane %v1010, 4
    %v1012 = vadd.f32 %v1010, %v1011
    %v1013 = vrot.slane %v1012, 2
    %v1014 = vadd.f32 %v1012, %v1013
    %v1015 = vrot.slane %v1014, 1
    %v1016 = vadd.f32 %v1014, %v1015
    %v1017 = vmul.f32 %v945, 0.003787879
    %v1018 = vmul.f32 %v1016, 0.003787879
    %v1019 = vmul.f32 %v1017, %v1017
    %v1020 = vsub.f32 %v1018, %v1019
    %v1021 = vmax.f32 %v1020, 0.0
    %v1022 = vadd.f32 %v1021, 1e-05
    %v1023 = vrsqrt.pop %v1022
    %v1024 = vmul.f32 %v906, %v1023
    %v1026 = vlaneseq
    %v1027 = vshrl.u32 %v1026, 7
    %v1028 = vsub.s32 0, %v1027
    %v1029 = vrot.slane %v1024, %v1028
    %v1031 = vmul.f32 %v873, %v1029
    %v1032 = vmul.f32 %v874, %v1029
    %v1033 = vmul.f32 %v875, %v1029
    %v1034 = vmul.f32 %v876, %v1029
    %v1035 = vmul.f32 %v877, %v1029
    %v1036 = vmul.f32 %v878, %v1029
    %v1037 = vmul.f32 %v879, %v1029
    %v1038 = vmul.f32 %v880, %v1029
    %v1039 = vmul.f32 %v881, %v1029
    %v1040 = vmul.f32 %v882, %v1029
    %v1041 = vmul.f32 %v883, %v1029
    %v1042 = vmul.f32 %v884, %v1029
    %v1043 = vmul.f32 %v885, %v1029
    %v1044 = vmul.f32 %v886, %v1029
    %v1045 = vmul.f32 %v887, %v1029
    %v1046 = vmul.f32 %v888, %v1029
    %v1047 = vmul.f32 %v889, %v1029
    %v1048 = vmul.f32 %v890, %v1029
    %v1049 = vmul.f32 %v891, %v1029
    %v1050 = vmul.f32 %v892, %v1029
    %v1051 = vmul.f32 %v893, %v1029
    %v1052 = vmul.f32 %v894, %v1029
    %v1053 = vmul.f32 %v895, %v1029
    %v1054 = vmul.f32 %v896, %v1029
    %v1055 = vmul.f32 %v897, %v1029
    %v1056 = vmul.f32 %v898, %v1029
    %v1057 = vmul.f32 %v899, %v1029
    %v1058 = vmul.f32 %v900, %v1029
    %v1059 = vmul.f32 %v901, %v1029
    %v1060 = vmul.f32 %v902, %v1029
    %v1061 = vmul.f32 %v903, %v1029
    %v1062 = vmul.f32 %v904, %v1029
    %v1063 = vmul.f32 %v905, %v1029
    %v1064 = vmul.f32 %v1017, %v1024
    %v1065 = vsub.f32 %v907, %v1064
    %v1067 = vlaneseq
    %v1068 = vshrl.u32 %v1067, 7
    %v1069 = vsub.s32 0, %v1068
    %v1070 = vrot.slane %v1065, %v1069
    %v1072 = vadd.f32 %v1031, %v1070
    %v1073 = vadd.f32 %v1032, %v1070
    %v1074 = vadd.f32 %v1033, %v1070
    %v1075 = vadd.f32 %v1034, %v1070
    %v1076 = vadd.f32 %v1035, %v1070
    %v1077 = vadd.f32 %v1036, %v1070
    %v1078 = vadd.f32 %v1037, %v1070
    %v1079 = vadd.f32 %v1038, %v1070
    %v1080 = vadd.f32 %v1039, %v1070
    %v1081 = vadd.f32 %v1040, %v1070
    %v1082 = vadd.f32 %v1041, %v1070
    %v1083 = vadd.f32 %v1042, %v1070
    %v1084 = vadd.f32 %v1043, %v1070
    %v1085 = vadd.f32 %v1044, %v1070
    %v1086 = vadd.f32 %v1045, %v1070
    %v1087 = vadd.f32 %v1046, %v1070
    %v1088 = vadd.f32 %v1047, %v1070
    %v1089 = vadd.f32 %v1048, %v1070
    %v1090 = vadd.f32 %v1049, %v1070
    %v1091 = vadd.f32 %v1050, %v1070
    %v1092 = vadd.f32 %v1051, %v1070
    %v1093 = vadd.f32 %v1052, %v1070
    %v1094 = vadd.f32 %v1053, %v1070
    %v1095 = vadd.f32 %v1054, %v1070
    %v1096 = vadd.f32 %v1055, %v1070
    %v1097 = vadd.f32 %v1056, %v1070
    %v1098 = vadd.f32 %v1057, %v1070
    %v1099 = vadd.f32 %v1058, %v1070
    %v1100 = vadd.f32 %v1059, %v1070
    %v1101 = vadd.f32 %v1060, %v1070
    %v1102 = vadd.f32 %v1061, %v1070
    %v1103 = vadd.f32 %v1062, %v1070
    %v1104 = vadd.f32 %v1063, %v1070
    %v1122 = vrot.slane %v1088, 3
    %v1123 = vrot.slane %v1089, 3
    %v1124 = vsel %vm401, %v1122, %v1123
    %v1125 = vrot.slane %v1090, 3
    %v1126 = vsel %vm401, %v1123, %v1125
    %v1127 = vrot.slane %v1091, 3
    %v1128 = vsel %vm401, %v1125, %v1127
    %v1129 = vrot.slane %v1092, 3
    %v1130 = vsel %vm401, %v1127, %v1129
    %v1131 = vrot.slane %v1093, 3
    %v1132 = vsel %vm401, %v1129, %v1131
    %v1133 = vrot.slane %v1094, 3
    %v1134 = vsel %vm401, %v1131, %v1133
    %v1135 = vrot.slane %v1095, 3
    %v1136 = vsel %vm401, %v1133, %v1135
    %v1137 = vrot.slane %v1096, 3
    %v1138 = vsel %vm401, %v1135, %v1137
    %v1139 = vrot.slane %v1097, 3
    %v1140 = vsel %vm401, %v1137, %v1139
    %v1141 = vrot.slane %v1098, 3
    %v1142 = vsel %vm401, %v1139, %v1141
    %v1143 = vrot.slane %v1099, 3
    %v1144 = vsel %vm401, %v1141, %v1143
    %v1145 = vrot.slane %v1100, 3
    %v1146 = vsel %vm401, %v1143, %v1145
    %v1147 = vrot.slane %v1101, 3
    %v1148 = vsel %vm401, %v1145, %v1147
    %v1149 = vrot.slane %v1102, 3
    %v1150 = vsel %vm401, %v1147, %v1149
    %v1151 = vrot.slane %v1103, 3
    %v1152 = vsel %vm401, %v1149, %v1151
    %v1153 = vrot.slane %v1104, 3
    %v1154 = vsel %vm401, %v1151, %v1153
    %vm1172 = vcmask 1040384
    %v1173 = vsel %vm1172, 0.0, %v1124
    %v1174 = vld [vmem:[%s9] sm:$0xff]
    %v1175 = vld [vmem:[%s9 + $0x8] sm:$0xff]
    %v1176 = vld [vmem:[%s9 + $0x10] sm:$0xff]
    %v1177 = vld [vmem:[%s9 + $0x18] sm:$0xff]
    %v1178 = vld [vmem:[%s9 + $0x20] sm:$0xff]
    %v1179 = vld [vmem:[%s9 + $0x28] sm:$0xff]
    %v1180 = vld [vmem:[%s9 + $0x30] sm:$0xff]
    %v1181 = vld [vmem:[%s9 + $0x38] sm:$0xff]
    %v1182 = vld [vmem:[%s9 + $0x40] sm:$0xff]
    %v1183 = vld [vmem:[%s9 + $0x48] sm:$0xff]
    %v1184 = vld [vmem:[%s9 + $0x50] sm:$0xff]
    %v1185 = vld [vmem:[%s9 + $0x58] sm:$0xff]
    %v1186 = vld [vmem:[%s9 + $0x60] sm:$0xff]
    %v1187 = vld [vmem:[%s9 + $0x68] sm:$0xff]
    %v1188 = vld [vmem:[%s9 + $0x70] sm:$0xff]
    %v1189 = vld [vmem:[%s9 + $0x78] sm:$0xff]
    %v1190 = vld [vmem:[%s9 + $0x80] sm:$0xf]
    %1192 = vset.pattern.permute.xlu0 0
    %1193 = vperm.xlu0 %1192, %v1174
    %v1194 = vpop.permute.xlu0 %1193
    %1197 = vset.pattern.permute.xlu0 0
    %1198 = vperm.xlu0 %1197, %v1175
    %v1199 = vpop.permute.xlu0 %1198
    %1202 = vset.pattern.permute.xlu0 0
    %1203 = vperm.xlu0 %1202, %v1176
    %v1204 = vpop.permute.xlu0 %1203
    %1207 = vset.pattern.permute.xlu0 0
    %1208 = vperm.xlu0 %1207, %v1177
    %v1209 = vpop.permute.xlu0 %1208
    %1212 = vset.pattern.permute.xlu0 0
    %1213 = vperm.xlu0 %1212, %v1178
    %v1214 = vpop.permute.xlu0 %1213
    %1217 = vset.pattern.permute.xlu0 0
    %1218 = vperm.xlu0 %1217, %v1179
    %v1219 = vpop.permute.xlu0 %1218
    %1222 = vset.pattern.permute.xlu0 0
    %1223 = vperm.xlu0 %1222, %v1180
    %v1224 = vpop.permute.xlu0 %1223
    %1227 = vset.pattern.permute.xlu0 0
    %1228 = vperm.xlu0 %1227, %v1181
    %v1229 = vpop.permute.xlu0 %1228
    %1232 = vset.pattern.permute.xlu0 0
    %1233 = vperm.xlu0 %1232, %v1182
    %v1234 = vpop.permute.xlu0 %1233
    %1237 = vset.pattern.permute.xlu0 0
    %1238 = vperm.xlu0 %1237, %v1183
    %v1239 = vpop.permute.xlu0 %1238
    %1242 = vset.pattern.permute.xlu0 0
    %1243 = vperm.xlu0 %1242, %v1184
    %v1244 = vpop.permute.xlu0 %1243
    %1247 = vset.pattern.permute.xlu0 0
    %1248 = vperm.xlu0 %1247, %v1185
    %v1249 = vpop.permute.xlu0 %1248
    %1252 = vset.pattern.permute.xlu0 0
    %1253 = vperm.xlu0 %1252, %v1186
    %v1254 = vpop.permute.xlu0 %1253
    %1257 = vset.pattern.permute.xlu0 0
    %1258 = vperm.xlu0 %1257, %v1187
    %v1259 = vpop.permute.xlu0 %1258
    %1262 = vset.pattern.permute.xlu0 0
    %1263 = vperm.xlu0 %1262, %v1188
    %v1264 = vpop.permute.xlu0 %1263
    %1267 = vset.pattern.permute.xlu0 0
    %1268 = vperm.xlu0 %1267, %v1189
    %v1269 = vpop.permute.xlu0 %1268
    %1272 = vset.pattern.permute.xlu0 0
    %1273 = vperm.xlu0 %1272, %v1190
    %v1274 = vpop.permute.xlu0 %1273
    %v1276 = vmul.f32 %v1173, %v1194
    %v1277 = vmul.f32 %v1126, %v1199
    %v1278 = vmul.f32 %v1128, %v1204
    %v1279 = vmul.f32 %v1130, %v1209
    %v1280 = vmul.f32 %v1132, %v1214
    %v1281 = vmul.f32 %v1134, %v1219
    %v1282 = vmul.f32 %v1136, %v1224
    %v1283 = vmul.f32 %v1138, %v1229
    %v1284 = vmul.f32 %v1140, %v1234
    %v1285 = vmul.f32 %v1142, %v1239
    %v1286 = vmul.f32 %v1144, %v1244
    %v1287 = vmul.f32 %v1146, %v1249
    %v1288 = vmul.f32 %v1148, %v1254
    %v1289 = vmul.f32 %v1150, %v1259
    %v1290 = vmul.f32 %v1152, %v1264
    %v1291 = vmul.f32 %v1154, %v1269
    %v1292 = vmul.f32 %v1153, %v1274
    %v1293 = vpack.c.bf16 %v1277, %v1276
    %v1294 = vpack.c.bf16 %v1279, %v1278
    %v1295 = vpack.c.bf16 %v1281, %v1280
    %v1296 = vpack.c.bf16 %v1283, %v1282
    %v1297 = vpack.c.bf16 %v1285, %v1284
    %v1298 = vpack.c.bf16 %v1287, %v1286
    %v1299 = vpack.c.bf16 %v1289, %v1288
    %v1300 = vpack.c.bf16 %v1291, %v1290
    %v1301 = vpack.c.bf16 %v1292, %v1292
    %v1302 = vld [vmem:[#allocation9] sm:$0xf]
    %v1303 = vld [vmem:[#allocation9 + $0x4] sm:$0xf]
    %v1304 = vld [vmem:[#allocation9 + $0x8] sm:$0xf]
    %v1305 = vld [vmem:[#allocation9 + $0xc] sm:$0xf]
    %v1306 = vld [vmem:[#allocation9 + $0x10] sm:$0xf]
    %v1307 = vld [vmem:[#allocation9 + $0x14] sm:$0xf]
    %v1308 = vld [vmem:[#allocation9 + $0x18] sm:$0xf]
    %v1309 = vld [vmem:[#allocation9 + $0x1c] sm:$0xf]
    %v1310 = vld [vmem:[#allocation9 + $0x20] sm:$0xf]
    %v1311 = vld [vmem:[#allocation9 + $0x24] sm:$0xf]
    %v1312 = vld [vmem:[#allocation9 + $0x28] sm:$0xf]
    %v1313 = vld [vmem:[#allocation9 + $0x2c] sm:$0xf]
    %v1314 = vld [vmem:[#allocation9 + $0x30] sm:$0xf]
    %v1315 = vld [vmem:[#allocation9 + $0x34] sm:$0xf]
    %v1316 = vld [vmem:[#allocation9 + $0x38] sm:$0xf]
    %v1317 = vld [vmem:[#allocation9 + $0x3c] sm:$0xf]
    %v1318 = vpack.c.bf16 %v1073, %v1072
    %v1319 = vpack.c.bf16 %v1075, %v1074
    %v1320 = vpack.c.bf16 %v1077, %v1076
    %v1321 = vpack.c.bf16 %v1079, %v1078
    %v1322 = vpack.c.bf16 %v1081, %v1080
    %v1323 = vpack.c.bf16 %v1083, %v1082
    %v1324 = vpack.c.bf16 %v1085, %v1084
    %v1325 = vpack.c.bf16 %v1087, %v1086
    %v1326 = vpack.c.bf16 %v1088, %v1088
    %s1327 = scalar_lea.vmem [#allocation9], 64
    %v1328 = vld [vmem:[%s1327] sm:$0xf]
    %v1329 = vld [vmem:[%s1327 + $0x4] sm:$0xf]
    %v1330 = vld [vmem:[%s1327 + $0x8] sm:$0xf]
    %v1331 = vld [vmem:[%s1327 + $0xc] sm:$0xf]
    %v1332 = vld [vmem:[%s1327 + $0x10] sm:$0xf]
    %v1333 = vld [vmem:[%s1327 + $0x14] sm:$0xf]
    %v1334 = vld [vmem:[%s1327 + $0x18] sm:$0xf]
    %v1335 = vld [vmem:[%s1327 + $0x1c] sm:$0xf]
    %v1336 = vld [vmem:[%s1327 + $0x20] sm:$0xf]
    %v1337 = vld [vmem:[%s1327 + $0x24] sm:$0xf]
    %v1338 = vld [vmem:[%s1327 + $0x28] sm:$0xf]
    %v1339 = vld [vmem:[%s1327 + $0x2c] sm:$0xf]
    %v1340 = vld [vmem:[%s1327 + $0x30] sm:$0xf]
    %v1341 = vld [vmem:[%s1327 + $0x34] sm:$0xf]
    %v1342 = vld [vmem:[%s1327 + $0x38] sm:$0xf]
    %v1343 = vld [vmem:[%s1327 + $0x3c] sm:$0xf]
    %v1360 = vunpack.c.l.b16 %v1328
    %v1361 = vunpack.c.l.b16 %v1329
    %v1362 = vunpack.c.l.b16 %v1330
    %v1363 = vunpack.c.l.b16 %v1331
    %v1364 = vunpack.c.l.b16 %v1332
    %v1365 = vunpack.c.l.b16 %v1333
    %v1366 = vunpack.c.l.b16 %v1334
    %v1367 = vunpack.c.l.b16 %v1335
    %v1368 = vunpack.c.l.b16 %v1336
    %v1369 = vunpack.c.l.b16 %v1337
    %v1370 = vunpack.c.l.b16 %v1338
    %v1371 = vunpack.c.l.b16 %v1339
    %v1372 = vunpack.c.l.b16 %v1340
    %v1373 = vunpack.c.l.b16 %v1341
    %v1374 = vunpack.c.l.b16 %v1342
    %v1375 = vunpack.c.l.b16 %v1343
    %v1376 = vpack.c.b16 %v1361, %v1360
    %v1377 = vpack.c.b16 %v1363, %v1362
    %v1378 = vpack.c.b16 %v1365, %v1364
    %v1379 = vpack.c.b16 %v1367, %v1366
    %v1380 = vpack.c.b16 %v1369, %v1368
    %v1381 = vpack.c.b16 %v1371, %v1370
    %v1382 = vpack.c.b16 %v1373, %v1372
    %v1383 = vpack.c.b16 %v1375, %v1374
    %1392 = vmatprep.subr.bf16.mxu0 0
    %1393 = vmatpush1.bf16.msra.mxu0 %v1383
    %1394 = vmatprep.subr.bf16.mxu0 0
    %1395 = vmatpush1.bf16.msra.mxu0 %v1382
    %1396 = vmatprep.subr.bf16.mxu0 0
    %1397 = vmatpush1.bf16.msra.mxu0 %v1381
    %1398 = vmatprep.subr.bf16.mxu0 0
    %1399 = vmatpush1.bf16.msra.mxu0 %v1380
    %1400 = vmatprep.subr.bf16.mxu0 0
    %1401 = vmatpush1.bf16.msra.mxu0 %v1379
    %1402 = vmatprep.subr.bf16.mxu0 0
    %1403 = vmatpush1.bf16.msra.mxu0 %v1378
    %1404 = vmatprep.subr.bf16.mxu0 0
    %1405 = vmatpush1.bf16.msra.mxu0 %v1377
    %1406 = vmatprep.subr.bf16.mxu0 0
    %1407 = vmatpush1.bf16.msra.mxu0 %v1376
    %1408 = vmatprep.subr.bf16.mxu0 0
    %1409 = vmatpush2.bf16.msra.mxu0 0
    %1410 = vmatprep.subr.bf16.mxu0 0
    %1411 = vmatpush2.bf16.msra.mxu0 0
    %1412 = vmatprep.subr.bf16.mxu0 0
    %1413 = vmatpush2.bf16.msra.mxu0 0
    %1414 = vmatprep.subr.bf16.mxu0 0
    %1415 = vmatpush2.bf16.msra.mxu0 0
    %1416 = vmatprep.subr.bf16.mxu0 0
    %1417 = vmatpush2.bf16.msra.mxu0 0
    %1418 = vmatprep.subr.bf16.mxu0 0
    %1419 = vmatpush2.bf16.msra.mxu0 0
    %1420 = vmatprep.subr.bf16.mxu0 0
    %1421 = vmatpush2.bf16.msra.mxu0 0
    %1422 = vmatprep.subr.bf16.mxu0 0
    %1423 = vmatpush2.bf16.msra.mxu0 0
    %1424 = vmatprep.mubr.bf16.mxu0 0
    %1425 = vmatmul.mubr.bf16.gmra.mxu0 %v1318
    %v1426 = vpop.f32.mrf.mxu0
    %v1427 = vadd.f32 0.0, %v1426
    %v1428 = vpop.f32.mrf.mxu0
    %v1429 = vpop.f32.mrf.mxu0
    %v1430 = vadd.f32 0.0, %v1429
    %v1431 = vpop.f32.mrf.mxu0
    %1432 = vmatprep.mubr.bf16.mxu0 0
    %1433 = vmatmul.mubr.bf16.gmra.mxu0 %v1319
    %v1434 = vpop.f32.mrf.mxu0
    %v1435 = vadd.f32 0.0, %v1434
    %v1436 = vpop.f32.mrf.mxu0
    %v1437 = vpop.f32.mrf.mxu0
    %v1438 = vadd.f32 0.0, %v1437
    %v1439 = vpop.f32.mrf.mxu0
    %1440 = vmatprep.mubr.bf16.mxu0 0
    %1441 = vmatmul.mubr.bf16.gmra.mxu0 %v1320
    %v1442 = vpop.f32.mrf.mxu0
    %v1443 = vadd.f32 0.0, %v1442
    %v1444 = vpop.f32.mrf.mxu0
    %v1445 = vpop.f32.mrf.mxu0
    %v1446 = vadd.f32 0.0, %v1445
    %v1447 = vpop.f32.mrf.mxu0
    %1448 = vmatprep.mubr.bf16.mxu0 0
    %1449 = vmatmul.mubr.bf16.gmra.mxu0 %v1321
    %v1450 = vpop.f32.mrf.mxu0
    %v1451 = vadd.f32 0.0, %v1450
    %v1452 = vpop.f32.mrf.mxu0
    %v1453 = vpop.f32.mrf.mxu0
    %v1454 = vadd.f32 0.0, %v1453
    %v1455 = vpop.f32.mrf.mxu0
    %1456 = vmatprep.mubr.bf16.mxu0 0
    %1457 = vmatmul.mubr.bf16.gmra.mxu0 %v1322
    %v1458 = vpop.f32.mrf.mxu0
    %v1459 = vadd.f32 0.0, %v1458
    %v1460 = vpop.f32.mrf.mxu0
    %v1461 = vpop.f32.mrf.mxu0
    %v1462 = vadd.f32 0.0, %v1461
    %v1463 = vpop.f32.mrf.mxu0
    %1464 = vmatprep.mubr.bf16.mxu0 0
    %1465 = vmatmul.mubr.bf16.gmra.mxu0 %v1323
    %v1466 = vpop.f32.mrf.mxu0
    %v1467 = vadd.f32 0.0, %v1466
    %v1468 = vpop.f32.mrf.mxu0
    %v1469 = vpop.f32.mrf.mxu0
    %v1470 = vadd.f32 0.0, %v1469
    %v1471 = vpop.f32.mrf.mxu0
    %1472 = vmatprep.mubr.bf16.mxu0 0
    %1473 = vmatmul.mubr.bf16.gmra.mxu0 %v1324
    %v1474 = vpop.f32.mrf.mxu0
    %v1475 = vadd.f32 0.0, %v1474
    %v1476 = vpop.f32.mrf.mxu0
    %v1477 = vpop.f32.mrf.mxu0
    %v1478 = vadd.f32 0.0, %v1477
    %v1479 = vpop.f32.mrf.mxu0
    %1480 = vmatprep.mubr.bf16.mxu0 0
    %1481 = vmatmul.mubr.bf16.gmra.mxu0 %v1325
    %v1482 = vpop.f32.mrf.mxu0
    %v1483 = vadd.f32 0.0, %v1482
    %v1484 = vpop.f32.mrf.mxu0
    %v1485 = vpop.f32.mrf.mxu0
    %v1486 = vadd.f32 0.0, %v1485
    %v1487 = vpop.f32.mrf.mxu0
    %1488 = vmatprep.mubr.bf16.mxu0 0
    %1489 = vmatmul.mubr.bf16.gmra.mxu0 %v1326
    %v1490 = vpop.f32.mrf.mxu0
    %v1491 = vadd.f32 0.0, %v1490
    %v1492 = vpop.f32.mrf.mxu0
    %v1493 = vpop.f32.mrf.mxu0
    %v1494 = vpop.f32.mrf.mxu0
    %1495 = vdwg.mxu0
    %v1512 = vunpack.c.l.b16 %v1302
    %v1513 = vunpack.c.l.b16 %v1303
    %v1514 = vunpack.c.l.b16 %v1304
    %v1515 = vunpack.c.l.b16 %v1305
    %v1516 = vunpack.c.l.b16 %v1306
    %v1517 = vunpack.c.l.b16 %v1307
    %v1518 = vunpack.c.l.b16 %v1308
    %v1519 = vunpack.c.l.b16 %v1309
    %v1520 = vunpack.c.l.b16 %v1310
    %v1521 = vunpack.c.l.b16 %v1311
    %v1522 = vunpack.c.l.b16 %v1312
    %v1523 = vunpack.c.l.b16 %v1313
    %v1524 = vunpack.c.l.b16 %v1314
    %v1525 = vunpack.c.l.b16 %v1315
    %v1526 = vunpack.c.l.b16 %v1316
    %v1527 = vunpack.c.l.b16 %v1317
    %v1528 = vpack.c.b16 %v1513, %v1512
    %v1529 = vpack.c.b16 %v1515, %v1514
    %v1530 = vpack.c.b16 %v1517, %v1516
    %v1531 = vpack.c.b16 %v1519, %v1518
    %v1532 = vpack.c.b16 %v1521, %v1520
    %v1533 = vpack.c.b16 %v1523, %v1522
    %v1534 = vpack.c.b16 %v1525, %v1524
    %v1535 = vpack.c.b16 %v1527, %v1526
    %1544 = vmatprep.subr.bf16.mxu0 0
    %1545 = vmatpush1.bf16.msra.mxu0 %v1535
    %1546 = vmatprep.subr.bf16.mxu0 0
    %1547 = vmatpush1.bf16.msra.mxu0 %v1534
    %1548 = vmatprep.subr.bf16.mxu0 0
    %1549 = vmatpush1.bf16.msra.mxu0 %v1533
    %1550 = vmatprep.subr.bf16.mxu0 0
    %1551 = vmatpush1.bf16.msra.mxu0 %v1532
    %1552 = vmatprep.subr.bf16.mxu0 0
    %1553 = vmatpush1.bf16.msra.mxu0 %v1531
    %1554 = vmatprep.subr.bf16.mxu0 0
    %1555 = vmatpush1.bf16.msra.mxu0 %v1530
    %1556 = vmatprep.subr.bf16.mxu0 0
    %1557 = vmatpush1.bf16.msra.mxu0 %v1529
    %1558 = vmatprep.subr.bf16.mxu0 0
    %1559 = vmatpush1.bf16.msra.mxu0 %v1528
    %1560 = vmatprep.subr.bf16.mxu0 0
    %1561 = vmatpush2.bf16.msra.mxu0 0
    %1562 = vmatprep.subr.bf16.mxu0 0
    %1563 = vmatpush2.bf16.msra.mxu0 0
    %1564 = vmatprep.subr.bf16.mxu0 0
    %1565 = vmatpush2.bf16.msra.mxu0 0
    %1566 = vmatprep.subr.bf16.mxu0 0
    %1567 = vmatpush2.bf16.msra.mxu0 0
    %1568 = vmatprep.subr.bf16.mxu0 0
    %1569 = vmatpush2.bf16.msra.mxu0 0
    %1570 = vmatprep.subr.bf16.mxu0 0
    %1571 = vmatpush2.bf16.msra.mxu0 0
    %1572 = vmatprep.subr.bf16.mxu0 0
    %1573 = vmatpush2.bf16.msra.mxu0 0
    %1574 = vmatprep.subr.bf16.mxu0 0
    %1575 = vmatpush2.bf16.msra.mxu0 0
    %1576 = vmatprep.mubr.bf16.mxu0 0
    %1577 = vmatmul.mubr.bf16.gmra.mxu0 %v1293
    %v1578 = vpop.f32.mrf.mxu0
    %v1579 = vadd.f32 %v1427, %v1578
    %v1580 = vpop.f32.mrf.mxu0
    %v1581 = vpop.f32.mrf.mxu0
    %v1582 = vadd.f32 %v1430, %v1581
    %v1583 = vpop.f32.mrf.mxu0
    %1584 = vmatprep.mubr.bf16.mxu0 0
    %1585 = vmatmul.mubr.bf16.gmra.mxu0 %v1294
    %v1586 = vpop.f32.mrf.mxu0
    %v1587 = vadd.f32 %v1435, %v1586
    %v1588 = vpop.f32.mrf.mxu0
    %v1589 = vpop.f32.mrf.mxu0
    %v1590 = vadd.f32 %v1438, %v1589
    %v1591 = vpop.f32.mrf.mxu0
    %1592 = vmatprep.mubr.bf16.mxu0 0
    %1593 = vmatmul.mubr.bf16.gmra.mxu0 %v1295
    %v1594 = vpop.f32.mrf.mxu0
    %v1595 = vadd.f32 %v1443, %v1594
    %v1596 = vpop.f32.mrf.mxu0
    %v1597 = vpop.f32.mrf.mxu0
    %v1598 = vadd.f32 %v1446, %v1597
    %v1599 = vpop.f32.mrf.mxu0
    %1600 = vmatprep.mubr.bf16.mxu0 0
    %1601 = vmatmul.mubr.bf16.gmra.mxu0 %v1296
    %v1602 = vpop.f32.mrf.mxu0
    %v1603 = vadd.f32 %v1451, %v1602
    %v1604 = vpop.f32.mrf.mxu0
    %v1605 = vpop.f32.mrf.mxu0
    %v1606 = vadd.f32 %v1454, %v1605
    %v1607 = vpop.f32.mrf.mxu0
    %1608 = vmatprep.mubr.bf16.mxu0 0
    %1609 = vmatmul.mubr.bf16.gmra.mxu0 %v1297
    %v1610 = vpop.f32.mrf.mxu0
    %v1611 = vadd.f32 %v1459, %v1610
    %v1612 = vpop.f32.mrf.mxu0
    %v1613 = vpop.f32.mrf.mxu0
    %v1614 = vadd.f32 %v1462, %v1613
    %v1615 = vpop.f32.mrf.mxu0
    %1616 = vmatprep.mubr.bf16.mxu0 0
    %1617 = vmatmul.mubr.bf16.gmra.mxu0 %v1298
    %v1618 = vpop.f32.mrf.mxu0
    %v1619 = vadd.f32 %v1467, %v1618
    %v1620 = vpop.f32.mrf.mxu0
    %v1621 = vpop.f32.mrf.mxu0
    %v1622 = vadd.f32 %v1470, %v1621
    %v1623 = vpop.f32.mrf.mxu0
    %1624 = vmatprep.mubr.bf16.mxu0 0
    %1625 = vmatmul.mubr.bf16.gmra.mxu0 %v1299
    %v1626 = vpop.f32.mrf.mxu0
    %v1627 = vadd.f32 %v1475, %v1626
    %v1628 = vpop.f32.mrf.mxu0
    %v1629 = vpop.f32.mrf.mxu0
    %v1630 = vadd.f32 %v1478, %v1629
    %v1631 = vpop.f32.mrf.mxu0
    %1632 = vmatprep.mubr.bf16.mxu0 0
    %1633 = vmatmul.mubr.bf16.gmra.mxu0 %v1300
    %v1634 = vpop.f32.mrf.mxu0
    %v1635 = vadd.f32 %v1483, %v1634
    %v1636 = vpop.f32.mrf.mxu0
    %v1637 = vpop.f32.mrf.mxu0
    %v1638 = vadd.f32 %v1486, %v1637
    %v1639 = vpop.f32.mrf.mxu0
    %1640 = vmatprep.mubr.bf16.mxu0 0
    %1641 = vmatmul.mubr.bf16.gmra.mxu0 %v1301
    %v1642 = vpop.f32.mrf.mxu0
    %v1643 = vadd.f32 %v1491, %v1642
    %v1644 = vpop.f32.mrf.mxu0
    %v1645 = vpop.f32.mrf.mxu0
    %v1646 = vpop.f32.mrf.mxu0
    %1647 = vdwg.mxu0
    %v1648 = vpack.c.bf16 %v1089, %v1088
    %v1649 = vpack.c.bf16 %v1091, %v1090
    %v1650 = vpack.c.bf16 %v1093, %v1092
    %v1651 = vpack.c.bf16 %v1095, %v1094
    %v1652 = vpack.c.bf16 %v1097, %v1096
    %v1653 = vpack.c.bf16 %v1099, %v1098
    %v1654 = vpack.c.bf16 %v1101, %v1100
    %v1655 = vpack.c.bf16 %v1103, %v1102
    %v1656 = vpack.c.bf16 %v1104, %v1104
    %s1657 = scalar_lea.vmem [#allocation9], 128
    %v1658 = vld [vmem:[%s1657] sm:$0xf]
    %v1659 = vld [vmem:[%s1657 + $0x4] sm:$0xf]
    %v1660 = vld [vmem:[%s1657 + $0x8] sm:$0xf]
    %v1661 = vld [vmem:[%s1657 + $0xc] sm:$0xf]
    %v1662 = vld [vmem:[%s1657 + $0x10] sm:$0xf]
    %v1663 = vld [vmem:[%s1657 + $0x14] sm:$0xf]
    %v1664 = vld [vmem:[%s1657 + $0x18] sm:$0xf]
    %v1665 = vld [vmem:[%s1657 + $0x1c] sm:$0xf]
    %v1666 = vld [vmem:[%s1657 + $0x20] sm:$0xf]
    %v1667 = vld [vmem:[%s1657 + $0x24] sm:$0xf]
    %v1668 = vld [vmem:[%s1657 + $0x28] sm:$0xf]
    %v1669 = vld [vmem:[%s1657 + $0x2c] sm:$0xf]
    %v1670 = vld [vmem:[%s1657 + $0x30] sm:$0xf]
    %v1671 = vld [vmem:[%s1657 + $0x34] sm:$0xf]
    %v1672 = vld [vmem:[%s1657 + $0x38] sm:$0xf]
    %v1673 = vld [vmem:[%s1657 + $0x3c] sm:$0xf]
    %vm1683 = vcmask 1045504
    %v1684 = vrot.slane %v1648, 2
    %v1685 = vrot.slane %v1649, 2
    %v1686 = vsel %vm1683, %v1684, %v1685
    %v1687 = vrot.slane %v1650, 2
    %v1688 = vsel %vm1683, %v1685, %v1687
    %v1689 = vrot.slane %v1651, 2
    %v1690 = vsel %vm1683, %v1687, %v1689
    %v1691 = vrot.slane %v1652, 2
    %v1692 = vsel %vm1683, %v1689, %v1691
    %v1693 = vrot.slane %v1653, 2
    %v1694 = vsel %vm1683, %v1691, %v1693
    %v1695 = vrot.slane %v1654, 2
    %v1696 = vsel %vm1683, %v1693, %v1695
    %v1697 = vrot.slane %v1655, 2
    %v1698 = vsel %vm1683, %v1695, %v1697
    %v1699 = vrot.slane %v1656, 2
    %v1700 = vsel %vm1683, %v1697, %v1699
    %v1726 = vunpack.c.l.b16 %v1658
    %v1727 = vunpack.c.l.b16 %v1659
    %v1728 = vunpack.c.l.b16 %v1660
    %v1729 = vunpack.c.l.b16 %v1661
    %v1730 = vunpack.c.l.b16 %v1662
    %v1731 = vunpack.c.l.b16 %v1663
    %v1732 = vunpack.c.l.b16 %v1664
    %v1733 = vunpack.c.l.b16 %v1665
    %v1734 = vunpack.c.l.b16 %v1666
    %v1735 = vunpack.c.l.b16 %v1667
    %v1736 = vunpack.c.l.b16 %v1668
    %v1737 = vunpack.c.l.b16 %v1669
    %v1738 = vunpack.c.l.b16 %v1670
    %v1739 = vunpack.c.l.b16 %v1671
    %v1740 = vunpack.c.l.b16 %v1672
    %v1741 = vunpack.c.l.b16 %v1673
    %v1742 = vpack.c.b16 %v1727, %v1726
    %v1743 = vpack.c.b16 %v1729, %v1728
    %v1744 = vpack.c.b16 %v1731, %v1730
    %v1745 = vpack.c.b16 %v1733, %v1732
    %v1746 = vpack.c.b16 %v1735, %v1734
    %v1747 = vpack.c.b16 %v1737, %v1736
    %v1748 = vpack.c.b16 %v1739, %v1738
    %v1749 = vpack.c.b16 %v1741, %v1740
    %1758 = vmatprep.subr.bf16.mxu0 0
    %1759 = vmatpush1.bf16.msra.mxu0 %v1749
    %1760 = vmatprep.subr.bf16.mxu0 0
    %1761 = vmatpush1.bf16.msra.mxu0 %v1748
    %1762 = vmatprep.subr.bf16.mxu0 0
    %1763 = vmatpush1.bf16.msra.mxu0 %v1747
    %1764 = vmatprep.subr.bf16.mxu0 0
    %1765 = vmatpush1.bf16.msra.mxu0 %v1746
    %1766 = vmatprep.subr.bf16.mxu0 0
    %1767 = vmatpush1.bf16.msra.mxu0 %v1745
    %1768 = vmatprep.subr.bf16.mxu0 0
    %1769 = vmatpush1.bf16.msra.mxu0 %v1744
    %1770 = vmatprep.subr.bf16.mxu0 0
    %1771 = vmatpush1.bf16.msra.mxu0 %v1743
    %1772 = vmatprep.subr.bf16.mxu0 0
    %1773 = vmatpush1.bf16.msra.mxu0 %v1742
    %1774 = vmatprep.subr.bf16.mxu0 0
    %1775 = vmatpush2.bf16.msra.mxu0 0
    %1776 = vmatprep.subr.bf16.mxu0 0
    %1777 = vmatpush2.bf16.msra.mxu0 0
    %1778 = vmatprep.subr.bf16.mxu0 0
    %1779 = vmatpush2.bf16.msra.mxu0 0
    %1780 = vmatprep.subr.bf16.mxu0 0
    %1781 = vmatpush2.bf16.msra.mxu0 0
    %1782 = vmatprep.subr.bf16.mxu0 0
    %1783 = vmatpush2.bf16.msra.mxu0 0
    %1784 = vmatprep.subr.bf16.mxu0 0
    %1785 = vmatpush2.bf16.msra.mxu0 0
    %1786 = vmatprep.subr.bf16.mxu0 0
    %1787 = vmatpush2.bf16.msra.mxu0 0
    %1788 = vmatprep.subr.bf16.mxu0 0
    %1789 = vmatpush2.bf16.msra.mxu0 0
    %1790 = vmatprep.mubr.bf16.mxu0 0
    %1791 = vmatmul.mubr.bf16.gmra.mxu0 %v1686
    %v1792 = vpop.f32.mrf.mxu0
    %v1793 = vadd.f32 0.0, %v1792
    %v1794 = vpop.f32.mrf.mxu0
    %v1795 = vpop.f32.mrf.mxu0
    %v1796 = vadd.f32 0.0, %v1795
    %v1797 = vpop.f32.mrf.mxu0
    %1798 = vmatprep.mubr.bf16.mxu0 0
    %1799 = vmatmul.mubr.bf16.gmra.mxu0 %v1688
    %v1800 = vpop.f32.mrf.mxu0
    %v1801 = vadd.f32 0.0, %v1800
    %v1802 = vpop.f32.mrf.mxu0
    %v1803 = vpop.f32.mrf.mxu0
    %v1804 = vadd.f32 0.0, %v1803
    %v1805 = vpop.f32.mrf.mxu0
    %1806 = vmatprep.mubr.bf16.mxu0 0
    %1807 = vmatmul.mubr.bf16.gmra.mxu0 %v1690
    %v1808 = vpop.f32.mrf.mxu0
    %v1809 = vadd.f32 0.0, %v1808
    %v1810 = vpop.f32.mrf.mxu0
    %v1811 = vpop.f32.mrf.mxu0
    %v1812 = vadd.f32 0.0, %v1811
    %v1813 = vpop.f32.mrf.mxu0
    %1814 = vmatprep.mubr.bf16.mxu0 0
    %1815 = vmatmul.mubr.bf16.gmra.mxu0 %v1692
    %v1816 = vpop.f32.mrf.mxu0
    %v1817 = vadd.f32 0.0, %v1816
    %v1818 = vpop.f32.mrf.mxu0
    %v1819 = vpop.f32.mrf.mxu0
    %v1820 = vadd.f32 0.0, %v1819
    %v1821 = vpop.f32.mrf.mxu0
    %1822 = vmatprep.mubr.bf16.mxu0 0
    %1823 = vmatmul.mubr.bf16.gmra.mxu0 %v1694
    %v1824 = vpop.f32.mrf.mxu0
    %v1825 = vadd.f32 0.0, %v1824
    %v1826 = vpop.f32.mrf.mxu0
    %v1827 = vpop.f32.mrf.mxu0
    %v1828 = vadd.f32 0.0, %v1827
    %v1829 = vpop.f32.mrf.mxu0
    %1830 = vmatprep.mubr.bf16.mxu0 0
    %1831 = vmatmul.mubr.bf16.gmra.mxu0 %v1696
    %v1832 = vpop.f32.mrf.mxu0
    %v1833 = vadd.f32 0.0, %v1832
    %v1834 = vpop.f32.mrf.mxu0
    %v1835 = vpop.f32.mrf.mxu0
    %v1836 = vadd.f32 0.0, %v1835
    %v1837 = vpop.f32.mrf.mxu0
    %1838 = vmatprep.mubr.bf16.mxu0 0
    %1839 = vmatmul.mubr.bf16.gmra.mxu0 %v1698
    %v1840 = vpop.f32.mrf.mxu0
    %v1841 = vadd.f32 0.0, %v1840
    %v1842 = vpop.f32.mrf.mxu0
    %v1843 = vpop.f32.mrf.mxu0
    %v1844 = vadd.f32 0.0, %v1843
    %v1845 = vpop.f32.mrf.mxu0
    %1846 = vmatprep.mubr.bf16.mxu0 0
    %1847 = vmatmul.mubr.bf16.gmra.mxu0 %v1700
    %v1848 = vpop.f32.mrf.mxu0
    %v1849 = vadd.f32 0.0, %v1848
    %v1850 = vpop.f32.mrf.mxu0
    %v1851 = vpop.f32.mrf.mxu0
    %v1852 = vadd.f32 0.0, %v1851
    %v1853 = vpop.f32.mrf.mxu0
    %1854 = vmatprep.mubr.bf16.mxu0 0
    %1855 = vmatmul.mubr.bf16.gmra.mxu0 %v1699
    %v1856 = vpop.f32.mrf.mxu0
    %v1857 = vadd.f32 0.0, %v1856
    %v1858 = vpop.f32.mrf.mxu0
    %v1859 = vpop.f32.mrf.mxu0
    %v1860 = vpop.f32.mrf.mxu0
    %1861 = vdwg.mxu0
    %v1862 = vadd.f32 %v1579, %v1793
    %v1863 = vadd.f32 %v1582, %v1796
    %v1864 = vadd.f32 %v1587, %v1801
    %v1865 = vadd.f32 %v1590, %v1804
    %v1866 = vadd.f32 %v1595, %v1809
    %v1867 = vadd.f32 %v1598, %v1812
    %v1868 = vadd.f32 %v1603, %v1817
    %v1869 = vadd.f32 %v1606, %v1820
    %v1870 = vadd.f32 %v1611, %v1825
    %v1871 = vadd.f32 %v1614, %v1828
    %v1872 = vadd.f32 %v1619, %v1833
    %v1873 = vadd.f32 %v1622, %v1836
    %v1874 = vadd.f32 %v1627, %v1841
    %v1875 = vadd.f32 %v1630, %v1844
    %v1876 = vadd.f32 %v1635, %v1849
    %v1877 = vadd.f32 %v1638, %v1852
    %v1878 = vadd.f32 %v1643, %v1857
    %v1879 = vld [vmem:[#allocation10] sm:$0x1]
    %v1881 = vlaneseq
    %v1882 = vshrl.u32 %v1881, 7
    %v1883 = vsub.s32 0, %v1882
    %v1884 = vrot.slane %v1879, %v1883
    %v1886 = vadd.f32 %v1862, %v1884
    %v1887 = vadd.f32 %v1863, %v1884
    %v1888 = vadd.f32 %v1864, %v1884
    %v1889 = vadd.f32 %v1865, %v1884
    %v1890 = vadd.f32 %v1866, %v1884
    %v1891 = vadd.f32 %v1867, %v1884
    %v1892 = vadd.f32 %v1868, %v1884
    %v1893 = vadd.f32 %v1869, %v1884
    %v1894 = vadd.f32 %v1870, %v1884
    %v1895 = vadd.f32 %v1871, %v1884
    %v1896 = vadd.f32 %v1872, %v1884
    %v1897 = vadd.f32 %v1873, %v1884
    %v1898 = vadd.f32 %v1874, %v1884
    %v1899 = vadd.f32 %v1875, %v1884
    %v1900 = vadd.f32 %v1876, %v1884
    %v1901 = vadd.f32 %v1877, %v1884
    %v1902 = vadd.f32 %v1878, %v1884
    %v1903 = vmax.f32 %v1886, 0.0
    %v1904 = vmax.f32 %v1887, 0.0
    %v1905 = vmax.f32 %v1888, 0.0
    %v1906 = vmax.f32 %v1889, 0.0
    %v1907 = vmax.f32 %v1890, 0.0
    %v1908 = vmax.f32 %v1891, 0.0
    %v1909 = vmax.f32 %v1892, 0.0
    %v1910 = vmax.f32 %v1893, 0.0
    %v1911 = vmax.f32 %v1894, 0.0
    %v1912 = vmax.f32 %v1895, 0.0
    %v1913 = vmax.f32 %v1896, 0.0
    %v1914 = vmax.f32 %v1897, 0.0
    %v1915 = vmax.f32 %v1898, 0.0
    %v1916 = vmax.f32 %v1899, 0.0
    %v1917 = vmax.f32 %v1900, 0.0
    %v1918 = vmax.f32 %v1901, 0.0
    %v1919 = vmax.f32 %v1902, 0.0
    %v1920 = vld [vmem:[#allocation12] sm:$0x1]
    %v1921 = vld [vmem:[#allocation13] sm:$0x1]
    %v1922 = vadd.f32 %v1903, %v1904
    %v1923 = vadd.f32 %v1922, %v1905
    %v1924 = vadd.f32 %v1923, %v1906
    %v1925 = vadd.f32 %v1924, %v1907
    %v1926 = vadd.f32 %v1925, %v1908
    %v1927 = vadd.f32 %v1926, %v1909
    %v1928 = vadd.f32 %v1927, %v1910
    %v1929 = vadd.f32 %v1928, %v1911
    %v1930 = vadd.f32 %v1929, %v1912
    %v1931 = vadd.f32 %v1930, %v1913
    %v1932 = vadd.f32 %v1931, %v1914
    %v1933 = vadd.f32 %v1932, %v1915
    %v1934 = vadd.f32 %v1933, %v1916
    %v1935 = vadd.f32 %v1934, %v1917
    %v1936 = vadd.f32 %v1935, %v1918
    %vm1937 = vcmask 1043456
    %v1938 = vsel %vm1937, %v1919, 0.0
    %v1939 = vadd.f32 %v1936, %v1938
    %v1940 = vrot.slane %v1939, 4
    %v1941 = vadd.f32 %v1939, %v1940
    %v1942 = vrot.slane %v1941, 2
    %v1943 = vadd.f32 %v1941, %v1942
    %v1944 = vrot.slane %v1943, 1
    %v1945 = vadd.f32 %v1943, %v1944
    %v1946 = vmul.f32 %v1903, %v1903
    %v1947 = vmul.f32 %v1904, %v1904
    %v1948 = vmul.f32 %v1905, %v1905
    %v1949 = vmul.f32 %v1906, %v1906
    %v1950 = vmul.f32 %v1907, %v1907
    %v1951 = vmul.f32 %v1908, %v1908
    %v1952 = vmul.f32 %v1909, %v1909
    %v1953 = vmul.f32 %v1910, %v1910
    %v1954 = vmul.f32 %v1911, %v1911
    %v1955 = vmul.f32 %v1912, %v1912
    %v1956 = vmul.f32 %v1913, %v1913
    %v1957 = vmul.f32 %v1914, %v1914
    %v1958 = vmul.f32 %v1915, %v1915
    %v1959 = vmul.f32 %v1916, %v1916
    %v1960 = vmul.f32 %v1917, %v1917
    %v1961 = vmul.f32 %v1918, %v1918
    %v1962 = vmul.f32 %v1919, %v1919
    %v1963 = vadd.f32 %v1946, %v1947
    %v1964 = vadd.f32 %v1963, %v1948
    %v1965 = vadd.f32 %v1964, %v1949
    %v1966 = vadd.f32 %v1965, %v1950
    %v1967 = vadd.f32 %v1966, %v1951
    %v1968 = vadd.f32 %v1967, %v1952
    %v1969 = vadd.f32 %v1968, %v1953
    %v1970 = vadd.f32 %v1969, %v1954
    %v1971 = vadd.f32 %v1970, %v1955
    %v1972 = vadd.f32 %v1971, %v1956
    %v1973 = vadd.f32 %v1972, %v1957
    %v1974 = vadd.f32 %v1973, %v1958
    %v1975 = vadd.f32 %v1974, %v1959
    %v1976 = vadd.f32 %v1975, %v1960
    %v1977 = vadd.f32 %v1976, %v1961
    %v1978 = vsel %vm1937, %v1962, 0.0
    %v1979 = vadd.f32 %v1977, %v1978
    %v1980 = vrot.slane %v1979, 4
    %v1981 = vadd.f32 %v1979, %v1980
    %v1982 = vrot.slane %v1981, 2
    %v1983 = vadd.f32 %v1981, %v1982
    %v1984 = vrot.slane %v1983, 1
    %v1985 = vadd.f32 %v1983, %v1984
    %v1986 = vmul.f32 %v1945, 0.007575758
    %v1987 = vmul.f32 %v1985, 0.007575758
    %v1988 = vmul.f32 %v1986, %v1986
    %v1989 = vsub.f32 %v1987, %v1988
    %v1990 = vmax.f32 %v1989, 0.0
    %v1991 = vadd.f32 %v1990, 1e-05
    %v1992 = vrsqrt.pop %v1991
    %v1993 = vmul.f32 %v1920, %v1992
    %v1995 = vlaneseq
    %v1996 = vshrl.u32 %v1995, 7
    %v1997 = vsub.s32 0, %v1996
    %v1998 = vrot.slane %v1993, %v1997
    %v2000 = vmul.f32 %v1903, %v1998
    %v2001 = vmul.f32 %v1904, %v1998
    %v2002 = vmul.f32 %v1905, %v1998
    %v2003 = vmul.f32 %v1906, %v1998
    %v2004 = vmul.f32 %v1907, %v1998
    %v2005 = vmul.f32 %v1908, %v1998
    %v2006 = vmul.f32 %v1909, %v1998
    %v2007 = vmul.f32 %v1910, %v1998
    %v2008 = vmul.f32 %v1911, %v1998
    %v2009 = vmul.f32 %v1912, %v1998
    %v2010 = vmul.f32 %v1913, %v1998
    %v2011 = vmul.f32 %v1914, %v1998
    %v2012 = vmul.f32 %v1915, %v1998
    %v2013 = vmul.f32 %v1916, %v1998
    %v2014 = vmul.f32 %v1917, %v1998
    %v2015 = vmul.f32 %v1918, %v1998
    %v2016 = vmul.f32 %v1919, %v1998
    %v2017 = vmul.f32 %v1986, %v1993
    %v2018 = vsub.f32 %v1921, %v2017
    %v2020 = vlaneseq
    %v2021 = vshrl.u32 %v2020, 7
    %v2022 = vsub.s32 0, %v2021
    %v2023 = vrot.slane %v2018, %v2022
    %v2025 = vadd.f32 %v2000, %v2023
    %v2026 = vadd.f32 %v2001, %v2023
    %v2027 = vadd.f32 %v2002, %v2023
    %v2028 = vadd.f32 %v2003, %v2023
    %v2029 = vadd.f32 %v2004, %v2023
    %v2030 = vadd.f32 %v2005, %v2023
    %v2031 = vadd.f32 %v2006, %v2023
    %v2032 = vadd.f32 %v2007, %v2023
    %v2033 = vadd.f32 %v2008, %v2023
    %v2034 = vadd.f32 %v2009, %v2023
    %v2035 = vadd.f32 %v2010, %v2023
    %v2036 = vadd.f32 %v2011, %v2023
    %v2037 = vadd.f32 %v2012, %v2023
    %v2038 = vadd.f32 %v2013, %v2023
    %v2039 = vadd.f32 %v2014, %v2023
    %v2040 = vadd.f32 %v2015, %v2023
    %v2041 = vadd.f32 %v2016, %v2023
    %v2042 = vpack.c.bf16 %v2026, %v2025
    %v2043 = vpack.c.bf16 %v2028, %v2027
    %v2044 = vpack.c.bf16 %v2030, %v2029
    %v2045 = vpack.c.bf16 %v2032, %v2031
    %v2046 = vpack.c.bf16 %v2034, %v2033
    %v2047 = vpack.c.bf16 %v2036, %v2035
    %v2048 = vpack.c.bf16 %v2038, %v2037
    %v2049 = vpack.c.bf16 %v2040, %v2039
    %v2050 = vpack.c.bf16 %v2041, %v2041
    %v2060 = vunpack.c.l.b16 %v2042
    %v2061 = vunpack.c.h.b16 %v2042
    %v2062 = vunpack.c.l.b16 %v2043
    %v2063 = vunpack.c.h.b16 %v2043
    %v2064 = vunpack.c.l.b16 %v2044
    %v2065 = vunpack.c.h.b16 %v2044
    %v2066 = vunpack.c.l.b16 %v2045
    %v2067 = vunpack.c.h.b16 %v2045
    %v2068 = vunpack.c.l.b16 %v2046
    %v2069 = vunpack.c.h.b16 %v2046
    %v2070 = vunpack.c.l.b16 %v2047
    %v2071 = vunpack.c.h.b16 %v2047
    %v2072 = vunpack.c.l.b16 %v2048
    %v2073 = vunpack.c.h.b16 %v2048
    %v2074 = vunpack.c.l.b16 %v2049
    %v2075 = vunpack.c.h.b16 %v2049
    %v2076 = vunpack.c.l.b16 %v2050
    %v2077 = vpack.c.b16 %v2060, %v2060
    %v2078 = vpack.c.b16 %v2061, %v2061
    %v2079 = vpack.c.b16 %v2062, %v2062
    %v2080 = vpack.c.b16 %v2063, %v2063
    %v2081 = vpack.c.b16 %v2064, %v2064
    %v2082 = vpack.c.b16 %v2065, %v2065
    %v2083 = vpack.c.b16 %v2066, %v2066
    %v2084 = vpack.c.b16 %v2067, %v2067
    %v2085 = vpack.c.b16 %v2068, %v2068
    %v2086 = vpack.c.b16 %v2069, %v2069
    %v2087 = vpack.c.b16 %v2070, %v2070
    %v2088 = vpack.c.b16 %v2071, %v2071
    %v2089 = vpack.c.b16 %v2072, %v2072
    %v2090 = vpack.c.b16 %v2073, %v2073
    %v2091 = vpack.c.b16 %v2074, %v2074
    %v2092 = vpack.c.b16 %v2075, %v2075
    %v2093 = vpack.c.b16 %v2076, %v2076
    %2111 = vst [vmem:[%s10] sm:$0xf] %v2077
    %2112 = vst [vmem:[%s10 + $0x4] sm:$0xf] %v2078
    %2113 = vst [vmem:[%s10 + $0x8] sm:$0xf] %v2079
    %2114 = vst [vmem:[%s10 + $0xc] sm:$0xf] %v2080
    %2115 = vst [vmem:[%s10 + $0x10] sm:$0xf] %v2081
    %2116 = vst [vmem:[%s10 + $0x14] sm:$0xf] %v2082
    %2117 = vst [vmem:[%s10 + $0x18] sm:$0xf] %v2083
    %2118 = vst [vmem:[%s10 + $0x1c] sm:$0xf] %v2084
    %2119 = vst [vmem:[%s10 + $0x20] sm:$0xf] %v2085
    %2120 = vst [vmem:[%s10 + $0x24] sm:$0xf] %v2086
    %2121 = vst [vmem:[%s10 + $0x28] sm:$0xf] %v2087
    %2122 = vst [vmem:[%s10 + $0x2c] sm:$0xf] %v2088
    %2123 = vst [vmem:[%s10 + $0x30] sm:$0xf] %v2089
    %2124 = vst [vmem:[%s10 + $0x34] sm:$0xf] %v2090
    %2125 = vst [vmem:[%s10 + $0x38] sm:$0xf] %v2091
    %2126 = vst [vmem:[%s10 + $0x3c] sm:$0xf] %v2092
    %2127 = vst [vmem:[%s10 + $0x40] sm:$0x3] %v2093
    // Predicated region
    $region74: #{net_forward.2} parent=1 // pred_check
      _
    $region75: #{net_forward.2} parent=1 // pred_check_branch
      %2129 = sbr.rel (0) target = $region77
    $region76: #{net_forward.2} parent=1 // pred_region
      _
    $region77: #{net_forward.2} parent=1 // pred_fallthru
      _
    // Predicated region
    $region78: #{net_forward.2} parent=1 // pred_check
      _
    $region79: #{net_forward.2} parent=1 // pred_check_branch
      %2131 = sbr.rel (0) target = $region81
    $region80: #{net_forward.2} parent=1 // pred_region
      _
    $region81: #{net_forward.2} parent=1 // pred_fallthru
      _
    %2132 = vsyncpa [#allocation3], 1
    %2133 = vsyncpa [#allocation5], 1
    %2134 = vsyncpa [#allocation8], 1
    %2135 = vsyncpa [#allocation11], 1
    %2136 = vsyncpa [#allocation14], 1

// kernel: net_forward.3
$region0: #{net_forward.3}
  #allocation0 [shape = 'u32[]', space=smem, size = 0x4, offset = 0x4, fixed_abs, tag = 'smem constant byte address 0x4 - core index']
  #allocation1 [shape = 'u32[144,128]{1,0:T(1,128)}', space=vmem, size = 0x12000, scoped, tag = 'internal scratch']
  %s0 = inlined_call_operand.vmem [shape: bf16[2,8448], index: 0, kind: input, shape index: {}]
  %s1 = inlined_call_operand.hbm [shape: bf16[8448,128], index: 1, kind: input, shape index: {}]
  %s2 = inlined_call_operand.hbm [shape: f32[1,128], index: 2, kind: input, shape index: {}]
  %s3 = inlined_call_operand.hbm [shape: f32[128,128], index: 3, kind: input, shape index: {}]
  %s4 = inlined_call_operand.hbm [shape: f32[1,128], index: 4, kind: input, shape index: {}]
  %s5 = inlined_call_operand.hbm [shape: f32[128,128], index: 5, kind: input, shape index: {}]
  %s6 = inlined_call_operand.hbm [shape: f32[1,128], index: 6, kind: input, shape index: {}]
  %s7 = inlined_call_operand.vmem [shape: f32[2,128], index: 7, kind: output, shape index: {}]
  %s8 = sld [smem:[#allocation0]]
  $region62: #{net_forward.3} parent=0
    _
  %s10 = ssub.s32 1, %s8
  %s11 = scalar_select 0, %s10, %s8
  $region1: #{net_forward.3} parent=0
    #allocation2 [shape = 'u8[2162688]{0}', space=vmem, size = 0x210000, scoped, tag = 'input window, operand 1, single buffered']
    #allocation3 [shape = 's32[1]{0}', space=sflag, size = 0x4, scoped, tag = 'scoped memory for net_forward.3']
    #allocation4 [shape = 'u8[512]{0}', space=vmem, size = 0x400, scoped, tag = 'input window, operand 2, single buffered']
    #allocation5 [shape = 's32[1]{0}', space=sflag, size = 0x4, scoped, tag = 'scoped memory for net_forward.3']
    #allocation6 [shape = 'u8[65536]{0}', space=vmem, size = 0x10000, scoped, tag = 'input window, operand 3, single buffered']
    #allocation7 [shape = 'u8[512]{0}', space=vmem, size = 0x400, scoped, tag = 'input window, operand 4, single buffered']
    #allocation8 [shape = 's32[1]{0}', space=sflag, size = 0x4, scoped, tag = 'scoped memory for net_forward.3']
    #allocation9 [shape = 'u8[65536]{0}', space=vmem, size = 0x10000, scoped, tag = 'input window, operand 5, single buffered']
    #allocation10 [shape = 'u8[512]{0}', space=vmem, size = 0x400, scoped, tag = 'input window, operand 6, single buffered']
    #allocation11 [shape = 's32[1]{0}', space=sflag, size = 0x4, scoped, tag = 'scoped memory for net_forward.3']
    %12 = vsyncpa [#allocation3], 0
    %13 = vsyncpa [#allocation5], 0
    %14 = vsyncpa [#allocation8], 0
    %15 = vsyncpa [#allocation11], 0
    // Predicated region
    $region2: #{net_forward.3} parent=1 // pred_check
      _
    $region3: #{net_forward.3} parent=1 // pred_check_branch
      %17 = sbr.rel (0) target = $region5
    $region4: #{net_forward.3} parent=1 // pred_region
      _
    $region5: #{net_forward.3} parent=1 // pred_fallthru
      _
    // Predicated region
    $region6: #{net_forward.3} parent=1 // pred_check
      _
    $region7: #{net_forward.3} parent=1 // pred_check_branch
      %19 = sbr.rel (0) target = $region9
    $region8: #{net_forward.3} parent=1 // pred_region
      %s21 = ssub.s32 67584, 67584
      %22 = vsyncadd [#allocation3], %s21
      %s23 = sshll.u32 [#allocation2], 4
      %s24 = int_to_ptr.vmem [resolvable:$true] %s23
      %29 = dma.hbm_to_vmem [thread:$0]  %s1, 67584, %s24, [#allocation3], 64, 64, 4
    $region9: #{net_forward.3} parent=1 // pred_fallthru
      _
    // Predicated region
    $region10: #{net_forward.3} parent=1 // pred_check
      _
    $region11: #{net_forward.3} parent=1 // pred_check_branch
      %31 = sbr.rel (0) target = $region13
    $region12: #{net_forward.3} parent=1 // pred_region
      %s33 = ssub.s32 16, 16
      %34 = vsyncadd [#allocation5], %s33
      %s36 = sshll.u32 [#allocation4], 4
      %s37 = int_to_ptr.vmem [resolvable:$true] %s36
      %39 = dma.hbm_to_vmem [thread:$0]  %s2, 16, %s37, [#allocation5]
    $region13: #{net_forward.3} parent=1 // pred_fallthru
      _
    // Predicated region
    $region14: #{net_forward.3} parent=1 // pred_check
      _
    $region15: #{net_forward.3} parent=1 // pred_check_branch
      %41 = sbr.rel (0) target = $region17
    $region16: #{net_forward.3} parent=1 // pred_region
      %s43 = ssub.s32 2048, 2048
      %44 = vsyncadd [#allocation5], %s43
      %s45 = sshll.u32 [#allocation6], 4
      %s46 = int_to_ptr.vmem [resolvable:$true] %s45
      %51 = dma.hbm_to_vmem [thread:$0]  %s3, 2048, %s46, [#allocation5], 128, 128, 8
    $region17: #{net_forward.3} parent=1 // pred_fallthru
      _
    // Predicated region
    $region18: #{net_forward.3} parent=1 // pred_check
      _
    $region19: #{net_forward.3} parent=1 // pred_check_branch
      %53 = sbr.rel (0) target = $region21
    $region20: #{net_forward.3} parent=1 // pred_region
      %s55 = ssub.s32 16, 16
      %56 = vsyncadd [#allocation8], %s55
      %s58 = sshll.u32 [#allocation7], 4
      %s59 = int_to_ptr.vmem [resolvable:$true] %s58
      %61 = dma.hbm_to_vmem [thread:$0]  %s4, 16, %s59, [#allocation8]
    $region21: #{net_forward.3} parent=1 // pred_fallthru
      _
    // Predicated region
    $region22: #{net_forward.3} parent=1 // pred_check
      _
    $region23: #{net_forward.3} parent=1 // pred_check_branch
      %63 = sbr.rel (0) target = $region25
    $region24: #{net_forward.3} parent=1 // pred_region
      %s65 = ssub.s32 2048, 2048
      %66 = vsyncadd [#allocation8], %s65
      %s67 = sshll.u32 [#allocation9], 4
      %s68 = int_to_ptr.vmem [resolvable:$true] %s67
      %73 = dma.hbm_to_vmem [thread:$0]  %s5, 2048, %s68, [#allocation8], 128, 128, 8
    $region25: #{net_forward.3} parent=1 // pred_fallthru
      _
    // Predicated region
    $region26: #{net_forward.3} parent=1 // pred_check
      _
    $region27: #{net_forward.3} parent=1 // pred_check_branch
      %75 = sbr.rel (0) target = $region29
    $region28: #{net_forward.3} parent=1 // pred_region
      %s77 = ssub.s32 16, 16
      %78 = vsyncadd [#allocation11], %s77
      %s80 = sshll.u32 [#allocation10], 4
      %s81 = int_to_ptr.vmem [resolvable:$true] %s80
      %83 = dma.hbm_to_vmem [thread:$0]  %s6, 16, %s81, [#allocation11]
    $region29: #{net_forward.3} parent=1 // pred_fallthru
      _
    // Predicated region
    $region30: #{net_forward.3} parent=1 // pred_check
      _
    $region31: #{net_forward.3} parent=1 // pred_check_branch
      %85 = sbr.rel (0) target = $region33
    $region32: #{net_forward.3} parent=1 // pred_region
      %86 = dma.done [#allocation3], 67584
    $region33: #{net_forward.3} parent=1 // pred_fallthru
      _
    // Predicated region
    $region34: #{net_forward.3} parent=1 // pred_check
      _
    $region35: #{net_forward.3} parent=1 // pred_check_branch
      %88 = sbr.rel (0) target = $region37
    $region36: #{net_forward.3} parent=1 // pred_region
      %89 = dma.done [#allocation5], 16
    $region37: #{net_forward.3} parent=1 // pred_fallthru
      _
    // Predicated region
    $region38: #{net_forward.3} parent=1 // pred_check
      _
    $region39: #{net_forward.3} parent=1 // pred_check_branch
      %91 = sbr.rel (0) target = $region41
    $region40: #{net_forward.3} parent=1 // pred_region
      %92 = dma.done [#allocation5], 2048
    $region41: #{net_forward.3} parent=1 // pred_fallthru
      _
    // Predicated region
    $region42: #{net_forward.3} parent=1 // pred_check
      _
    $region43: #{net_forward.3} parent=1 // pred_check_branch
      %94 = sbr.rel (0) target = $region45
    $region44: #{net_forward.3} parent=1 // pred_region
      %95 = dma.done [#allocation8], 16
    $region45: #{net_forward.3} parent=1 // pred_fallthru
      _
    // Predicated region
    $region46: #{net_forward.3} parent=1 // pred_check
      _
    $region47: #{net_forward.3} parent=1 // pred_check_branch
      %97 = sbr.rel (0) target = $region49
    $region48: #{net_forward.3} parent=1 // pred_region
      %98 = dma.done [#allocation8], 2048
    $region49: #{net_forward.3} parent=1 // pred_fallthru
      _
    // Predicated region
    $region50: #{net_forward.3} parent=1 // pred_check
      _
    $region51: #{net_forward.3} parent=1 // pred_check_branch
      %100 = sbr.rel (0) target = $region53
    $region52: #{net_forward.3} parent=1 // pred_region
      %101 = dma.done [#allocation11], 16
    $region53: #{net_forward.3} parent=1 // pred_fallthru
      _
    %v103 = vld [vmem:[%s0] sm:$0xff]
    %v104 = vld [vmem:[%s0 + $0x8] sm:$0xff]
    %v105 = vld [vmem:[%s0 + $0x10] sm:$0xff]
    %v106 = vld [vmem:[%s0 + $0x18] sm:$0xff]
    %v107 = vld [vmem:[%s0 + $0x20] sm:$0xff]
    %v108 = vld [vmem:[%s0 + $0x28] sm:$0xff]
    %v109 = vld [vmem:[%s0 + $0x30] sm:$0xff]
    %v110 = vld [vmem:[%s0 + $0x38] sm:$0xff]
    %v111 = vld [vmem:[%s0 + $0x40] sm:$0x3]
    %v112 = vld [vmem:[#allocation2] sm:$0xf]
    %v113 = vld [vmem:[#allocation2 + $0x4] sm:$0xf]
    %v114 = vld [vmem:[#allocation2 + $0x8] sm:$0xf]
    %v115 = vld [vmem:[#allocation2 + $0xc] sm:$0xf]
    %v116 = vld [vmem:[#allocation2 + $0x10] sm:$0xf]
    %v117 = vld [vmem:[#allocation2 + $0x14] sm:$0xf]
    %v118 = vld [vmem:[#allocation2 + $0x18] sm:$0xf]
    %v119 = vld [vmem:[#allocation2 + $0x1c] sm:$0xf]
    %v120 = vld [vmem:[#allocation2 + $0x20] sm:$0xf]
    %v121 = vld [vmem:[#allocation2 + $0x24] sm:$0xf]
    %v122 = vld [vmem:[#allocation2 + $0x28] sm:$0xf]
    %v123 = vld [vmem:[#allocation2 + $0x2c] sm:$0xf]
    %v124 = vld [vmem:[#allocation2 + $0x30] sm:$0xf]
    %v125 = vld [vmem:[#allocation2 + $0x34] sm:$0xf]
    %v126 = vld [vmem:[#allocation2 + $0x38] sm:$0xf]
    %v127 = vld [vmem:[#allocation2 + $0x3c] sm:$0xf]
    %v128 = vld [vmem:[#allocation2 + $0x40] sm:$0xf]
    %v129 = vld [vmem:[#allocation2 + $0x44] sm:$0xf]
    %v130 = vld [vmem:[#allocation2 + $0x48] sm:$0xf]
    %v131 = vld [vmem:[#allocation2 + $0x4c] sm:$0xf]
    %v132 = vld [vmem:[#allocation2 + $0x50] sm:$0xf]
    %v133 = vld [vmem:[#allocation2 + $0x54] sm:$0xf]
    %v134 = vld [vmem:[#allocation2 + $0x58] sm:$0xf]
    %v135 = vld [vmem:[#allocation2 + $0x5c] sm:$0xf]
    %v136 = vld [vmem:[#allocation2 + $0x60] sm:$0xf]
    %v137 = vld [vmem:[#allocation2 + $0x64] sm:$0xf]
    %v138 = vld [vmem:[#allocation2 + $0x68] sm:$0xf]
    %v139 = vld [vmem:[#allocation2 + $0x6c] sm:$0xf]
    %v140 = vld [vmem:[#allocation2 + $0x70] sm:$0xf]
    %v141 = vld [vmem:[#allocation2 + $0x74] sm:$0xf]
    %v142 = vld [vmem:[#allocation2 + $0x78] sm:$0xf]
    %v143 = vld [vmem:[#allocation2 + $0x7c] sm:$0xf]
    %v144 = vld [vmem:[#allocation2 + $0x80] sm:$0xf]
    %v145 = vld [vmem:[#allocation2 + $0x84] sm:$0xf]
    %v146 = vld [vmem:[#allocation2 + $0x88] sm:$0xf]
    %v147 = vld [vmem:[#allocation2 + $0x8c] sm:$0xf]
    %v148 = vld [vmem:[#allocation2 + $0x90] sm:$0xf]
    %v149 = vld [vmem:[#allocation2 + $0x94] sm:$0xf]
    %v150 = vld [vmem:[#allocation2 + $0x98] sm:$0xf]
    %v151 = vld [vmem:[#allocation2 + $0x9c] sm:$0xf]
    %v152 = vld [vmem:[#allocation2 + $0xa0] sm:$0xf]
    %v153 = vld [vmem:[#allocation2 + $0xa4] sm:$0xf]
    %v154 = vld [vmem:[#allocation2 + $0xa8] sm:$0xf]
    %v155 = vld [vmem:[#allocation2 + $0xac] sm:$0xf]
    %v156 = vld [vmem:[#allocation2 + $0xb0] sm:$0xf]
    %v157 = vld [vmem:[#allocation2 + $0xb4] sm:$0xf]
    %v158 = vld [vmem:[#allocation2 + $0xb8] sm:$0xf]
    %v159 = vld [vmem:[#allocation2 + $0xbc] sm:$0xf]
    %v160 = vld [vmem:[#allocation2 + $0xc0] sm:$0xf]
    %v161 = vld [vmem:[#allocation2 + $0xc4] sm:$0xf]
    %v162 = vld [vmem:[#allocation2 + $0xc8] sm:$0xf]
    %v163 = vld [vmem:[#allocation2 + $0xcc] sm:$0xf]
    %v164 = vld [vmem:[#allocation2 + $0xd0] sm:$0xf]
    %v165 = vld [vmem:[#allocation2 + $0xd4] sm:$0xf]
    %v166 = vld [vmem:[#allocation2 + $0xd8] sm:$0xf]
    %v167 = vld [vmem:[#allocation2 + $0xdc] sm:$0xf]
    %v168 = vld [vmem:[#allocation2 + $0xe0] sm:$0xf]
    %v169 = vld [vmem:[#allocation2 + $0xe4] sm:$0xf]
    %v170 = vld [vmem:[#allocation2 + $0xe8] sm:$0xf]
    %v171 = vld [vmem:[#allocation2 + $0xec] sm:$0xf]
    %v172 = vld [vmem:[#allocation2 + $0xf0] sm:$0xf]
    %v173 = vld [vmem:[#allocation2 + $0xf4] sm:$0xf]
    %v174 = vld [vmem:[#allocation2 + $0xf8] sm:$0xf]
    %v175 = vld [vmem:[#allocation2 + $0xfc] sm:$0xf]
    %v176 = vld [vmem:[#allocation2 + $0x100] sm:$0xf]
    %v177 = vld [vmem:[#allocation2 + $0x104] sm:$0xf]
    %v178 = vld [vmem:[#allocation2 + $0x108] sm:$0xf]
    %v179 = vld [vmem:[#allocation2 + $0x10c] sm:$0xf]
    %v180 = vld [vmem:[#allocation2 + $0x110] sm:$0xf]
    %v181 = vld [vmem:[#allocation2 + $0x114] sm:$0xf]
    %v182 = vld [vmem:[#allocation2 + $0x118] sm:$0xf]
    %v183 = vld [vmem:[#allocation2 + $0x11c] sm:$0xf]
    %v184 = vld [vmem:[#allocation2 + $0x120] sm:$0xf]
    %v185 = vld [vmem:[#allocation2 + $0x124] sm:$0xf]
    %v186 = vld [vmem:[#allocation2 + $0x128] sm:$0xf]
    %v187 = vld [vmem:[#allocation2 + $0x12c] sm:$0xf]
    %v188 = vld [vmem:[#allocation2 + $0x130] sm:$0xf]
    %v189 = vld [vmem:[#allocation2 + $0x134] sm:$0xf]
    %v190 = vld [vmem:[#allocation2 + $0x138] sm:$0xf]
    %v191 = vld [vmem:[#allocation2 + $0x13c] sm:$0xf]
    %v192 = vld [vmem:[#allocation2 + $0x140] sm:$0xf]
    %v193 = vld [vmem:[#allocation2 + $0x144] sm:$0xf]
    %v194 = vld [vmem:[#allocation2 + $0x148] sm:$0xf]
    %v195 = vld [vmem:[#allocation2 + $0x14c] sm:$0xf]
    %v196 = vld [vmem:[#allocation2 + $0x150] sm:$0xf]
    %v197 = vld [vmem:[#allocation2 + $0x154] sm:$0xf]
    %v198 = vld [vmem:[#allocation2 + $0x158] sm:$0xf]
    %v199 = vld [vmem:[#allocation2 + $0x15c] sm:$0xf]
    %v200 = vld [vmem:[#allocation2 + $0x160] sm:$0xf]
    %v201 = vld [vmem:[#allocation2 + $0x164] sm:$0xf]
    %v202 = vld [vmem:[#allocation2 + $0x168] sm:$0xf]
    %v203 = vld [vmem:[#allocation2 + $0x16c] sm:$0xf]
    %v204 = vld [vmem:[#allocation2 + $0x170] sm:$0xf]
    %v205 = vld [vmem:[#allocation2 + $0x174] sm:$0xf]
    %v206 = vld [vmem:[#allocation2 + $0x178] sm:$0xf]
    %v207 = vld [vmem:[#allocation2 + $0x17c] sm:$0xf]
    %v208 = vld [vmem:[#allocation2 + $0x180] sm:$0xf]
    %v209 = vld [vmem:[#allocation2 + $0x184] sm:$0xf]
    %v210 = vld [vmem:[#allocation2 + $0x188] sm:$0xf]
    %v211 = vld [vmem:[#allocation2 + $0x18c] sm:$0xf]
    %v212 = vld [vmem:[#allocation2 + $0x190] sm:$0xf]
    %v213 = vld [vmem:[#allocation2 + $0x194] sm:$0xf]
    %v214 = vld [vmem:[#allocation2 + $0x198] sm:$0xf]
    %v215 = vld [vmem:[#allocation2 + $0x19c] sm:$0xf]
    %v216 = vld [vmem:[#allocation2 + $0x1a0] sm:$0xf]
    %v217 = vld [vmem:[#allocation2 + $0x1a4] sm:$0xf]
    %v218 = vld [vmem:[#allocation2 + $0x1a8] sm:$0xf]
    %v219 = vld [vmem:[#allocation2 + $0x1ac] sm:$0xf]
    %v220 = vld [vmem:[#allocation2 + $0x1b0] sm:$0xf]
    %v221 = vld [vmem:[#allocation2 + $0x1b4] sm:$0xf]
    %v222 = vld [vmem:[#allocation2 + $0x1b8] sm:$0xf]
    %v223 = vld [vmem:[#allocation2 + $0x1bc] sm:$0xf]
    %v224 = vld [vmem:[#allocation2 + $0x1c0] sm:$0xf]
    %v225 = vld [vmem:[#allocation2 + $0x1c4] sm:$0xf]
    %v226 = vld [vmem:[#allocation2 + $0x1c8] sm:$0xf]
    %v227 = vld [vmem:[#allocation2 + $0x1cc] sm:$0xf]
    %v228 = vld [vmem:[#allocation2 + $0x1d0] sm:$0xf]
    %v229 = vld [vmem:[#allocation2 + $0x1d4] sm:$0xf]
    %v230 = vld [vmem:[#allocation2 + $0x1d8] sm:$0xf]
    %v231 = vld [vmem:[#allocation2 + $0x1dc] sm:$0xf]
    %v232 = vld [vmem:[#allocation2 + $0x1e0] sm:$0xf]
    %v233 = vld [vmem:[#allocation2 + $0x1e4] sm:$0xf]
    %v234 = vld [vmem:[#allocation2 + $0x1e8] sm:$0xf]
    %v235 = vld [vmem:[#allocation2 + $0x1ec] sm:$0xf]
    %v236 = vld [vmem:[#allocation2 + $0x1f0] sm:$0xf]
    %v237 = vld [vmem:[#allocation2 + $0x1f4] sm:$0xf]
    %v238 = vld [vmem:[#allocation2 + $0x1f8] sm:$0xf]
    %v239 = vld [vmem:[#allocation2 + $0x1fc] sm:$0xf]
    %v240 = vld [vmem:[#allocation2 + $0x200] sm:$0xf]
    %v241 = vld [vmem:[#allocation2 + $0x204] sm:$0xf]
    %v242 = vld [vmem:[#allocation2 + $0x208] sm:$0xf]
    %v243 = vld [vmem:[#allocation2 + $0x20c] sm:$0xf]
    %v244 = vld [vmem:[#allocation2 + $0x210] sm:$0xf]
    %v245 = vld [vmem:[#allocation2 + $0x214] sm:$0xf]
    %v246 = vld [vmem:[#allocation2 + $0x218] sm:$0xf]
    %v247 = vld [vmem:[#allocation2 + $0x21c] sm:$0xf]
    %v248 = vld [vmem:[#allocation2 + $0x220] sm:$0xf]
    %v249 = vld [vmem:[#allocation2 + $0x224] sm:$0xf]
    %v250 = vld [vmem:[#allocation2 + $0x228] sm:$0xf]
    %v251 = vld [vmem:[#allocation2 + $0x22c] sm:$0xf]
    %v252 = vld [vmem:[#allocation2 + $0x230] sm:$0xf]
    %v253 = vld [vmem:[#allocation2 + $0x234] sm:$0xf]
    %v254 = vld [vmem:[#allocation2 + $0x238] sm:$0xf]
    %v255 = vld [vmem:[#allocation2 + $0x23c] sm:$0xf]
    %v256 = vld [vmem:[#allocation2 + $0x240] sm:$0xf]
    %v257 = vld [vmem:[#allocation2 + $0x244] sm:$0xf]
    %v258 = vld [vmem:[#allocation2 + $0x248] sm:$0xf]
    %v259 = vld [vmem:[#allocation2 + $0x24c] sm:$0xf]
    %v260 = vld [vmem:[#allocation2 + $0x250] sm:$0xf]
    %v261 = vld [vmem:[#allocation2 + $0x254] sm:$0xf]
    %v262 = vld [vmem:[#allocation2 + $0x258] sm:$0xf]
    %v263 = vld [vmem:[#allocation2 + $0x25c] sm:$0xf]
    %v264 = vld [vmem:[#allocation2 + $0x260] sm:$0xf]
    %v265 = vld [vmem:[#allocation2 + $0x264] sm:$0xf]
    %v266 = vld [vmem:[#allocation2 + $0x268] sm:$0xf]
    %v267 = vld [vmem:[#allocation2 + $0x26c] sm:$0xf]
    %v268 = vld [vmem:[#allocation2 + $0x270] sm:$0xf]
    %v269 = vld [vmem:[#allocation2 + $0x274] sm:$0xf]
    %v270 = vld [vmem:[#allocation2 + $0x278] sm:$0xf]
    %v271 = vld [vmem:[#allocation2 + $0x27c] sm:$0xf]
    %v272 = vld [vmem:[#allocation2 + $0x280] sm:$0xf]
    %v273 = vld [vmem:[#allocation2 + $0x284] sm:$0xf]
    %v274 = vld [vmem:[#allocation2 + $0x288] sm:$0xf]
    %v275 = vld [vmem:[#allocation2 + $0x28c] sm:$0xf]
    %v276 = vld [vmem:[#allocation2 + $0x290] sm:$0xf]
    %v277 = vld [vmem:[#allocation2 + $0x294] sm:$0xf]
    %v278 = vld [vmem:[#allocation2 + $0x298] sm:$0xf]
    %v279 = vld [vmem:[#allocation2 + $0x29c] sm:$0xf]
    %v280 = vld [vmem:[#allocation2 + $0x2a0] sm:$0xf]
    %v281 = vld [vmem:[#allocation2 + $0x2a4] sm:$0xf]
    %v282 = vld [vmem:[#allocation2 + $0x2a8] sm:$0xf]
    %v283 = vld [vmem:[#allocation2 + $0x2ac] sm:$0xf]
    %v284 = vld [vmem:[#allocation2 + $0x2b0] sm:$0xf]
    %v285 = vld [vmem:[#allocation2 + $0x2b4] sm:$0xf]
    %v286 = vld [vmem:[#allocation2 + $0x2b8] sm:$0xf]
    %v287 = vld [vmem:[#allocation2 + $0x2bc] sm:$0xf]
    %v288 = vld [vmem:[#allocation2 + $0x2c0] sm:$0xf]
    %v289 = vld [vmem:[#allocation2 + $0x2c4] sm:$0xf]
    %v290 = vld [vmem:[#allocation2 + $0x2c8] sm:$0xf]
    %v291 = vld [vmem:[#allocation2 + $0x2cc] sm:$0xf]
    %v292 = vld [vmem:[#allocation2 + $0x2d0] sm:$0xf]
    %v293 = vld [vmem:[#allocation2 + $0x2d4] sm:$0xf]
    %v294 = vld [vmem:[#allocation2 + $0x2d8] sm:$0xf]
    %v295 = vld [vmem:[#allocation2 + $0x2dc] sm:$0xf]
    %v296 = vld [vmem:[#allocation2 + $0x2e0] sm:$0xf]
    %v297 = vld [vmem:[#allocation2 + $0x2e4] sm:$0xf]
    %v298 = vld [vmem:[#allocation2 + $0x2e8] sm:$0xf]
    %v299 = vld [vmem:[#allocation2 + $0x2ec] sm:$0xf]
    %v300 = vld [vmem:[#allocation2 + $0x2f0] sm:$0xf]
    %v301 = vld [vmem:[#allocation2 + $0x2f4] sm:$0xf]
    %v302 = vld [vmem:[#allocation2 + $0x2f8] sm:$0xf]
    %v303 = vld [vmem:[#allocation2 + $0x2fc] sm:$0xf]
    %v304 = vld [vmem:[#allocation2 + $0x300] sm:$0xf]
    %v305 = vld [vmem:[#allocation2 + $0x304] sm:$0xf]
    %v306 = vld [vmem:[#allocation2 + $0x308] sm:$0xf]
    %v307 = vld [vmem:[#allocation2 + $0x30c] sm:$0xf]
    %v308 = vld [vmem:[#allocation2 + $0x310] sm:$0xf]
    %v309 = vld [vmem:[#allocation2 + $0x314] sm:$0xf]
    %v310 = vld [vmem:[#allocation2 + $0x318] sm:$0xf]
    %v311 = vld [vmem:[#allocation2 + $0x31c] sm:$0xf]
    %v312 = vld [vmem:[#allocation2 + $0x320] sm:$0xf]
    %v313 = vld [vmem:[#allocation2 + $0x324] sm:$0xf]
    %v314 = vld [vmem:[#allocation2 + $0x328] sm:$0xf]
    %v315 = vld [vmem:[#allocation2 + $0x32c] sm:$0xf]
    %v316 = vld [vmem:[#allocation2 + $0x330] sm:$0xf]
    %v317 = vld [vmem:[#allocation2 + $0x334] sm:$0xf]
    %v318 = vld [vmem:[#allocation2 + $0x338] sm:$0xf]
    %v319 = vld [vmem:[#allocation2 + $0x33c] sm:$0xf]
    %v320 = vld [vmem:[#allocation2 + $0x340] sm:$0xf]
    %v321 = vld [vmem:[#allocation2 + $0x344] sm:$0xf]
    %v322 = vld [vmem:[#allocation2 + $0x348] sm:$0xf]
    %v323 = vld [vmem:[#allocation2 + $0x34c] sm:$0xf]
    %v324 = vld [vmem:[#allocation2 + $0x350] sm:$0xf]
    %v325 = vld [vmem:[#allocation2 + $0x354] sm:$0xf]
    %v326 = vld [vmem:[#allocation2 + $0x358] sm:$0xf]
    %v327 = vld [vmem:[#allocation2 + $0x35c] sm:$0xf]
    %v328 = vld [vmem:[#allocation2 + $0x360] sm:$0xf]
    %v329 = vld [vmem:[#allocation2 + $0x364] sm:$0xf]
    %v330 = vld [vmem:[#allocation2 + $0x368] sm:$0xf]
    %v331 = vld [vmem:[#allocation2 + $0x36c] sm:$0xf]
    %v332 = vld [vmem:[#allocation2 + $0x370] sm:$0xf]
    %v333 = vld [vmem:[#allocation2 + $0x374] sm:$0xf]
    %v334 = vld [vmem:[#allocation2 + $0x378] sm:$0xf]
    %v335 = vld [vmem:[#allocation2 + $0x37c] sm:$0xf]
    %v336 = vld [vmem:[#allocation2 + $0x380] sm:$0xf]
    %v337 = vld [vmem:[#allocation2 + $0x384] sm:$0xf]
    %v338 = vld [vmem:[#allocation2 + $0x388] sm:$0xf]
    %v339 = vld [vmem:[#allocation2 + $0x38c] sm:$0xf]
    %v340 = vld [vmem:[#allocation2 + $0x390] sm:$0xf]
    %v341 = vld [vmem:[#allocation2 + $0x394] sm:$0xf]
    %v342 = vld [vmem:[#allocation2 + $0x398] sm:$0xf]
    %v343 = vld [vmem:[#allocation2 + $0x39c] sm:$0xf]
    %v344 = vld [vmem:[#allocation2 + $0x3a0] sm:$0xf]
    %v345 = vld [vmem:[#allocation2 + $0x3a4] sm:$0xf]
    %v346 = vld [vmem:[#allocation2 + $0x3a8] sm:$0xf]
    %v347 = vld [vmem:[#allocation2 + $0x3ac] sm:$0xf]
    %v348 = vld [vmem:[#allocation2 + $0x3b0] sm:$0xf]
    %v349 = vld [vmem:[#allocation2 + $0x3b4] sm:$0xf]
    %v350 = vld [vmem:[#allocation2 + $0x3b8] sm:$0xf]
    %v351 = vld [vmem:[#allocation2 + $0x3bc] sm:$0xf]
    %v352 = vld [vmem:[#allocation2 + $0x3c0] sm:$0xf]
    %v353 = vld [vmem:[#allocation2 + $0x3c4] sm:$0xf]
    %v354 = vld [vmem:[#allocation2 + $0x3c8] sm:$0xf]
    %v355 = vld [vmem:[#allocation2 + $0x3cc] sm:$0xf]
    %v356 = vld [vmem:[#allocation2 + $0x3d0] sm:$0xf]
    %v357 = vld [vmem:[#allocation2 + $0x3d4] sm:$0xf]
    %v358 = vld [vmem:[#allocation2 + $0x3d8] sm:$0xf]
    %v359 = vld [vmem:[#allocation2 + $0x3dc] sm:$0xf]
    %v360 = vld [vmem:[#allocation2 + $0x3e0] sm:$0xf]
    %v361 = vld [vmem:[#allocation2 + $0x3e4] sm:$0xf]
    %v362 = vld [vmem:[#allocation2 + $0x3e8] sm:$0xf]
    %v363 = vld [vmem:[#allocation2 + $0x3ec] sm:$0xf]
    %v364 = vld [vmem:[#allocation2 + $0x3f0] sm:$0xf]
    %v365 = vld [vmem:[#allocation2 + $0x3f4] sm:$0xf]
    %v366 = vld [vmem:[#allocation2 + $0x3f8] sm:$0xf]
    %v367 = vld [vmem:[#allocation2 + $0x3fc] sm:$0xf]
    %v368 = vld [vmem:[#allocation2 + $0x400] sm:$0xf]
    %v369 = vld [vmem:[#allocation2 + $0x404] sm:$0xf]
    %v370 = vld [vmem:[#allocation2 + $0x408] sm:$0xf]
    %v371 = vld [vmem:[#allocation2 + $0x40c] sm:$0xf]
    %v372 = vld [vmem:[#allocation2 + $0x410] sm:$0xf]
    %v373 = vld [vmem:[#allocation2 + $0x414] sm:$0xf]
    %v374 = vld [vmem:[#allocation2 + $0x418] sm:$0xf]
    %v375 = vld [vmem:[#allocation2 + $0x41c] sm:$0xf]
    %v376 = vld [vmem:[#allocation2 + $0x420] sm:$0xf]
    %v377 = vld [vmem:[#allocation2 + $0x424] sm:$0xf]
    %v378 = vld [vmem:[#allocation2 + $0x428] sm:$0xf]
    %v379 = vld [vmem:[#allocation2 + $0x42c] sm:$0xf]
    %v380 = vld [vmem:[#allocation2 + $0x430] sm:$0xf]
    %v381 = vld [vmem:[#allocation2 + $0x434] sm:$0xf]
    %v382 = vld [vmem:[#allocation2 + $0x438] sm:$0xf]
    %v383 = vld [vmem:[#allocation2 + $0x43c] sm:$0xf]
    %v384 = vld [vmem:[#allocation2 + $0x440] sm:$0xf]
    %v385 = vld [vmem:[#allocation2 + $0x444] sm:$0xf]
    %v386 = vld [vmem:[#allocation2 + $0x448] sm:$0xf]
    %v387 = vld [vmem:[#allocation2 + $0x44c] sm:$0xf]
    %v388 = vld [vmem:[#allocation2 + $0x450] sm:$0xf]
    %v389 = vld [vmem:[#allocation2 + $0x454] sm:$0xf]
    %v390 = vld [vmem:[#allocation2 + $0x458] sm:$0xf]
    %v391 = vld [vmem:[#allocation2 + $0x45c] sm:$0xf]
    %v392 = vld [vmem:[#allocation2 + $0x460] sm:$0xf]
    %v393 = vld [vmem:[#allocation2 + $0x464] sm:$0xf]
    %v394 = vld [vmem:[#allocation2 + $0x468] sm:$0xf]
    %v395 = vld [vmem:[#allocation2 + $0x46c] sm:$0xf]
    %v396 = vld [vmem:[#allocation2 + $0x470] sm:$0xf]
    %v397 = vld [vmem:[#allocation2 + $0x474] sm:$0xf]
    %v398 = vld [vmem:[#allocation2 + $0x478] sm:$0xf]
    %v399 = vld [vmem:[#allocation2 + $0x47c] sm:$0xf]
    %v400 = vld [vmem:[#allocation2 + $0x480] sm:$0xf]
    %v401 = vld [vmem:[#allocation2 + $0x484] sm:$0xf]
    %v402 = vld [vmem:[#allocation2 + $0x488] sm:$0xf]
    %v403 = vld [vmem:[#allocation2 + $0x48c] sm:$0xf]
    %v404 = vld [vmem:[#allocation2 + $0x490] sm:$0xf]
    %v405 = vld [vmem:[#allocation2 + $0x494] sm:$0xf]
    %v406 = vld [vmem:[#allocation2 + $0x498] sm:$0xf]
    %v407 = vld [vmem:[#allocation2 + $0x49c] sm:$0xf]
    %v408 = vld [vmem:[#allocation2 + $0x4a0] sm:$0xf]
    %v409 = vld [vmem:[#allocation2 + $0x4a4] sm:$0xf]
    %v410 = vld [vmem:[#allocation2 + $0x4a8] sm:$0xf]
    %v411 = vld [vmem:[#allocation2 + $0x4ac] sm:$0xf]
    %v412 = vld [vmem:[#allocation2 + $0x4b0] sm:$0xf]
    %v413 = vld [vmem:[#allocation2 + $0x4b4] sm:$0xf]
    %v414 = vld [vmem:[#allocation2 + $0x4b8] sm:$0xf]
    %v415 = vld [vmem:[#allocation2 + $0x4bc] sm:$0xf]
    %v416 = vld [vmem:[#allocation2 + $0x4c0] sm:$0xf]
    %v417 = vld [vmem:[#allocation2 + $0x4c4] sm:$0xf]
    %v418 = vld [vmem:[#allocation2 + $0x4c8] sm:$0xf]
    %v419 = vld [vmem:[#allocation2 + $0x4cc] sm:$0xf]
    %v420 = vld [vmem:[#allocation2 + $0x4d0] sm:$0xf]
    %v421 = vld [vmem:[#allocation2 + $0x4d4] sm:$0xf]
    %v422 = vld [vmem:[#allocation2 + $0x4d8] sm:$0xf]
    %v423 = vld [vmem:[#allocation2 + $0x4dc] sm:$0xf]
    %v424 = vld [vmem:[#allocation2 + $0x4e0] sm:$0xf]
    %v425 = vld [vmem:[#allocation2 + $0x4e4] sm:$0xf]
    %v426 = vld [vmem:[#allocation2 + $0x4e8] sm:$0xf]
    %v427 = vld [vmem:[#allocation2 + $0x4ec] sm:$0xf]
    %v428 = vld [vmem:[#allocation2 + $0x4f0] sm:$0xf]
    %v429 = vld [vmem:[#allocation2 + $0x4f4] sm:$0xf]
    %v430 = vld [vmem:[#allocation2 + $0x4f8] sm:$0xf]
    %v431 = vld [vmem:[#allocation2 + $0x4fc] sm:$0xf]
    %v432 = vld [vmem:[#allocation2 + $0x500] sm:$0xf]
    %v433 = vld [vmem:[#allocation2 + $0x504] sm:$0xf]
    %v434 = vld [vmem:[#allocation2 + $0x508] sm:$0xf]
    %v435 = vld [vmem:[#allocation2 + $0x50c] sm:$0xf]
    %v436 = vld [vmem:[#allocation2 + $0x510] sm:$0xf]
    %v437 = vld [vmem:[#allocation2 + $0x514] sm:$0xf]
    %v438 = vld [vmem:[#allocation2 + $0x518] sm:$0xf]
    %v439 = vld [vmem:[#allocation2 + $0x51c] sm:$0xf]
    %v440 = vld [vmem:[#allocation2 + $0x520] sm:$0xf]
    %v441 = vld [vmem:[#allocation2 + $0x524] sm:$0xf]
    %v442 = vld [vmem:[#allocation2 + $0x528] sm:$0xf]
    %v443 = vld [vmem:[#allocation2 + $0x52c] sm:$0xf]
    %v444 = vld [vmem:[#allocation2 + $0x530] sm:$0xf]
    %v445 = vld [vmem:[#allocation2 + $0x534] sm:$0xf]
    %v446 = vld [vmem:[#allocation2 + $0x538] sm:$0xf]
    %v447 = vld [vmem:[#allocation2 + $0x53c] sm:$0xf]
    %v448 = vld [vmem:[#allocation2 + $0x540] sm:$0xf]
    %v449 = vld [vmem:[#allocation2 + $0x544] sm:$0xf]
    %v450 = vld [vmem:[#allocation2 + $0x548] sm:$0xf]
    %v451 = vld [vmem:[#allocation2 + $0x54c] sm:$0xf]
    %v452 = vld [vmem:[#allocation2 + $0x550] sm:$0xf]
    %v453 = vld [vmem:[#allocation2 + $0x554] sm:$0xf]
    %v454 = vld [vmem:[#allocation2 + $0x558] sm:$0xf]
    %v455 = vld [vmem:[#allocation2 + $0x55c] sm:$0xf]
    %v456 = vld [vmem:[#allocation2 + $0x560] sm:$0xf]
    %v457 = vld [vmem:[#allocation2 + $0x564] sm:$0xf]
    %v458 = vld [vmem:[#allocation2 + $0x568] sm:$0xf]
    %v459 = vld [vmem:[#allocation2 + $0x56c] sm:$0xf]
    %v460 = vld [vmem:[#allocation2 + $0x570] sm:$0xf]
    %v461 = vld [vmem:[#allocation2 + $0x574] sm:$0xf]
    %v462 = vld [vmem:[#allocation2 + $0x578] sm:$0xf]
    %v463 = vld [vmem:[#allocation2 + $0x57c] sm:$0xf]
    %v464 = vld [vmem:[#allocation2 + $0x580] sm:$0xf]
    %v465 = vld [vmem:[#allocation2 + $0x584] sm:$0xf]
    %v466 = vld [vmem:[#allocation2 + $0x588] sm:$0xf]
    %v467 = vld [vmem:[#allocation2 + $0x58c] sm:$0xf]
    %v468 = vld [vmem:[#allocation2 + $0x590] sm:$0xf]
    %v469 = vld [vmem:[#allocation2 + $0x594] sm:$0xf]
    %v470 = vld [vmem:[#allocation2 + $0x598] sm:$0xf]
    %v471 = vld [vmem:[#allocation2 + $0x59c] sm:$0xf]
    %v472 = vld [vmem:[#allocation2 + $0x5a0] sm:$0xf]
    %v473 = vld [vmem:[#allocation2 + $0x5a4] sm:$0xf]
    %v474 = vld [vmem:[#allocation2 + $0x5a8] sm:$0xf]
    %v475 = vld [vmem:[#allocation2 + $0x5ac] sm:$0xf]
    %v476 = vld [vmem:[#allocation2 + $0x5b0] sm:$0xf]
    %v477 = vld [vmem:[#allocation2 + $0x5b4] sm:$0xf]
    %v478 = vld [vmem:[#allocation2 + $0x5b8] sm:$0xf]
    %v479 = vld [vmem:[#allocation2 + $0x5bc] sm:$0xf]
    %v480 = vld [vmem:[#allocation2 + $0x5c0] sm:$0xf]
    %v481 = vld [vmem:[#allocation2 + $0x5c4] sm:$0xf]
    %v482 = vld [vmem:[#allocation2 + $0x5c8] sm:$0xf]
    %v483 = vld [vmem:[#allocation2 + $0x5cc] sm:$0xf]
    %v484 = vld [vmem:[#allocation2 + $0x5d0] sm:$0xf]
    %v485 = vld [vmem:[#allocation2 + $0x5d4] sm:$0xf]
    %v486 = vld [vmem:[#allocation2 + $0x5d8] sm:$0xf]
    %v487 = vld [vmem:[#allocation2 + $0x5dc] sm:$0xf]
    %v488 = vld [vmem:[#allocation2 + $0x5e0] sm:$0xf]
    %v489 = vld [vmem:[#allocation2 + $0x5e4] sm:$0xf]
    %v490 = vld [vmem:[#allocation2 + $0x5e8] sm:$0xf]
    %v491 = vld [vmem:[#allocation2 + $0x5ec] sm:$0xf]
    %v492 = vld [vmem:[#allocation2 + $0x5f0] sm:$0xf]
    %v493 = vld [vmem:[#allocation2 + $0x5f4] sm:$0xf]
    %v494 = vld [vmem:[#allocation2 + $0x5f8] sm:$0xf]
    %v495 = vld [vmem:[#allocation2 + $0x5fc] sm:$0xf]
    %v496 = vld [vmem:[#allocation2 + $0x600] sm:$0xf]
    %v497 = vld [vmem:[#allocation2 + $0x604] sm:$0xf]
    %v498 = vld [vmem:[#allocation2 + $0x608] sm:$0xf]
    %v499 = vld [vmem:[#allocation2 + $0x60c] sm:$0xf]
    %v500 = vld [vmem:[#allocation2 + $0x610] sm:$0xf]
    %v501 = vld [vmem:[#allocation2 + $0x614] sm:$0xf]
    %v502 = vld [vmem:[#allocation2 + $0x618] sm:$0xf]
    %v503 = vld [vmem:[#allocation2 + $0x61c] sm:$0xf]
    %v504 = vld [vmem:[#allocation2 + $0x620] sm:$0xf]
    %v505 = vld [vmem:[#allocation2 + $0x624] sm:$0xf]
    %v506 = vld [vmem:[#allocation2 + $0x628] sm:$0xf]
    %v507 = vld [vmem:[#allocation2 + $0x62c] sm:$0xf]
    %v508 = vld [vmem:[#allocation2 + $0x630] sm:$0xf]
    %v509 = vld [vmem:[#allocation2 + $0x634] sm:$0xf]
    %v510 = vld [vmem:[#allocation2 + $0x638] sm:$0xf]
    %v511 = vld [vmem:[#allocation2 + $0x63c] sm:$0xf]
    %v512 = vld [vmem:[#allocation2 + $0x640] sm:$0xf]
    %v513 = vld [vmem:[#allocation2 + $0x644] sm:$0xf]
    %v514 = vld [vmem:[#allocation2 + $0x648] sm:$0xf]
    %v515 = vld [vmem:[#allocation2 + $0x64c] sm:$0xf]
    %v516 = vld [vmem:[#allocation2 + $0x650] sm:$0xf]
    %v517 = vld [vmem:[#allocation2 + $0x654] sm:$0xf]
    %v518 = vld [vmem:[#allocation2 + $0x658] sm:$0xf]
    %v519 = vld [vmem:[#allocation2 + $0x65c] sm:$0xf]
    %v520 = vld [vmem:[#allocation2 + $0x660] sm:$0xf]
    %v521 = vld [vmem:[#allocation2 + $0x664] sm:$0xf]
    %v522 = vld [vmem:[#allocation2 + $0x668] sm:$0xf]
    %v523 = vld [vmem:[#allocation2 + $0x66c] sm:$0xf]
    %v524 = vld [vmem:[#allocation2 + $0x670] sm:$0xf]
    %v525 = vld [vmem:[#allocation2 + $0x674] sm:$0xf]
    %v526 = vld [vmem:[#allocation2 + $0x678] sm:$0xf]
    %v527 = vld [vmem:[#allocation2 + $0x67c] sm:$0xf]
    %v528 = vld [vmem:[#allocation2 + $0x680] sm:$0xf]
    %v529 = vld [vmem:[#allocation2 + $0x684] sm:$0xf]
    %v530 = vld [vmem:[#allocation2 + $0x688] sm:$0xf]
    %v531 = vld [vmem:[#allocation2 + $0x68c] sm:$0xf]
    %v532 = vld [vmem:[#allocation2 + $0x690] sm:$0xf]
    %v533 = vld [vmem:[#allocation2 + $0x694] sm:$0xf]
    %v534 = vld [vmem:[#allocation2 + $0x698] sm:$0xf]
    %v535 = vld [vmem:[#allocation2 + $0x69c] sm:$0xf]
    %v536 = vld [vmem:[#allocation2 + $0x6a0] sm:$0xf]
    %v537 = vld [vmem:[#allocation2 + $0x6a4] sm:$0xf]
    %v538 = vld [vmem:[#allocation2 + $0x6a8] sm:$0xf]
    %v539 = vld [vmem:[#allocation2 + $0x6ac] sm:$0xf]
    %v540 = vld [vmem:[#allocation2 + $0x6b0] sm:$0xf]
    %v541 = vld [vmem:[#allocation2 + $0x6b4] sm:$0xf]
    %v542 = vld [vmem:[#allocation2 + $0x6b8] sm:$0xf]
    %v543 = vld [vmem:[#allocation2 + $0x6bc] sm:$0xf]
    %v544 = vld [vmem:[#allocation2 + $0x6c0] sm:$0xf]
    %v545 = vld [vmem:[#allocation2 + $0x6c4] sm:$0xf]
    %v546 = vld [vmem:[#allocation2 + $0x6c8] sm:$0xf]
    %v547 = vld [vmem:[#allocation2 + $0x6cc] sm:$0xf]
    %v548 = vld [vmem:[#allocation2 + $0x6d0] sm:$0xf]
    %v549 = vld [vmem:[#allocation2 + $0x6d4] sm:$0xf]
    %v550 = vld [vmem:[#allocation2 + $0x6d8] sm:$0xf]
    %v551 = vld [vmem:[#allocation2 + $0x6dc] sm:$0xf]
    %v552 = vld [vmem:[#allocation2 + $0x6e0] sm:$0xf]
    %v553 = vld [vmem:[#allocation2 + $0x6e4] sm:$0xf]
    %v554 = vld [vmem:[#allocation2 + $0x6e8] sm:$0xf]
    %v555 = vld [vmem:[#allocation2 + $0x6ec] sm:$0xf]
    %v556 = vld [vmem:[#allocation2 + $0x6f0] sm:$0xf]
    %v557 = vld [vmem:[#allocation2 + $0x6f4] sm:$0xf]
    %v558 = vld [vmem:[#allocation2 + $0x6f8] sm:$0xf]
    %v559 = vld [vmem:[#allocation2 + $0x6fc] sm:$0xf]
    %v560 = vld [vmem:[#allocation2 + $0x700] sm:$0xf]
    %v561 = vld [vmem:[#allocation2 + $0x704] sm:$0xf]
    %v562 = vld [vmem:[#allocation2 + $0x708] sm:$0xf]
    %v563 = vld [vmem:[#allocation2 + $0x70c] sm:$0xf]
    %v564 = vld [vmem:[#allocation2 + $0x710] sm:$0xf]
    %v565 = vld [vmem:[#allocation2 + $0x714] sm:$0xf]
    %v566 = vld [vmem:[#allocation2 + $0x718] sm:$0xf]
    %v567 = vld [vmem:[#allocation2 + $0x71c] sm:$0xf]
    %v568 = vld [vmem:[#allocation2 + $0x720] sm:$0xf]
    %v569 = vld [vmem:[#allocation2 + $0x724] sm:$0xf]
    %v570 = vld [vmem:[#allocation2 + $0x728] sm:$0xf]
    %v571 = vld [vmem:[#allocation2 + $0x72c] sm:$0xf]
    %v572 = vld [vmem:[#allocation2 + $0x730] sm:$0xf]
    %v573 = vld [vmem:[#allocation2 + $0x734] sm:$0xf]
    %v574 = vld [vmem:[#allocation2 + $0x738] sm:$0xf]
    %v575 = vld [vmem:[#allocation2 + $0x73c] sm:$0xf]
    %v576 = vld [vmem:[#allocation2 + $0x740] sm:$0xf]
    %v577 = vld [vmem:[#allocation2 + $0x744] sm:$0xf]
    %v578 = vld [vmem:[#allocation2 + $0x748] sm:$0xf]
    %v579 = vld [vmem:[#allocation2 + $0x74c] sm:$0xf]
    %v580 = vld [vmem:[#allocation2 + $0x750] sm:$0xf]
    %v581 = vld [vmem:[#allocation2 + $0x754] sm:$0xf]
    %v582 = vld [vmem:[#allocation2 + $0x758] sm:$0xf]
    %v583 = vld [vmem:[#allocation2 + $0x75c] sm:$0xf]
    %v584 = vld [vmem:[#allocation2 + $0x760] sm:$0xf]
    %v585 = vld [vmem:[#allocation2 + $0x764] sm:$0xf]
    %v586 = vld [vmem:[#allocation2 + $0x768] sm:$0xf]
    %v587 = vld [vmem:[#allocation2 + $0x76c] sm:$0xf]
    %v588 = vld [vmem:[#allocation2 + $0x770] sm:$0xf]
    %v589 = vld [vmem:[#allocation2 + $0x774] sm:$0xf]
    %v590 = vld [vmem:[#allocation2 + $0x778] sm:$0xf]
    %v591 = vld [vmem:[#allocation2 + $0x77c] sm:$0xf]
    %v592 = vld [vmem:[#allocation2 + $0x780] sm:$0xf]
    %v593 = vld [vmem:[#allocation2 + $0x784] sm:$0xf]
    %v594 = vld [vmem:[#allocation2 + $0x788] sm:$0xf]
    %v595 = vld [vmem:[#allocation2 + $0x78c] sm:$0xf]
    %v596 = vld [vmem:[#allocation2 + $0x790] sm:$0xf]
    %v597 = vld [vmem:[#allocation2 + $0x794] sm:$0xf]
    %v598 = vld [vmem:[#allocation2 + $0x798] sm:$0xf]
    %v599 = vld [vmem:[#allocation2 + $0x79c] sm:$0xf]
    %v600 = vld [vmem:[#allocation2 + $0x7a0] sm:$0xf]
    %v601 = vld [vmem:[#allocation2 + $0x7a4] sm:$0xf]
    %v602 = vld [vmem:[#allocation2 + $0x7a8] sm:$0xf]
    %v603 = vld [vmem:[#allocation2 + $0x7ac] sm:$0xf]
    %v604 = vld [vmem:[#allocation2 + $0x7b0] sm:$0xf]
    %v605 = vld [vmem:[#allocation2 + $0x7b4] sm:$0xf]
    %v606 = vld [vmem:[#allocation2 + $0x7b8] sm:$0xf]
    %v607 = vld [vmem:[#allocation2 + $0x7bc] sm:$0xf]
    %v608 = vld [vmem:[#allocation2 + $0x7c0] sm:$0xf]
    %v609 = vld [vmem:[#allocation2 + $0x7c4] sm:$0xf]
    %v610 = vld [vmem:[#allocation2 + $0x7c8] sm:$0xf]
    %v611 = vld [vmem:[#allocation2 + $0x7cc] sm:$0xf]
    %v612 = vld [vmem:[#allocation2 + $0x7d0] sm:$0xf]
    %v613 = vld [vmem:[#allocation2 + $0x7d4] sm:$0xf]
    %v614 = vld [vmem:[#allocation2 + $0x7d8] sm:$0xf]
    %v615 = vld [vmem:[#allocation2 + $0x7dc] sm:$0xf]
    %v616 = vld [vmem:[#allocation2 + $0x7e0] sm:$0xf]
    %v617 = vld [vmem:[#allocation2 + $0x7e4] sm:$0xf]
    %v618 = vld [vmem:[#allocation2 + $0x7e8] sm:$0xf]
    %v619 = vld [vmem:[#allocation2 + $0x7ec] sm:$0xf]
    %v620 = vld [vmem:[#allocation2 + $0x7f0] sm:$0xf]
    %v621 = vld [vmem:[#allocation2 + $0x7f4] sm:$0xf]
    %v622 = vld [vmem:[#allocation2 + $0x7f8] sm:$0xf]
    %v623 = vld [vmem:[#allocation2 + $0x7fc] sm:$0xf]
    %v624 = vld [vmem:[#allocation2 + $0x800] sm:$0xf]
    %v625 = vld [vmem:[#allocation2 + $0x804] sm:$0xf]
    %v626 = vld [vmem:[#allocation2 + $0x808] sm:$0xf]
    %v627 = vld [vmem:[#allocation2 + $0x80c] sm:$0xf]
    %v628 = vld [vmem:[#allocation2 + $0x810] sm:$0xf]
    %v629 = vld [vmem:[#allocation2 + $0x814] sm:$0xf]
    %v630 = vld [vmem:[#allocation2 + $0x818] sm:$0xf]
    %v631 = vld [vmem:[#allocation2 + $0x81c] sm:$0xf]
    %v632 = vld [vmem:[#allocation2 + $0x820] sm:$0xf]
    %v633 = vld [vmem:[#allocation2 + $0x824] sm:$0xf]
    %v634 = vld [vmem:[#allocation2 + $0x828] sm:$0xf]
    %v635 = vld [vmem:[#allocation2 + $0x82c] sm:$0xf]
    %v636 = vld [vmem:[#allocation2 + $0x830] sm:$0xf]
    %v637 = vld [vmem:[#allocation2 + $0x834] sm:$0xf]
    %v638 = vld [vmem:[#allocation2 + $0x838] sm:$0xf]
    %v639 = vld [vmem:[#allocation2 + $0x83c] sm:$0xf]
    %v640 = vld [vmem:[#allocation2 + $0x840] sm:$0xf]
    %v641 = vld [vmem:[#allocation2 + $0x844] sm:$0xf]
    %v642 = vld [vmem:[#allocation2 + $0x848] sm:$0xf]
    %v643 = vld [vmem:[#allocation2 + $0x84c] sm:$0xf]
    %v644 = vld [vmem:[#allocation2 + $0x850] sm:$0xf]
    %v645 = vld [vmem:[#allocation2 + $0x854] sm:$0xf]
    %v646 = vld [vmem:[#allocation2 + $0x858] sm:$0xf]
    %v647 = vld [vmem:[#allocation2 + $0x85c] sm:$0xf]
    %v648 = vld [vmem:[#allocation2 + $0x860] sm:$0xf]
    %v649 = vld [vmem:[#allocation2 + $0x864] sm:$0xf]
    %v650 = vld [vmem:[#allocation2 + $0x868] sm:$0xf]
    %v651 = vld [vmem:[#allocation2 + $0x86c] sm:$0xf]
    %v652 = vld [vmem:[#allocation2 + $0x870] sm:$0xf]
    %v653 = vld [vmem:[#allocation2 + $0x874] sm:$0xf]
    %v654 = vld [vmem:[#allocation2 + $0x878] sm:$0xf]
    %v655 = vld [vmem:[#allocation2 + $0x87c] sm:$0xf]
    %v656 = vld [vmem:[#allocation2 + $0x880] sm:$0xf]
    %v657 = vld [vmem:[#allocation2 + $0x884] sm:$0xf]
    %v658 = vld [vmem:[#allocation2 + $0x888] sm:$0xf]
    %v659 = vld [vmem:[#allocation2 + $0x88c] sm:$0xf]
    %v660 = vld [vmem:[#allocation2 + $0x890] sm:$0xf]
    %v661 = vld [vmem:[#allocation2 + $0x894] sm:$0xf]
    %v662 = vld [vmem:[#allocation2 + $0x898] sm:$0xf]
    %v663 = vld [vmem:[#allocation2 + $0x89c] sm:$0xf]
    %v664 = vld [vmem:[#allocation2 + $0x8a0] sm:$0xf]
    %v665 = vld [vmem:[#allocation2 + $0x8a4] sm:$0xf]
    %v666 = vld [vmem:[#allocation2 + $0x8a8] sm:$0xf]
    %v667 = vld [vmem:[#allocation2 + $0x8ac] sm:$0xf]
    %v668 = vld [vmem:[#allocation2 + $0x8b0] sm:$0xf]
    %v669 = vld [vmem:[#allocation2 + $0x8b4] sm:$0xf]
    %v670 = vld [vmem:[#allocation2 + $0x8b8] sm:$0xf]
    %v671 = vld [vmem:[#allocation2 + $0x8bc] sm:$0xf]
    %v672 = vld [vmem:[#allocation2 + $0x8c0] sm:$0xf]
    %v673 = vld [vmem:[#allocation2 + $0x8c4] sm:$0xf]
    %v674 = vld [vmem:[#allocation2 + $0x8c8] sm:$0xf]
    %v675 = vld [vmem:[#allocation2 + $0x8cc] sm:$0xf]
    %v676 = vld [vmem:[#allocation2 + $0x8d0] sm:$0xf]
    %v677 = vld [vmem:[#allocation2 + $0x8d4] sm:$0xf]
    %v678 = vld [vmem:[#allocation2 + $0x8d8] sm:$0xf]
    %v679 = vld [vmem:[#allocation2 + $0x8dc] sm:$0xf]
    %v680 = vld [vmem:[#allocation2 + $0x8e0] sm:$0xf]
    %v681 = vld [vmem:[#allocation2 + $0x8e4] sm:$0xf]
    %v682 = vld [vmem:[#allocation2 + $0x8e8] sm:$0xf]
    %v683 = vld [vmem:[#allocation2 + $0x8ec] sm:$0xf]
    %v684 = vld [vmem:[#allocation2 + $0x8f0] sm:$0xf]
    %v685 = vld [vmem:[#allocation2 + $0x8f4] sm:$0xf]
    %v686 = vld [vmem:[#allocation2 + $0x8f8] sm:$0xf]
    %v687 = vld [vmem:[#allocation2 + $0x8fc] sm:$0xf]
    %v688 = vld [vmem:[#allocation2 + $0x900] sm:$0xf]
    %v689 = vld [vmem:[#allocation2 + $0x904] sm:$0xf]
    %v690 = vld [vmem:[#allocation2 + $0x908] sm:$0xf]
    %v691 = vld [vmem:[#allocation2 + $0x90c] sm:$0xf]
    %v692 = vld [vmem:[#allocation2 + $0x910] sm:$0xf]
    %v693 = vld [vmem:[#allocation2 + $0x914] sm:$0xf]
    %v694 = vld [vmem:[#allocation2 + $0x918] sm:$0xf]
    %v695 = vld [vmem:[#allocation2 + $0x91c] sm:$0xf]
    %v696 = vld [vmem:[#allocation2 + $0x920] sm:$0xf]
    %v697 = vld [vmem:[#allocation2 + $0x924] sm:$0xf]
    %v698 = vld [vmem:[#allocation2 + $0x928] sm:$0xf]
    %v699 = vld [vmem:[#allocation2 + $0x92c] sm:$0xf]
    %v700 = vld [vmem:[#allocation2 + $0x930] sm:$0xf]
    %v701 = vld [vmem:[#allocation2 + $0x934] sm:$0xf]
    %v702 = vld [vmem:[#allocation2 + $0x938] sm:$0xf]
    %v703 = vld [vmem:[#allocation2 + $0x93c] sm:$0xf]
    %v704 = vld [vmem:[#allocation2 + $0x940] sm:$0xf]
    %v705 = vld [vmem:[#allocation2 + $0x944] sm:$0xf]
    %v706 = vld [vmem:[#allocation2 + $0x948] sm:$0xf]
    %v707 = vld [vmem:[#allocation2 + $0x94c] sm:$0xf]
    %v708 = vld [vmem:[#allocation2 + $0x950] sm:$0xf]
    %v709 = vld [vmem:[#allocation2 + $0x954] sm:$0xf]
    %v710 = vld [vmem:[#allocation2 + $0x958] sm:$0xf]
    %v711 = vld [vmem:[#allocation2 + $0x95c] sm:$0xf]
    %v712 = vld [vmem:[#allocation2 + $0x960] sm:$0xf]
    %v713 = vld [vmem:[#allocation2 + $0x964] sm:$0xf]
    %v714 = vld [vmem:[#allocation2 + $0x968] sm:$0xf]
    %v715 = vld [vmem:[#allocation2 + $0x96c] sm:$0xf]
    %v716 = vld [vmem:[#allocation2 + $0x970] sm:$0xf]
    %v717 = vld [vmem:[#allocation2 + $0x974] sm:$0xf]
    %v718 = vld [vmem:[#allocation2 + $0x978] sm:$0xf]
    %v719 = vld [vmem:[#allocation2 + $0x97c] sm:$0xf]
    %v720 = vld [vmem:[#allocation2 + $0x980] sm:$0xf]
    %v721 = vld [vmem:[#allocation2 + $0x984] sm:$0xf]
    %v722 = vld [vmem:[#allocation2 + $0x988] sm:$0xf]
    %v723 = vld [vmem:[#allocation2 + $0x98c] sm:$0xf]
    %v724 = vld [vmem:[#allocation2 + $0x990] sm:$0xf]
    %v725 = vld [vmem:[#allocation2 + $0x994] sm:$0xf]
    %v726 = vld [vmem:[#allocation2 + $0x998] sm:$0xf]
    %v727 = vld [vmem:[#allocation2 + $0x99c] sm:$0xf]
    %v728 = vld [vmem:[#allocation2 + $0x9a0] sm:$0xf]
    %v729 = vld [vmem:[#allocation2 + $0x9a4] sm:$0xf]
    %v730 = vld [vmem:[#allocation2 + $0x9a8] sm:$0xf]
    %v731 = vld [vmem:[#allocation2 + $0x9ac] sm:$0xf]
    %v732 = vld [vmem:[#allocation2 + $0x9b0] sm:$0xf]
    %v733 = vld [vmem:[#allocation2 + $0x9b4] sm:$0xf]
    %v734 = vld [vmem:[#allocation2 + $0x9b8] sm:$0xf]
    %v735 = vld [vmem:[#allocation2 + $0x9bc] sm:$0xf]
    %v736 = vld [vmem:[#allocation2 + $0x9c0] sm:$0xf]
    %v737 = vld [vmem:[#allocation2 + $0x9c4] sm:$0xf]
    %v738 = vld [vmem:[#allocation2 + $0x9c8] sm:$0xf]
    %v739 = vld [vmem:[#allocation2 + $0x9cc] sm:$0xf]
    %v740 = vld [vmem:[#allocation2 + $0x9d0] sm:$0xf]
    %v741 = vld [vmem:[#allocation2 + $0x9d4] sm:$0xf]
    %v742 = vld [vmem:[#allocation2 + $0x9d8] sm:$0xf]
    %v743 = vld [vmem:[#allocation2 + $0x9dc] sm:$0xf]
    %v744 = vld [vmem:[#allocation2 + $0x9e0] sm:$0xf]
    %v745 = vld [vmem:[#allocation2 + $0x9e4] sm:$0xf]
    %v746 = vld [vmem:[#allocation2 + $0x9e8] sm:$0xf]
    %v747 = vld [vmem:[#allocation2 + $0x9ec] sm:$0xf]
    %v748 = vld [vmem:[#allocation2 + $0x9f0] sm:$0xf]
    %v749 = vld [vmem:[#allocation2 + $0x9f4] sm:$0xf]
    %v750 = vld [vmem:[#allocation2 + $0x9f8] sm:$0xf]
    %v751 = vld [vmem:[#allocation2 + $0x9fc] sm:$0xf]
    %v752 = vld [vmem:[#allocation2 + $0xa00] sm:$0xf]
    %v753 = vld [vmem:[#allocation2 + $0xa04] sm:$0xf]
    %v754 = vld [vmem:[#allocation2 + $0xa08] sm:$0xf]
    %v755 = vld [vmem:[#allocation2 + $0xa0c] sm:$0xf]
    %v756 = vld [vmem:[#allocation2 + $0xa10] sm:$0xf]
    %v757 = vld [vmem:[#allocation2 + $0xa14] sm:$0xf]
    %v758 = vld [vmem:[#allocation2 + $0xa18] sm:$0xf]
    %v759 = vld [vmem:[#allocation2 + $0xa1c] sm:$0xf]
    %v760 = vld [vmem:[#allocation2 + $0xa20] sm:$0xf]
    %v761 = vld [vmem:[#allocation2 + $0xa24] sm:$0xf]
    %v762 = vld [vmem:[#allocation2 + $0xa28] sm:$0xf]
    %v763 = vld [vmem:[#allocation2 + $0xa2c] sm:$0xf]
    %v764 = vld [vmem:[#allocation2 + $0xa30] sm:$0xf]
    %v765 = vld [vmem:[#allocation2 + $0xa34] sm:$0xf]
    %v766 = vld [vmem:[#allocation2 + $0xa38] sm:$0xf]
    %v767 = vld [vmem:[#allocation2 + $0xa3c] sm:$0xf]
    %v768 = vld [vmem:[#allocation2 + $0xa40] sm:$0xf]
    %v769 = vld [vmem:[#allocation2 + $0xa44] sm:$0xf]
    %v770 = vld [vmem:[#allocation2 + $0xa48] sm:$0xf]
    %v771 = vld [vmem:[#allocation2 + $0xa4c] sm:$0xf]
    %v772 = vld [vmem:[#allocation2 + $0xa50] sm:$0xf]
    %v773 = vld [vmem:[#allocation2 + $0xa54] sm:$0xf]
    %v774 = vld [vmem:[#allocation2 + $0xa58] sm:$0xf]
    %v775 = vld [vmem:[#allocation2 + $0xa5c] sm:$0xf]
    %v776 = vld [vmem:[#allocation2 + $0xa60] sm:$0xf]
    %v777 = vld [vmem:[#allocation2 + $0xa64] sm:$0xf]
    %v778 = vld [vmem:[#allocation2 + $0xa68] sm:$0xf]
    %v779 = vld [vmem:[#allocation2 + $0xa6c] sm:$0xf]
    %v780 = vld [vmem:[#allocation2 + $0xa70] sm:$0xf]
    %v781 = vld [vmem:[#allocation2 + $0xa74] sm:$0xf]
    %v782 = vld [vmem:[#allocation2 + $0xa78] sm:$0xf]
    %v783 = vld [vmem:[#allocation2 + $0xa7c] sm:$0xf]
    %v784 = vld [vmem:[#allocation2 + $0xa80] sm:$0xf]
    %v785 = vld [vmem:[#allocation2 + $0xa84] sm:$0xf]
    %v786 = vld [vmem:[#allocation2 + $0xa88] sm:$0xf]
    %v787 = vld [vmem:[#allocation2 + $0xa8c] sm:$0xf]
    %v788 = vld [vmem:[#allocation2 + $0xa90] sm:$0xf]
    %v789 = vld [vmem:[#allocation2 + $0xa94] sm:$0xf]
    %v790 = vld [vmem:[#allocation2 + $0xa98] sm:$0xf]
    %v791 = vld [vmem:[#allocation2 + $0xa9c] sm:$0xf]
    %v792 = vld [vmem:[#allocation2 + $0xaa0] sm:$0xf]
    %v793 = vld [vmem:[#allocation2 + $0xaa4] sm:$0xf]
    %v794 = vld [vmem:[#allocation2 + $0xaa8] sm:$0xf]
    %v795 = vld [vmem:[#allocation2 + $0xaac] sm:$0xf]
    %v796 = vld [vmem:[#allocation2 + $0xab0] sm:$0xf]
    %v797 = vld [vmem:[#allocation2 + $0xab4] sm:$0xf]
    %v798 = vld [vmem:[#allocation2 + $0xab8] sm:$0xf]
    %v799 = vld [vmem:[#allocation2 + $0xabc] sm:$0xf]
    %v800 = vld [vmem:[#allocation2 + $0xac0] sm:$0xf]
    %v801 = vld [vmem:[#allocation2 + $0xac4] sm:$0xf]
    %v802 = vld [vmem:[#allocation2 + $0xac8] sm:$0xf]
    %v803 = vld [vmem:[#allocation2 + $0xacc] sm:$0xf]
    %v804 = vld [vmem:[#allocation2 + $0xad0] sm:$0xf]
    %v805 = vld [vmem:[#allocation2 + $0xad4] sm:$0xf]
    %v806 = vld [vmem:[#allocation2 + $0xad8] sm:$0xf]
    %v807 = vld [vmem:[#allocation2 + $0xadc] sm:$0xf]
    %v808 = vld [vmem:[#allocation2 + $0xae0] sm:$0xf]
    %v809 = vld [vmem:[#allocation2 + $0xae4] sm:$0xf]
    %v810 = vld [vmem:[#allocation2 + $0xae8] sm:$0xf]
    %v811 = vld [vmem:[#allocation2 + $0xaec] sm:$0xf]
    %v812 = vld [vmem:[#allocation2 + $0xaf0] sm:$0xf]
    %v813 = vld [vmem:[#allocation2 + $0xaf4] sm:$0xf]
    %v814 = vld [vmem:[#allocation2 + $0xaf8] sm:$0xf]
    %v815 = vld [vmem:[#allocation2 + $0xafc] sm:$0xf]
    %v816 = vld [vmem:[#allocation2 + $0xb00] sm:$0xf]
    %v817 = vld [vmem:[#allocation2 + $0xb04] sm:$0xf]
    %v818 = vld [vmem:[#allocation2 + $0xb08] sm:$0xf]
    %v819 = vld [vmem:[#allocation2 + $0xb0c] sm:$0xf]
    %v820 = vld [vmem:[#allocation2 + $0xb10] sm:$0xf]
    %v821 = vld [vmem:[#allocation2 + $0xb14] sm:$0xf]
    %v822 = vld [vmem:[#allocation2 + $0xb18] sm:$0xf]
    %v823 = vld [vmem:[#allocation2 + $0xb1c] sm:$0xf]
    %v824 = vld [vmem:[#allocation2 + $0xb20] sm:$0xf]
    %v825 = vld [vmem:[#allocation2 + $0xb24] sm:$0xf]
    %v826 = vld [vmem:[#allocation2 + $0xb28] sm:$0xf]
    %v827 = vld [vmem:[#allocation2 + $0xb2c] sm:$0xf]
    %v828 = vld [vmem:[#allocation2 + $0xb30] sm:$0xf]
    %v829 = vld [vmem:[#allocation2 + $0xb34] sm:$0xf]
    %v830 = vld [vmem:[#allocation2 + $0xb38] sm:$0xf]
    %v831 = vld [vmem:[#allocation2 + $0xb3c] sm:$0xf]
    %v832 = vld [vmem:[#allocation2 + $0xb40] sm:$0xf]
    %v833 = vld [vmem:[#allocation2 + $0xb44] sm:$0xf]
    %v834 = vld [vmem:[#allocation2 + $0xb48] sm:$0xf]
    %v835 = vld [vmem:[#allocation2 + $0xb4c] sm:$0xf]
    %v836 = vld [vmem:[#allocation2 + $0xb50] sm:$0xf]
    %v837 = vld [vmem:[#allocation2 + $0xb54] sm:$0xf]
    %v838 = vld [vmem:[#allocation2 + $0xb58] sm:$0xf]
    %v839 = vld [vmem:[#allocation2 + $0xb5c] sm:$0xf]
    %v840 = vld [vmem:[#allocation2 + $0xb60] sm:$0xf]
    %v841 = vld [vmem:[#allocation2 + $0xb64] sm:$0xf]
    %v842 = vld [vmem:[#allocation2 + $0xb68] sm:$0xf]
    %v843 = vld [vmem:[#allocation2 + $0xb6c] sm:$0xf]
    %v844 = vld [vmem:[#allocation2 + $0xb70] sm:$0xf]
    %v845 = vld [vmem:[#allocation2 + $0xb74] sm:$0xf]
    %v846 = vld [vmem:[#allocation2 + $0xb78] sm:$0xf]
    %v847 = vld [vmem:[#allocation2 + $0xb7c] sm:$0xf]
    %v848 = vld [vmem:[#allocation2 + $0xb80] sm:$0xf]
    %v849 = vld [vmem:[#allocation2 + $0xb84] sm:$0xf]
    %v850 = vld [vmem:[#allocation2 + $0xb88] sm:$0xf]
    %v851 = vld [vmem:[#allocation2 + $0xb8c] sm:$0xf]
    %v852 = vld [vmem:[#allocation2 + $0xb90] sm:$0xf]
    %v853 = vld [vmem:[#allocation2 + $0xb94] sm:$0xf]
    %v854 = vld [vmem:[#allocation2 + $0xb98] sm:$0xf]
    %v855 = vld [vmem:[#allocation2 + $0xb9c] sm:$0xf]
    %v856 = vld [vmem:[#allocation2 + $0xba0] sm:$0xf]
    %v857 = vld [vmem:[#allocation2 + $0xba4] sm:$0xf]
    %v858 = vld [vmem:[#allocation2 + $0xba8] sm:$0xf]
    %v859 = vld [vmem:[#allocation2 + $0xbac] sm:$0xf]
    %v860 = vld [vmem:[#allocation2 + $0xbb0] sm:$0xf]
    %v861 = vld [vmem:[#allocation2 + $0xbb4] sm:$0xf]
    %v862 = vld [vmem:[#allocation2 + $0xbb8] sm:$0xf]
    %v863 = vld [vmem:[#allocation2 + $0xbbc] sm:$0xf]
    %v864 = vld [vmem:[#allocation2 + $0xbc0] sm:$0xf]
    %v865 = vld [vmem:[#allocation2 + $0xbc4] sm:$0xf]
    %v866 = vld [vmem:[#allocation2 + $0xbc8] sm:$0xf]
    %v867 = vld [vmem:[#allocation2 + $0xbcc] sm:$0xf]
    %v868 = vld [vmem:[#allocation2 + $0xbd0] sm:$0xf]
    %v869 = vld [vmem:[#allocation2 + $0xbd4] sm:$0xf]
    %v870 = vld [vmem:[#allocation2 + $0xbd8] sm:$0xf]
    %v871 = vld [vmem:[#allocation2 + $0xbdc] sm:$0xf]
    %v872 = vld [vmem:[#allocation2 + $0xbe0] sm:$0xf]
    %v873 = vld [vmem:[#allocation2 + $0xbe4] sm:$0xf]
    %v874 = vld [vmem:[#allocation2 + $0xbe8] sm:$0xf]
    %v875 = vld [vmem:[#allocation2 + $0xbec] sm:$0xf]
    %v876 = vld [vmem:[#allocation2 + $0xbf0] sm:$0xf]
    %v877 = vld [vmem:[#allocation2 + $0xbf4] sm:$0xf]
    %v878 = vld [vmem:[#allocation2 + $0xbf8] sm:$0xf]
    %v879 = vld [vmem:[#allocation2 + $0xbfc] sm:$0xf]
    %v880 = vld [vmem:[#allocation2 + $0xc00] sm:$0xf]
    %v881 = vld [vmem:[#allocation2 + $0xc04] sm:$0xf]
    %v882 = vld [vmem:[#allocation2 + $0xc08] sm:$0xf]
    %v883 = vld [vmem:[#allocation2 + $0xc0c] sm:$0xf]
    %v884 = vld [vmem:[#allocation2 + $0xc10] sm:$0xf]
    %v885 = vld [vmem:[#allocation2 + $0xc14] sm:$0xf]
    %v886 = vld [vmem:[#allocation2 + $0xc18] sm:$0xf]
    %v887 = vld [vmem:[#allocation2 + $0xc1c] sm:$0xf]
    %v888 = vld [vmem:[#allocation2 + $0xc20] sm:$0xf]
    %v889 = vld [vmem:[#allocation2 + $0xc24] sm:$0xf]
    %v890 = vld [vmem:[#allocation2 + $0xc28] sm:$0xf]
    %v891 = vld [vmem:[#allocation2 + $0xc2c] sm:$0xf]
    %v892 = vld [vmem:[#allocation2 + $0xc30] sm:$0xf]
    %v893 = vld [vmem:[#allocation2 + $0xc34] sm:$0xf]
    %v894 = vld [vmem:[#allocation2 + $0xc38] sm:$0xf]
    %v895 = vld [vmem:[#allocation2 + $0xc3c] sm:$0xf]
    %v896 = vld [vmem:[#allocation2 + $0xc40] sm:$0xf]
    %v897 = vld [vmem:[#allocation2 + $0xc44] sm:$0xf]
    %v898 = vld [vmem:[#allocation2 + $0xc48] sm:$0xf]
    %v899 = vld [vmem:[#allocation2 + $0xc4c] sm:$0xf]
    %v900 = vld [vmem:[#allocation2 + $0xc50] sm:$0xf]
    %v901 = vld [vmem:[#allocation2 + $0xc54] sm:$0xf]
    %v902 = vld [vmem:[#allocation2 + $0xc58] sm:$0xf]
    %v903 = vld [vmem:[#allocation2 + $0xc5c] sm:$0xf]
    %v904 = vld [vmem:[#allocation2 + $0xc60] sm:$0xf]
    %v905 = vld [vmem:[#allocation2 + $0xc64] sm:$0xf]
    %v906 = vld [vmem:[#allocation2 + $0xc68] sm:$0xf]
    %v907 = vld [vmem:[#allocation2 + $0xc6c] sm:$0xf]
    %v908 = vld [vmem:[#allocation2 + $0xc70] sm:$0xf]
    %v909 = vld [vmem:[#allocation2 + $0xc74] sm:$0xf]
    %v910 = vld [vmem:[#allocation2 + $0xc78] sm:$0xf]
    %v911 = vld [vmem:[#allocation2 + $0xc7c] sm:$0xf]
    %v912 = vld [vmem:[#allocation2 + $0xc80] sm:$0xf]
    %v913 = vld [vmem:[#allocation2 + $0xc84] sm:$0xf]
    %v914 = vld [vmem:[#allocation2 + $0xc88] sm:$0xf]
    %v915 = vld [vmem:[#allocation2 + $0xc8c] sm:$0xf]
    %v916 = vld [vmem:[#allocation2 + $0xc90] sm:$0xf]
    %v917 = vld [vmem:[#allocation2 + $0xc94] sm:$0xf]
    %v918 = vld [vmem:[#allocation2 + $0xc98] sm:$0xf]
    %v919 = vld [vmem:[#allocation2 + $0xc9c] sm:$0xf]
    %v920 = vld [vmem:[#allocation2 + $0xca0] sm:$0xf]
    %v921 = vld [vmem:[#allocation2 + $0xca4] sm:$0xf]
    %v922 = vld [vmem:[#allocation2 + $0xca8] sm:$0xf]
    %v923 = vld [vmem:[#allocation2 + $0xcac] sm:$0xf]
    %v924 = vld [vmem:[#allocation2 + $0xcb0] sm:$0xf]
    %v925 = vld [vmem:[#allocation2 + $0xcb4] sm:$0xf]
    %v926 = vld [vmem:[#allocation2 + $0xcb8] sm:$0xf]
    %v927 = vld [vmem:[#allocation2 + $0xcbc] sm:$0xf]
    %v928 = vld [vmem:[#allocation2 + $0xcc0] sm:$0xf]
    %v929 = vld [vmem:[#allocation2 + $0xcc4] sm:$0xf]
    %v930 = vld [vmem:[#allocation2 + $0xcc8] sm:$0xf]
    %v931 = vld [vmem:[#allocation2 + $0xccc] sm:$0xf]
    %v932 = vld [vmem:[#allocation2 + $0xcd0] sm:$0xf]
    %v933 = vld [vmem:[#allocation2 + $0xcd4] sm:$0xf]
    %v934 = vld [vmem:[#allocation2 + $0xcd8] sm:$0xf]
    %v935 = vld [vmem:[#allocation2 + $0xcdc] sm:$0xf]
    %v936 = vld [vmem:[#allocation2 + $0xce0] sm:$0xf]
    %v937 = vld [vmem:[#allocation2 + $0xce4] sm:$0xf]
    %v938 = vld [vmem:[#allocation2 + $0xce8] sm:$0xf]
    %v939 = vld [vmem:[#allocation2 + $0xcec] sm:$0xf]
    %v940 = vld [vmem:[#allocation2 + $0xcf0] sm:$0xf]
    %v941 = vld [vmem:[#allocation2 + $0xcf4] sm:$0xf]
    %v942 = vld [vmem:[#allocation2 + $0xcf8] sm:$0xf]
    %v943 = vld [vmem:[#allocation2 + $0xcfc] sm:$0xf]
    %v944 = vld [vmem:[#allocation2 + $0xd00] sm:$0xf]
    %v945 = vld [vmem:[#allocation2 + $0xd04] sm:$0xf]
    %v946 = vld [vmem:[#allocation2 + $0xd08] sm:$0xf]
    %v947 = vld [vmem:[#allocation2 + $0xd0c] sm:$0xf]
    %v948 = vld [vmem:[#allocation2 + $0xd10] sm:$0xf]
    %v949 = vld [vmem:[#allocation2 + $0xd14] sm:$0xf]
    %v950 = vld [vmem:[#allocation2 + $0xd18] sm:$0xf]
    %v951 = vld [vmem:[#allocation2 + $0xd1c] sm:$0xf]
    %v952 = vld [vmem:[#allocation2 + $0xd20] sm:$0xf]
    %v953 = vld [vmem:[#allocation2 + $0xd24] sm:$0xf]
    %v954 = vld [vmem:[#allocation2 + $0xd28] sm:$0xf]
    %v955 = vld [vmem:[#allocation2 + $0xd2c] sm:$0xf]
    %v956 = vld [vmem:[#allocation2 + $0xd30] sm:$0xf]
    %v957 = vld [vmem:[#allocation2 + $0xd34] sm:$0xf]
    %v958 = vld [vmem:[#allocation2 + $0xd38] sm:$0xf]
    %v959 = vld [vmem:[#allocation2 + $0xd3c] sm:$0xf]
    %v960 = vld [vmem:[#allocation2 + $0xd40] sm:$0xf]
    %v961 = vld [vmem:[#allocation2 + $0xd44] sm:$0xf]
    %v962 = vld [vmem:[#allocation2 + $0xd48] sm:$0xf]
    %v963 = vld [vmem:[#allocation2 + $0xd4c] sm:$0xf]
    %v964 = vld [vmem:[#allocation2 + $0xd50] sm:$0xf]
    %v965 = vld [vmem:[#allocation2 + $0xd54] sm:$0xf]
    %v966 = vld [vmem:[#allocation2 + $0xd58] sm:$0xf]
    %v967 = vld [vmem:[#allocation2 + $0xd5c] sm:$0xf]
    %v968 = vld [vmem:[#allocation2 + $0xd60] sm:$0xf]
    %v969 = vld [vmem:[#allocation2 + $0xd64] sm:$0xf]
    %v970 = vld [vmem:[#allocation2 + $0xd68] sm:$0xf]
    %v971 = vld [vmem:[#allocation2 + $0xd6c] sm:$0xf]
    %v972 = vld [vmem:[#allocation2 + $0xd70] sm:$0xf]
    %v973 = vld [vmem:[#allocation2 + $0xd74] sm:$0xf]
    %v974 = vld [vmem:[#allocation2 + $0xd78] sm:$0xf]
    %v975 = vld [vmem:[#allocation2 + $0xd7c] sm:$0xf]
    %v976 = vld [vmem:[#allocation2 + $0xd80] sm:$0xf]
    %v977 = vld [vmem:[#allocation2 + $0xd84] sm:$0xf]
    %v978 = vld [vmem:[#allocation2 + $0xd88] sm:$0xf]
    %v979 = vld [vmem:[#allocation2 + $0xd8c] sm:$0xf]
    %v980 = vld [vmem:[#allocation2 + $0xd90] sm:$0xf]
    %v981 = vld [vmem:[#allocation2 + $0xd94] sm:$0xf]
    %v982 = vld [vmem:[#allocation2 + $0xd98] sm:$0xf]
    %v983 = vld [vmem:[#allocation2 + $0xd9c] sm:$0xf]
    %v984 = vld [vmem:[#allocation2 + $0xda0] sm:$0xf]
    %v985 = vld [vmem:[#allocation2 + $0xda4] sm:$0xf]
    %v986 = vld [vmem:[#allocation2 + $0xda8] sm:$0xf]
    %v987 = vld [vmem:[#allocation2 + $0xdac] sm:$0xf]
    %v988 = vld [vmem:[#allocation2 + $0xdb0] sm:$0xf]
    %v989 = vld [vmem:[#allocation2 + $0xdb4] sm:$0xf]
    %v990 = vld [vmem:[#allocation2 + $0xdb8] sm:$0xf]
    %v991 = vld [vmem:[#allocation2 + $0xdbc] sm:$0xf]
    %v992 = vld [vmem:[#allocation2 + $0xdc0] sm:$0xf]
    %v993 = vld [vmem:[#allocation2 + $0xdc4] sm:$0xf]
    %v994 = vld [vmem:[#allocation2 + $0xdc8] sm:$0xf]
    %v995 = vld [vmem:[#allocation2 + $0xdcc] sm:$0xf]
    %v996 = vld [vmem:[#allocation2 + $0xdd0] sm:$0xf]
    %v997 = vld [vmem:[#allocation2 + $0xdd4] sm:$0xf]
    %v998 = vld [vmem:[#allocation2 + $0xdd8] sm:$0xf]
    %v999 = vld [vmem:[#allocation2 + $0xddc] sm:$0xf]
    %v1000 = vld [vmem:[#allocation2 + $0xde0] sm:$0xf]
    %v1001 = vld [vmem:[#allocation2 + $0xde4] sm:$0xf]
    %v1002 = vld [vmem:[#allocation2 + $0xde8] sm:$0xf]
    %v1003 = vld [vmem:[#allocation2 + $0xdec] sm:$0xf]
    %v1004 = vld [vmem:[#allocation2 + $0xdf0] sm:$0xf]
    %v1005 = vld [vmem:[#allocation2 + $0xdf4] sm:$0xf]
    %v1006 = vld [vmem:[#allocation2 + $0xdf8] sm:$0xf]
    %v1007 = vld [vmem:[#allocation2 + $0xdfc] sm:$0xf]
    %v1008 = vld [vmem:[#allocation2 + $0xe00] sm:$0xf]
    %v1009 = vld [vmem:[#allocation2 + $0xe04] sm:$0xf]
    %v1010 = vld [vmem:[#allocation2 + $0xe08] sm:$0xf]
    %v1011 = vld [vmem:[#allocation2 + $0xe0c] sm:$0xf]
    %v1012 = vld [vmem:[#allocation2 + $0xe10] sm:$0xf]
    %v1013 = vld [vmem:[#allocation2 + $0xe14] sm:$0xf]
    %v1014 = vld [vmem:[#allocation2 + $0xe18] sm:$0xf]
    %v1015 = vld [vmem:[#allocation2 + $0xe1c] sm:$0xf]
    %v1016 = vld [vmem:[#allocation2 + $0xe20] sm:$0xf]
    %v1017 = vld [vmem:[#allocation2 + $0xe24] sm:$0xf]
    %v1018 = vld [vmem:[#allocation2 + $0xe28] sm:$0xf]
    %v1019 = vld [vmem:[#allocation2 + $0xe2c] sm:$0xf]
    %v1020 = vld [vmem:[#allocation2 + $0xe30] sm:$0xf]
    %v1021 = vld [vmem:[#allocation2 + $0xe34] sm:$0xf]
    %v1022 = vld [vmem:[#allocation2 + $0xe38] sm:$0xf]
    %v1023 = vld [vmem:[#allocation2 + $0xe3c] sm:$0xf]
    %v1024 = vld [vmem:[#allocation2 + $0xe40] sm:$0xf]
    %v1025 = vld [vmem:[#allocation2 + $0xe44] sm:$0xf]
    %v1026 = vld [vmem:[#allocation2 + $0xe48] sm:$0xf]
    %v1027 = vld [vmem:[#allocation2 + $0xe4c] sm:$0xf]
    %v1028 = vld [vmem:[#allocation2 + $0xe50] sm:$0xf]
    %v1029 = vld [vmem:[#allocation2 + $0xe54] sm:$0xf]
    %v1030 = vld [vmem:[#allocation2 + $0xe58] sm:$0xf]
    %v1031 = vld [vmem:[#allocation2 + $0xe5c] sm:$0xf]
    %v1032 = vld [vmem:[#allocation2 + $0xe60] sm:$0xf]
    %v1033 = vld [vmem:[#allocation2 + $0xe64] sm:$0xf]
    %v1034 = vld [vmem:[#allocation2 + $0xe68] sm:$0xf]
    %v1035 = vld [vmem:[#allocation2 + $0xe6c] sm:$0xf]
    %v1036 = vld [vmem:[#allocation2 + $0xe70] sm:$0xf]
    %v1037 = vld [vmem:[#allocation2 + $0xe74] sm:$0xf]
    %v1038 = vld [vmem:[#allocation2 + $0xe78] sm:$0xf]
    %v1039 = vld [vmem:[#allocation2 + $0xe7c] sm:$0xf]
    %v1040 = vld [vmem:[#allocation2 + $0xe80] sm:$0xf]
    %v1041 = vld [vmem:[#allocation2 + $0xe84] sm:$0xf]
    %v1042 = vld [vmem:[#allocation2 + $0xe88] sm:$0xf]
    %v1043 = vld [vmem:[#allocation2 + $0xe8c] sm:$0xf]
    %v1044 = vld [vmem:[#allocation2 + $0xe90] sm:$0xf]
    %v1045 = vld [vmem:[#allocation2 + $0xe94] sm:$0xf]
    %v1046 = vld [vmem:[#allocation2 + $0xe98] sm:$0xf]
    %v1047 = vld [vmem:[#allocation2 + $0xe9c] sm:$0xf]
    %v1048 = vld [vmem:[#allocation2 + $0xea0] sm:$0xf]
    %v1049 = vld [vmem:[#allocation2 + $0xea4] sm:$0xf]
    %v1050 = vld [vmem:[#allocation2 + $0xea8] sm:$0xf]
    %v1051 = vld [vmem:[#allocation2 + $0xeac] sm:$0xf]
    %v1052 = vld [vmem:[#allocation2 + $0xeb0] sm:$0xf]
    %v1053 = vld [vmem:[#allocation2 + $0xeb4] sm:$0xf]
    %v1054 = vld [vmem:[#allocation2 + $0xeb8] sm:$0xf]
    %v1055 = vld [vmem:[#allocation2 + $0xebc] sm:$0xf]
    %v1056 = vld [vmem:[#allocation2 + $0xec0] sm:$0xf]
    %v1057 = vld [vmem:[#allocation2 + $0xec4] sm:$0xf]
    %v1058 = vld [vmem:[#allocation2 + $0xec8] sm:$0xf]
    %v1059 = vld [vmem:[#allocation2 + $0xecc] sm:$0xf]
    %v1060 = vld [vmem:[#allocation2 + $0xed0] sm:$0xf]
    %v1061 = vld [vmem:[#allocation2 + $0xed4] sm:$0xf]
    %v1062 = vld [vmem:[#allocation2 + $0xed8] sm:$0xf]
    %v1063 = vld [vmem:[#allocation2 + $0xedc] sm:$0xf]
    %v1064 = vld [vmem:[#allocation2 + $0xee0] sm:$0xf]
    %v1065 = vld [vmem:[#allocation2 + $0xee4] sm:$0xf]
    %v1066 = vld [vmem:[#allocation2 + $0xee8] sm:$0xf]
    %v1067 = vld [vmem:[#allocation2 + $0xeec] sm:$0xf]
    %v1068 = vld [vmem:[#allocation2 + $0xef0] sm:$0xf]
    %v1069 = vld [vmem:[#allocation2 + $0xef4] sm:$0xf]
    %v1070 = vld [vmem:[#allocation2 + $0xef8] sm:$0xf]
    %v1071 = vld [vmem:[#allocation2 + $0xefc] sm:$0xf]
    %v1072 = vld [vmem:[#allocation2 + $0xf00] sm:$0xf]
    %v1073 = vld [vmem:[#allocation2 + $0xf04] sm:$0xf]
    %v1074 = vld [vmem:[#allocation2 + $0xf08] sm:$0xf]
    %v1075 = vld [vmem:[#allocation2 + $0xf0c] sm:$0xf]
    %v1076 = vld [vmem:[#allocation2 + $0xf10] sm:$0xf]
    %v1077 = vld [vmem:[#allocation2 + $0xf14] sm:$0xf]
    %v1078 = vld [vmem:[#allocation2 + $0xf18] sm:$0xf]
    %v1079 = vld [vmem:[#allocation2 + $0xf1c] sm:$0xf]
    %v1080 = vld [vmem:[#allocation2 + $0xf20] sm:$0xf]
    %v1081 = vld [vmem:[#allocation2 + $0xf24] sm:$0xf]
    %v1082 = vld [vmem:[#allocation2 + $0xf28] sm:$0xf]
    %v1083 = vld [vmem:[#allocation2 + $0xf2c] sm:$0xf]
    %v1084 = vld [vmem:[#allocation2 + $0xf30] sm:$0xf]
    %v1085 = vld [vmem:[#allocation2 + $0xf34] sm:$0xf]
    %v1086 = vld [vmem:[#allocation2 + $0xf38] sm:$0xf]
    %v1087 = vld [vmem:[#allocation2 + $0xf3c] sm:$0xf]
    %v1088 = vld [vmem:[#allocation2 + $0xf40] sm:$0xf]
    %v1089 = vld [vmem:[#allocation2 + $0xf44] sm:$0xf]
    %v1090 = vld [vmem:[#allocation2 + $0xf48] sm:$0xf]
    %v1091 = vld [vmem:[#allocation2 + $0xf4c] sm:$0xf]
    %v1092 = vld [vmem:[#allocation2 + $0xf50] sm:$0xf]
    %v1093 = vld [vmem:[#allocation2 + $0xf54] sm:$0xf]
    %v1094 = vld [vmem:[#allocation2 + $0xf58] sm:$0xf]
    %v1095 = vld [vmem:[#allocation2 + $0xf5c] sm:$0xf]
    %v1096 = vld [vmem:[#allocation2 + $0xf60] sm:$0xf]
    %v1097 = vld [vmem:[#allocation2 + $0xf64] sm:$0xf]
    %v1098 = vld [vmem:[#allocation2 + $0xf68] sm:$0xf]
    %v1099 = vld [vmem:[#allocation2 + $0xf6c] sm:$0xf]
    %v1100 = vld [vmem:[#allocation2 + $0xf70] sm:$0xf]
    %v1101 = vld [vmem:[#allocation2 + $0xf74] sm:$0xf]
    %v1102 = vld [vmem:[#allocation2 + $0xf78] sm:$0xf]
    %v1103 = vld [vmem:[#allocation2 + $0xf7c] sm:$0xf]
    %v1104 = vld [vmem:[#allocation2 + $0xf80] sm:$0xf]
    %v1105 = vld [vmem:[#allocation2 + $0xf84] sm:$0xf]
    %v1106 = vld [vmem:[#allocation2 + $0xf88] sm:$0xf]
    %v1107 = vld [vmem:[#allocation2 + $0xf8c] sm:$0xf]
    %v1108 = vld [vmem:[#allocation2 + $0xf90] sm:$0xf]
    %v1109 = vld [vmem:[#allocation2 + $0xf94] sm:$0xf]
    %v1110 = vld [vmem:[#allocation2 + $0xf98] sm:$0xf]
    %v1111 = vld [vmem:[#allocation2 + $0xf9c] sm:$0xf]
    %v1112 = vld [vmem:[#allocation2 + $0xfa0] sm:$0xf]
    %v1113 = vld [vmem:[#allocation2 + $0xfa4] sm:$0xf]
    %v1114 = vld [vmem:[#allocation2 + $0xfa8] sm:$0xf]
    %v1115 = vld [vmem:[#allocation2 + $0xfac] sm:$0xf]
    %v1116 = vld [vmem:[#allocation2 + $0xfb0] sm:$0xf]
    %v1117 = vld [vmem:[#allocation2 + $0xfb4] sm:$0xf]
    %v1118 = vld [vmem:[#allocation2 + $0xfb8] sm:$0xf]
    %v1119 = vld [vmem:[#allocation2 + $0xfbc] sm:$0xf]
    %v1120 = vld [vmem:[#allocation2 + $0xfc0] sm:$0xf]
    %v1121 = vld [vmem:[#allocation2 + $0xfc4] sm:$0xf]
    %v1122 = vld [vmem:[#allocation2 + $0xfc8] sm:$0xf]
    %v1123 = vld [vmem:[#allocation2 + $0xfcc] sm:$0xf]
    %v1124 = vld [vmem:[#allocation2 + $0xfd0] sm:$0xf]
    %v1125 = vld [vmem:[#allocation2 + $0xfd4] sm:$0xf]
    %v1126 = vld [vmem:[#allocation2 + $0xfd8] sm:$0xf]
    %v1127 = vld [vmem:[#allocation2 + $0xfdc] sm:$0xf]
    %v1128 = vld [vmem:[#allocation2 + $0xfe0] sm:$0xf]
    %v1129 = vld [vmem:[#allocation2 + $0xfe4] sm:$0xf]
    %v1130 = vld [vmem:[#allocation2 + $0xfe8] sm:$0xf]
    %v1131 = vld [vmem:[#allocation2 + $0xfec] sm:$0xf]
    %v1132 = vld [vmem:[#allocation2 + $0xff0] sm:$0xf]
    %v1133 = vld [vmem:[#allocation2 + $0xff4] sm:$0xf]
    %v1134 = vld [vmem:[#allocation2 + $0xff8] sm:$0xf]
    %v1135 = vld [vmem:[#allocation2 + $0xffc] sm:$0xf]
    %v1136 = vld [vmem:[#allocation2 + $0x1000] sm:$0xf]
    %v1137 = vld [vmem:[#allocation2 + $0x1004] sm:$0xf]
    %v1138 = vld [vmem:[#allocation2 + $0x1008] sm:$0xf]
    %v1139 = vld [vmem:[#allocation2 + $0x100c] sm:$0xf]
    %v1140 = vld [vmem:[#allocation2 + $0x1010] sm:$0xf]
    %v1141 = vld [vmem:[#allocation2 + $0x1014] sm:$0xf]
    %v1142 = vld [vmem:[#allocation2 + $0x1018] sm:$0xf]
    %v1143 = vld [vmem:[#allocation2 + $0x101c] sm:$0xf]
    %v1144 = vld [vmem:[#allocation2 + $0x1020] sm:$0xf]
    %v1145 = vld [vmem:[#allocation2 + $0x1024] sm:$0xf]
    %v1146 = vld [vmem:[#allocation2 + $0x1028] sm:$0xf]
    %v1147 = vld [vmem:[#allocation2 + $0x102c] sm:$0xf]
    %v1148 = vld [vmem:[#allocation2 + $0x1030] sm:$0xf]
    %v1149 = vld [vmem:[#allocation2 + $0x1034] sm:$0xf]
    %v1150 = vld [vmem:[#allocation2 + $0x1038] sm:$0xf]
    %v1151 = vld [vmem:[#allocation2 + $0x103c] sm:$0xf]
    %v1152 = vld [vmem:[#allocation2 + $0x1040] sm:$0xf]
    %v1153 = vld [vmem:[#allocation2 + $0x1044] sm:$0xf]
    %v1154 = vld [vmem:[#allocation2 + $0x1048] sm:$0xf]
    %v1155 = vld [vmem:[#allocation2 + $0x104c] sm:$0xf]
    %v1156 = vld [vmem:[#allocation2 + $0x1050] sm:$0xf]
    %v1157 = vld [vmem:[#allocation2 + $0x1054] sm:$0xf]
    %v1158 = vld [vmem:[#allocation2 + $0x1058] sm:$0xf]
    %v1159 = vld [vmem:[#allocation2 + $0x105c] sm:$0xf]
    %v1160 = vld [vmem:[#allocation2 + $0x1060] sm:$0xf]
    %v1161 = vld [vmem:[#allocation2 + $0x1064] sm:$0xf]
    %v1162 = vld [vmem:[#allocation2 + $0x1068] sm:$0xf]
    %v1163 = vld [vmem:[#allocation2 + $0x106c] sm:$0xf]
    %v1164 = vld [vmem:[#allocation2 + $0x1070] sm:$0xf]
    %v1165 = vld [vmem:[#allocation2 + $0x1074] sm:$0xf]
    %v1166 = vld [vmem:[#allocation2 + $0x1078] sm:$0xf]
    %v1167 = vld [vmem:[#allocation2 + $0x107c] sm:$0xf]
    %v1168 = vld [vmem:[#allocation4] sm:$0x1]
    %v1170 = vlaneseq
    %v1171 = vshrl.u32 %v1170, 7
    %v1172 = vsub.s32 0, %v1171
    %v1173 = vrot.slane %v1168, %v1172
    %v1184 = vcombine.high %v103, %v103
    %v1186 = vunpack.c.l.s4 1966171168
    %v1187 = vunpack.c.0.s8 %v1186
    %v1188 = vlaneseq
    %v1189 = vshrl.u32 %v1188, 7
    %v1190 = vsub.s32 %v1187, %v1189
    %v1191 = vrot.slane %v103, %v1190
    %v1193 = vunpack.c.l.s4 1966171168
    %v1194 = vunpack.c.0.s8 %v1193
    %v1195 = vlaneseq
    %v1196 = vshrl.u32 %v1195, 7
    %v1197 = vsub.s32 %v1194, %v1196
    %v1198 = vrot.slane %v1184, %v1197
    %v1199 = vcombine.high %v1191, %v1191
    %v1200 = vcombine.high %v1198, %v1198
    %v1202 = vunpack.c.l.s4 1966171168
    %v1203 = vunpack.c.0.s8 %v1202
    %v1204 = vlaneseq
    %v1205 = vshrl.u32 %v1204, 7
    %v1206 = vsub.s32 %v1203, %v1205
    %v1207 = vrot.slane %v1191, %v1206
    %v1209 = vunpack.c.l.s4 1966171168
    %v1210 = vunpack.c.0.s8 %v1209
    %v1211 = vlaneseq
    %v1212 = vshrl.u32 %v1211, 7
    %v1213 = vsub.s32 %v1210, %v1212
    %v1214 = vrot.slane %v1198, %v1213
    %v1216 = vunpack.c.l.s4 1966171168
    %v1217 = vunpack.c.0.s8 %v1216
    %v1218 = vlaneseq
    %v1219 = vshrl.u32 %v1218, 7
    %v1220 = vsub.s32 %v1217, %v1219
    %v1221 = vrot.slane %v1199, %v1220
    %v1223 = vunpack.c.l.s4 1966171168
    %v1224 = vunpack.c.0.s8 %v1223
    %v1225 = vlaneseq
    %v1226 = vshrl.u32 %v1225, 7
    %v1227 = vsub.s32 %v1224, %v1226
    %v1228 = vrot.slane %v1200, %v1227
    %v1229 = vcombine.high %v1207, %v1207
    %v1230 = vcombine.high %v1214, %v1214
    %v1231 = vcombine.high %v1221, %v1221
    %v1232 = vcombine.high %v1228, %v1228
    %v1233 = vcombine.high %v104, %v104
    %v1235 = vunpack.c.l.s4 1966171168
    %v1236 = vunpack.c.0.s8 %v1235
    %v1237 = vlaneseq
    %v1238 = vshrl.u32 %v1237, 7
    %v1239 = vsub.s32 %v1236, %v1238
    %v1240 = vrot.slane %v104, %v1239
    %v1242 = vunpack.c.l.s4 1966171168
    %v1243 = vunpack.c.0.s8 %v1242
    %v1244 = vlaneseq
    %v1245 = vshrl.u32 %v1244, 7
    %v1246 = vsub.s32 %v1243, %v1245
    %v1247 = vrot.slane %v1233, %v1246
    %v1248 = vcombine.high %v1240, %v1240
    %v1249 = vcombine.high %v1247, %v1247
    %v1251 = vunpack.c.l.s4 1966171168
    %v1252 = vunpack.c.0.s8 %v1251
    %v1253 = vlaneseq
    %v1254 = vshrl.u32 %v1253, 7
    %v1255 = vsub.s32 %v1252, %v1254
    %v1256 = vrot.slane %v1240, %v1255
    %v1258 = vunpack.c.l.s4 1966171168
    %v1259 = vunpack.c.0.s8 %v1258
    %v1260 = vlaneseq
    %v1261 = vshrl.u32 %v1260, 7
    %v1262 = vsub.s32 %v1259, %v1261
    %v1263 = vrot.slane %v1247, %v1262
    %v1265 = vunpack.c.l.s4 1966171168
    %v1266 = vunpack.c.0.s8 %v1265
    %v1267 = vlaneseq
    %v1268 = vshrl.u32 %v1267, 7
    %v1269 = vsub.s32 %v1266, %v1268
    %v1270 = vrot.slane %v1248, %v1269
    %v1272 = vunpack.c.l.s4 1966171168
    %v1273 = vunpack.c.0.s8 %v1272
    %v1274 = vlaneseq
    %v1275 = vshrl.u32 %v1274, 7
    %v1276 = vsub.s32 %v1273, %v1275
    %v1277 = vrot.slane %v1249, %v1276
    %v1278 = vcombine.high %v1256, %v1256
    %v1279 = vcombine.high %v1263, %v1263
    %v1280 = vcombine.high %v1270, %v1270
    %v1281 = vcombine.high %v1277, %v1277
    %v1282 = vcombine.high %v105, %v105
    %v1284 = vunpack.c.l.s4 1966171168
    %v1285 = vunpack.c.0.s8 %v1284
    %v1286 = vlaneseq
    %v1287 = vshrl.u32 %v1286, 7
    %v1288 = vsub.s32 %v1285, %v1287
    %v1289 = vrot.slane %v105, %v1288
    %v1291 = vunpack.c.l.s4 1966171168
    %v1292 = vunpack.c.0.s8 %v1291
    %v1293 = vlaneseq
    %v1294 = vshrl.u32 %v1293, 7
    %v1295 = vsub.s32 %v1292, %v1294
    %v1296 = vrot.slane %v1282, %v1295
    %v1297 = vcombine.high %v1289, %v1289
    %v1298 = vcombine.high %v1296, %v1296
    %v1300 = vunpack.c.l.s4 1966171168
    %v1301 = vunpack.c.0.s8 %v1300
    %v1302 = vlaneseq
    %v1303 = vshrl.u32 %v1302, 7
    %v1304 = vsub.s32 %v1301, %v1303
    %v1305 = vrot.slane %v1289, %v1304
    %v1307 = vunpack.c.l.s4 1966171168
    %v1308 = vunpack.c.0.s8 %v1307
    %v1309 = vlaneseq
    %v1310 = vshrl.u32 %v1309, 7
    %v1311 = vsub.s32 %v1308, %v1310
    %v1312 = vrot.slane %v1296, %v1311
    %v1314 = vunpack.c.l.s4 1966171168
    %v1315 = vunpack.c.0.s8 %v1314
    %v1316 = vlaneseq
    %v1317 = vshrl.u32 %v1316, 7
    %v1318 = vsub.s32 %v1315, %v1317
    %v1319 = vrot.slane %v1297, %v1318
    %v1321 = vunpack.c.l.s4 1966171168
    %v1322 = vunpack.c.0.s8 %v1321
    %v1323 = vlaneseq
    %v1324 = vshrl.u32 %v1323, 7
    %v1325 = vsub.s32 %v1322, %v1324
    %v1326 = vrot.slane %v1298, %v1325
    %v1327 = vcombine.high %v1305, %v1305
    %v1328 = vcombine.high %v1312, %v1312
    %v1329 = vcombine.high %v1319, %v1319
    %v1330 = vcombine.high %v1326, %v1326
    %v1331 = vcombine.high %v106, %v106
    %v1333 = vunpack.c.l.s4 1966171168
    %v1334 = vunpack.c.0.s8 %v1333
    %v1335 = vlaneseq
    %v1336 = vshrl.u32 %v1335, 7
    %v1337 = vsub.s32 %v1334, %v1336
    %v1338 = vrot.slane %v106, %v1337
    %v1340 = vunpack.c.l.s4 1966171168
    %v1341 = vunpack.c.0.s8 %v1340
    %v1342 = vlaneseq
    %v1343 = vshrl.u32 %v1342, 7
    %v1344 = vsub.s32 %v1341, %v1343
    %v1345 = vrot.slane %v1331, %v1344
    %v1346 = vcombine.high %v1338, %v1338
    %v1347 = vcombine.high %v1345, %v1345
    %v1349 = vunpack.c.l.s4 1966171168
    %v1350 = vunpack.c.0.s8 %v1349
    %v1351 = vlaneseq
    %v1352 = vshrl.u32 %v1351, 7
    %v1353 = vsub.s32 %v1350, %v1352
    %v1354 = vrot.slane %v1338, %v1353
    %v1356 = vunpack.c.l.s4 1966171168
    %v1357 = vunpack.c.0.s8 %v1356
    %v1358 = vlaneseq
    %v1359 = vshrl.u32 %v1358, 7
    %v1360 = vsub.s32 %v1357, %v1359
    %v1361 = vrot.slane %v1345, %v1360
    %v1363 = vunpack.c.l.s4 1966171168
    %v1364 = vunpack.c.0.s8 %v1363
    %v1365 = vlaneseq
    %v1366 = vshrl.u32 %v1365, 7
    %v1367 = vsub.s32 %v1364, %v1366
    %v1368 = vrot.slane %v1346, %v1367
    %v1370 = vunpack.c.l.s4 1966171168
    %v1371 = vunpack.c.0.s8 %v1370
    %v1372 = vlaneseq
    %v1373 = vshrl.u32 %v1372, 7
    %v1374 = vsub.s32 %v1371, %v1373
    %v1375 = vrot.slane %v1347, %v1374
    %v1376 = vcombine.high %v1354, %v1354
    %v1377 = vcombine.high %v1361, %v1361
    %v1378 = vcombine.high %v1368, %v1368
    %v1379 = vcombine.high %v1375, %v1375
    %v1380 = vcombine.high %v107, %v107
    %v1382 = vunpack.c.l.s4 1966171168
    %v1383 = vunpack.c.0.s8 %v1382
    %v1384 = vlaneseq
    %v1385 = vshrl.u32 %v1384, 7
    %v1386 = vsub.s32 %v1383, %v1385
    %v1387 = vrot.slane %v107, %v1386
    %v1389 = vunpack.c.l.s4 1966171168
    %v1390 = vunpack.c.0.s8 %v1389
    %v1391 = vlaneseq
    %v1392 = vshrl.u32 %v1391, 7
    %v1393 = vsub.s32 %v1390, %v1392
    %v1394 = vrot.slane %v1380, %v1393
    %v1395 = vcombine.high %v1387, %v1387
    %v1396 = vcombine.high %v1394, %v1394
    %v1398 = vunpack.c.l.s4 1966171168
    %v1399 = vunpack.c.0.s8 %v1398
    %v1400 = vlaneseq
    %v1401 = vshrl.u32 %v1400, 7
    %v1402 = vsub.s32 %v1399, %v1401
    %v1403 = vrot.slane %v1387, %v1402
    %v1405 = vunpack.c.l.s4 1966171168
    %v1406 = vunpack.c.0.s8 %v1405
    %v1407 = vlaneseq
    %v1408 = vshrl.u32 %v1407, 7
    %v1409 = vsub.s32 %v1406, %v1408
    %v1410 = vrot.slane %v1394, %v1409
    %v1412 = vunpack.c.l.s4 1966171168
    %v1413 = vunpack.c.0.s8 %v1412
    %v1414 = vlaneseq
    %v1415 = vshrl.u32 %v1414, 7
    %v1416 = vsub.s32 %v1413, %v1415
    %v1417 = vrot.slane %v1395, %v1416
    %v1419 = vunpack.c.l.s4 1966171168
    %v1420 = vunpack.c.0.s8 %v1419
    %v1421 = vlaneseq
    %v1422 = vshrl.u32 %v1421, 7
    %v1423 = vsub.s32 %v1420, %v1422
    %v1424 = vrot.slane %v1396, %v1423
    %v1425 = vcombine.high %v1403, %v1403
    %v1426 = vcombine.high %v1410, %v1410
    %v1427 = vcombine.high %v1417, %v1417
    %v1428 = vcombine.high %v1424, %v1424
    %v1429 = vcombine.high %v108, %v108
    %v1431 = vunpack.c.l.s4 1966171168
    %v1432 = vunpack.c.0.s8 %v1431
    %v1433 = vlaneseq
    %v1434 = vshrl.u32 %v1433, 7
    %v1435 = vsub.s32 %v1432, %v1434
    %v1436 = vrot.slane %v108, %v1435
    %v1438 = vunpack.c.l.s4 1966171168
    %v1439 = vunpack.c.0.s8 %v1438
    %v1440 = vlaneseq
    %v1441 = vshrl.u32 %v1440, 7
    %v1442 = vsub.s32 %v1439, %v1441
    %v1443 = vrot.slane %v1429, %v1442
    %v1444 = vcombine.high %v1436, %v1436
    %v1445 = vcombine.high %v1443, %v1443
    %v1447 = vunpack.c.l.s4 1966171168
    %v1448 = vunpack.c.0.s8 %v1447
    %v1449 = vlaneseq
    %v1450 = vshrl.u32 %v1449, 7
    %v1451 = vsub.s32 %v1448, %v1450
    %v1452 = vrot.slane %v1436, %v1451
    %v1454 = vunpack.c.l.s4 1966171168
    %v1455 = vunpack.c.0.s8 %v1454
    %v1456 = vlaneseq
    %v1457 = vshrl.u32 %v1456, 7
    %v1458 = vsub.s32 %v1455, %v1457
    %v1459 = vrot.slane %v1443, %v1458
    %v1461 = vunpack.c.l.s4 1966171168
    %v1462 = vunpack.c.0.s8 %v1461
    %v1463 = vlaneseq
    %v1464 = vshrl.u32 %v1463, 7
    %v1465 = vsub.s32 %v1462, %v1464
    %v1466 = vrot.slane %v1444, %v1465
    %v1468 = vunpack.c.l.s4 1966171168
    %v1469 = vunpack.c.0.s8 %v1468
    %v1470 = vlaneseq
    %v1471 = vshrl.u32 %v1470, 7
    %v1472 = vsub.s32 %v1469, %v1471
    %v1473 = vrot.slane %v1445, %v1472
    %v1474 = vcombine.high %v1452, %v1452
    %v1475 = vcombine.high %v1459, %v1459
    %v1476 = vcombine.high %v1466, %v1466
    %v1477 = vcombine.high %v1473, %v1473
    %v1478 = vcombine.high %v109, %v109
    %v1480 = vunpack.c.l.s4 1966171168
    %v1481 = vunpack.c.0.s8 %v1480
    %v1482 = vlaneseq
    %v1483 = vshrl.u32 %v1482, 7
    %v1484 = vsub.s32 %v1481, %v1483
    %v1485 = vrot.slane %v109, %v1484
    %v1487 = vunpack.c.l.s4 1966171168
    %v1488 = vunpack.c.0.s8 %v1487
    %v1489 = vlaneseq
    %v1490 = vshrl.u32 %v1489, 7
    %v1491 = vsub.s32 %v1488, %v1490
    %v1492 = vrot.slane %v1478, %v1491
    %v1493 = vcombine.high %v1485, %v1485
    %v1494 = vcombine.high %v1492, %v1492
    %v1496 = vunpack.c.l.s4 1966171168
    %v1497 = vunpack.c.0.s8 %v1496
    %v1498 = vlaneseq
    %v1499 = vshrl.u32 %v1498, 7
    %v1500 = vsub.s32 %v1497, %v1499
    %v1501 = vrot.slane %v1485, %v1500
    %v1503 = vunpack.c.l.s4 1966171168
    %v1504 = vunpack.c.0.s8 %v1503
    %v1505 = vlaneseq
    %v1506 = vshrl.u32 %v1505, 7
    %v1507 = vsub.s32 %v1504, %v1506
    %v1508 = vrot.slane %v1492, %v1507
    %v1510 = vunpack.c.l.s4 1966171168
    %v1511 = vunpack.c.0.s8 %v1510
    %v1512 = vlaneseq
    %v1513 = vshrl.u32 %v1512, 7
    %v1514 = vsub.s32 %v1511, %v1513
    %v1515 = vrot.slane %v1493, %v1514
    %v1517 = vunpack.c.l.s4 1966171168
    %v1518 = vunpack.c.0.s8 %v1517
    %v1519 = vlaneseq
    %v1520 = vshrl.u32 %v1519, 7
    %v1521 = vsub.s32 %v1518, %v1520
    %v1522 = vrot.slane %v1494, %v1521
    %v1523 = vcombine.high %v1501, %v1501
    %v1524 = vcombine.high %v1508, %v1508
    %v1525 = vcombine.high %v1515, %v1515
    %v1526 = vcombine.high %v1522, %v1522
    %v1527 = vcombine.high %v110, %v110
    %v1529 = vunpack.c.l.s4 1966171168
    %v1530 = vunpack.c.0.s8 %v1529
    %v1531 = vlaneseq
    %v1532 = vshrl.u32 %v1531, 7
    %v1533 = vsub.s32 %v1530, %v1532
    %v1534 = vrot.slane %v110, %v1533
    %v1536 = vunpack.c.l.s4 1966171168
    %v1537 = vunpack.c.0.s8 %v1536
    %v1538 = vlaneseq
    %v1539 = vshrl.u32 %v1538, 7
    %v1540 = vsub.s32 %v1537, %v1539
    %v1541 = vrot.slane %v1527, %v1540
    %v1542 = vcombine.high %v1534, %v1534
    %v1543 = vcombine.high %v1541, %v1541
    %v1545 = vunpack.c.l.s4 1966171168
    %v1546 = vunpack.c.0.s8 %v1545
    %v1547 = vlaneseq
    %v1548 = vshrl.u32 %v1547, 7
    %v1549 = vsub.s32 %v1546, %v1548
    %v1550 = vrot.slane %v1534, %v1549
    %v1552 = vunpack.c.l.s4 1966171168
    %v1553 = vunpack.c.0.s8 %v1552
    %v1554 = vlaneseq
    %v1555 = vshrl.u32 %v1554, 7
    %v1556 = vsub.s32 %v1553, %v1555
    %v1557 = vrot.slane %v1541, %v1556
    %v1559 = vunpack.c.l.s4 1966171168
    %v1560 = vunpack.c.0.s8 %v1559
    %v1561 = vlaneseq
    %v1562 = vshrl.u32 %v1561, 7
    %v1563 = vsub.s32 %v1560, %v1562
    %v1564 = vrot.slane %v1542, %v1563
    %v1566 = vunpack.c.l.s4 1966171168
    %v1567 = vunpack.c.0.s8 %v1566
    %v1568 = vlaneseq
    %v1569 = vshrl.u32 %v1568, 7
    %v1570 = vsub.s32 %v1567, %v1569
    %v1571 = vrot.slane %v1543, %v1570
    %v1572 = vcombine.high %v1550, %v1550
    %v1573 = vcombine.high %v1557, %v1557
    %v1574 = vcombine.high %v1564, %v1564
    %v1575 = vcombine.high %v1571, %v1571
    %v1577 = vunpack.c.l.s4 1966171168
    %v1578 = vunpack.c.0.s8 %v1577
    %v1579 = vlaneseq
    %v1580 = vshrl.u32 %v1579, 7
    %v1581 = vsub.s32 %v1578, %v1580
    %v1582 = vrot.slane %v111, %v1581
    %v1583 = vcombine.high %v1582, %v1582
    %v1585 = vunpack.c.l.s4 1966171168
    %v1586 = vunpack.c.0.s8 %v1585
    %v1587 = vlaneseq
    %v1588 = vshrl.u32 %v1587, 7
    %v1589 = vsub.s32 %v1586, %v1588
    %v1590 = vrot.slane %v1582, %v1589
    %v1592 = vunpack.c.l.s4 1966171168
    %v1593 = vunpack.c.0.s8 %v1592
    %v1594 = vlaneseq
    %v1595 = vshrl.u32 %v1594, 7
    %v1596 = vsub.s32 %v1593, %v1595
    %v1597 = vrot.slane %v1583, %v1596
    %v2720 = vunpack.c.l.b16 %v112
    %v2721 = vunpack.c.l.b16 %v113
    %v2722 = vunpack.c.l.b16 %v114
    %v2723 = vunpack.c.l.b16 %v115
    %v2724 = vunpack.c.l.b16 %v116
    %v2725 = vunpack.c.l.b16 %v117
    %v2726 = vunpack.c.l.b16 %v118
    %v2727 = vunpack.c.l.b16 %v119
    %v2728 = vunpack.c.l.b16 %v120
    %v2729 = vunpack.c.l.b16 %v121
    %v2730 = vunpack.c.l.b16 %v122
    %v2731 = vunpack.c.l.b16 %v123
    %v2732 = vunpack.c.l.b16 %v124
    %v2733 = vunpack.c.l.b16 %v125
    %v2734 = vunpack.c.l.b16 %v126
    %v2735 = vunpack.c.l.b16 %v127
    %v2736 = vunpack.c.l.b16 %v128
    %v2737 = vunpack.c.l.b16 %v129
    %v2738 = vunpack.c.l.b16 %v130
    %v2739 = vunpack.c.l.b16 %v131
    %v2740 = vunpack.c.l.b16 %v132
    %v2741 = vunpack.c.l.b16 %v133
    %v2742 = vunpack.c.l.b16 %v134
    %v2743 = vunpack.c.l.b16 %v135
    %v2744 = vunpack.c.l.b16 %v136
    %v2745 = vunpack.c.l.b16 %v137
    %v2746 = vunpack.c.l.b16 %v138
    %v2747 = vunpack.c.l.b16 %v139
    %v2748 = vunpack.c.l.b16 %v140
    %v2749 = vunpack.c.l.b16 %v141
    %v2750 = vunpack.c.l.b16 %v142
    %v2751 = vunpack.c.l.b16 %v143
    %v2752 = vunpack.c.l.b16 %v144
    %v2753 = vunpack.c.l.b16 %v145
    %v2754 = vunpack.c.l.b16 %v146
    %v2755 = vunpack.c.l.b16 %v147
    %v2756 = vunpack.c.l.b16 %v148
    %v2757 = vunpack.c.l.b16 %v149
    %v2758 = vunpack.c.l.b16 %v150
    %v2759 = vunpack.c.l.b16 %v151
    %v2760 = vunpack.c.l.b16 %v152
    %v2761 = vunpack.c.l.b16 %v153
    %v2762 = vunpack.c.l.b16 %v154
    %v2763 = vunpack.c.l.b16 %v155
    %v2764 = vunpack.c.l.b16 %v156
    %v2765 = vunpack.c.l.b16 %v157
    %v2766 = vunpack.c.l.b16 %v158
    %v2767 = vunpack.c.l.b16 %v159
    %v2768 = vunpack.c.l.b16 %v160
    %v2769 = vunpack.c.l.b16 %v161
    %v2770 = vunpack.c.l.b16 %v162
    %v2771 = vunpack.c.l.b16 %v163
    %v2772 = vunpack.c.l.b16 %v164
    %v2773 = vunpack.c.l.b16 %v165
    %v2774 = vunpack.c.l.b16 %v166
    %v2775 = vunpack.c.l.b16 %v167
    %v2776 = vunpack.c.l.b16 %v168
    %v2777 = vunpack.c.l.b16 %v169
    %v2778 = vunpack.c.l.b16 %v170
    %v2779 = vunpack.c.l.b16 %v171
    %v2780 = vunpack.c.l.b16 %v172
    %v2781 = vunpack.c.l.b16 %v173
    %v2782 = vunpack.c.l.b16 %v174
    %v2783 = vunpack.c.l.b16 %v175
    %v2784 = vunpack.c.l.b16 %v176
    %v2785 = vunpack.c.l.b16 %v177
    %v2786 = vunpack.c.l.b16 %v178
    %v2787 = vunpack.c.l.b16 %v179
    %v2788 = vunpack.c.l.b16 %v180
    %v2789 = vunpack.c.l.b16 %v181
    %v2790 = vunpack.c.l.b16 %v182
    %v2791 = vunpack.c.l.b16 %v183
    %v2792 = vunpack.c.l.b16 %v184
    %v2793 = vunpack.c.l.b16 %v185
    %v2794 = vunpack.c.l.b16 %v186
    %v2795 = vunpack.c.l.b16 %v187
    %v2796 = vunpack.c.l.b16 %v188
    %v2797 = vunpack.c.l.b16 %v189
    %v2798 = vunpack.c.l.b16 %v190
    %v2799 = vunpack.c.l.b16 %v191
    %v2800 = vunpack.c.l.b16 %v192
    %v2801 = vunpack.c.l.b16 %v193
    %v2802 = vunpack.c.l.b16 %v194
    %v2803 = vunpack.c.l.b16 %v195
    %v2804 = vunpack.c.l.b16 %v196
    %v2805 = vunpack.c.l.b16 %v197
    %v2806 = vunpack.c.l.b16 %v198
    %v2807 = vunpack.c.l.b16 %v199
    %v2808 = vunpack.c.l.b16 %v200
    %v2809 = vunpack.c.l.b16 %v201
    %v2810 = vunpack.c.l.b16 %v202
    %v2811 = vunpack.c.l.b16 %v203
    %v2812 = vunpack.c.l.b16 %v204
    %v2813 = vunpack.c.l.b16 %v205
    %v2814 = vunpack.c.l.b16 %v206
    %v2815 = vunpack.c.l.b16 %v207
    %v2816 = vunpack.c.l.b16 %v208
    %v2817 = vunpack.c.l.b16 %v209
    %v2818 = vunpack.c.l.b16 %v210
    %v2819 = vunpack.c.l.b16 %v211
    %v2820 = vunpack.c.l.b16 %v212
    %v2821 = vunpack.c.l.b16 %v213
    %v2822 = vunpack.c.l.b16 %v214
    %v2823 = vunpack.c.l.b16 %v215
    %v2824 = vunpack.c.l.b16 %v216
    %v2825 = vunpack.c.l.b16 %v217
    %v2826 = vunpack.c.l.b16 %v218
    %v2827 = vunpack.c.l.b16 %v219
    %v2828 = vunpack.c.l.b16 %v220
    %v2829 = vunpack.c.l.b16 %v221
    %v2830 = vunpack.c.l.b16 %v222
    %v2831 = vunpack.c.l.b16 %v223
    %v2832 = vunpack.c.l.b16 %v224
    %v2833 = vunpack.c.l.b16 %v225
    %v2834 = vunpack.c.l.b16 %v226
    %v2835 = vunpack.c.l.b16 %v227
    %v2836 = vunpack.c.l.b16 %v228
    %v2837 = vunpack.c.l.b16 %v229
    %v2838 = vunpack.c.l.b16 %v230
    %v2839 = vunpack.c.l.b16 %v231
    %v2840 = vunpack.c.l.b16 %v232
    %v2841 = vunpack.c.l.b16 %v233
    %v2842 = vunpack.c.l.b16 %v234
    %v2843 = vunpack.c.l.b16 %v235
    %v2844 = vunpack.c.l.b16 %v236
    %v2845 = vunpack.c.l.b16 %v237
    %v2846 = vunpack.c.l.b16 %v238
    %v2847 = vunpack.c.l.b16 %v239
    %v2848 = vunpack.c.l.b16 %v240
    %v2849 = vunpack.c.l.b16 %v241
    %v2850 = vunpack.c.l.b16 %v242
    %v2851 = vunpack.c.l.b16 %v243
    %v2852 = vunpack.c.l.b16 %v244
    %v2853 = vunpack.c.l.b16 %v245
    %v2854 = vunpack.c.l.b16 %v246
    %v2855 = vunpack.c.l.b16 %v247
    %v2856 = vunpack.c.l.b16 %v248
    %v2857 = vunpack.c.l.b16 %v249
    %v2858 = vunpack.c.l.b16 %v250
    %v2859 = vunpack.c.l.b16 %v251
    %v2860 = vunpack.c.l.b16 %v252
    %v2861 = vunpack.c.l.b16 %v253
    %v2862 = vunpack.c.l.b16 %v254
    %v2863 = vunpack.c.l.b16 %v255
    %v2864 = vunpack.c.l.b16 %v256
    %v2865 = vunpack.c.l.b16 %v257
    %v2866 = vunpack.c.l.b16 %v258
    %v2867 = vunpack.c.l.b16 %v259
    %v2868 = vunpack.c.l.b16 %v260
    %v2869 = vunpack.c.l.b16 %v261
    %v2870 = vunpack.c.l.b16 %v262
    %v2871 = vunpack.c.l.b16 %v263
    %v2872 = vunpack.c.l.b16 %v264
    %v2873 = vunpack.c.l.b16 %v265
    %v2874 = vunpack.c.l.b16 %v266
    %v2875 = vunpack.c.l.b16 %v267
    %v2876 = vunpack.c.l.b16 %v268
    %v2877 = vunpack.c.l.b16 %v269
    %v2878 = vunpack.c.l.b16 %v270
    %v2879 = vunpack.c.l.b16 %v271
    %v2880 = vunpack.c.l.b16 %v272
    %v2881 = vunpack.c.l.b16 %v273
    %v2882 = vunpack.c.l.b16 %v274
    %v2883 = vunpack.c.l.b16 %v275
    %v2884 = vunpack.c.l.b16 %v276
    %v2885 = vunpack.c.l.b16 %v277
    %v2886 = vunpack.c.l.b16 %v278
    %v2887 = vunpack.c.l.b16 %v279
    %v2888 = vunpack.c.l.b16 %v280
    %v2889 = vunpack.c.l.b16 %v281
    %v2890 = vunpack.c.l.b16 %v282
    %v2891 = vunpack.c.l.b16 %v283
    %v2892 = vunpack.c.l.b16 %v284
    %v2893 = vunpack.c.l.b16 %v285
    %v2894 = vunpack.c.l.b16 %v286
    %v2895 = vunpack.c.l.b16 %v287
    %v2896 = vunpack.c.l.b16 %v288
    %v2897 = vunpack.c.l.b16 %v289
    %v2898 = vunpack.c.l.b16 %v290
    %v2899 = vunpack.c.l.b16 %v291
    %v2900 = vunpack.c.l.b16 %v292
    %v2901 = vunpack.c.l.b16 %v293
    %v2902 = vunpack.c.l.b16 %v294
    %v2903 = vunpack.c.l.b16 %v295
    %v2904 = vunpack.c.l.b16 %v296
    %v2905 = vunpack.c.l.b16 %v297
    %v2906 = vunpack.c.l.b16 %v298
    %v2907 = vunpack.c.l.b16 %v299
    %v2908 = vunpack.c.l.b16 %v300
    %v2909 = vunpack.c.l.b16 %v301
    %v2910 = vunpack.c.l.b16 %v302
    %v2911 = vunpack.c.l.b16 %v303
    %v2912 = vunpack.c.l.b16 %v304
    %v2913 = vunpack.c.l.b16 %v305
    %v2914 = vunpack.c.l.b16 %v306
    %v2915 = vunpack.c.l.b16 %v307
    %v2916 = vunpack.c.l.b16 %v308
    %v2917 = vunpack.c.l.b16 %v309
    %v2918 = vunpack.c.l.b16 %v310
    %v2919 = vunpack.c.l.b16 %v311
    %v2920 = vunpack.c.l.b16 %v312
    %v2921 = vunpack.c.l.b16 %v313
    %v2922 = vunpack.c.l.b16 %v314
    %v2923 = vunpack.c.l.b16 %v315
    %v2924 = vunpack.c.l.b16 %v316
    %v2925 = vunpack.c.l.b16 %v317
    %v2926 = vunpack.c.l.b16 %v318
    %v2927 = vunpack.c.l.b16 %v319
    %v2928 = vunpack.c.l.b16 %v320
    %v2929 = vunpack.c.l.b16 %v321
    %v2930 = vunpack.c.l.b16 %v322
    %v2931 = vunpack.c.l.b16 %v323
    %v2932 = vunpack.c.l.b16 %v324
    %v2933 = vunpack.c.l.b16 %v325
    %v2934 = vunpack.c.l.b16 %v326
    %v2935 = vunpack.c.l.b16 %v327
    %v2936 = vunpack.c.l.b16 %v328
    %v2937 = vunpack.c.l.b16 %v329
    %v2938 = vunpack.c.l.b16 %v330
    %v2939 = vunpack.c.l.b16 %v331
    %v2940 = vunpack.c.l.b16 %v332
    %v2941 = vunpack.c.l.b16 %v333
    %v2942 = vunpack.c.l.b16 %v334
    %v2943 = vunpack.c.l.b16 %v335
    %v2944 = vunpack.c.l.b16 %v336
    %v2945 = vunpack.c.l.b16 %v337
    %v2946 = vunpack.c.l.b16 %v338
    %v2947 = vunpack.c.l.b16 %v339
    %v2948 = vunpack.c.l.b16 %v340
    %v2949 = vunpack.c.l.b16 %v341
    %v2950 = vunpack.c.l.b16 %v342
    %v2951 = vunpack.c.l.b16 %v343
    %v2952 = vunpack.c.l.b16 %v344
    %v2953 = vunpack.c.l.b16 %v345
    %v2954 = vunpack.c.l.b16 %v346
    %v2955 = vunpack.c.l.b16 %v347
    %v2956 = vunpack.c.l.b16 %v348
    %v2957 = vunpack.c.l.b16 %v349
    %v2958 = vunpack.c.l.b16 %v350
    %v2959 = vunpack.c.l.b16 %v351
    %v2960 = vunpack.c.l.b16 %v352
    %v2961 = vunpack.c.l.b16 %v353
    %v2962 = vunpack.c.l.b16 %v354
    %v2963 = vunpack.c.l.b16 %v355
    %v2964 = vunpack.c.l.b16 %v356
    %v2965 = vunpack.c.l.b16 %v357
    %v2966 = vunpack.c.l.b16 %v358
    %v2967 = vunpack.c.l.b16 %v359
    %v2968 = vunpack.c.l.b16 %v360
    %v2969 = vunpack.c.l.b16 %v361
    %v2970 = vunpack.c.l.b16 %v362
    %v2971 = vunpack.c.l.b16 %v363
    %v2972 = vunpack.c.l.b16 %v364
    %v2973 = vunpack.c.l.b16 %v365
    %v2974 = vunpack.c.l.b16 %v366
    %v2975 = vunpack.c.l.b16 %v367
    %v2976 = vunpack.c.l.b16 %v368
    %v2977 = vunpack.c.l.b16 %v369
    %v2978 = vunpack.c.l.b16 %v370
    %v2979 = vunpack.c.l.b16 %v371
    %v2980 = vunpack.c.l.b16 %v372
    %v2981 = vunpack.c.l.b16 %v373
    %v2982 = vunpack.c.l.b16 %v374
    %v2983 = vunpack.c.l.b16 %v375
    %v2984 = vunpack.c.l.b16 %v376
    %v2985 = vunpack.c.l.b16 %v377
    %v2986 = vunpack.c.l.b16 %v378
    %v2987 = vunpack.c.l.b16 %v379
    %v2988 = vunpack.c.l.b16 %v380
    %v2989 = vunpack.c.l.b16 %v381
    %v2990 = vunpack.c.l.b16 %v382
    %v2991 = vunpack.c.l.b16 %v383
    %v2992 = vunpack.c.l.b16 %v384
    %v2993 = vunpack.c.l.b16 %v385
    %v2994 = vunpack.c.l.b16 %v386
    %v2995 = vunpack.c.l.b16 %v387
    %v2996 = vunpack.c.l.b16 %v388
    %v2997 = vunpack.c.l.b16 %v389
    %v2998 = vunpack.c.l.b16 %v390
    %v2999 = vunpack.c.l.b16 %v391
    %v3000 = vunpack.c.l.b16 %v392
    %v3001 = vunpack.c.l.b16 %v393
    %v3002 = vunpack.c.l.b16 %v394
    %v3003 = vunpack.c.l.b16 %v395
    %v3004 = vunpack.c.l.b16 %v396
    %v3005 = vunpack.c.l.b16 %v397
    %v3006 = vunpack.c.l.b16 %v398
    %v3007 = vunpack.c.l.b16 %v399
    %v3008 = vunpack.c.l.b16 %v400
    %v3009 = vunpack.c.l.b16 %v401
    %v3010 = vunpack.c.l.b16 %v402
    %v3011 = vunpack.c.l.b16 %v403
    %v3012 = vunpack.c.l.b16 %v404
    %v3013 = vunpack.c.l.b16 %v405
    %v3014 = vunpack.c.l.b16 %v406
    %v3015 = vunpack.c.l.b16 %v407
    %v3016 = vunpack.c.l.b16 %v408
    %v3017 = vunpack.c.l.b16 %v409
    %v3018 = vunpack.c.l.b16 %v410
    %v3019 = vunpack.c.l.b16 %v411
    %v3020 = vunpack.c.l.b16 %v412
    %v3021 = vunpack.c.l.b16 %v413
    %v3022 = vunpack.c.l.b16 %v414
    %v3023 = vunpack.c.l.b16 %v415
    %v3024 = vunpack.c.l.b16 %v416
    %v3025 = vunpack.c.l.b16 %v417
    %v3026 = vunpack.c.l.b16 %v418
    %v3027 = vunpack.c.l.b16 %v419
    %v3028 = vunpack.c.l.b16 %v420
    %v3029 = vunpack.c.l.b16 %v421
    %v3030 = vunpack.c.l.b16 %v422
    %v3031 = vunpack.c.l.b16 %v423
    %v3032 = vunpack.c.l.b16 %v424
    %v3033 = vunpack.c.l.b16 %v425
    %v3034 = vunpack.c.l.b16 %v426
    %v3035 = vunpack.c.l.b16 %v427
    %v3036 = vunpack.c.l.b16 %v428
    %v3037 = vunpack.c.l.b16 %v429
    %v3038 = vunpack.c.l.b16 %v430
    %v3039 = vunpack.c.l.b16 %v431
    %v3040 = vunpack.c.l.b16 %v432
    %v3041 = vunpack.c.l.b16 %v433
    %v3042 = vunpack.c.l.b16 %v434
    %v3043 = vunpack.c.l.b16 %v435
    %v3044 = vunpack.c.l.b16 %v436
    %v3045 = vunpack.c.l.b16 %v437
    %v3046 = vunpack.c.l.b16 %v438
    %v3047 = vunpack.c.l.b16 %v439
    %v3048 = vunpack.c.l.b16 %v440
    %v3049 = vunpack.c.l.b16 %v441
    %v3050 = vunpack.c.l.b16 %v442
    %v3051 = vunpack.c.l.b16 %v443
    %v3052 = vunpack.c.l.b16 %v444
    %v3053 = vunpack.c.l.b16 %v445
    %v3054 = vunpack.c.l.b16 %v446
    %v3055 = vunpack.c.l.b16 %v447
    %v3056 = vunpack.c.l.b16 %v448
    %v3057 = vunpack.c.l.b16 %v449
    %v3058 = vunpack.c.l.b16 %v450
    %v3059 = vunpack.c.l.b16 %v451
    %v3060 = vunpack.c.l.b16 %v452
    %v3061 = vunpack.c.l.b16 %v453
    %v3062 = vunpack.c.l.b16 %v454
    %v3063 = vunpack.c.l.b16 %v455
    %v3064 = vunpack.c.l.b16 %v456
    %v3065 = vunpack.c.l.b16 %v457
    %v3066 = vunpack.c.l.b16 %v458
    %v3067 = vunpack.c.l.b16 %v459
    %v3068 = vunpack.c.l.b16 %v460
    %v3069 = vunpack.c.l.b16 %v461
    %v3070 = vunpack.c.l.b16 %v462
    %v3071 = vunpack.c.l.b16 %v463
    %v3072 = vunpack.c.l.b16 %v464
    %v3073 = vunpack.c.l.b16 %v465
    %v3074 = vunpack.c.l.b16 %v466
    %v3075 = vunpack.c.l.b16 %v467
    %v3076 = vunpack.c.l.b16 %v468
    %v3077 = vunpack.c.l.b16 %v469
    %v3078 = vunpack.c.l.b16 %v470
    %v3079 = vunpack.c.l.b16 %v471
    %v3080 = vunpack.c.l.b16 %v472
    %v3081 = vunpack.c.l.b16 %v473
    %v3082 = vunpack.c.l.b16 %v474
    %v3083 = vunpack.c.l.b16 %v475
    %v3084 = vunpack.c.l.b16 %v476
    %v3085 = vunpack.c.l.b16 %v477
    %v3086 = vunpack.c.l.b16 %v478
    %v3087 = vunpack.c.l.b16 %v479
    %v3088 = vunpack.c.l.b16 %v480
    %v3089 = vunpack.c.l.b16 %v481
    %v3090 = vunpack.c.l.b16 %v482
    %v3091 = vunpack.c.l.b16 %v483
    %v3092 = vunpack.c.l.b16 %v484
    %v3093 = vunpack.c.l.b16 %v485
    %v3094 = vunpack.c.l.b16 %v486
    %v3095 = vunpack.c.l.b16 %v487
    %v3096 = vunpack.c.l.b16 %v488
    %v3097 = vunpack.c.l.b16 %v489
    %v3098 = vunpack.c.l.b16 %v490
    %v3099 = vunpack.c.l.b16 %v491
    %v3100 = vunpack.c.l.b16 %v492
    %v3101 = vunpack.c.l.b16 %v493
    %v3102 = vunpack.c.l.b16 %v494
    %v3103 = vunpack.c.l.b16 %v495
    %v3104 = vunpack.c.l.b16 %v496
    %v3105 = vunpack.c.l.b16 %v497
    %v3106 = vunpack.c.l.b16 %v498
    %v3107 = vunpack.c.l.b16 %v499
    %v3108 = vunpack.c.l.b16 %v500
    %v3109 = vunpack.c.l.b16 %v501
    %v3110 = vunpack.c.l.b16 %v502
    %v3111 = vunpack.c.l.b16 %v503
    %v3112 = vunpack.c.l.b16 %v504
    %v3113 = vunpack.c.l.b16 %v505
    %v3114 = vunpack.c.l.b16 %v506
    %v3115 = vunpack.c.l.b16 %v507
    %v3116 = vunpack.c.l.b16 %v508
    %v3117 = vunpack.c.l.b16 %v509
    %v3118 = vunpack.c.l.b16 %v510
    %v3119 = vunpack.c.l.b16 %v511
    %v3120 = vunpack.c.l.b16 %v512
    %v3121 = vunpack.c.l.b16 %v513
    %v3122 = vunpack.c.l.b16 %v514
    %v3123 = vunpack.c.l.b16 %v515
    %v3124 = vunpack.c.l.b16 %v516
    %v3125 = vunpack.c.l.b16 %v517
    %v3126 = vunpack.c.l.b16 %v518
    %v3127 = vunpack.c.l.b16 %v519
    %v3128 = vunpack.c.l.b16 %v520
    %v3129 = vunpack.c.l.b16 %v521
    %v3130 = vunpack.c.l.b16 %v522
    %v3131 = vunpack.c.l.b16 %v523
    %v3132 = vunpack.c.l.b16 %v524
    %v3133 = vunpack.c.l.b16 %v525
    %v3134 = vunpack.c.l.b16 %v526
    %v3135 = vunpack.c.l.b16 %v527
    %v3136 = vunpack.c.l.b16 %v528
    %v3137 = vunpack.c.l.b16 %v529
    %v3138 = vunpack.c.l.b16 %v530
    %v3139 = vunpack.c.l.b16 %v531
    %v3140 = vunpack.c.l.b16 %v532
    %v3141 = vunpack.c.l.b16 %v533
    %v3142 = vunpack.c.l.b16 %v534
    %v3143 = vunpack.c.l.b16 %v535
    %v3144 = vunpack.c.l.b16 %v536
    %v3145 = vunpack.c.l.b16 %v537
    %v3146 = vunpack.c.l.b16 %v538
    %v3147 = vunpack.c.l.b16 %v539
    %v3148 = vunpack.c.l.b16 %v540
    %v3149 = vunpack.c.l.b16 %v541
    %v3150 = vunpack.c.l.b16 %v542
    %v3151 = vunpack.c.l.b16 %v543
    %v3152 = vunpack.c.l.b16 %v544
    %v3153 = vunpack.c.l.b16 %v545
    %v3154 = vunpack.c.l.b16 %v546
    %v3155 = vunpack.c.l.b16 %v547
    %v3156 = vunpack.c.l.b16 %v548
    %v3157 = vunpack.c.l.b16 %v549
    %v3158 = vunpack.c.l.b16 %v550
    %v3159 = vunpack.c.l.b16 %v551
    %v3160 = vunpack.c.l.b16 %v552
    %v3161 = vunpack.c.l.b16 %v553
    %v3162 = vunpack.c.l.b16 %v554
    %v3163 = vunpack.c.l.b16 %v555
    %v3164 = vunpack.c.l.b16 %v556
    %v3165 = vunpack.c.l.b16 %v557
    %v3166 = vunpack.c.l.b16 %v558
    %v3167 = vunpack.c.l.b16 %v559
    %v3168 = vunpack.c.l.b16 %v560
    %v3169 = vunpack.c.l.b16 %v561
    %v3170 = vunpack.c.l.b16 %v562
    %v3171 = vunpack.c.l.b16 %v563
    %v3172 = vunpack.c.l.b16 %v564
    %v3173 = vunpack.c.l.b16 %v565
    %v3174 = vunpack.c.l.b16 %v566
    %v3175 = vunpack.c.l.b16 %v567
    %v3176 = vunpack.c.l.b16 %v568
    %v3177 = vunpack.c.l.b16 %v569
    %v3178 = vunpack.c.l.b16 %v570
    %v3179 = vunpack.c.l.b16 %v571
    %v3180 = vunpack.c.l.b16 %v572
    %v3181 = vunpack.c.l.b16 %v573
    %v3182 = vunpack.c.l.b16 %v574
    %v3183 = vunpack.c.l.b16 %v575
    %v3184 = vunpack.c.l.b16 %v576
    %v3185 = vunpack.c.l.b16 %v577
    %v3186 = vunpack.c.l.b16 %v578
    %v3187 = vunpack.c.l.b16 %v579
    %v3188 = vunpack.c.l.b16 %v580
    %v3189 = vunpack.c.l.b16 %v581
    %v3190 = vunpack.c.l.b16 %v582
    %v3191 = vunpack.c.l.b16 %v583
    %v3192 = vunpack.c.l.b16 %v584
    %v3193 = vunpack.c.l.b16 %v585
    %v3194 = vunpack.c.l.b16 %v586
    %v3195 = vunpack.c.l.b16 %v587
    %v3196 = vunpack.c.l.b16 %v588
    %v3197 = vunpack.c.l.b16 %v589
    %v3198 = vunpack.c.l.b16 %v590
    %v3199 = vunpack.c.l.b16 %v591
    %v3200 = vunpack.c.l.b16 %v592
    %v3201 = vunpack.c.l.b16 %v593
    %v3202 = vunpack.c.l.b16 %v594
    %v3203 = vunpack.c.l.b16 %v595
    %v3204 = vunpack.c.l.b16 %v596
    %v3205 = vunpack.c.l.b16 %v597
    %v3206 = vunpack.c.l.b16 %v598
    %v3207 = vunpack.c.l.b16 %v599
    %v3208 = vunpack.c.l.b16 %v600
    %v3209 = vunpack.c.l.b16 %v601
    %v3210 = vunpack.c.l.b16 %v602
    %v3211 = vunpack.c.l.b16 %v603
    %v3212 = vunpack.c.l.b16 %v604
    %v3213 = vunpack.c.l.b16 %v605
    %v3214 = vunpack.c.l.b16 %v606
    %v3215 = vunpack.c.l.b16 %v607
    %v3216 = vunpack.c.l.b16 %v608
    %v3217 = vunpack.c.l.b16 %v609
    %v3218 = vunpack.c.l.b16 %v610
    %v3219 = vunpack.c.l.b16 %v611
    %v3220 = vunpack.c.l.b16 %v612
    %v3221 = vunpack.c.l.b16 %v613
    %v3222 = vunpack.c.l.b16 %v614
    %v3223 = vunpack.c.l.b16 %v615
    %v3224 = vunpack.c.l.b16 %v616
    %v3225 = vunpack.c.l.b16 %v617
    %v3226 = vunpack.c.l.b16 %v618
    %v3227 = vunpack.c.l.b16 %v619
    %v3228 = vunpack.c.l.b16 %v620
    %v3229 = vunpack.c.l.b16 %v621
    %v3230 = vunpack.c.l.b16 %v622
    %v3231 = vunpack.c.l.b16 %v623
    %v3232 = vunpack.c.l.b16 %v624
    %v3233 = vunpack.c.l.b16 %v625
    %v3234 = vunpack.c.l.b16 %v626
    %v3235 = vunpack.c.l.b16 %v627
    %v3236 = vunpack.c.l.b16 %v628
    %v3237 = vunpack.c.l.b16 %v629
    %v3238 = vunpack.c.l.b16 %v630
    %v3239 = vunpack.c.l.b16 %v631
    %v3240 = vunpack.c.l.b16 %v632
    %v3241 = vunpack.c.l.b16 %v633
    %v3242 = vunpack.c.l.b16 %v634
    %v3243 = vunpack.c.l.b16 %v635
    %v3244 = vunpack.c.l.b16 %v636
    %v3245 = vunpack.c.l.b16 %v637
    %v3246 = vunpack.c.l.b16 %v638
    %v3247 = vunpack.c.l.b16 %v639
    %v3248 = vunpack.c.l.b16 %v640
    %v3249 = vunpack.c.l.b16 %v641
    %v3250 = vunpack.c.l.b16 %v642
    %v3251 = vunpack.c.l.b16 %v643
    %v3252 = vunpack.c.l.b16 %v644
    %v3253 = vunpack.c.l.b16 %v645
    %v3254 = vunpack.c.l.b16 %v646
    %v3255 = vunpack.c.l.b16 %v647
    %v3256 = vunpack.c.l.b16 %v648
    %v3257 = vunpack.c.l.b16 %v649
    %v3258 = vunpack.c.l.b16 %v650
    %v3259 = vunpack.c.l.b16 %v651
    %v3260 = vunpack.c.l.b16 %v652
    %v3261 = vunpack.c.l.b16 %v653
    %v3262 = vunpack.c.l.b16 %v654
    %v3263 = vunpack.c.l.b16 %v655
    %v3264 = vunpack.c.l.b16 %v656
    %v3265 = vunpack.c.l.b16 %v657
    %v3266 = vunpack.c.l.b16 %v658
    %v3267 = vunpack.c.l.b16 %v659
    %v3268 = vunpack.c.l.b16 %v660
    %v3269 = vunpack.c.l.b16 %v661
    %v3270 = vunpack.c.l.b16 %v662
    %v3271 = vunpack.c.l.b16 %v663
    %v3272 = vunpack.c.l.b16 %v664
    %v3273 = vunpack.c.l.b16 %v665
    %v3274 = vunpack.c.l.b16 %v666
    %v3275 = vunpack.c.l.b16 %v667
    %v3276 = vunpack.c.l.b16 %v668
    %v3277 = vunpack.c.l.b16 %v669
    %v3278 = vunpack.c.l.b16 %v670
    %v3279 = vunpack.c.l.b16 %v671
    %v3280 = vunpack.c.l.b16 %v672
    %v3281 = vunpack.c.l.b16 %v673
    %v3282 = vunpack.c.l.b16 %v674
    %v3283 = vunpack.c.l.b16 %v675
    %v3284 = vunpack.c.l.b16 %v676
    %v3285 = vunpack.c.l.b16 %v677
    %v3286 = vunpack.c.l.b16 %v678
    %v3287 = vunpack.c.l.b16 %v679
    %v3288 = vunpack.c.l.b16 %v680
    %v3289 = vunpack.c.l.b16 %v681
    %v3290 = vunpack.c.l.b16 %v682
    %v3291 = vunpack.c.l.b16 %v683
    %v3292 = vunpack.c.l.b16 %v684
    %v3293 = vunpack.c.l.b16 %v685
    %v3294 = vunpack.c.l.b16 %v686
    %v3295 = vunpack.c.l.b16 %v687
    %v3296 = vunpack.c.l.b16 %v688
    %v3297 = vunpack.c.l.b16 %v689
    %v3298 = vunpack.c.l.b16 %v690
    %v3299 = vunpack.c.l.b16 %v691
    %v3300 = vunpack.c.l.b16 %v692
    %v3301 = vunpack.c.l.b16 %v693
    %v3302 = vunpack.c.l.b16 %v694
    %v3303 = vunpack.c.l.b16 %v695
    %v3304 = vunpack.c.l.b16 %v696
    %v3305 = vunpack.c.l.b16 %v697
    %v3306 = vunpack.c.l.b16 %v698
    %v3307 = vunpack.c.l.b16 %v699
    %v3308 = vunpack.c.l.b16 %v700
    %v3309 = vunpack.c.l.b16 %v701
    %v3310 = vunpack.c.l.b16 %v702
    %v3311 = vunpack.c.l.b16 %v703
    %v3312 = vunpack.c.l.b16 %v704
    %v3313 = vunpack.c.l.b16 %v705
    %v3314 = vunpack.c.l.b16 %v706
    %v3315 = vunpack.c.l.b16 %v707
    %v3316 = vunpack.c.l.b16 %v708
    %v3317 = vunpack.c.l.b16 %v709
    %v3318 = vunpack.c.l.b16 %v710
    %v3319 = vunpack.c.l.b16 %v711
    %v3320 = vunpack.c.l.b16 %v712
    %v3321 = vunpack.c.l.b16 %v713
    %v3322 = vunpack.c.l.b16 %v714
    %v3323 = vunpack.c.l.b16 %v715
    %v3324 = vunpack.c.l.b16 %v716
    %v3325 = vunpack.c.l.b16 %v717
    %v3326 = vunpack.c.l.b16 %v718
    %v3327 = vunpack.c.l.b16 %v719
    %v3328 = vunpack.c.l.b16 %v720
    %v3329 = vunpack.c.l.b16 %v721
    %v3330 = vunpack.c.l.b16 %v722
    %v3331 = vunpack.c.l.b16 %v723
    %v3332 = vunpack.c.l.b16 %v724
    %v3333 = vunpack.c.l.b16 %v725
    %v3334 = vunpack.c.l.b16 %v726
    %v3335 = vunpack.c.l.b16 %v727
    %v3336 = vunpack.c.l.b16 %v728
    %v3337 = vunpack.c.l.b16 %v729
    %v3338 = vunpack.c.l.b16 %v730
    %v3339 = vunpack.c.l.b16 %v731
    %v3340 = vunpack.c.l.b16 %v732
    %v3341 = vunpack.c.l.b16 %v733
    %v3342 = vunpack.c.l.b16 %v734
    %v3343 = vunpack.c.l.b16 %v735
    %v3344 = vunpack.c.l.b16 %v736
    %v3345 = vunpack.c.l.b16 %v737
    %v3346 = vunpack.c.l.b16 %v738
    %v3347 = vunpack.c.l.b16 %v739
    %v3348 = vunpack.c.l.b16 %v740
    %v3349 = vunpack.c.l.b16 %v741
    %v3350 = vunpack.c.l.b16 %v742
    %v3351 = vunpack.c.l.b16 %v743
    %v3352 = vunpack.c.l.b16 %v744
    %v3353 = vunpack.c.l.b16 %v745
    %v3354 = vunpack.c.l.b16 %v746
    %v3355 = vunpack.c.l.b16 %v747
    %v3356 = vunpack.c.l.b16 %v748
    %v3357 = vunpack.c.l.b16 %v749
    %v3358 = vunpack.c.l.b16 %v750
    %v3359 = vunpack.c.l.b16 %v751
    %v3360 = vunpack.c.l.b16 %v752
    %v3361 = vunpack.c.l.b16 %v753
    %v3362 = vunpack.c.l.b16 %v754
    %v3363 = vunpack.c.l.b16 %v755
    %v3364 = vunpack.c.l.b16 %v756
    %v3365 = vunpack.c.l.b16 %v757
    %v3366 = vunpack.c.l.b16 %v758
    %v3367 = vunpack.c.l.b16 %v759
    %v3368 = vunpack.c.l.b16 %v760
    %v3369 = vunpack.c.l.b16 %v761
    %v3370 = vunpack.c.l.b16 %v762
    %v3371 = vunpack.c.l.b16 %v763
    %v3372 = vunpack.c.l.b16 %v764
    %v3373 = vunpack.c.l.b16 %v765
    %v3374 = vunpack.c.l.b16 %v766
    %v3375 = vunpack.c.l.b16 %v767
    %v3376 = vunpack.c.l.b16 %v768
    %v3377 = vunpack.c.l.b16 %v769
    %v3378 = vunpack.c.l.b16 %v770
    %v3379 = vunpack.c.l.b16 %v771
    %v3380 = vunpack.c.l.b16 %v772
    %v3381 = vunpack.c.l.b16 %v773
    %v3382 = vunpack.c.l.b16 %v774
    %v3383 = vunpack.c.l.b16 %v775
    %v3384 = vunpack.c.l.b16 %v776
    %v3385 = vunpack.c.l.b16 %v777
    %v3386 = vunpack.c.l.b16 %v778
    %v3387 = vunpack.c.l.b16 %v779
    %v3388 = vunpack.c.l.b16 %v780
    %v3389 = vunpack.c.l.b16 %v781
    %v3390 = vunpack.c.l.b16 %v782
    %v3391 = vunpack.c.l.b16 %v783
    %v3392 = vunpack.c.l.b16 %v784
    %v3393 = vunpack.c.l.b16 %v785
    %v3394 = vunpack.c.l.b16 %v786
    %v3395 = vunpack.c.l.b16 %v787
    %v3396 = vunpack.c.l.b16 %v788
    %v3397 = vunpack.c.l.b16 %v789
    %v3398 = vunpack.c.l.b16 %v790
    %v3399 = vunpack.c.l.b16 %v791
    %v3400 = vunpack.c.l.b16 %v792
    %v3401 = vunpack.c.l.b16 %v793
    %v3402 = vunpack.c.l.b16 %v794
    %v3403 = vunpack.c.l.b16 %v795
    %v3404 = vunpack.c.l.b16 %v796
    %v3405 = vunpack.c.l.b16 %v797
    %v3406 = vunpack.c.l.b16 %v798
    %v3407 = vunpack.c.l.b16 %v799
    %v3408 = vunpack.c.l.b16 %v800
    %v3409 = vunpack.c.l.b16 %v801
    %v3410 = vunpack.c.l.b16 %v802
    %v3411 = vunpack.c.l.b16 %v803
    %v3412 = vunpack.c.l.b16 %v804
    %v3413 = vunpack.c.l.b16 %v805
    %v3414 = vunpack.c.l.b16 %v806
    %v3415 = vunpack.c.l.b16 %v807
    %v3416 = vunpack.c.l.b16 %v808
    %v3417 = vunpack.c.l.b16 %v809
    %v3418 = vunpack.c.l.b16 %v810
    %v3419 = vunpack.c.l.b16 %v811
    %v3420 = vunpack.c.l.b16 %v812
    %v3421 = vunpack.c.l.b16 %v813
    %v3422 = vunpack.c.l.b16 %v814
    %v3423 = vunpack.c.l.b16 %v815
    %v3424 = vunpack.c.l.b16 %v816
    %v3425 = vunpack.c.l.b16 %v817
    %v3426 = vunpack.c.l.b16 %v818
    %v3427 = vunpack.c.l.b16 %v819
    %v3428 = vunpack.c.l.b16 %v820
    %v3429 = vunpack.c.l.b16 %v821
    %v3430 = vunpack.c.l.b16 %v822
    %v3431 = vunpack.c.l.b16 %v823
    %v3432 = vunpack.c.l.b16 %v824
    %v3433 = vunpack.c.l.b16 %v825
    %v3434 = vunpack.c.l.b16 %v826
    %v3435 = vunpack.c.l.b16 %v827
    %v3436 = vunpack.c.l.b16 %v828
    %v3437 = vunpack.c.l.b16 %v829
    %v3438 = vunpack.c.l.b16 %v830
    %v3439 = vunpack.c.l.b16 %v831
    %v3440 = vunpack.c.l.b16 %v832
    %v3441 = vunpack.c.l.b16 %v833
    %v3442 = vunpack.c.l.b16 %v834
    %v3443 = vunpack.c.l.b16 %v835
    %v3444 = vunpack.c.l.b16 %v836
    %v3445 = vunpack.c.l.b16 %v837
    %v3446 = vunpack.c.l.b16 %v838
    %v3447 = vunpack.c.l.b16 %v839
    %v3448 = vunpack.c.l.b16 %v840
    %v3449 = vunpack.c.l.b16 %v841
    %v3450 = vunpack.c.l.b16 %v842
    %v3451 = vunpack.c.l.b16 %v843
    %v3452 = vunpack.c.l.b16 %v844
    %v3453 = vunpack.c.l.b16 %v845
    %v3454 = vunpack.c.l.b16 %v846
    %v3455 = vunpack.c.l.b16 %v847
    %v3456 = vunpack.c.l.b16 %v848
    %v3457 = vunpack.c.l.b16 %v849
    %v3458 = vunpack.c.l.b16 %v850
    %v3459 = vunpack.c.l.b16 %v851
    %v3460 = vunpack.c.l.b16 %v852
    %v3461 = vunpack.c.l.b16 %v853
    %v3462 = vunpack.c.l.b16 %v854
    %v3463 = vunpack.c.l.b16 %v855
    %v3464 = vunpack.c.l.b16 %v856
    %v3465 = vunpack.c.l.b16 %v857
    %v3466 = vunpack.c.l.b16 %v858
    %v3467 = vunpack.c.l.b16 %v859
    %v3468 = vunpack.c.l.b16 %v860
    %v3469 = vunpack.c.l.b16 %v861
    %v3470 = vunpack.c.l.b16 %v862
    %v3471 = vunpack.c.l.b16 %v863
    %v3472 = vunpack.c.l.b16 %v864
    %v3473 = vunpack.c.l.b16 %v865
    %v3474 = vunpack.c.l.b16 %v866
    %v3475 = vunpack.c.l.b16 %v867
    %v3476 = vunpack.c.l.b16 %v868
    %v3477 = vunpack.c.l.b16 %v869
    %v3478 = vunpack.c.l.b16 %v870
    %v3479 = vunpack.c.l.b16 %v871
    %v3480 = vunpack.c.l.b16 %v872
    %v3481 = vunpack.c.l.b16 %v873
    %v3482 = vunpack.c.l.b16 %v874
    %v3483 = vunpack.c.l.b16 %v875
    %v3484 = vunpack.c.l.b16 %v876
    %v3485 = vunpack.c.l.b16 %v877
    %v3486 = vunpack.c.l.b16 %v878
    %v3487 = vunpack.c.l.b16 %v879
    %v3488 = vunpack.c.l.b16 %v880
    %v3489 = vunpack.c.l.b16 %v881
    %v3490 = vunpack.c.l.b16 %v882
    %v3491 = vunpack.c.l.b16 %v883
    %v3492 = vunpack.c.l.b16 %v884
    %v3493 = vunpack.c.l.b16 %v885
    %v3494 = vunpack.c.l.b16 %v886
    %v3495 = vunpack.c.l.b16 %v887
    %v3496 = vunpack.c.l.b16 %v888
    %v3497 = vunpack.c.l.b16 %v889
    %v3498 = vunpack.c.l.b16 %v890
    %v3499 = vunpack.c.l.b16 %v891
    %v3500 = vunpack.c.l.b16 %v892
    %v3501 = vunpack.c.l.b16 %v893
    %v3502 = vunpack.c.l.b16 %v894
    %v3503 = vunpack.c.l.b16 %v895
    %v3504 = vunpack.c.l.b16 %v896
    %v3505 = vunpack.c.l.b16 %v897
    %v3506 = vunpack.c.l.b16 %v898
    %v3507 = vunpack.c.l.b16 %v899
    %v3508 = vunpack.c.l.b16 %v900
    %v3509 = vunpack.c.l.b16 %v901
    %v3510 = vunpack.c.l.b16 %v902
    %v3511 = vunpack.c.l.b16 %v903
    %v3512 = vunpack.c.l.b16 %v904
    %v3513 = vunpack.c.l.b16 %v905
    %v3514 = vunpack.c.l.b16 %v906
    %v3515 = vunpack.c.l.b16 %v907
    %v3516 = vunpack.c.l.b16 %v908
    %v3517 = vunpack.c.l.b16 %v909
    %v3518 = vunpack.c.l.b16 %v910
    %v3519 = vunpack.c.l.b16 %v911
    %v3520 = vunpack.c.l.b16 %v912
    %v3521 = vunpack.c.l.b16 %v913
    %v3522 = vunpack.c.l.b16 %v914
    %v3523 = vunpack.c.l.b16 %v915
    %v3524 = vunpack.c.l.b16 %v916
    %v3525 = vunpack.c.l.b16 %v917
    %v3526 = vunpack.c.l.b16 %v918
    %v3527 = vunpack.c.l.b16 %v919
    %v3528 = vunpack.c.l.b16 %v920
    %v3529 = vunpack.c.l.b16 %v921
    %v3530 = vunpack.c.l.b16 %v922
    %v3531 = vunpack.c.l.b16 %v923
    %v3532 = vunpack.c.l.b16 %v924
    %v3533 = vunpack.c.l.b16 %v925
    %v3534 = vunpack.c.l.b16 %v926
    %v3535 = vunpack.c.l.b16 %v927
    %v3536 = vunpack.c.l.b16 %v928
    %v3537 = vunpack.c.l.b16 %v929
    %v3538 = vunpack.c.l.b16 %v930
    %v3539 = vunpack.c.l.b16 %v931
    %v3540 = vunpack.c.l.b16 %v932
    %v3541 = vunpack.c.l.b16 %v933
    %v3542 = vunpack.c.l.b16 %v934
    %v3543 = vunpack.c.l.b16 %v935
    %v3544 = vunpack.c.l.b16 %v936
    %v3545 = vunpack.c.l.b16 %v937
    %v3546 = vunpack.c.l.b16 %v938
    %v3547 = vunpack.c.l.b16 %v939
    %v3548 = vunpack.c.l.b16 %v940
    %v3549 = vunpack.c.l.b16 %v941
    %v3550 = vunpack.c.l.b16 %v942
    %v3551 = vunpack.c.l.b16 %v943
    %v3552 = vunpack.c.l.b16 %v944
    %v3553 = vunpack.c.l.b16 %v945
    %v3554 = vunpack.c.l.b16 %v946
    %v3555 = vunpack.c.l.b16 %v947
    %v3556 = vunpack.c.l.b16 %v948
    %v3557 = vunpack.c.l.b16 %v949
    %v3558 = vunpack.c.l.b16 %v950
    %v3559 = vunpack.c.l.b16 %v951
    %v3560 = vunpack.c.l.b16 %v952
    %v3561 = vunpack.c.l.b16 %v953
    %v3562 = vunpack.c.l.b16 %v954
    %v3563 = vunpack.c.l.b16 %v955
    %v3564 = vunpack.c.l.b16 %v956
    %v3565 = vunpack.c.l.b16 %v957
    %v3566 = vunpack.c.l.b16 %v958
    %v3567 = vunpack.c.l.b16 %v959
    %v3568 = vunpack.c.l.b16 %v960
    %v3569 = vunpack.c.l.b16 %v961
    %v3570 = vunpack.c.l.b16 %v962
    %v3571 = vunpack.c.l.b16 %v963
    %v3572 = vunpack.c.l.b16 %v964
    %v3573 = vunpack.c.l.b16 %v965
    %v3574 = vunpack.c.l.b16 %v966
    %v3575 = vunpack.c.l.b16 %v967
    %v3576 = vunpack.c.l.b16 %v968
    %v3577 = vunpack.c.l.b16 %v969
    %v3578 = vunpack.c.l.b16 %v970
    %v3579 = vunpack.c.l.b16 %v971
    %v3580 = vunpack.c.l.b16 %v972
    %v3581 = vunpack.c.l.b16 %v973
    %v3582 = vunpack.c.l.b16 %v974
    %v3583 = vunpack.c.l.b16 %v975
    %v3584 = vunpack.c.l.b16 %v976
    %v3585 = vunpack.c.l.b16 %v977
    %v3586 = vunpack.c.l.b16 %v978
    %v3587 = vunpack.c.l.b16 %v979
    %v3588 = vunpack.c.l.b16 %v980
    %v3589 = vunpack.c.l.b16 %v981
    %v3590 = vunpack.c.l.b16 %v982
    %v3591 = vunpack.c.l.b16 %v983
    %v3592 = vunpack.c.l.b16 %v984
    %v3593 = vunpack.c.l.b16 %v985
    %v3594 = vunpack.c.l.b16 %v986
    %v3595 = vunpack.c.l.b16 %v987
    %v3596 = vunpack.c.l.b16 %v988
    %v3597 = vunpack.c.l.b16 %v989
    %v3598 = vunpack.c.l.b16 %v990
    %v3599 = vunpack.c.l.b16 %v991
    %v3600 = vunpack.c.l.b16 %v992
    %v3601 = vunpack.c.l.b16 %v993
    %v3602 = vunpack.c.l.b16 %v994
    %v3603 = vunpack.c.l.b16 %v995
    %v3604 = vunpack.c.l.b16 %v996
    %v3605 = vunpack.c.l.b16 %v997
    %v3606 = vunpack.c.l.b16 %v998
    %v3607 = vunpack.c.l.b16 %v999
    %v3608 = vunpack.c.l.b16 %v1000
    %v3609 = vunpack.c.l.b16 %v1001
    %v3610 = vunpack.c.l.b16 %v1002
    %v3611 = vunpack.c.l.b16 %v1003
    %v3612 = vunpack.c.l.b16 %v1004
    %v3613 = vunpack.c.l.b16 %v1005
    %v3614 = vunpack.c.l.b16 %v1006
    %v3615 = vunpack.c.l.b16 %v1007
    %v3616 = vunpack.c.l.b16 %v1008
    %v3617 = vunpack.c.l.b16 %v1009
    %v3618 = vunpack.c.l.b16 %v1010
    %v3619 = vunpack.c.l.b16 %v1011
    %v3620 = vunpack.c.l.b16 %v1012
    %v3621 = vunpack.c.l.b16 %v1013
    %v3622 = vunpack.c.l.b16 %v1014
    %v3623 = vunpack.c.l.b16 %v1015
    %v3624 = vunpack.c.l.b16 %v1016
    %v3625 = vunpack.c.l.b16 %v1017
    %v3626 = vunpack.c.l.b16 %v1018
    %v3627 = vunpack.c.l.b16 %v1019
    %v3628 = vunpack.c.l.b16 %v1020
    %v3629 = vunpack.c.l.b16 %v1021
    %v3630 = vunpack.c.l.b16 %v1022
    %v3631 = vunpack.c.l.b16 %v1023
    %v3632 = vunpack.c.l.b16 %v1024
    %v3633 = vunpack.c.l.b16 %v1025
    %v3634 = vunpack.c.l.b16 %v1026
    %v3635 = vunpack.c.l.b16 %v1027
    %v3636 = vunpack.c.l.b16 %v1028
    %v3637 = vunpack.c.l.b16 %v1029
    %v3638 = vunpack.c.l.b16 %v1030
    %v3639 = vunpack.c.l.b16 %v1031
    %v3640 = vunpack.c.l.b16 %v1032
    %v3641 = vunpack.c.l.b16 %v1033
    %v3642 = vunpack.c.l.b16 %v1034
    %v3643 = vunpack.c.l.b16 %v1035
    %v3644 = vunpack.c.l.b16 %v1036
    %v3645 = vunpack.c.l.b16 %v1037
    %v3646 = vunpack.c.l.b16 %v1038
    %v3647 = vunpack.c.l.b16 %v1039
    %v3648 = vunpack.c.l.b16 %v1040
    %v3649 = vunpack.c.l.b16 %v1041
    %v3650 = vunpack.c.l.b16 %v1042
    %v3651 = vunpack.c.l.b16 %v1043
    %v3652 = vunpack.c.l.b16 %v1044
    %v3653 = vunpack.c.l.b16 %v1045
    %v3654 = vunpack.c.l.b16 %v1046
    %v3655 = vunpack.c.l.b16 %v1047
    %v3656 = vunpack.c.l.b16 %v1048
    %v3657 = vunpack.c.l.b16 %v1049
    %v3658 = vunpack.c.l.b16 %v1050
    %v3659 = vunpack.c.l.b16 %v1051
    %v3660 = vunpack.c.l.b16 %v1052
    %v3661 = vunpack.c.l.b16 %v1053
    %v3662 = vunpack.c.l.b16 %v1054
    %v3663 = vunpack.c.l.b16 %v1055
    %v3664 = vunpack.c.l.b16 %v1056
    %v3665 = vunpack.c.l.b16 %v1057
    %v3666 = vunpack.c.l.b16 %v1058
    %v3667 = vunpack.c.l.b16 %v1059
    %v3668 = vunpack.c.l.b16 %v1060
    %v3669 = vunpack.c.l.b16 %v1061
    %v3670 = vunpack.c.l.b16 %v1062
    %v3671 = vunpack.c.l.b16 %v1063
    %v3672 = vunpack.c.l.b16 %v1064
    %v3673 = vunpack.c.l.b16 %v1065
    %v3674 = vunpack.c.l.b16 %v1066
    %v3675 = vunpack.c.l.b16 %v1067
    %v3676 = vunpack.c.l.b16 %v1068
    %v3677 = vunpack.c.l.b16 %v1069
    %v3678 = vunpack.c.l.b16 %v1070
    %v3679 = vunpack.c.l.b16 %v1071
    %v3680 = vunpack.c.l.b16 %v1072
    %v3681 = vunpack.c.l.b16 %v1073
    %v3682 = vunpack.c.l.b16 %v1074
    %v3683 = vunpack.c.l.b16 %v1075
    %v3684 = vunpack.c.l.b16 %v1076
    %v3685 = vunpack.c.l.b16 %v1077
    %v3686 = vunpack.c.l.b16 %v1078
    %v3687 = vunpack.c.l.b16 %v1079
    %v3688 = vunpack.c.l.b16 %v1080
    %v3689 = vunpack.c.l.b16 %v1081
    %v3690 = vunpack.c.l.b16 %v1082
    %v3691 = vunpack.c.l.b16 %v1083
    %v3692 = vunpack.c.l.b16 %v1084
    %v3693 = vunpack.c.l.b16 %v1085
    %v3694 = vunpack.c.l.b16 %v1086
    %v3695 = vunpack.c.l.b16 %v1087
    %v3696 = vunpack.c.l.b16 %v1088
    %v3697 = vunpack.c.l.b16 %v1089
    %v3698 = vunpack.c.l.b16 %v1090
    %v3699 = vunpack.c.l.b16 %v1091
    %v3700 = vunpack.c.l.b16 %v1092
    %v3701 = vunpack.c.l.b16 %v1093
    %v3702 = vunpack.c.l.b16 %v1094
    %v3703 = vunpack.c.l.b16 %v1095
    %v3704 = vunpack.c.l.b16 %v1096
    %v3705 = vunpack.c.l.b16 %v1097
    %v3706 = vunpack.c.l.b16 %v1098
    %v3707 = vunpack.c.l.b16 %v1099
    %v3708 = vunpack.c.l.b16 %v1100
    %v3709 = vunpack.c.l.b16 %v1101
    %v3710 = vunpack.c.l.b16 %v1102
    %v3711 = vunpack.c.l.b16 %v1103
    %v3712 = vunpack.c.l.b16 %v1104
    %v3713 = vunpack.c.l.b16 %v1105
    %v3714 = vunpack.c.l.b16 %v1106
    %v3715 = vunpack.c.l.b16 %v1107
    %v3716 = vunpack.c.l.b16 %v1108
    %v3717 = vunpack.c.l.b16 %v1109
    %v3718 = vunpack.c.l.b16 %v1110
    %v3719 = vunpack.c.l.b16 %v1111
    %v3720 = vunpack.c.l.b16 %v1112
    %v3721 = vunpack.c.l.b16 %v1113
    %v3722 = vunpack.c.l.b16 %v1114
    %v3723 = vunpack.c.l.b16 %v1115
    %v3724 = vunpack.c.l.b16 %v1116
    %v3725 = vunpack.c.l.b16 %v1117
    %v3726 = vunpack.c.l.b16 %v1118
    %v3727 = vunpack.c.l.b16 %v1119
    %v3728 = vunpack.c.l.b16 %v1120
    %v3729 = vunpack.c.l.b16 %v1121
    %v3730 = vunpack.c.l.b16 %v1122
    %v3731 = vunpack.c.l.b16 %v1123
    %v3732 = vunpack.c.l.b16 %v1124
    %v3733 = vunpack.c.l.b16 %v1125
    %v3734 = vunpack.c.l.b16 %v1126
    %v3735 = vunpack.c.l.b16 %v1127
    %v3736 = vunpack.c.l.b16 %v1128
    %v3737 = vunpack.c.l.b16 %v1129
    %v3738 = vunpack.c.l.b16 %v1130
    %v3739 = vunpack.c.l.b16 %v1131
    %v3740 = vunpack.c.l.b16 %v1132
    %v3741 = vunpack.c.l.b16 %v1133
    %v3742 = vunpack.c.l.b16 %v1134
    %v3743 = vunpack.c.l.b16 %v1135
    %v3744 = vunpack.c.l.b16 %v1136
    %v3745 = vunpack.c.l.b16 %v1137
    %v3746 = vunpack.c.l.b16 %v1138
    %v3747 = vunpack.c.l.b16 %v1139
    %v3748 = vunpack.c.l.b16 %v1140
    %v3749 = vunpack.c.l.b16 %v1141
    %v3750 = vunpack.c.l.b16 %v1142
    %v3751 = vunpack.c.l.b16 %v1143
    %v3752 = vunpack.c.l.b16 %v1144
    %v3753 = vunpack.c.l.b16 %v1145
    %v3754 = vunpack.c.l.b16 %v1146
    %v3755 = vunpack.c.l.b16 %v1147
    %v3756 = vunpack.c.l.b16 %v1148
    %v3757 = vunpack.c.l.b16 %v1149
    %v3758 = vunpack.c.l.b16 %v1150
    %v3759 = vunpack.c.l.b16 %v1151
    %v3760 = vunpack.c.l.b16 %v1152
    %v3761 = vunpack.c.l.b16 %v1153
    %v3762 = vunpack.c.l.b16 %v1154
    %v3763 = vunpack.c.l.b16 %v1155
    %v3764 = vunpack.c.l.b16 %v1156
    %v3765 = vunpack.c.l.b16 %v1157
    %v3766 = vunpack.c.l.b16 %v1158
    %v3767 = vunpack.c.l.b16 %v1159
    %v3768 = vunpack.c.l.b16 %v1160
    %v3769 = vunpack.c.l.b16 %v1161
    %v3770 = vunpack.c.l.b16 %v1162
    %v3771 = vunpack.c.l.b16 %v1163
    %v3772 = vunpack.c.l.b16 %v1164
    %v3773 = vunpack.c.l.b16 %v1165
    %v3774 = vunpack.c.l.b16 %v1166
    %v3775 = vunpack.c.l.b16 %v1167
    %v3776 = vpack.c.b16 %v2721, %v2720
    %v3777 = vpack.c.b16 %v2723, %v2722
    %v3778 = vpack.c.b16 %v2725, %v2724
    %v3779 = vpack.c.b16 %v2727, %v2726
    %v3780 = vpack.c.b16 %v2729, %v2728
    %v3781 = vpack.c.b16 %v2731, %v2730
    %v3782 = vpack.c.b16 %v2733, %v2732
    %v3783 = vpack.c.b16 %v2735, %v2734
    %v3784 = vpack.c.b16 %v2737, %v2736
    %v3785 = vpack.c.b16 %v2739, %v2738
    %v3786 = vpack.c.b16 %v2741, %v2740
    %v3787 = vpack.c.b16 %v2743, %v2742
    %v3788 = vpack.c.b16 %v2745, %v2744
    %v3789 = vpack.c.b16 %v2747, %v2746
    %v3790 = vpack.c.b16 %v2749, %v2748
    %v3791 = vpack.c.b16 %v2751, %v2750
    %v3792 = vpack.c.b16 %v2753, %v2752
    %v3793 = vpack.c.b16 %v2755, %v2754
    %v3794 = vpack.c.b16 %v2757, %v2756
    %v3795 = vpack.c.b16 %v2759, %v2758
    %v3796 = vpack.c.b16 %v2761, %v2760
    %v3797 = vpack.c.b16 %v2763, %v2762
    %v3798 = vpack.c.b16 %v2765, %v2764
    %v3799 = vpack.c.b16 %v2767, %v2766
    %v3800 = vpack.c.b16 %v2769, %v2768
    %v3801 = vpack.c.b16 %v2771, %v2770
    %v3802 = vpack.c.b16 %v2773, %v2772
    %v3803 = vpack.c.b16 %v2775, %v2774
    %v3804 = vpack.c.b16 %v2777, %v2776
    %v3805 = vpack.c.b16 %v2779, %v2778
    %v3806 = vpack.c.b16 %v2781, %v2780
    %v3807 = vpack.c.b16 %v2783, %v2782
    %v3808 = vpack.c.b16 %v2785, %v2784
    %v3809 = vpack.c.b16 %v2787, %v2786
    %v3810 = vpack.c.b16 %v2789, %v2788
    %v3811 = vpack.c.b16 %v2791, %v2790
    %v3812 = vpack.c.b16 %v2793, %v2792
    %v3813 = vpack.c.b16 %v2795, %v2794
    %v3814 = vpack.c.b16 %v2797, %v2796
    %v3815 = vpack.c.b16 %v2799, %v2798
    %v3816 = vpack.c.b16 %v2801, %v2800
    %v3817 = vpack.c.b16 %v2803, %v2802
    %v3818 = vpack.c.b16 %v2805, %v2804
    %v3819 = vpack.c.b16 %v2807, %v2806
    %v3820 = vpack.c.b16 %v2809, %v2808
    %v3821 = vpack.c.b16 %v2811, %v2810
    %v3822 = vpack.c.b16 %v2813, %v2812
    %v3823 = vpack.c.b16 %v2815, %v2814
    %v3824 = vpack.c.b16 %v2817, %v2816
    %v3825 = vpack.c.b16 %v2819, %v2818
    %v3826 = vpack.c.b16 %v2821, %v2820
    %v3827 = vpack.c.b16 %v2823, %v2822
    %v3828 = vpack.c.b16 %v2825, %v2824
    %v3829 = vpack.c.b16 %v2827, %v2826
    %v3830 = vpack.c.b16 %v2829, %v2828
    %v3831 = vpack.c.b16 %v2831, %v2830
    %v3832 = vpack.c.b16 %v2833, %v2832
    %v3833 = vpack.c.b16 %v2835, %v2834
    %v3834 = vpack.c.b16 %v2837, %v2836
    %v3835 = vpack.c.b16 %v2839, %v2838
    %v3836 = vpack.c.b16 %v2841, %v2840
    %v3837 = vpack.c.b16 %v2843, %v2842
    %v3838 = vpack.c.b16 %v2845, %v2844
    %v3839 = vpack.c.b16 %v2847, %v2846
    %v3840 = vpack.c.b16 %v2849, %v2848
    %v3841 = vpack.c.b16 %v2851, %v2850
    %v3842 = vpack.c.b16 %v2853, %v2852
    %v3843 = vpack.c.b16 %v2855, %v2854
    %v3844 = vpack.c.b16 %v2857, %v2856
    %v3845 = vpack.c.b16 %v2859, %v2858
    %v3846 = vpack.c.b16 %v2861, %v2860
    %v3847 = vpack.c.b16 %v2863, %v2862
    %v3848 = vpack.c.b16 %v2865, %v2864
    %v3849 = vpack.c.b16 %v2867, %v2866
    %v3850 = vpack.c.b16 %v2869, %v2868
    %v3851 = vpack.c.b16 %v2871, %v2870
    %v3852 = vpack.c.b16 %v2873, %v2872
    %v3853 = vpack.c.b16 %v2875, %v2874
    %v3854 = vpack.c.b16 %v2877, %v2876
    %v3855 = vpack.c.b16 %v2879, %v2878
    %v3856 = vpack.c.b16 %v2881, %v2880
    %v3857 = vpack.c.b16 %v2883, %v2882
    %v3858 = vpack.c.b16 %v2885, %v2884
    %v3859 = vpack.c.b16 %v2887, %v2886
    %v3860 = vpack.c.b16 %v2889, %v2888
    %v3861 = vpack.c.b16 %v2891, %v2890
    %v3862 = vpack.c.b16 %v2893, %v2892
    %v3863 = vpack.c.b16 %v2895, %v2894
    %v3864 = vpack.c.b16 %v2897, %v2896
    %v3865 = vpack.c.b16 %v2899, %v2898
    %v3866 = vpack.c.b16 %v2901, %v2900
    %v3867 = vpack.c.b16 %v2903, %v2902
    %v3868 = vpack.c.b16 %v2905, %v2904
    %v3869 = vpack.c.b16 %v2907, %v2906
    %v3870 = vpack.c.b16 %v2909, %v2908
    %v3871 = vpack.c.b16 %v2911, %v2910
    %v3872 = vpack.c.b16 %v2913, %v2912
    %v3873 = vpack.c.b16 %v2915, %v2914
    %v3874 = vpack.c.b16 %v2917, %v2916
    %v3875 = vpack.c.b16 %v2919, %v2918
    %v3876 = vpack.c.b16 %v2921, %v2920
    %v3877 = vpack.c.b16 %v2923, %v2922
    %v3878 = vpack.c.b16 %v2925, %v2924
    %v3879 = vpack.c.b16 %v2927, %v2926
    %v3880 = vpack.c.b16 %v2929, %v2928
    %v3881 = vpack.c.b16 %v2931, %v2930
    %v3882 = vpack.c.b16 %v2933, %v2932
    %v3883 = vpack.c.b16 %v2935, %v2934
    %v3884 = vpack.c.b16 %v2937, %v2936
    %v3885 = vpack.c.b16 %v2939, %v2938
    %v3886 = vpack.c.b16 %v2941, %v2940
    %v3887 = vpack.c.b16 %v2943, %v2942
    %v3888 = vpack.c.b16 %v2945, %v2944
    %v3889 = vpack.c.b16 %v2947, %v2946
    %v3890 = vpack.c.b16 %v2949, %v2948
    %v3891 = vpack.c.b16 %v2951, %v2950
    %v3892 = vpack.c.b16 %v2953, %v2952
    %v3893 = vpack.c.b16 %v2955, %v2954
    %v3894 = vpack.c.b16 %v2957, %v2956
    %v3895 = vpack.c.b16 %v2959, %v2958
    %v3896 = vpack.c.b16 %v2961, %v2960
    %v3897 = vpack.c.b16 %v2963, %v2962
    %v3898 = vpack.c.b16 %v2965, %v2964
    %v3899 = vpack.c.b16 %v2967, %v2966
    %v3900 = vpack.c.b16 %v2969, %v2968
    %v3901 = vpack.c.b16 %v2971, %v2970
    %v3902 = vpack.c.b16 %v2973, %v2972
    %v3903 = vpack.c.b16 %v2975, %v2974
    %v3904 = vpack.c.b16 %v2977, %v2976
    %v3905 = vpack.c.b16 %v2979, %v2978
    %v3906 = vpack.c.b16 %v2981, %v2980
    %v3907 = vpack.c.b16 %v2983, %v2982
    %v3908 = vpack.c.b16 %v2985, %v2984
    %v3909 = vpack.c.b16 %v2987, %v2986
    %v3910 = vpack.c.b16 %v2989, %v2988
    %v3911 = vpack.c.b16 %v2991, %v2990
    %v3912 = vpack.c.b16 %v2993, %v2992
    %v3913 = vpack.c.b16 %v2995, %v2994
    %v3914 = vpack.c.b16 %v2997, %v2996
    %v3915 = vpack.c.b16 %v2999, %v2998
    %v3916 = vpack.c.b16 %v3001, %v3000
    %v3917 = vpack.c.b16 %v3003, %v3002
    %v3918 = vpack.c.b16 %v3005, %v3004
    %v3919 = vpack.c.b16 %v3007, %v3006
    %v3920 = vpack.c.b16 %v3009, %v3008
    %v3921 = vpack.c.b16 %v3011, %v3010
    %v3922 = vpack.c.b16 %v3013, %v3012
    %v3923 = vpack.c.b16 %v3015, %v3014
    %v3924 = vpack.c.b16 %v3017, %v3016
    %v3925 = vpack.c.b16 %v3019, %v3018
    %v3926 = vpack.c.b16 %v3021, %v3020
    %v3927 = vpack.c.b16 %v3023, %v3022
    %v3928 = vpack.c.b16 %v3025, %v3024
    %v3929 = vpack.c.b16 %v3027, %v3026
    %v3930 = vpack.c.b16 %v3029, %v3028
    %v3931 = vpack.c.b16 %v3031, %v3030
    %v3932 = vpack.c.b16 %v3033, %v3032
    %v3933 = vpack.c.b16 %v3035, %v3034
    %v3934 = vpack.c.b16 %v3037, %v3036
    %v3935 = vpack.c.b16 %v3039, %v3038
    %v3936 = vpack.c.b16 %v3041, %v3040
    %v3937 = vpack.c.b16 %v3043, %v3042
    %v3938 = vpack.c.b16 %v3045, %v3044
    %v3939 = vpack.c.b16 %v3047, %v3046
    %v3940 = vpack.c.b16 %v3049, %v3048
    %v3941 = vpack.c.b16 %v3051, %v3050
    %v3942 = vpack.c.b16 %v3053, %v3052
    %v3943 = vpack.c.b16 %v3055, %v3054
    %v3944 = vpack.c.b16 %v3057, %v3056
    %v3945 = vpack.c.b16 %v3059, %v3058
    %v3946 = vpack.c.b16 %v3061, %v3060
    %v3947 = vpack.c.b16 %v3063, %v3062
    %v3948 = vpack.c.b16 %v3065, %v3064
    %v3949 = vpack.c.b16 %v3067, %v3066
    %v3950 = vpack.c.b16 %v3069, %v3068
    %v3951 = vpack.c.b16 %v3071, %v3070
    %v3952 = vpack.c.b16 %v3073, %v3072
    %v3953 = vpack.c.b16 %v3075, %v3074
    %v3954 = vpack.c.b16 %v3077, %v3076
    %v3955 = vpack.c.b16 %v3079, %v3078
    %v3956 = vpack.c.b16 %v3081, %v3080
    %v3957 = vpack.c.b16 %v3083, %v3082
    %v3958 = vpack.c.b16 %v3085, %v3084
    %v3959 = vpack.c.b16 %v3087, %v3086
    %v3960 = vpack.c.b16 %v3089, %v3088
    %v3961 = vpack.c.b16 %v3091, %v3090
    %v3962 = vpack.c.b16 %v3093, %v3092
    %v3963 = vpack.c.b16 %v3095, %v3094
    %v3964 = vpack.c.b16 %v3097, %v3096
    %v3965 = vpack.c.b16 %v3099, %v3098
    %v3966 = vpack.c.b16 %v3101, %v3100
    %v3967 = vpack.c.b16 %v3103, %v3102
    %v3968 = vpack.c.b16 %v3105, %v3104
    %v3969 = vpack.c.b16 %v3107, %v3106
    %v3970 = vpack.c.b16 %v3109, %v3108
    %v3971 = vpack.c.b16 %v3111, %v3110
    %v3972 = vpack.c.b16 %v3113, %v3112
    %v3973 = vpack.c.b16 %v3115, %v3114
    %v3974 = vpack.c.b16 %v3117, %v3116
    %v3975 = vpack.c.b16 %v3119, %v3118
    %v3976 = vpack.c.b16 %v3121, %v3120
    %v3977 = vpack.c.b16 %v3123, %v3122
    %v3978 = vpack.c.b16 %v3125, %v3124
    %v3979 = vpack.c.b16 %v3127, %v3126
    %v3980 = vpack.c.b16 %v3129, %v3128
    %v3981 = vpack.c.b16 %v3131, %v3130
    %v3982 = vpack.c.b16 %v3133, %v3132
    %v3983 = vpack.c.b16 %v3135, %v3134
    %v3984 = vpack.c.b16 %v3137, %v3136
    %v3985 = vpack.c.b16 %v3139, %v3138
    %v3986 = vpack.c.b16 %v3141, %v3140
    %v3987 = vpack.c.b16 %v3143, %v3142
    %v3988 = vpack.c.b16 %v3145, %v3144
    %v3989 = vpack.c.b16 %v3147, %v3146
    %v3990 = vpack.c.b16 %v3149, %v3148
    %v3991 = vpack.c.b16 %v3151, %v3150
    %v3992 = vpack.c.b16 %v3153, %v3152
    %v3993 = vpack.c.b16 %v3155, %v3154
    %v3994 = vpack.c.b16 %v3157, %v3156
    %v3995 = vpack.c.b16 %v3159, %v3158
    %v3996 = vpack.c.b16 %v3161, %v3160
    %v3997 = vpack.c.b16 %v3163, %v3162
    %v3998 = vpack.c.b16 %v3165, %v3164
    %v3999 = vpack.c.b16 %v3167, %v3166
    %v4000 = vpack.c.b16 %v3169, %v3168
    %v4001 = vpack.c.b16 %v3171, %v3170
    %v4002 = vpack.c.b16 %v3173, %v3172
    %v4003 = vpack.c.b16 %v3175, %v3174
    %v4004 = vpack.c.b16 %v3177, %v3176
    %v4005 = vpack.c.b16 %v3179, %v3178
    %v4006 = vpack.c.b16 %v3181, %v3180
    %v4007 = vpack.c.b16 %v3183, %v3182
    %v4008 = vpack.c.b16 %v3185, %v3184
    %v4009 = vpack.c.b16 %v3187, %v3186
    %v4010 = vpack.c.b16 %v3189, %v3188
    %v4011 = vpack.c.b16 %v3191, %v3190
    %v4012 = vpack.c.b16 %v3193, %v3192
    %v4013 = vpack.c.b16 %v3195, %v3194
    %v4014 = vpack.c.b16 %v3197, %v3196
    %v4015 = vpack.c.b16 %v3199, %v3198
    %v4016 = vpack.c.b16 %v3201, %v3200
    %v4017 = vpack.c.b16 %v3203, %v3202
    %v4018 = vpack.c.b16 %v3205, %v3204
    %v4019 = vpack.c.b16 %v3207, %v3206
    %v4020 = vpack.c.b16 %v3209, %v3208
    %v4021 = vpack.c.b16 %v3211, %v3210
    %v4022 = vpack.c.b16 %v3213, %v3212
    %v4023 = vpack.c.b16 %v3215, %v3214
    %v4024 = vpack.c.b16 %v3217, %v3216
    %v4025 = vpack.c.b16 %v3219, %v3218
    %v4026 = vpack.c.b16 %v3221, %v3220
    %v4027 = vpack.c.b16 %v3223, %v3222
    %v4028 = vpack.c.b16 %v3225, %v3224
    %v4029 = vpack.c.b16 %v3227, %v3226
    %v4030 = vpack.c.b16 %v3229, %v3228
    %v4031 = vpack.c.b16 %v3231, %v3230
    %v4032 = vpack.c.b16 %v3233, %v3232
    %v4033 = vpack.c.b16 %v3235, %v3234
    %v4034 = vpack.c.b16 %v3237, %v3236
    %v4035 = vpack.c.b16 %v3239, %v3238
    %v4036 = vpack.c.b16 %v3241, %v3240
    %v4037 = vpack.c.b16 %v3243, %v3242
    %v4038 = vpack.c.b16 %v3245, %v3244
    %v4039 = vpack.c.b16 %v3247, %v3246
    %v4040 = vpack.c.b16 %v3249, %v3248
    %v4041 = vpack.c.b16 %v3251, %v3250
    %v4042 = vpack.c.b16 %v3253, %v3252
    %v4043 = vpack.c.b16 %v3255, %v3254
    %v4044 = vpack.c.b16 %v3257, %v3256
    %v4045 = vpack.c.b16 %v3259, %v3258
    %v4046 = vpack.c.b16 %v3261, %v3260
    %v4047 = vpack.c.b16 %v3263, %v3262
    %v4048 = vpack.c.b16 %v3265, %v3264
    %v4049 = vpack.c.b16 %v3267, %v3266
    %v4050 = vpack.c.b16 %v3269, %v3268
    %v4051 = vpack.c.b16 %v3271, %v3270
    %v4052 = vpack.c.b16 %v3273, %v3272
    %v4053 = vpack.c.b16 %v3275, %v3274
    %v4054 = vpack.c.b16 %v3277, %v3276
    %v4055 = vpack.c.b16 %v3279, %v3278
    %v4056 = vpack.c.b16 %v3281, %v3280
    %v4057 = vpack.c.b16 %v3283, %v3282
    %v4058 = vpack.c.b16 %v3285, %v3284
    %v4059 = vpack.c.b16 %v3287, %v3286
    %v4060 = vpack.c.b16 %v3289, %v3288
    %v4061 = vpack.c.b16 %v3291, %v3290
    %v4062 = vpack.c.b16 %v3293, %v3292
    %v4063 = vpack.c.b16 %v3295, %v3294
    %v4064 = vpack.c.b16 %v3297, %v3296
    %v4065 = vpack.c.b16 %v3299, %v3298
    %v4066 = vpack.c.b16 %v3301, %v3300
    %v4067 = vpack.c.b16 %v3303, %v3302
    %v4068 = vpack.c.b16 %v3305, %v3304
    %v4069 = vpack.c.b16 %v3307, %v3306
    %v4070 = vpack.c.b16 %v3309, %v3308
    %v4071 = vpack.c.b16 %v3311, %v3310
    %v4072 = vpack.c.b16 %v3313, %v3312
    %v4073 = vpack.c.b16 %v3315, %v3314
    %v4074 = vpack.c.b16 %v3317, %v3316
    %v4075 = vpack.c.b16 %v3319, %v3318
    %v4076 = vpack.c.b16 %v3321, %v3320
    %v4077 = vpack.c.b16 %v3323, %v3322
    %v4078 = vpack.c.b16 %v3325, %v3324
    %v4079 = vpack.c.b16 %v3327, %v3326
    %v4080 = vpack.c.b16 %v3329, %v3328
    %v4081 = vpack.c.b16 %v3331, %v3330
    %v4082 = vpack.c.b16 %v3333, %v3332
    %v4083 = vpack.c.b16 %v3335, %v3334
    %v4084 = vpack.c.b16 %v3337, %v3336
    %v4085 = vpack.c.b16 %v3339, %v3338
    %v4086 = vpack.c.b16 %v3341, %v3340
    %v4087 = vpack.c.b16 %v3343, %v3342
    %v4088 = vpack.c.b16 %v3345, %v3344
    %v4089 = vpack.c.b16 %v3347, %v3346
    %v4090 = vpack.c.b16 %v3349, %v3348
    %v4091 = vpack.c.b16 %v3351, %v3350
    %v4092 = vpack.c.b16 %v3353, %v3352
    %v4093 = vpack.c.b16 %v3355, %v3354
    %v4094 = vpack.c.b16 %v3357, %v3356
    %v4095 = vpack.c.b16 %v3359, %v3358
    %v4096 = vpack.c.b16 %v3361, %v3360
    %v4097 = vpack.c.b16 %v3363, %v3362
    %v4098 = vpack.c.b16 %v3365, %v3364
    %v4099 = vpack.c.b16 %v3367, %v3366
    %v4100 = vpack.c.b16 %v3369, %v3368
    %v4101 = vpack.c.b16 %v3371, %v3370
    %v4102 = vpack.c.b16 %v3373, %v3372
    %v4103 = vpack.c.b16 %v3375, %v3374
    %v4104 = vpack.c.b16 %v3377, %v3376
    %v4105 = vpack.c.b16 %v3379, %v3378
    %v4106 = vpack.c.b16 %v3381, %v3380
    %v4107 = vpack.c.b16 %v3383, %v3382
    %v4108 = vpack.c.b16 %v3385, %v3384
    %v4109 = vpack.c.b16 %v3387, %v3386
    %v4110 = vpack.c.b16 %v3389, %v3388
    %v4111 = vpack.c.b16 %v3391, %v3390
    %v4112 = vpack.c.b16 %v3393, %v3392
    %v4113 = vpack.c.b16 %v3395, %v3394
    %v4114 = vpack.c.b16 %v3397, %v3396
    %v4115 = vpack.c.b16 %v3399, %v3398
    %v4116 = vpack.c.b16 %v3401, %v3400
    %v4117 = vpack.c.b16 %v3403, %v3402
    %v4118 = vpack.c.b16 %v3405, %v3404
    %v4119 = vpack.c.b16 %v3407, %v3406
    %v4120 = vpack.c.b16 %v3409, %v3408
    %v4121 = vpack.c.b16 %v3411, %v3410
    %v4122 = vpack.c.b16 %v3413, %v3412
    %v4123 = vpack.c.b16 %v3415, %v3414
    %v4124 = vpack.c.b16 %v3417, %v3416
    %v4125 = vpack.c.b16 %v3419, %v3418
    %v4126 = vpack.c.b16 %v3421, %v3420
    %v4127 = vpack.c.b16 %v3423, %v3422
    %v4128 = vpack.c.b16 %v3425, %v3424
    %v4129 = vpack.c.b16 %v3427, %v3426
    %v4130 = vpack.c.b16 %v3429, %v3428
    %v4131 = vpack.c.b16 %v3431, %v3430
    %v4132 = vpack.c.b16 %v3433, %v3432
    %v4133 = vpack.c.b16 %v3435, %v3434
    %v4134 = vpack.c.b16 %v3437, %v3436
    %v4135 = vpack.c.b16 %v3439, %v3438
    %v4136 = vpack.c.b16 %v3441, %v3440
    %v4137 = vpack.c.b16 %v3443, %v3442
    %v4138 = vpack.c.b16 %v3445, %v3444
    %v4139 = vpack.c.b16 %v3447, %v3446
    %v4140 = vpack.c.b16 %v3449, %v3448
    %v4141 = vpack.c.b16 %v3451, %v3450
    %v4142 = vpack.c.b16 %v3453, %v3452
    %v4143 = vpack.c.b16 %v3455, %v3454
    %v4144 = vpack.c.b16 %v3457, %v3456
    %v4145 = vpack.c.b16 %v3459, %v3458
    %v4146 = vpack.c.b16 %v3461, %v3460
    %v4147 = vpack.c.b16 %v3463, %v3462
    %v4148 = vpack.c.b16 %v3465, %v3464
    %v4149 = vpack.c.b16 %v3467, %v3466
    %v4150 = vpack.c.b16 %v3469, %v3468
    %v4151 = vpack.c.b16 %v3471, %v3470
    %v4152 = vpack.c.b16 %v3473, %v3472
    %v4153 = vpack.c.b16 %v3475, %v3474
    %v4154 = vpack.c.b16 %v3477, %v3476
    %v4155 = vpack.c.b16 %v3479, %v3478
    %v4156 = vpack.c.b16 %v3481, %v3480
    %v4157 = vpack.c.b16 %v3483, %v3482
    %v4158 = vpack.c.b16 %v3485, %v3484
    %v4159 = vpack.c.b16 %v3487, %v3486
    %v4160 = vpack.c.b16 %v3489, %v3488
    %v4161 = vpack.c.b16 %v3491, %v3490
    %v4162 = vpack.c.b16 %v3493, %v3492
    %v4163 = vpack.c.b16 %v3495, %v3494
    %v4164 = vpack.c.b16 %v3497, %v3496
    %v4165 = vpack.c.b16 %v3499, %v3498
    %v4166 = vpack.c.b16 %v3501, %v3500
    %v4167 = vpack.c.b16 %v3503, %v3502
    %v4168 = vpack.c.b16 %v3505, %v3504
    %v4169 = vpack.c.b16 %v3507, %v3506
    %v4170 = vpack.c.b16 %v3509, %v3508
    %v4171 = vpack.c.b16 %v3511, %v3510
    %v4172 = vpack.c.b16 %v3513, %v3512
    %v4173 = vpack.c.b16 %v3515, %v3514
    %v4174 = vpack.c.b16 %v3517, %v3516
    %v4175 = vpack.c.b16 %v3519, %v3518
    %v4176 = vpack.c.b16 %v3521, %v3520
    %v4177 = vpack.c.b16 %v3523, %v3522
    %v4178 = vpack.c.b16 %v3525, %v3524
    %v4179 = vpack.c.b16 %v3527, %v3526
    %v4180 = vpack.c.b16 %v3529, %v3528
    %v4181 = vpack.c.b16 %v3531, %v3530
    %v4182 = vpack.c.b16 %v3533, %v3532
    %v4183 = vpack.c.b16 %v3535, %v3534
    %v4184 = vpack.c.b16 %v3537, %v3536
    %v4185 = vpack.c.b16 %v3539, %v3538
    %v4186 = vpack.c.b16 %v3541, %v3540
    %v4187 = vpack.c.b16 %v3543, %v3542
    %v4188 = vpack.c.b16 %v3545, %v3544
    %v4189 = vpack.c.b16 %v3547, %v3546
    %v4190 = vpack.c.b16 %v3549, %v3548
    %v4191 = vpack.c.b16 %v3551, %v3550
    %v4192 = vpack.c.b16 %v3553, %v3552
    %v4193 = vpack.c.b16 %v3555, %v3554
    %v4194 = vpack.c.b16 %v3557, %v3556
    %v4195 = vpack.c.b16 %v3559, %v3558
    %v4196 = vpack.c.b16 %v3561, %v3560
    %v4197 = vpack.c.b16 %v3563, %v3562
    %v4198 = vpack.c.b16 %v3565, %v3564
    %v4199 = vpack.c.b16 %v3567, %v3566
    %v4200 = vpack.c.b16 %v3569, %v3568
    %v4201 = vpack.c.b16 %v3571, %v3570
    %v4202 = vpack.c.b16 %v3573, %v3572
    %v4203 = vpack.c.b16 %v3575, %v3574
    %v4204 = vpack.c.b16 %v3577, %v3576
    %v4205 = vpack.c.b16 %v3579, %v3578
    %v4206 = vpack.c.b16 %v3581, %v3580
    %v4207 = vpack.c.b16 %v3583, %v3582
    %v4208 = vpack.c.b16 %v3585, %v3584
    %v4209 = vpack.c.b16 %v3587, %v3586
    %v4210 = vpack.c.b16 %v3589, %v3588
    %v4211 = vpack.c.b16 %v3591, %v3590
    %v4212 = vpack.c.b16 %v3593, %v3592
    %v4213 = vpack.c.b16 %v3595, %v3594
    %v4214 = vpack.c.b16 %v3597, %v3596
    %v4215 = vpack.c.b16 %v3599, %v3598
    %v4216 = vpack.c.b16 %v3601, %v3600
    %v4217 = vpack.c.b16 %v3603, %v3602
    %v4218 = vpack.c.b16 %v3605, %v3604
    %v4219 = vpack.c.b16 %v3607, %v3606
    %v4220 = vpack.c.b16 %v3609, %v3608
    %v4221 = vpack.c.b16 %v3611, %v3610
    %v4222 = vpack.c.b16 %v3613, %v3612
    %v4223 = vpack.c.b16 %v3615, %v3614
    %v4224 = vpack.c.b16 %v3617, %v3616
    %v4225 = vpack.c.b16 %v3619, %v3618
    %v4226 = vpack.c.b16 %v3621, %v3620
    %v4227 = vpack.c.b16 %v3623, %v3622
    %v4228 = vpack.c.b16 %v3625, %v3624
    %v4229 = vpack.c.b16 %v3627, %v3626
    %v4230 = vpack.c.b16 %v3629, %v3628
    %v4231 = vpack.c.b16 %v3631, %v3630
    %v4232 = vpack.c.b16 %v3633, %v3632
    %v4233 = vpack.c.b16 %v3635, %v3634
    %v4234 = vpack.c.b16 %v3637, %v3636
    %v4235 = vpack.c.b16 %v3639, %v3638
    %v4236 = vpack.c.b16 %v3641, %v3640
    %v4237 = vpack.c.b16 %v3643, %v3642
    %v4238 = vpack.c.b16 %v3645, %v3644
    %v4239 = vpack.c.b16 %v3647, %v3646
    %v4240 = vpack.c.b16 %v3649, %v3648
    %v4241 = vpack.c.b16 %v3651, %v3650
    %v4242 = vpack.c.b16 %v3653, %v3652
    %v4243 = vpack.c.b16 %v3655, %v3654
    %v4244 = vpack.c.b16 %v3657, %v3656
    %v4245 = vpack.c.b16 %v3659, %v3658
    %v4246 = vpack.c.b16 %v3661, %v3660
    %v4247 = vpack.c.b16 %v3663, %v3662
    %v4248 = vpack.c.b16 %v3665, %v3664
    %v4249 = vpack.c.b16 %v3667, %v3666
    %v4250 = vpack.c.b16 %v3669, %v3668
    %v4251 = vpack.c.b16 %v3671, %v3670
    %v4252 = vpack.c.b16 %v3673, %v3672
    %v4253 = vpack.c.b16 %v3675, %v3674
    %v4254 = vpack.c.b16 %v3677, %v3676
    %v4255 = vpack.c.b16 %v3679, %v3678
    %v4256 = vpack.c.b16 %v3681, %v3680
    %v4257 = vpack.c.b16 %v3683, %v3682
    %v4258 = vpack.c.b16 %v3685, %v3684
    %v4259 = vpack.c.b16 %v3687, %v3686
    %v4260 = vpack.c.b16 %v3689, %v3688
    %v4261 = vpack.c.b16 %v3691, %v3690
    %v4262 = vpack.c.b16 %v3693, %v3692
    %v4263 = vpack.c.b16 %v3695, %v3694
    %v4264 = vpack.c.b16 %v3697, %v3696
    %v4265 = vpack.c.b16 %v3699, %v3698
    %v4266 = vpack.c.b16 %v3701, %v3700
    %v4267 = vpack.c.b16 %v3703, %v3702
    %v4268 = vpack.c.b16 %v3705, %v3704
    %v4269 = vpack.c.b16 %v3707, %v3706
    %v4270 = vpack.c.b16 %v3709, %v3708
    %v4271 = vpack.c.b16 %v3711, %v3710
    %v4272 = vpack.c.b16 %v3713, %v3712
    %v4273 = vpack.c.b16 %v3715, %v3714
    %v4274 = vpack.c.b16 %v3717, %v3716
    %v4275 = vpack.c.b16 %v3719, %v3718
    %v4276 = vpack.c.b16 %v3721, %v3720
    %v4277 = vpack.c.b16 %v3723, %v3722
    %v4278 = vpack.c.b16 %v3725, %v3724
    %v4279 = vpack.c.b16 %v3727, %v3726
    %v4280 = vpack.c.b16 %v3729, %v3728
    %v4281 = vpack.c.b16 %v3731, %v3730
    %v4282 = vpack.c.b16 %v3733, %v3732
    %v4283 = vpack.c.b16 %v3735, %v3734
    %v4284 = vpack.c.b16 %v3737, %v3736
    %v4285 = vpack.c.b16 %v3739, %v3738
    %v4286 = vpack.c.b16 %v3741, %v3740
    %v4287 = vpack.c.b16 %v3743, %v3742
    %v4288 = vpack.c.b16 %v3745, %v3744
    %v4289 = vpack.c.b16 %v3747, %v3746
    %v4290 = vpack.c.b16 %v3749, %v3748
    %v4291 = vpack.c.b16 %v3751, %v3750
    %v4292 = vpack.c.b16 %v3753, %v3752
    %v4293 = vpack.c.b16 %v3755, %v3754
    %v4294 = vpack.c.b16 %v3757, %v3756
    %v4295 = vpack.c.b16 %v3759, %v3758
    %v4296 = vpack.c.b16 %v3761, %v3760
    %v4297 = vpack.c.b16 %v3763, %v3762
    %v4298 = vpack.c.b16 %v3765, %v3764
    %v4299 = vpack.c.b16 %v3767, %v3766
    %v4300 = vpack.c.b16 %v3769, %v3768
    %v4301 = vpack.c.b16 %v3771, %v3770
    %v4302 = vpack.c.b16 %v3773, %v3772
    %v4303 = vpack.c.b16 %v3775, %v3774
    %4832 = vmatprep.subr.bf16.mxu0 0
    %4833 = vmatpush1.bf16.msra.mxu0 %v3783
    %4834 = vmatprep.subr.bf16.mxu0 0
    %4835 = vmatpush1.bf16.msra.mxu0 %v3782
    %4836 = vmatprep.subr.bf16.mxu0 0
    %4837 = vmatpush1.bf16.msra.mxu0 %v3781
    %4838 = vmatprep.subr.bf16.mxu0 0
    %4839 = vmatpush1.bf16.msra.mxu0 %v3780
    %4840 = vmatprep.subr.bf16.mxu0 0
    %4841 = vmatpush1.bf16.msra.mxu0 %v3779
    %4842 = vmatprep.subr.bf16.mxu0 0
    %4843 = vmatpush1.bf16.msra.mxu0 %v3778
    %4844 = vmatprep.subr.bf16.mxu0 0
    %4845 = vmatpush1.bf16.msra.mxu0 %v3777
    %4846 = vmatprep.subr.bf16.mxu0 0
    %4847 = vmatpush1.bf16.msra.mxu0 %v3776
    %4848 = vmatprep.subr.bf16.mxu0 0
    %4849 = vmatpush2.bf16.msra.mxu0 %v3791
    %4850 = vmatprep.subr.bf16.mxu0 0
    %4851 = vmatpush2.bf16.msra.mxu0 %v3790
    %4852 = vmatprep.subr.bf16.mxu0 0
    %4853 = vmatpush2.bf16.msra.mxu0 %v3789
    %4854 = vmatprep.subr.bf16.mxu0 0
    %4855 = vmatpush2.bf16.msra.mxu0 %v3788
    %4856 = vmatprep.subr.bf16.mxu0 0
    %4857 = vmatpush2.bf16.msra.mxu0 %v3787
    %4858 = vmatprep.subr.bf16.mxu0 0
    %4859 = vmatpush2.bf16.msra.mxu0 %v3786
    %4860 = vmatprep.subr.bf16.mxu0 0
    %4861 = vmatpush2.bf16.msra.mxu0 %v3785
    %4862 = vmatprep.subr.bf16.mxu0 0
    %4863 = vmatpush2.bf16.msra.mxu0 %v3784
    %4864 = vmatprep.mubr.bf16.mxu0 %v1221
    %4865 = vmatmul.mubr.bf16.gmra.mxu0 %v1207
    %v4866 = vpop.f32.mrf.mxu0
    %v4867 = vadd.f32 %v1173, %v4866
    %v4868 = vpop.f32.mrf.mxu0
    %v4869 = vpop.f32.mrf.mxu0
    %v4870 = vpop.f32.mrf.mxu0
    %4871 = vdwg.mxu0
    %4872 = vmatprep.subr.bf16.mxu0 0
    %4873 = vmatpush1.bf16.msra.mxu0 %v3799
    %4874 = vmatprep.subr.bf16.mxu0 0
    %4875 = vmatpush1.bf16.msra.mxu0 %v3798
    %4876 = vmatprep.subr.bf16.mxu0 0
    %4877 = vmatpush1.bf16.msra.mxu0 %v3797
    %4878 = vmatprep.subr.bf16.mxu0 0
    %4879 = vmatpush1.bf16.msra.mxu0 %v3796
    %4880 = vmatprep.subr.bf16.mxu0 0
    %4881 = vmatpush1.bf16.msra.mxu0 %v3795
    %4882 = vmatprep.subr.bf16.mxu0 0
    %4883 = vmatpush1.bf16.msra.mxu0 %v3794
    %4884 = vmatprep.subr.bf16.mxu0 0
    %4885 = vmatpush1.bf16.msra.mxu0 %v3793
    %4886 = vmatprep.subr.bf16.mxu0 0
    %4887 = vmatpush1.bf16.msra.mxu0 %v3792
    %4888 = vmatprep.subr.bf16.mxu0 0
    %4889 = vmatpush2.bf16.msra.mxu0 %v3807
    %4890 = vmatprep.subr.bf16.mxu0 0
    %4891 = vmatpush2.bf16.msra.mxu0 %v3806
    %4892 = vmatprep.subr.bf16.mxu0 0
    %4893 = vmatpush2.bf16.msra.mxu0 %v3805
    %4894 = vmatprep.subr.bf16.mxu0 0
    %4895 = vmatpush2.bf16.msra.mxu0 %v3804
    %4896 = vmatprep.subr.bf16.mxu0 0
    %4897 = vmatpush2.bf16.msra.mxu0 %v3803
    %4898 = vmatprep.subr.bf16.mxu0 0
    %4899 = vmatpush2.bf16.msra.mxu0 %v3802
    %4900 = vmatprep.subr.bf16.mxu0 0
    %4901 = vmatpush2.bf16.msra.mxu0 %v3801
    %4902 = vmatprep.subr.bf16.mxu0 0
    %4903 = vmatpush2.bf16.msra.mxu0 %v3800
    %4904 = vmatprep.mubr.bf16.mxu0 %v1231
    %4905 = vmatmul.mubr.bf16.gmra.mxu0 %v1229
    %v4906 = vpop.f32.mrf.mxu0
    %v4907 = vadd.f32 %v4867, %v4906
    %v4908 = vpop.f32.mrf.mxu0
    %v4909 = vpop.f32.mrf.mxu0
    %v4910 = vpop.f32.mrf.mxu0
    %4911 = vdwg.mxu0
    %4912 = vmatprep.subr.bf16.mxu0 0
    %4913 = vmatpush1.bf16.msra.mxu0 %v3815
    %4914 = vmatprep.subr.bf16.mxu0 0
    %4915 = vmatpush1.bf16.msra.mxu0 %v3814
    %4916 = vmatprep.subr.bf16.mxu0 0
    %4917 = vmatpush1.bf16.msra.mxu0 %v3813
    %4918 = vmatprep.subr.bf16.mxu0 0
    %4919 = vmatpush1.bf16.msra.mxu0 %v3812
    %4920 = vmatprep.subr.bf16.mxu0 0
    %4921 = vmatpush1.bf16.msra.mxu0 %v3811
    %4922 = vmatprep.subr.bf16.mxu0 0
    %4923 = vmatpush1.bf16.msra.mxu0 %v3810
    %4924 = vmatprep.subr.bf16.mxu0 0
    %4925 = vmatpush1.bf16.msra.mxu0 %v3809
    %4926 = vmatprep.subr.bf16.mxu0 0
    %4927 = vmatpush1.bf16.msra.mxu0 %v3808
    %4928 = vmatprep.subr.bf16.mxu0 0
    %4929 = vmatpush2.bf16.msra.mxu0 %v3823
    %4930 = vmatprep.subr.bf16.mxu0 0
    %4931 = vmatpush2.bf16.msra.mxu0 %v3822
    %4932 = vmatprep.subr.bf16.mxu0 0
    %4933 = vmatpush2.bf16.msra.mxu0 %v3821
    %4934 = vmatprep.subr.bf16.mxu0 0
    %4935 = vmatpush2.bf16.msra.mxu0 %v3820
    %4936 = vmatprep.subr.bf16.mxu0 0
    %4937 = vmatpush2.bf16.msra.mxu0 %v3819
    %4938 = vmatprep.subr.bf16.mxu0 0
    %4939 = vmatpush2.bf16.msra.mxu0 %v3818
    %4940 = vmatprep.subr.bf16.mxu0 0
    %4941 = vmatpush2.bf16.msra.mxu0 %v3817
    %4942 = vmatprep.subr.bf16.mxu0 0
    %4943 = vmatpush2.bf16.msra.mxu0 %v3816
    %4944 = vmatprep.mubr.bf16.mxu0 %v1228
    %4945 = vmatmul.mubr.bf16.gmra.mxu0 %v1214
    %v4946 = vpop.f32.mrf.mxu0
    %v4947 = vadd.f32 %v4907, %v4946
    %v4948 = vpop.f32.mrf.mxu0
    %v4949 = vpop.f32.mrf.mxu0
    %v4950 = vpop.f32.mrf.mxu0
    %4951 = vdwg.mxu0
    %4952 = vmatprep.subr.bf16.mxu0 0
    %4953 = vmatpush1.bf16.msra.mxu0 %v3831
    %4954 = vmatprep.subr.bf16.mxu0 0
    %4955 = vmatpush1.bf16.msra.mxu0 %v3830
    %4956 = vmatprep.subr.bf16.mxu0 0
    %4957 = vmatpush1.bf16.msra.mxu0 %v3829
    %4958 = vmatprep.subr.bf16.mxu0 0
    %4959 = vmatpush1.bf16.msra.mxu0 %v3828
    %4960 = vmatprep.subr.bf16.mxu0 0
    %4961 = vmatpush1.bf16.msra.mxu0 %v3827
    %4962 = vmatprep.subr.bf16.mxu0 0
    %4963 = vmatpush1.bf16.msra.mxu0 %v3826
    %4964 = vmatprep.subr.bf16.mxu0 0
    %4965 = vmatpush1.bf16.msra.mxu0 %v3825
    %4966 = vmatprep.subr.bf16.mxu0 0
    %4967 = vmatpush1.bf16.msra.mxu0 %v3824
    %4968 = vmatprep.subr.bf16.mxu0 0
    %4969 = vmatpush2.bf16.msra.mxu0 %v3839
    %4970 = vmatprep.subr.bf16.mxu0 0
    %4971 = vmatpush2.bf16.msra.mxu0 %v3838
    %4972 = vmatprep.subr.bf16.mxu0 0
    %4973 = vmatpush2.bf16.msra.mxu0 %v3837
    %4974 = vmatprep.subr.bf16.mxu0 0
    %4975 = vmatpush2.bf16.msra.mxu0 %v3836
    %4976 = vmatprep.subr.bf16.mxu0 0
    %4977 = vmatpush2.bf16.msra.mxu0 %v3835
    %4978 = vmatprep.subr.bf16.mxu0 0
    %4979 = vmatpush2.bf16.msra.mxu0 %v3834
    %4980 = vmatprep.subr.bf16.mxu0 0
    %4981 = vmatpush2.bf16.msra.mxu0 %v3833
    %4982 = vmatprep.subr.bf16.mxu0 0
    %4983 = vmatpush2.bf16.msra.mxu0 %v3832
    %4984 = vmatprep.mubr.bf16.mxu0 %v1232
    %4985 = vmatmul.mubr.bf16.gmra.mxu0 %v1230
    %v4986 = vpop.f32.mrf.mxu0
    %v4987 = vadd.f32 %v4947, %v4986
    %v4988 = vpop.f32.mrf.mxu0
    %v4989 = vpop.f32.mrf.mxu0
    %v4990 = vpop.f32.mrf.mxu0
    %4991 = vdwg.mxu0
    %4992 = vmatprep.subr.bf16.mxu0 0
    %4993 = vmatpush1.bf16.msra.mxu0 %v3847
    %4994 = vmatprep.subr.bf16.mxu0 0
    %4995 = vmatpush1.bf16.msra.mxu0 %v3846
    %4996 = vmatprep.subr.bf16.mxu0 0
    %4997 = vmatpush1.bf16.msra.mxu0 %v3845
    %4998 = vmatprep.subr.bf16.mxu0 0
    %4999 = vmatpush1.bf16.msra.mxu0 %v3844
    %5000 = vmatprep.subr.bf16.mxu0 0
    %5001 = vmatpush1.bf16.msra.mxu0 %v3843
    %5002 = vmatprep.subr.bf16.mxu0 0
    %5003 = vmatpush1.bf16.msra.mxu0 %v3842
    %5004 = vmatprep.subr.bf16.mxu0 0
    %5005 = vmatpush1.bf16.msra.mxu0 %v3841
    %5006 = vmatprep.subr.bf16.mxu0 0
    %5007 = vmatpush1.bf16.msra.mxu0 %v3840
    %5008 = vmatprep.subr.bf16.mxu0 0
    %5009 = vmatpush2.bf16.msra.mxu0 %v3855
    %5010 = vmatprep.subr.bf16.mxu0 0
    %5011 = vmatpush2.bf16.msra.mxu0 %v3854
    %5012 = vmatprep.subr.bf16.mxu0 0
    %5013 = vmatpush2.bf16.msra.mxu0 %v3853
    %5014 = vmatprep.subr.bf16.mxu0 0
    %5015 = vmatpush2.bf16.msra.mxu0 %v3852
    %5016 = vmatprep.subr.bf16.mxu0 0
    %5017 = vmatpush2.bf16.msra.mxu0 %v3851
    %5018 = vmatprep.subr.bf16.mxu0 0
    %5019 = vmatpush2.bf16.msra.mxu0 %v3850
    %5020 = vmatprep.subr.bf16.mxu0 0
    %5021 = vmatpush2.bf16.msra.mxu0 %v3849
    %5022 = vmatprep.subr.bf16.mxu0 0
    %5023 = vmatpush2.bf16.msra.mxu0 %v3848
    %5024 = vmatprep.mubr.bf16.mxu0 %v1270
    %5025 = vmatmul.mubr.bf16.gmra.mxu0 %v1256
    %v5026 = vpop.f32.mrf.mxu0
    %v5027 = vadd.f32 %v4987, %v5026
    %v5028 = vpop.f32.mrf.mxu0
    %v5029 = vpop.f32.mrf.mxu0
    %v5030 = vpop.f32.mrf.mxu0
    %5031 = vdwg.mxu0
    %5032 = vmatprep.subr.bf16.mxu0 0
    %5033 = vmatpush1.bf16.msra.mxu0 %v3863
    %5034 = vmatprep.subr.bf16.mxu0 0
    %5035 = vmatpush1.bf16.msra.mxu0 %v3862
    %5036 = vmatprep.subr.bf16.mxu0 0
    %5037 = vmatpush1.bf16.msra.mxu0 %v3861
    %5038 = vmatprep.subr.bf16.mxu0 0
    %5039 = vmatpush1.bf16.msra.mxu0 %v3860
    %5040 = vmatprep.subr.bf16.mxu0 0
    %5041 = vmatpush1.bf16.msra.mxu0 %v3859
    %5042 = vmatprep.subr.bf16.mxu0 0
    %5043 = vmatpush1.bf16.msra.mxu0 %v3858
    %5044 = vmatprep.subr.bf16.mxu0 0
    %5045 = vmatpush1.bf16.msra.mxu0 %v3857
    %5046 = vmatprep.subr.bf16.mxu0 0
    %5047 = vmatpush1.bf16.msra.mxu0 %v3856
    %5048 = vmatprep.subr.bf16.mxu0 0
    %5049 = vmatpush2.bf16.msra.mxu0 %v3871
    %5050 = vmatprep.subr.bf16.mxu0 0
    %5051 = vmatpush2.bf16.msra.mxu0 %v3870
    %5052 = vmatprep.subr.bf16.mxu0 0
    %5053 = vmatpush2.bf16.msra.mxu0 %v3869
    %5054 = vmatprep.subr.bf16.mxu0 0
    %5055 = vmatpush2.bf16.msra.mxu0 %v3868
    %5056 = vmatprep.subr.bf16.mxu0 0
    %5057 = vmatpush2.bf16.msra.mxu0 %v3867
    %5058 = vmatprep.subr.bf16.mxu0 0
    %5059 = vmatpush2.bf16.msra.mxu0 %v3866
    %5060 = vmatprep.subr.bf16.mxu0 0
    %5061 = vmatpush2.bf16.msra.mxu0 %v3865
    %5062 = vmatprep.subr.bf16.mxu0 0
    %5063 = vmatpush2.bf16.msra.mxu0 %v3864
    %5064 = vmatprep.mubr.bf16.mxu0 %v1280
    %5065 = vmatmul.mubr.bf16.gmra.mxu0 %v1278
    %v5066 = vpop.f32.mrf.mxu0
    %v5067 = vadd.f32 %v5027, %v5066
    %v5068 = vpop.f32.mrf.mxu0
    %v5069 = vpop.f32.mrf.mxu0
    %v5070 = vpop.f32.mrf.mxu0
    %5071 = vdwg.mxu0
    %5072 = vmatprep.subr.bf16.mxu0 0
    %5073 = vmatpush1.bf16.msra.mxu0 %v3879
    %5074 = vmatprep.subr.bf16.mxu0 0
    %5075 = vmatpush1.bf16.msra.mxu0 %v3878
    %5076 = vmatprep.subr.bf16.mxu0 0
    %5077 = vmatpush1.bf16.msra.mxu0 %v3877
    %5078 = vmatprep.subr.bf16.mxu0 0
    %5079 = vmatpush1.bf16.msra.mxu0 %v3876
    %5080 = vmatprep.subr.bf16.mxu0 0
    %5081 = vmatpush1.bf16.msra.mxu0 %v3875
    %5082 = vmatprep.subr.bf16.mxu0 0
    %5083 = vmatpush1.bf16.msra.mxu0 %v3874
    %5084 = vmatprep.subr.bf16.mxu0 0
    %5085 = vmatpush1.bf16.msra.mxu0 %v3873
    %5086 = vmatprep.subr.bf16.mxu0 0
    %5087 = vmatpush1.bf16.msra.mxu0 %v3872
    %5088 = vmatprep.subr.bf16.mxu0 0
    %5089 = vmatpush2.bf16.msra.mxu0 %v3887
    %5090 = vmatprep.subr.bf16.mxu0 0
    %5091 = vmatpush2.bf16.msra.mxu0 %v3886
    %5092 = vmatprep.subr.bf16.mxu0 0
    %5093 = vmatpush2.bf16.msra.mxu0 %v3885
    %5094 = vmatprep.subr.bf16.mxu0 0
    %5095 = vmatpush2.bf16.msra.mxu0 %v3884
    %5096 = vmatprep.subr.bf16.mxu0 0
    %5097 = vmatpush2.bf16.msra.mxu0 %v3883
    %5098 = vmatprep.subr.bf16.mxu0 0
    %5099 = vmatpush2.bf16.msra.mxu0 %v3882
    %5100 = vmatprep.subr.bf16.mxu0 0
    %5101 = vmatpush2.bf16.msra.mxu0 %v3881
    %5102 = vmatprep.subr.bf16.mxu0 0
    %5103 = vmatpush2.bf16.msra.mxu0 %v3880
    %5104 = vmatprep.mubr.bf16.mxu0 %v1277
    %5105 = vmatmul.mubr.bf16.gmra.mxu0 %v1263
    %v5106 = vpop.f32.mrf.mxu0
    %v5107 = vadd.f32 %v5067, %v5106
    %v5108 = vpop.f32.mrf.mxu0
    %v5109 = vpop.f32.mrf.mxu0
    %v5110 = vpop.f32.mrf.mxu0
    %5111 = vdwg.mxu0
    %5112 = vmatprep.subr.bf16.mxu0 0
    %5113 = vmatpush1.bf16.msra.mxu0 %v3895
    %5114 = vmatprep.subr.bf16.mxu0 0
    %5115 = vmatpush1.bf16.msra.mxu0 %v3894
    %5116 = vmatprep.subr.bf16.mxu0 0
    %5117 = vmatpush1.bf16.msra.mxu0 %v3893
    %5118 = vmatprep.subr.bf16.mxu0 0
    %5119 = vmatpush1.bf16.msra.mxu0 %v3892
    %5120 = vmatprep.subr.bf16.mxu0 0
    %5121 = vmatpush1.bf16.msra.mxu0 %v3891
    %5122 = vmatprep.subr.bf16.mxu0 0
    %5123 = vmatpush1.bf16.msra.mxu0 %v3890
    %5124 = vmatprep.subr.bf16.mxu0 0
    %5125 = vmatpush1.bf16.msra.mxu0 %v3889
    %5126 = vmatprep.subr.bf16.mxu0 0
    %5127 = vmatpush1.bf16.msra.mxu0 %v3888
    %5128 = vmatprep.subr.bf16.mxu0 0
    %5129 = vmatpush2.bf16.msra.mxu0 %v3903
    %5130 = vmatprep.subr.bf16.mxu0 0
    %5131 = vmatpush2.bf16.msra.mxu0 %v3902
    %5132 = vmatprep.subr.bf16.mxu0 0
    %5133 = vmatpush2.bf16.msra.mxu0 %v3901
    %5134 = vmatprep.subr.bf16.mxu0 0
    %5135 = vmatpush2.bf16.msra.mxu0 %v3900
    %5136 = vmatprep.subr.bf16.mxu0 0
    %5137 = vmatpush2.bf16.msra.mxu0 %v3899
    %5138 = vmatprep.subr.bf16.mxu0 0
    %5139 = vmatpush2.bf16.msra.mxu0 %v3898
    %5140 = vmatprep.subr.bf16.mxu0 0
    %5141 = vmatpush2.bf16.msra.mxu0 %v3897
    %5142 = vmatprep.subr.bf16.mxu0 0
    %5143 = vmatpush2.bf16.msra.mxu0 %v3896
    %5144 = vmatprep.mubr.bf16.mxu0 %v1281
    %5145 = vmatmul.mubr.bf16.gmra.mxu0 %v1279
    %v5146 = vpop.f32.mrf.mxu0
    %v5147 = vadd.f32 %v5107, %v5146
    %v5148 = vpop.f32.mrf.mxu0
    %v5149 = vpop.f32.mrf.mxu0
    %v5150 = vpop.f32.mrf.mxu0
    %5151 = vdwg.mxu0
    %5152 = vmatprep.subr.bf16.mxu0 0
    %5153 = vmatpush1.bf16.msra.mxu0 %v3911
    %5154 = vmatprep.subr.bf16.mxu0 0
    %5155 = vmatpush1.bf16.msra.mxu0 %v3910
    %5156 = vmatprep.subr.bf16.mxu0 0
    %5157 = vmatpush1.bf16.msra.mxu0 %v3909
    %5158 = vmatprep.subr.bf16.mxu0 0
    %5159 = vmatpush1.bf16.msra.mxu0 %v3908
    %5160 = vmatprep.subr.bf16.mxu0 0
    %5161 = vmatpush1.bf16.msra.mxu0 %v3907
    %5162 = vmatprep.subr.bf16.mxu0 0
    %5163 = vmatpush1.bf16.msra.mxu0 %v3906
    %5164 = vmatprep.subr.bf16.mxu0 0
    %5165 = vmatpush1.bf16.msra.mxu0 %v3905
    %5166 = vmatprep.subr.bf16.mxu0 0
    %5167 = vmatpush1.bf16.msra.mxu0 %v3904
    %5168 = vmatprep.subr.bf16.mxu0 0
    %5169 = vmatpush2.bf16.msra.mxu0 %v3919
    %5170 = vmatprep.subr.bf16.mxu0 0
    %5171 = vmatpush2.bf16.msra.mxu0 %v3918
    %5172 = vmatprep.subr.bf16.mxu0 0
    %5173 = vmatpush2.bf16.msra.mxu0 %v3917
    %5174 = vmatprep.subr.bf16.mxu0 0
    %5175 = vmatpush2.bf16.msra.mxu0 %v3916
    %5176 = vmatprep.subr.bf16.mxu0 0
    %5177 = vmatpush2.bf16.msra.mxu0 %v3915
    %5178 = vmatprep.subr.bf16.mxu0 0
    %5179 = vmatpush2.bf16.msra.mxu0 %v3914
    %5180 = vmatprep.subr.bf16.mxu0 0
    %5181 = vmatpush2.bf16.msra.mxu0 %v3913
    %5182 = vmatprep.subr.bf16.mxu0 0
    %5183 = vmatpush2.bf16.msra.mxu0 %v3912
    %5184 = vmatprep.mubr.bf16.mxu0 %v1319
    %5185 = vmatmul.mubr.bf16.gmra.mxu0 %v1305
    %v5186 = vpop.f32.mrf.mxu0
    %v5187 = vadd.f32 %v5147, %v5186
    %v5188 = vpop.f32.mrf.mxu0
    %v5189 = vpop.f32.mrf.mxu0
    %v5190 = vpop.f32.mrf.mxu0
    %5191 = vdwg.mxu0
    %5192 = vmatprep.subr.bf16.mxu0 0
    %5193 = vmatpush1.bf16.msra.mxu0 %v3927
    %5194 = vmatprep.subr.bf16.mxu0 0
    %5195 = vmatpush1.bf16.msra.mxu0 %v3926
    %5196 = vmatprep.subr.bf16.mxu0 0
    %5197 = vmatpush1.bf16.msra.mxu0 %v3925
    %5198 = vmatprep.subr.bf16.mxu0 0
    %5199 = vmatpush1.bf16.msra.mxu0 %v3924
    %5200 = vmatprep.subr.bf16.mxu0 0
    %5201 = vmatpush1.bf16.msra.mxu0 %v3923
    %5202 = vmatprep.subr.bf16.mxu0 0
    %5203 = vmatpush1.bf16.msra.mxu0 %v3922
    %5204 = vmatprep.subr.bf16.mxu0 0
    %5205 = vmatpush1.bf16.msra.mxu0 %v3921
    %5206 = vmatprep.subr.bf16.mxu0 0
    %5207 = vmatpush1.bf16.msra.mxu0 %v3920
    %5208 = vmatprep.subr.bf16.mxu0 0
    %5209 = vmatpush2.bf16.msra.mxu0 %v3935
    %5210 = vmatprep.subr.bf16.mxu0 0
    %5211 = vmatpush2.bf16.msra.mxu0 %v3934
    %5212 = vmatprep.subr.bf16.mxu0 0
    %5213 = vmatpush2.bf16.msra.mxu0 %v3933
    %5214 = vmatprep.subr.bf16.mxu0 0
    %5215 = vmatpush2.bf16.msra.mxu0 %v3932
    %5216 = vmatprep.subr.bf16.mxu0 0
    %5217 = vmatpush2.bf16.msra.mxu0 %v3931
    %5218 = vmatprep.subr.bf16.mxu0 0
    %5219 = vmatpush2.bf16.msra.mxu0 %v3930
    %5220 = vmatprep.subr.bf16.mxu0 0
    %5221 = vmatpush2.bf16.msra.mxu0 %v3929
    %5222 = vmatprep.subr.bf16.mxu0 0
    %5223 = vmatpush2.bf16.msra.mxu0 %v3928
    %5224 = vmatprep.mubr.bf16.mxu0 %v1329
    %5225 = vmatmul.mubr.bf16.gmra.mxu0 %v1327
    %v5226 = vpop.f32.mrf.mxu0
    %v5227 = vadd.f32 %v5187, %v5226
    %v5228 = vpop.f32.mrf.mxu0
    %v5229 = vpop.f32.mrf.mxu0
    %v5230 = vpop.f32.mrf.mxu0
    %5231 = vdwg.mxu0
    %5232 = vmatprep.subr.bf16.mxu0 0
    %5233 = vmatpush1.bf16.msra.mxu0 %v3943
    %5234 = vmatprep.subr.bf16.mxu0 0
    %5235 = vmatpush1.bf16.msra.mxu0 %v3942
    %5236 = vmatprep.subr.bf16.mxu0 0
    %5237 = vmatpush1.bf16.msra.mxu0 %v3941
    %5238 = vmatprep.subr.bf16.mxu0 0
    %5239 = vmatpush1.bf16.msra.mxu0 %v3940
    %5240 = vmatprep.subr.bf16.mxu0 0
    %5241 = vmatpush1.bf16.msra.mxu0 %v3939
    %5242 = vmatprep.subr.bf16.mxu0 0
    %5243 = vmatpush1.bf16.msra.mxu0 %v3938
    %5244 = vmatprep.subr.bf16.mxu0 0
    %5245 = vmatpush1.bf16.msra.mxu0 %v3937
    %5246 = vmatprep.subr.bf16.mxu0 0
    %5247 = vmatpush1.bf16.msra.mxu0 %v3936
    %5248 = vmatprep.subr.bf16.mxu0 0
    %5249 = vmatpush2.bf16.msra.mxu0 %v3951
    %5250 = vmatprep.subr.bf16.mxu0 0
    %5251 = vmatpush2.bf16.msra.mxu0 %v3950
    %5252 = vmatprep.subr.bf16.mxu0 0
    %5253 = vmatpush2.bf16.msra.mxu0 %v3949
    %5254 = vmatprep.subr.bf16.mxu0 0
    %5255 = vmatpush2.bf16.msra.mxu0 %v3948
    %5256 = vmatprep.subr.bf16.mxu0 0
    %5257 = vmatpush2.bf16.msra.mxu0 %v3947
    %5258 = vmatprep.subr.bf16.mxu0 0
    %5259 = vmatpush2.bf16.msra.mxu0 %v3946
    %5260 = vmatprep.subr.bf16.mxu0 0
    %5261 = vmatpush2.bf16.msra.mxu0 %v3945
    %5262 = vmatprep.subr.bf16.mxu0 0
    %5263 = vmatpush2.bf16.msra.mxu0 %v3944
    %5264 = vmatprep.mubr.bf16.mxu0 %v1326
    %5265 = vmatmul.mubr.bf16.gmra.mxu0 %v1312
    %v5266 = vpop.f32.mrf.mxu0
    %v5267 = vadd.f32 %v5227, %v5266
    %v5268 = vpop.f32.mrf.mxu0
    %v5269 = vpop.f32.mrf.mxu0
    %v5270 = vpop.f32.mrf.mxu0
    %5271 = vdwg.mxu0
    %5272 = vmatprep.subr.bf16.mxu0 0
    %5273 = vmatpush1.bf16.msra.mxu0 %v3959
    %5274 = vmatprep.subr.bf16.mxu0 0
    %5275 = vmatpush1.bf16.msra.mxu0 %v3958
    %5276 = vmatprep.subr.bf16.mxu0 0
    %5277 = vmatpush1.bf16.msra.mxu0 %v3957
    %5278 = vmatprep.subr.bf16.mxu0 0
    %5279 = vmatpush1.bf16.msra.mxu0 %v3956
    %5280 = vmatprep.subr.bf16.mxu0 0
    %5281 = vmatpush1.bf16.msra.mxu0 %v3955
    %5282 = vmatprep.subr.bf16.mxu0 0
    %5283 = vmatpush1.bf16.msra.mxu0 %v3954
    %5284 = vmatprep.subr.bf16.mxu0 0
    %5285 = vmatpush1.bf16.msra.mxu0 %v3953
    %5286 = vmatprep.subr.bf16.mxu0 0
    %5287 = vmatpush1.bf16.msra.mxu0 %v3952
    %5288 = vmatprep.subr.bf16.mxu0 0
    %5289 = vmatpush2.bf16.msra.mxu0 %v3967
    %5290 = vmatprep.subr.bf16.mxu0 0
    %5291 = vmatpush2.bf16.msra.mxu0 %v3966
    %5292 = vmatprep.subr.bf16.mxu0 0
    %5293 = vmatpush2.bf16.msra.mxu0 %v3965
    %5294 = vmatprep.subr.bf16.mxu0 0
    %5295 = vmatpush2.bf16.msra.mxu0 %v3964
    %5296 = vmatprep.subr.bf16.mxu0 0
    %5297 = vmatpush2.bf16.msra.mxu0 %v3963
    %5298 = vmatprep.subr.bf16.mxu0 0
    %5299 = vmatpush2.bf16.msra.mxu0 %v3962
    %5300 = vmatprep.subr.bf16.mxu0 0
    %5301 = vmatpush2.bf16.msra.mxu0 %v3961
    %5302 = vmatprep.subr.bf16.mxu0 0
    %5303 = vmatpush2.bf16.msra.mxu0 %v3960
    %5304 = vmatprep.mubr.bf16.mxu0 %v1330
    %5305 = vmatmul.mubr.bf16.gmra.mxu0 %v1328
    %v5306 = vpop.f32.mrf.mxu0
    %v5307 = vadd.f32 %v5267, %v5306
    %v5308 = vpop.f32.mrf.mxu0
    %v5309 = vpop.f32.mrf.mxu0
    %v5310 = vpop.f32.mrf.mxu0
    %5311 = vdwg.mxu0
    %5312 = vmatprep.subr.bf16.mxu0 0
    %5313 = vmatpush1.bf16.msra.mxu0 %v3975
    %5314 = vmatprep.subr.bf16.mxu0 0
    %5315 = vmatpush1.bf16.msra.mxu0 %v3974
    %5316 = vmatprep.subr.bf16.mxu0 0
    %5317 = vmatpush1.bf16.msra.mxu0 %v3973
    %5318 = vmatprep.subr.bf16.mxu0 0
    %5319 = vmatpush1.bf16.msra.mxu0 %v3972
    %5320 = vmatprep.subr.bf16.mxu0 0
    %5321 = vmatpush1.bf16.msra.mxu0 %v3971
    %5322 = vmatprep.subr.bf16.mxu0 0
    %5323 = vmatpush1.bf16.msra.mxu0 %v3970
    %5324 = vmatprep.subr.bf16.mxu0 0
    %5325 = vmatpush1.bf16.msra.mxu0 %v3969
    %5326 = vmatprep.subr.bf16.mxu0 0
    %5327 = vmatpush1.bf16.msra.mxu0 %v3968
    %5328 = vmatprep.subr.bf16.mxu0 0
    %5329 = vmatpush2.bf16.msra.mxu0 %v3983
    %5330 = vmatprep.subr.bf16.mxu0 0
    %5331 = vmatpush2.bf16.msra.mxu0 %v3982
    %5332 = vmatprep.subr.bf16.mxu0 0
    %5333 = vmatpush2.bf16.msra.mxu0 %v3981
    %5334 = vmatprep.subr.bf16.mxu0 0
    %5335 = vmatpush2.bf16.msra.mxu0 %v3980
    %5336 = vmatprep.subr.bf16.mxu0 0
    %5337 = vmatpush2.bf16.msra.mxu0 %v3979
    %5338 = vmatprep.subr.bf16.mxu0 0
    %5339 = vmatpush2.bf16.msra.mxu0 %v3978
    %5340 = vmatprep.subr.bf16.mxu0 0
    %5341 = vmatpush2.bf16.msra.mxu0 %v3977
    %5342 = vmatprep.subr.bf16.mxu0 0
    %5343 = vmatpush2.bf16.msra.mxu0 %v3976
    %5344 = vmatprep.mubr.bf16.mxu0 %v1368
    %5345 = vmatmul.mubr.bf16.gmra.mxu0 %v1354
    %v5346 = vpop.f32.mrf.mxu0
    %v5347 = vadd.f32 %v5307, %v5346
    %v5348 = vpop.f32.mrf.mxu0
    %v5349 = vpop.f32.mrf.mxu0
    %v5350 = vpop.f32.mrf.mxu0
    %5351 = vdwg.mxu0
    %5352 = vmatprep.subr.bf16.mxu0 0
    %5353 = vmatpush1.bf16.msra.mxu0 %v3991
    %5354 = vmatprep.subr.bf16.mxu0 0
    %5355 = vmatpush1.bf16.msra.mxu0 %v3990
    %5356 = vmatprep.subr.bf16.mxu0 0
    %5357 = vmatpush1.bf16.msra.mxu0 %v3989
    %5358 = vmatprep.subr.bf16.mxu0 0
    %5359 = vmatpush1.bf16.msra.mxu0 %v3988
    %5360 = vmatprep.subr.bf16.mxu0 0
    %5361 = vmatpush1.bf16.msra.mxu0 %v3987
    %5362 = vmatprep.subr.bf16.mxu0 0
    %5363 = vmatpush1.bf16.msra.mxu0 %v3986
    %5364 = vmatprep.subr.bf16.mxu0 0
    %5365 = vmatpush1.bf16.msra.mxu0 %v3985
    %5366 = vmatprep.subr.bf16.mxu0 0
    %5367 = vmatpush1.bf16.msra.mxu0 %v3984
    %5368 = vmatprep.subr.bf16.mxu0 0
    %5369 = vmatpush2.bf16.msra.mxu0 %v3999
    %5370 = vmatprep.subr.bf16.mxu0 0
    %5371 = vmatpush2.bf16.msra.mxu0 %v3998
    %5372 = vmatprep.subr.bf16.mxu0 0
    %5373 = vmatpush2.bf16.msra.mxu0 %v3997
    %5374 = vmatprep.subr.bf16.mxu0 0
    %5375 = vmatpush2.bf16.msra.mxu0 %v3996
    %5376 = vmatprep.subr.bf16.mxu0 0
    %5377 = vmatpush2.bf16.msra.mxu0 %v3995
    %5378 = vmatprep.subr.bf16.mxu0 0
    %5379 = vmatpush2.bf16.msra.mxu0 %v3994
    %5380 = vmatprep.subr.bf16.mxu0 0
    %5381 = vmatpush2.bf16.msra.mxu0 %v3993
    %5382 = vmatprep.subr.bf16.mxu0 0
    %5383 = vmatpush2.bf16.msra.mxu0 %v3992
    %5384 = vmatprep.mubr.bf16.mxu0 %v1378
    %5385 = vmatmul.mubr.bf16.gmra.mxu0 %v1376
    %v5386 = vpop.f32.mrf.mxu0
    %v5387 = vadd.f32 %v5347, %v5386
    %v5388 = vpop.f32.mrf.mxu0
    %v5389 = vpop.f32.mrf.mxu0
    %v5390 = vpop.f32.mrf.mxu0
    %5391 = vdwg.mxu0
    %5392 = vmatprep.subr.bf16.mxu0 0
    %5393 = vmatpush1.bf16.msra.mxu0 %v4007
    %5394 = vmatprep.subr.bf16.mxu0 0
    %5395 = vmatpush1.bf16.msra.mxu0 %v4006
    %5396 = vmatprep.subr.bf16.mxu0 0
    %5397 = vmatpush1.bf16.msra.mxu0 %v4005
    %5398 = vmatprep.subr.bf16.mxu0 0
    %5399 = vmatpush1.bf16.msra.mxu0 %v4004
    %5400 = vmatprep.subr.bf16.mxu0 0
    %5401 = vmatpush1.bf16.msra.mxu0 %v4003
    %5402 = vmatprep.subr.bf16.mxu0 0
    %5403 = vmatpush1.bf16.msra.mxu0 %v4002
    %5404 = vmatprep.subr.bf16.mxu0 0
    %5405 = vmatpush1.bf16.msra.mxu0 %v4001
    %5406 = vmatprep.subr.bf16.mxu0 0
    %5407 = vmatpush1.bf16.msra.mxu0 %v4000
    %5408 = vmatprep.subr.bf16.mxu0 0
    %5409 = vmatpush2.bf16.msra.mxu0 %v4015
    %5410 = vmatprep.subr.bf16.mxu0 0
    %5411 = vmatpush2.bf16.msra.mxu0 %v4014
    %5412 = vmatprep.subr.bf16.mxu0 0
    %5413 = vmatpush2.bf16.msra.mxu0 %v4013
    %5414 = vmatprep.subr.bf16.mxu0 0
    %5415 = vmatpush2.bf16.msra.mxu0 %v4012
    %5416 = vmatprep.subr.bf16.mxu0 0
    %5417 = vmatpush2.bf16.msra.mxu0 %v4011
    %5418 = vmatprep.subr.bf16.mxu0 0
    %5419 = vmatpush2.bf16.msra.mxu0 %v4010
    %5420 = vmatprep.subr.bf16.mxu0 0
    %5421 = vmatpush2.bf16.msra.mxu0 %v4009
    %5422 = vmatprep.subr.bf16.mxu0 0
    %5423 = vmatpush2.bf16.msra.mxu0 %v4008
    %5424 = vmatprep.mubr.bf16.mxu0 %v1375
    %5425 = vmatmul.mubr.bf16.gmra.mxu0 %v1361
    %v5426 = vpop.f32.mrf.mxu0
    %v5427 = vadd.f32 %v5387, %v5426
    %v5428 = vpop.f32.mrf.mxu0
    %v5429 = vpop.f32.mrf.mxu0
    %v5430 = vpop.f32.mrf.mxu0
    %5431 = vdwg.mxu0
    %5432 = vmatprep.subr.bf16.mxu0 0
    %5433 = vmatpush1.bf16.msra.mxu0 %v4023
    %5434 = vmatprep.subr.bf16.mxu0 0
    %5435 = vmatpush1.bf16.msra.mxu0 %v4022
    %5436 = vmatprep.subr.bf16.mxu0 0
    %5437 = vmatpush1.bf16.msra.mxu0 %v4021
    %5438 = vmatprep.subr.bf16.mxu0 0
    %5439 = vmatpush1.bf16.msra.mxu0 %v4020
    %5440 = vmatprep.subr.bf16.mxu0 0
    %5441 = vmatpush1.bf16.msra.mxu0 %v4019
    %5442 = vmatprep.subr.bf16.mxu0 0
    %5443 = vmatpush1.bf16.msra.mxu0 %v4018
    %5444 = vmatprep.subr.bf16.mxu0 0
    %5445 = vmatpush1.bf16.msra.mxu0 %v4017
    %5446 = vmatprep.subr.bf16.mxu0 0
    %5447 = vmatpush1.bf16.msra.mxu0 %v4016
    %5448 = vmatprep.subr.bf16.mxu0 0
    %5449 = vmatpush2.bf16.msra.mxu0 %v4031
    %5450 = vmatprep.subr.bf16.mxu0 0
    %5451 = vmatpush2.bf16.msra.mxu0 %v4030
    %5452 = vmatprep.subr.bf16.mxu0 0
    %5453 = vmatpush2.bf16.msra.mxu0 %v4029
    %5454 = vmatprep.subr.bf16.mxu0 0
    %5455 = vmatpush2.bf16.msra.mxu0 %v4028
    %5456 = vmatprep.subr.bf16.mxu0 0
    %5457 = vmatpush2.bf16.msra.mxu0 %v4027
    %5458 = vmatprep.subr.bf16.mxu0 0
    %5459 = vmatpush2.bf16.msra.mxu0 %v4026
    %5460 = vmatprep.subr.bf16.mxu0 0
    %5461 = vmatpush2.bf16.msra.mxu0 %v4025
    %5462 = vmatprep.subr.bf16.mxu0 0
    %5463 = vmatpush2.bf16.msra.mxu0 %v4024
    %5464 = vmatprep.mubr.bf16.mxu0 %v1379
    %5465 = vmatmul.mubr.bf16.gmra.mxu0 %v1377
    %v5466 = vpop.f32.mrf.mxu0
    %v5467 = vadd.f32 %v5427, %v5466
    %v5468 = vpop.f32.mrf.mxu0
    %v5469 = vpop.f32.mrf.mxu0
    %v5470 = vpop.f32.mrf.mxu0
    %5471 = vdwg.mxu0
    %5472 = vmatprep.subr.bf16.mxu0 0
    %5473 = vmatpush1.bf16.msra.mxu0 %v4039
    %5474 = vmatprep.subr.bf16.mxu0 0
    %5475 = vmatpush1.bf16.msra.mxu0 %v4038
    %5476 = vmatprep.subr.bf16.mxu0 0
    %5477 = vmatpush1.bf16.msra.mxu0 %v4037
    %5478 = vmatprep.subr.bf16.mxu0 0
    %5479 = vmatpush1.bf16.msra.mxu0 %v4036
    %5480 = vmatprep.subr.bf16.mxu0 0
    %5481 = vmatpush1.bf16.msra.mxu0 %v4035
    %5482 = vmatprep.subr.bf16.mxu0 0
    %5483 = vmatpush1.bf16.msra.mxu0 %v4034
    %5484 = vmatprep.subr.bf16.mxu0 0
    %5485 = vmatpush1.bf16.msra.mxu0 %v4033
    %5486 = vmatprep.subr.bf16.mxu0 0
    %5487 = vmatpush1.bf16.msra.mxu0 %v4032
    %5488 = vmatprep.subr.bf16.mxu0 0
    %5489 = vmatpush2.bf16.msra.mxu0 %v4047
    %5490 = vmatprep.subr.bf16.mxu0 0
    %5491 = vmatpush2.bf16.msra.mxu0 %v4046
    %5492 = vmatprep.subr.bf16.mxu0 0
    %5493 = vmatpush2.bf16.msra.mxu0 %v4045
    %5494 = vmatprep.subr.bf16.mxu0 0
    %5495 = vmatpush2.bf16.msra.mxu0 %v4044
    %5496 = vmatprep.subr.bf16.mxu0 0
    %5497 = vmatpush2.bf16.msra.mxu0 %v4043
    %5498 = vmatprep.subr.bf16.mxu0 0
    %5499 = vmatpush2.bf16.msra.mxu0 %v4042
    %5500 = vmatprep.subr.bf16.mxu0 0
    %5501 = vmatpush2.bf16.msra.mxu0 %v4041
    %5502 = vmatprep.subr.bf16.mxu0 0
    %5503 = vmatpush2.bf16.msra.mxu0 %v4040
    %5504 = vmatprep.mubr.bf16.mxu0 %v1417
    %5505 = vmatmul.mubr.bf16.gmra.mxu0 %v1403
    %v5506 = vpop.f32.mrf.mxu0
    %v5507 = vadd.f32 %v5467, %v5506
    %v5508 = vpop.f32.mrf.mxu0
    %v5509 = vpop.f32.mrf.mxu0
    %v5510 = vpop.f32.mrf.mxu0
    %5511 = vdwg.mxu0
    %5512 = vmatprep.subr.bf16.mxu0 0
    %5513 = vmatpush1.bf16.msra.mxu0 %v4055
    %5514 = vmatprep.subr.bf16.mxu0 0
    %5515 = vmatpush1.bf16.msra.mxu0 %v4054
    %5516 = vmatprep.subr.bf16.mxu0 0
    %5517 = vmatpush1.bf16.msra.mxu0 %v4053
    %5518 = vmatprep.subr.bf16.mxu0 0
    %5519 = vmatpush1.bf16.msra.mxu0 %v4052
    %5520 = vmatprep.subr.bf16.mxu0 0
    %5521 = vmatpush1.bf16.msra.mxu0 %v4051
    %5522 = vmatprep.subr.bf16.mxu0 0
    %5523 = vmatpush1.bf16.msra.mxu0 %v4050
    %5524 = vmatprep.subr.bf16.mxu0 0
    %5525 = vmatpush1.bf16.msra.mxu0 %v4049
    %5526 = vmatprep.subr.bf16.mxu0 0
    %5527 = vmatpush1.bf16.msra.mxu0 %v4048
    %5528 = vmatprep.subr.bf16.mxu0 0
    %5529 = vmatpush2.bf16.msra.mxu0 %v4063
    %5530 = vmatprep.subr.bf16.mxu0 0
    %5531 = vmatpush2.bf16.msra.mxu0 %v4062
    %5532 = vmatprep.subr.bf16.mxu0 0
    %5533 = vmatpush2.bf16.msra.mxu0 %v4061
    %5534 = vmatprep.subr.bf16.mxu0 0
    %5535 = vmatpush2.bf16.msra.mxu0 %v4060
    %5536 = vmatprep.subr.bf16.mxu0 0
    %5537 = vmatpush2.bf16.msra.mxu0 %v4059
    %5538 = vmatprep.subr.bf16.mxu0 0
    %5539 = vmatpush2.bf16.msra.mxu0 %v4058
    %5540 = vmatprep.subr.bf16.mxu0 0
    %5541 = vmatpush2.bf16.msra.mxu0 %v4057
    %5542 = vmatprep.subr.bf16.mxu0 0
    %5543 = vmatpush2.bf16.msra.mxu0 %v4056
    %5544 = vmatprep.mubr.bf16.mxu0 %v1427
    %5545 = vmatmul.mubr.bf16.gmra.mxu0 %v1425
    %v5546 = vpop.f32.mrf.mxu0
    %v5547 = vadd.f32 %v5507, %v5546
    %v5548 = vpop.f32.mrf.mxu0
    %v5549 = vpop.f32.mrf.mxu0
    %v5550 = vpop.f32.mrf.mxu0
    %5551 = vdwg.mxu0
    %5552 = vmatprep.subr.bf16.mxu0 0
    %5553 = vmatpush1.bf16.msra.mxu0 %v4071
    %5554 = vmatprep.subr.bf16.mxu0 0
    %5555 = vmatpush1.bf16.msra.mxu0 %v4070
    %5556 = vmatprep.subr.bf16.mxu0 0
    %5557 = vmatpush1.bf16.msra.mxu0 %v4069
    %5558 = vmatprep.subr.bf16.mxu0 0
    %5559 = vmatpush1.bf16.msra.mxu0 %v4068
    %5560 = vmatprep.subr.bf16.mxu0 0
    %5561 = vmatpush1.bf16.msra.mxu0 %v4067
    %5562 = vmatprep.subr.bf16.mxu0 0
    %5563 = vmatpush1.bf16.msra.mxu0 %v4066
    %5564 = vmatprep.subr.bf16.mxu0 0
    %5565 = vmatpush1.bf16.msra.mxu0 %v4065
    %5566 = vmatprep.subr.bf16.mxu0 0
    %5567 = vmatpush1.bf16.msra.mxu0 %v4064
    %5568 = vmatprep.subr.bf16.mxu0 0
    %5569 = vmatpush2.bf16.msra.mxu0 %v4079
    %5570 = vmatprep.subr.bf16.mxu0 0
    %5571 = vmatpush2.bf16.msra.mxu0 %v4078
    %5572 = vmatprep.subr.bf16.mxu0 0
    %5573 = vmatpush2.bf16.msra.mxu0 %v4077
    %5574 = vmatprep.subr.bf16.mxu0 0
    %5575 = vmatpush2.bf16.msra.mxu0 %v4076
    %5576 = vmatprep.subr.bf16.mxu0 0
    %5577 = vmatpush2.bf16.msra.mxu0 %v4075
    %5578 = vmatprep.subr.bf16.mxu0 0
    %5579 = vmatpush2.bf16.msra.mxu0 %v4074
    %5580 = vmatprep.subr.bf16.mxu0 0
    %5581 = vmatpush2.bf16.msra.mxu0 %v4073
    %5582 = vmatprep.subr.bf16.mxu0 0
    %5583 = vmatpush2.bf16.msra.mxu0 %v4072
    %5584 = vmatprep.mubr.bf16.mxu0 %v1424
    %5585 = vmatmul.mubr.bf16.gmra.mxu0 %v1410
    %v5586 = vpop.f32.mrf.mxu0
    %v5587 = vadd.f32 %v5547, %v5586
    %v5588 = vpop.f32.mrf.mxu0
    %v5589 = vpop.f32.mrf.mxu0
    %v5590 = vpop.f32.mrf.mxu0
    %5591 = vdwg.mxu0
    %5592 = vmatprep.subr.bf16.mxu0 0
    %5593 = vmatpush1.bf16.msra.mxu0 %v4087
    %5594 = vmatprep.subr.bf16.mxu0 0
    %5595 = vmatpush1.bf16.msra.mxu0 %v4086
    %5596 = vmatprep.subr.bf16.mxu0 0
    %5597 = vmatpush1.bf16.msra.mxu0 %v4085
    %5598 = vmatprep.subr.bf16.mxu0 0
    %5599 = vmatpush1.bf16.msra.mxu0 %v4084
    %5600 = vmatprep.subr.bf16.mxu0 0
    %5601 = vmatpush1.bf16.msra.mxu0 %v4083
    %5602 = vmatprep.subr.bf16.mxu0 0
    %5603 = vmatpush1.bf16.msra.mxu0 %v4082
    %5604 = vmatprep.subr.bf16.mxu0 0
    %5605 = vmatpush1.bf16.msra.mxu0 %v4081
    %5606 = vmatprep.subr.bf16.mxu0 0
    %5607 = vmatpush1.bf16.msra.mxu0 %v4080
    %5608 = vmatprep.subr.bf16.mxu0 0
    %5609 = vmatpush2.bf16.msra.mxu0 %v4095
    %5610 = vmatprep.subr.bf16.mxu0 0
    %5611 = vmatpush2.bf16.msra.mxu0 %v4094
    %5612 = vmatprep.subr.bf16.mxu0 0
    %5613 = vmatpush2.bf16.msra.mxu0 %v4093
    %5614 = vmatprep.subr.bf16.mxu0 0
    %5615 = vmatpush2.bf16.msra.mxu0 %v4092
    %5616 = vmatprep.subr.bf16.mxu0 0
    %5617 = vmatpush2.bf16.msra.mxu0 %v4091
    %5618 = vmatprep.subr.bf16.mxu0 0
    %5619 = vmatpush2.bf16.msra.mxu0 %v4090
    %5620 = vmatprep.subr.bf16.mxu0 0
    %5621 = vmatpush2.bf16.msra.mxu0 %v4089
    %5622 = vmatprep.subr.bf16.mxu0 0
    %5623 = vmatpush2.bf16.msra.mxu0 %v4088
    %5624 = vmatprep.mubr.bf16.mxu0 %v1428
    %5625 = vmatmul.mubr.bf16.gmra.mxu0 %v1426
    %v5626 = vpop.f32.mrf.mxu0
    %v5627 = vadd.f32 %v5587, %v5626
    %v5628 = vpop.f32.mrf.mxu0
    %v5629 = vpop.f32.mrf.mxu0
    %v5630 = vpop.f32.mrf.mxu0
    %5631 = vdwg.mxu0
    %5632 = vmatprep.subr.bf16.mxu0 0
    %5633 = vmatpush1.bf16.msra.mxu0 %v4103
    %5634 = vmatprep.subr.bf16.mxu0 0
    %5635 = vmatpush1.bf16.msra.mxu0 %v4102
    %5636 = vmatprep.subr.bf16.mxu0 0
    %5637 = vmatpush1.bf16.msra.mxu0 %v4101
    %5638 = vmatprep.subr.bf16.mxu0 0
    %5639 = vmatpush1.bf16.msra.mxu0 %v4100
    %5640 = vmatprep.subr.bf16.mxu0 0
    %5641 = vmatpush1.bf16.msra.mxu0 %v4099
    %5642 = vmatprep.subr.bf16.mxu0 0
    %5643 = vmatpush1.bf16.msra.mxu0 %v4098
    %5644 = vmatprep.subr.bf16.mxu0 0
    %5645 = vmatpush1.bf16.msra.mxu0 %v4097
    %5646 = vmatprep.subr.bf16.mxu0 0
    %5647 = vmatpush1.bf16.msra.mxu0 %v4096
    %5648 = vmatprep.subr.bf16.mxu0 0
    %5649 = vmatpush2.bf16.msra.mxu0 %v4111
    %5650 = vmatprep.subr.bf16.mxu0 0
    %5651 = vmatpush2.bf16.msra.mxu0 %v4110
    %5652 = vmatprep.subr.bf16.mxu0 0
    %5653 = vmatpush2.bf16.msra.mxu0 %v4109
    %5654 = vmatprep.subr.bf16.mxu0 0
    %5655 = vmatpush2.bf16.msra.mxu0 %v4108
    %5656 = vmatprep.subr.bf16.mxu0 0
    %5657 = vmatpush2.bf16.msra.mxu0 %v4107
    %5658 = vmatprep.subr.bf16.mxu0 0
    %5659 = vmatpush2.bf16.msra.mxu0 %v4106
    %5660 = vmatprep.subr.bf16.mxu0 0
    %5661 = vmatpush2.bf16.msra.mxu0 %v4105
    %5662 = vmatprep.subr.bf16.mxu0 0
    %5663 = vmatpush2.bf16.msra.mxu0 %v4104
    %5664 = vmatprep.mubr.bf16.mxu0 %v1466
    %5665 = vmatmul.mubr.bf16.gmra.mxu0 %v1452
    %v5666 = vpop.f32.mrf.mxu0
    %v5667 = vadd.f32 %v5627, %v5666
    %v5668 = vpop.f32.mrf.mxu0
    %v5669 = vpop.f32.mrf.mxu0
    %v5670 = vpop.f32.mrf.mxu0
    %5671 = vdwg.mxu0
    %5672 = vmatprep.subr.bf16.mxu0 0
    %5673 = vmatpush1.bf16.msra.mxu0 %v4119
    %5674 = vmatprep.subr.bf16.mxu0 0
    %5675 = vmatpush1.bf16.msra.mxu0 %v4118
    %5676 = vmatprep.subr.bf16.mxu0 0
    %5677 = vmatpush1.bf16.msra.mxu0 %v4117
    %5678 = vmatprep.subr.bf16.mxu0 0
    %5679 = vmatpush1.bf16.msra.mxu0 %v4116
    %5680 = vmatprep.subr.bf16.mxu0 0
    %5681 = vmatpush1.bf16.msra.mxu0 %v4115
    %5682 = vmatprep.subr.bf16.mxu0 0
    %5683 = vmatpush1.bf16.msra.mxu0 %v4114
    %5684 = vmatprep.subr.bf16.mxu0 0
    %5685 = vmatpush1.bf16.msra.mxu0 %v4113
    %5686 = vmatprep.subr.bf16.mxu0 0
    %5687 = vmatpush1.bf16.msra.mxu0 %v4112
    %5688 = vmatprep.subr.bf16.mxu0 0
    %5689 = vmatpush2.bf16.msra.mxu0 %v4127
    %5690 = vmatprep.subr.bf16.mxu0 0
    %5691 = vmatpush2.bf16.msra.mxu0 %v4126
    %5692 = vmatprep.subr.bf16.mxu0 0
    %5693 = vmatpush2.bf16.msra.mxu0 %v4125
    %5694 = vmatprep.subr.bf16.mxu0 0
    %5695 = vmatpush2.bf16.msra.mxu0 %v4124
    %5696 = vmatprep.subr.bf16.mxu0 0
    %5697 = vmatpush2.bf16.msra.mxu0 %v4123
    %5698 = vmatprep.subr.bf16.mxu0 0
    %5699 = vmatpush2.bf16.msra.mxu0 %v4122
    %5700 = vmatprep.subr.bf16.mxu0 0
    %5701 = vmatpush2.bf16.msra.mxu0 %v4121
    %5702 = vmatprep.subr.bf16.mxu0 0
    %5703 = vmatpush2.bf16.msra.mxu0 %v4120
    %5704 = vmatprep.mubr.bf16.mxu0 %v1476
    %5705 = vmatmul.mubr.bf16.gmra.mxu0 %v1474
    %v5706 = vpop.f32.mrf.mxu0
    %v5707 = vadd.f32 %v5667, %v5706
    %v5708 = vpop.f32.mrf.mxu0
    %v5709 = vpop.f32.mrf.mxu0
    %v5710 = vpop.f32.mrf.mxu0
    %5711 = vdwg.mxu0
    %5712 = vmatprep.subr.bf16.mxu0 0
    %5713 = vmatpush1.bf16.msra.mxu0 %v4135
    %5714 = vmatprep.subr.bf16.mxu0 0
    %5715 = vmatpush1.bf16.msra.mxu0 %v4134
    %5716 = vmatprep.subr.bf16.mxu0 0
    %5717 = vmatpush1.bf16.msra.mxu0 %v4133
    %5718 = vmatprep.subr.bf16.mxu0 0
    %5719 = vmatpush1.bf16.msra.mxu0 %v4132
    %5720 = vmatprep.subr.bf16.mxu0 0
    %5721 = vmatpush1.bf16.msra.mxu0 %v4131
    %5722 = vmatprep.subr.bf16.mxu0 0
    %5723 = vmatpush1.bf16.msra.mxu0 %v4130
    %5724 = vmatprep.subr.bf16.mxu0 0
    %5725 = vmatpush1.bf16.msra.mxu0 %v4129
    %5726 = vmatprep.subr.bf16.mxu0 0
    %5727 = vmatpush1.bf16.msra.mxu0 %v4128
    %5728 = vmatprep.subr.bf16.mxu0 0
    %5729 = vmatpush2.bf16.msra.mxu0 %v4143
    %5730 = vmatprep.subr.bf16.mxu0 0
    %5731 = vmatpush2.bf16.msra.mxu0 %v4142
    %5732 = vmatprep.subr.bf16.mxu0 0
    %5733 = vmatpush2.bf16.msra.mxu0 %v4141
    %5734 = vmatprep.subr.bf16.mxu0 0
    %5735 = vmatpush2.bf16.msra.mxu0 %v4140
    %5736 = vmatprep.subr.bf16.mxu0 0
    %5737 = vmatpush2.bf16.msra.mxu0 %v4139
    %5738 = vmatprep.subr.bf16.mxu0 0
    %5739 = vmatpush2.bf16.msra.mxu0 %v4138
    %5740 = vmatprep.subr.bf16.mxu0 0
    %5741 = vmatpush2.bf16.msra.mxu0 %v4137
    %5742 = vmatprep.subr.bf16.mxu0 0
    %5743 = vmatpush2.bf16.msra.mxu0 %v4136
    %5744 = vmatprep.mubr.bf16.mxu0 %v1473
    %5745 = vmatmul.mubr.bf16.gmra.mxu0 %v1459
    %v5746 = vpop.f32.mrf.mxu0
    %v5747 = vadd.f32 %v5707, %v5746
    %v5748 = vpop.f32.mrf.mxu0
    %v5749 = vpop.f32.mrf.mxu0
    %v5750 = vpop.f32.mrf.mxu0
    %5751 = vdwg.mxu0
    %5752 = vmatprep.subr.bf16.mxu0 0
    %5753 = vmatpush1.bf16.msra.mxu0 %v4151
    %5754 = vmatprep.subr.bf16.mxu0 0
    %5755 = vmatpush1.bf16.msra.mxu0 %v4150
    %5756 = vmatprep.subr.bf16.mxu0 0
    %5757 = vmatpush1.bf16.msra.mxu0 %v4149
    %5758 = vmatprep.subr.bf16.mxu0 0
    %5759 = vmatpush1.bf16.msra.mxu0 %v4148
    %5760 = vmatprep.subr.bf16.mxu0 0
    %5761 = vmatpush1.bf16.msra.mxu0 %v4147
    %5762 = vmatprep.subr.bf16.mxu0 0
    %5763 = vmatpush1.bf16.msra.mxu0 %v4146
    %5764 = vmatprep.subr.bf16.mxu0 0
    %5765 = vmatpush1.bf16.msra.mxu0 %v4145
    %5766 = vmatprep.subr.bf16.mxu0 0
    %5767 = vmatpush1.bf16.msra.mxu0 %v4144
    %5768 = vmatprep.subr.bf16.mxu0 0
    %5769 = vmatpush2.bf16.msra.mxu0 %v4159
    %5770 = vmatprep.subr.bf16.mxu0 0
    %5771 = vmatpush2.bf16.msra.mxu0 %v4158
    %5772 = vmatprep.subr.bf16.mxu0 0
    %5773 = vmatpush2.bf16.msra.mxu0 %v4157
    %5774 = vmatprep.subr.bf16.mxu0 0
    %5775 = vmatpush2.bf16.msra.mxu0 %v4156
    %5776 = vmatprep.subr.bf16.mxu0 0
    %5777 = vmatpush2.bf16.msra.mxu0 %v4155
    %5778 = vmatprep.subr.bf16.mxu0 0
    %5779 = vmatpush2.bf16.msra.mxu0 %v4154
    %5780 = vmatprep.subr.bf16.mxu0 0
    %5781 = vmatpush2.bf16.msra.mxu0 %v4153
    %5782 = vmatprep.subr.bf16.mxu0 0
    %5783 = vmatpush2.bf16.msra.mxu0 %v4152
    %5784 = vmatprep.mubr.bf16.mxu0 %v1477
    %5785 = vmatmul.mubr.bf16.gmra.mxu0 %v1475
    %v5786 = vpop.f32.mrf.mxu0
    %v5787 = vadd.f32 %v5747, %v5786
    %v5788 = vpop.f32.mrf.mxu0
    %v5789 = vpop.f32.mrf.mxu0
    %v5790 = vpop.f32.mrf.mxu0
    %5791 = vdwg.mxu0
    %5792 = vmatprep.subr.bf16.mxu0 0
    %5793 = vmatpush1.bf16.msra.mxu0 %v4167
    %5794 = vmatprep.subr.bf16.mxu0 0
    %5795 = vmatpush1.bf16.msra.mxu0 %v4166
    %5796 = vmatprep.subr.bf16.mxu0 0
    %5797 = vmatpush1.bf16.msra.mxu0 %v4165
    %5798 = vmatprep.subr.bf16.mxu0 0
    %5799 = vmatpush1.bf16.msra.mxu0 %v4164
    %5800 = vmatprep.subr.bf16.mxu0 0
    %5801 = vmatpush1.bf16.msra.mxu0 %v4163
    %5802 = vmatprep.subr.bf16.mxu0 0
    %5803 = vmatpush1.bf16.msra.mxu0 %v4162
    %5804 = vmatprep.subr.bf16.mxu0 0
    %5805 = vmatpush1.bf16.msra.mxu0 %v4161
    %5806 = vmatprep.subr.bf16.mxu0 0
    %5807 = vmatpush1.bf16.msra.mxu0 %v4160
    %5808 = vmatprep.subr.bf16.mxu0 0
    %5809 = vmatpush2.bf16.msra.mxu0 %v4175
    %5810 = vmatprep.subr.bf16.mxu0 0
    %5811 = vmatpush2.bf16.msra.mxu0 %v4174
    %5812 = vmatprep.subr.bf16.mxu0 0
    %5813 = vmatpush2.bf16.msra.mxu0 %v4173
    %5814 = vmatprep.subr.bf16.mxu0 0
    %5815 = vmatpush2.bf16.msra.mxu0 %v4172
    %5816 = vmatprep.subr.bf16.mxu0 0
    %5817 = vmatpush2.bf16.msra.mxu0 %v4171
    %5818 = vmatprep.subr.bf16.mxu0 0
    %5819 = vmatpush2.bf16.msra.mxu0 %v4170
    %5820 = vmatprep.subr.bf16.mxu0 0
    %5821 = vmatpush2.bf16.msra.mxu0 %v4169
    %5822 = vmatprep.subr.bf16.mxu0 0
    %5823 = vmatpush2.bf16.msra.mxu0 %v4168
    %5824 = vmatprep.mubr.bf16.mxu0 %v1515
    %5825 = vmatmul.mubr.bf16.gmra.mxu0 %v1501
    %v5826 = vpop.f32.mrf.mxu0
    %v5827 = vadd.f32 %v5787, %v5826
    %v5828 = vpop.f32.mrf.mxu0
    %v5829 = vpop.f32.mrf.mxu0
    %v5830 = vpop.f32.mrf.mxu0
    %5831 = vdwg.mxu0
    %5832 = vmatprep.subr.bf16.mxu0 0
    %5833 = vmatpush1.bf16.msra.mxu0 %v4183
    %5834 = vmatprep.subr.bf16.mxu0 0
    %5835 = vmatpush1.bf16.msra.mxu0 %v4182
    %5836 = vmatprep.subr.bf16.mxu0 0
    %5837 = vmatpush1.bf16.msra.mxu0 %v4181
    %5838 = vmatprep.subr.bf16.mxu0 0
    %5839 = vmatpush1.bf16.msra.mxu0 %v4180
    %5840 = vmatprep.subr.bf16.mxu0 0
    %5841 = vmatpush1.bf16.msra.mxu0 %v4179
    %5842 = vmatprep.subr.bf16.mxu0 0
    %5843 = vmatpush1.bf16.msra.mxu0 %v4178
    %5844 = vmatprep.subr.bf16.mxu0 0
    %5845 = vmatpush1.bf16.msra.mxu0 %v4177
    %5846 = vmatprep.subr.bf16.mxu0 0
    %5847 = vmatpush1.bf16.msra.mxu0 %v4176
    %5848 = vmatprep.subr.bf16.mxu0 0
    %5849 = vmatpush2.bf16.msra.mxu0 %v4191
    %5850 = vmatprep.subr.bf16.mxu0 0
    %5851 = vmatpush2.bf16.msra.mxu0 %v4190
    %5852 = vmatprep.subr.bf16.mxu0 0
    %5853 = vmatpush2.bf16.msra.mxu0 %v4189
    %5854 = vmatprep.subr.bf16.mxu0 0
    %5855 = vmatpush2.bf16.msra.mxu0 %v4188
    %5856 = vmatprep.subr.bf16.mxu0 0
    %5857 = vmatpush2.bf16.msra.mxu0 %v4187
    %5858 = vmatprep.subr.bf16.mxu0 0
    %5859 = vmatpush2.bf16.msra.mxu0 %v4186
    %5860 = vmatprep.subr.bf16.mxu0 0
    %5861 = vmatpush2.bf16.msra.mxu0 %v4185
    %5862 = vmatprep.subr.bf16.mxu0 0
    %5863 = vmatpush2.bf16.msra.mxu0 %v4184
    %5864 = vmatprep.mubr.bf16.mxu0 %v1525
    %5865 = vmatmul.mubr.bf16.gmra.mxu0 %v1523
    %v5866 = vpop.f32.mrf.mxu0
    %v5867 = vadd.f32 %v5827, %v5866
    %v5868 = vpop.f32.mrf.mxu0
    %v5869 = vpop.f32.mrf.mxu0
    %v5870 = vpop.f32.mrf.mxu0
    %5871 = vdwg.mxu0
    %5872 = vmatprep.subr.bf16.mxu0 0
    %5873 = vmatpush1.bf16.msra.mxu0 %v4199
    %5874 = vmatprep.subr.bf16.mxu0 0
    %5875 = vmatpush1.bf16.msra.mxu0 %v4198
    %5876 = vmatprep.subr.bf16.mxu0 0
    %5877 = vmatpush1.bf16.msra.mxu0 %v4197
    %5878 = vmatprep.subr.bf16.mxu0 0
    %5879 = vmatpush1.bf16.msra.mxu0 %v4196
    %5880 = vmatprep.subr.bf16.mxu0 0
    %5881 = vmatpush1.bf16.msra.mxu0 %v4195
    %5882 = vmatprep.subr.bf16.mxu0 0
    %5883 = vmatpush1.bf16.msra.mxu0 %v4194
    %5884 = vmatprep.subr.bf16.mxu0 0
    %5885 = vmatpush1.bf16.msra.mxu0 %v4193
    %5886 = vmatprep.subr.bf16.mxu0 0
    %5887 = vmatpush1.bf16.msra.mxu0 %v4192
    %5888 = vmatprep.subr.bf16.mxu0 0
    %5889 = vmatpush2.bf16.msra.mxu0 %v4207
    %5890 = vmatprep.subr.bf16.mxu0 0
    %5891 = vmatpush2.bf16.msra.mxu0 %v4206
    %5892 = vmatprep.subr.bf16.mxu0 0
    %5893 = vmatpush2.bf16.msra.mxu0 %v4205
    %5894 = vmatprep.subr.bf16.mxu0 0
    %5895 = vmatpush2.bf16.msra.mxu0 %v4204
    %5896 = vmatprep.subr.bf16.mxu0 0
    %5897 = vmatpush2.bf16.msra.mxu0 %v4203
    %5898 = vmatprep.subr.bf16.mxu0 0
    %5899 = vmatpush2.bf16.msra.mxu0 %v4202
    %5900 = vmatprep.subr.bf16.mxu0 0
    %5901 = vmatpush2.bf16.msra.mxu0 %v4201
    %5902 = vmatprep.subr.bf16.mxu0 0
    %5903 = vmatpush2.bf16.msra.mxu0 %v4200
    %5904 = vmatprep.mubr.bf16.mxu0 %v1522
    %5905 = vmatmul.mubr.bf16.gmra.mxu0 %v1508
    %v5906 = vpop.f32.mrf.mxu0
    %v5907 = vadd.f32 %v5867, %v5906
    %v5908 = vpop.f32.mrf.mxu0
    %v5909 = vpop.f32.mrf.mxu0
    %v5910 = vpop.f32.mrf.mxu0
    %5911 = vdwg.mxu0
    %5912 = vmatprep.subr.bf16.mxu0 0
    %5913 = vmatpush1.bf16.msra.mxu0 %v4215
    %5914 = vmatprep.subr.bf16.mxu0 0
    %5915 = vmatpush1.bf16.msra.mxu0 %v4214
    %5916 = vmatprep.subr.bf16.mxu0 0
    %5917 = vmatpush1.bf16.msra.mxu0 %v4213
    %5918 = vmatprep.subr.bf16.mxu0 0
    %5919 = vmatpush1.bf16.msra.mxu0 %v4212
    %5920 = vmatprep.subr.bf16.mxu0 0
    %5921 = vmatpush1.bf16.msra.mxu0 %v4211
    %5922 = vmatprep.subr.bf16.mxu0 0
    %5923 = vmatpush1.bf16.msra.mxu0 %v4210
    %5924 = vmatprep.subr.bf16.mxu0 0
    %5925 = vmatpush1.bf16.msra.mxu0 %v4209
    %5926 = vmatprep.subr.bf16.mxu0 0
    %5927 = vmatpush1.bf16.msra.mxu0 %v4208
    %5928 = vmatprep.subr.bf16.mxu0 0
    %5929 = vmatpush2.bf16.msra.mxu0 %v4223
    %5930 = vmatprep.subr.bf16.mxu0 0
    %5931 = vmatpush2.bf16.msra.mxu0 %v4222
    %5932 = vmatprep.subr.bf16.mxu0 0
    %5933 = vmatpush2.bf16.msra.mxu0 %v4221
    %5934 = vmatprep.subr.bf16.mxu0 0
    %5935 = vmatpush2.bf16.msra.mxu0 %v4220
    %5936 = vmatprep.subr.bf16.mxu0 0
    %5937 = vmatpush2.bf16.msra.mxu0 %v4219
    %5938 = vmatprep.subr.bf16.mxu0 0
    %5939 = vmatpush2.bf16.msra.mxu0 %v4218
    %5940 = vmatprep.subr.bf16.mxu0 0
    %5941 = vmatpush2.bf16.msra.mxu0 %v4217
    %5942 = vmatprep.subr.bf16.mxu0 0
    %5943 = vmatpush2.bf16.msra.mxu0 %v4216
    %5944 = vmatprep.mubr.bf16.mxu0 %v1526
    %5945 = vmatmul.mubr.bf16.gmra.mxu0 %v1524
    %v5946 = vpop.f32.mrf.mxu0
    %v5947 = vadd.f32 %v5907, %v5946
    %v5948 = vpop.f32.mrf.mxu0
    %v5949 = vpop.f32.mrf.mxu0
    %v5950 = vpop.f32.mrf.mxu0
    %5951 = vdwg.mxu0
    %5952 = vmatprep.subr.bf16.mxu0 0
    %5953 = vmatpush1.bf16.msra.mxu0 %v4231
    %5954 = vmatprep.subr.bf16.mxu0 0
    %5955 = vmatpush1.bf16.msra.mxu0 %v4230
    %5956 = vmatprep.subr.bf16.mxu0 0
    %5957 = vmatpush1.bf16.msra.mxu0 %v4229
    %5958 = vmatprep.subr.bf16.mxu0 0
    %5959 = vmatpush1.bf16.msra.mxu0 %v4228
    %5960 = vmatprep.subr.bf16.mxu0 0
    %5961 = vmatpush1.bf16.msra.mxu0 %v4227
    %5962 = vmatprep.subr.bf16.mxu0 0
    %5963 = vmatpush1.bf16.msra.mxu0 %v4226
    %5964 = vmatprep.subr.bf16.mxu0 0
    %5965 = vmatpush1.bf16.msra.mxu0 %v4225
    %5966 = vmatprep.subr.bf16.mxu0 0
    %5967 = vmatpush1.bf16.msra.mxu0 %v4224
    %5968 = vmatprep.subr.bf16.mxu0 0
    %5969 = vmatpush2.bf16.msra.mxu0 %v4239
    %5970 = vmatprep.subr.bf16.mxu0 0
    %5971 = vmatpush2.bf16.msra.mxu0 %v4238
    %5972 = vmatprep.subr.bf16.mxu0 0
    %5973 = vmatpush2.bf16.msra.mxu0 %v4237
    %5974 = vmatprep.subr.bf16.mxu0 0
    %5975 = vmatpush2.bf16.msra.mxu0 %v4236
    %5976 = vmatprep.subr.bf16.mxu0 0
    %5977 = vmatpush2.bf16.msra.mxu0 %v4235
    %5978 = vmatprep.subr.bf16.mxu0 0
    %5979 = vmatpush2.bf16.msra.mxu0 %v4234
    %5980 = vmatprep.subr.bf16.mxu0 0
    %5981 = vmatpush2.bf16.msra.mxu0 %v4233
    %5982 = vmatprep.subr.bf16.mxu0 0
    %5983 = vmatpush2.bf16.msra.mxu0 %v4232
    %5984 = vmatprep.mubr.bf16.mxu0 %v1564
    %5985 = vmatmul.mubr.bf16.gmra.mxu0 %v1550
    %v5986 = vpop.f32.mrf.mxu0
    %v5987 = vadd.f32 %v5947, %v5986
    %v5988 = vpop.f32.mrf.mxu0
    %v5989 = vpop.f32.mrf.mxu0
    %v5990 = vpop.f32.mrf.mxu0
    %5991 = vdwg.mxu0
    %5992 = vmatprep.subr.bf16.mxu0 0
    %5993 = vmatpush1.bf16.msra.mxu0 %v4247
    %5994 = vmatprep.subr.bf16.mxu0 0
    %5995 = vmatpush1.bf16.msra.mxu0 %v4246
    %5996 = vmatprep.subr.bf16.mxu0 0
    %5997 = vmatpush1.bf16.msra.mxu0 %v4245
    %5998 = vmatprep.subr.bf16.mxu0 0
    %5999 = vmatpush1.bf16.msra.mxu0 %v4244
    %6000 = vmatprep.subr.bf16.mxu0 0
    %6001 = vmatpush1.bf16.msra.mxu0 %v4243
    %6002 = vmatprep.subr.bf16.mxu0 0
    %6003 = vmatpush1.bf16.msra.mxu0 %v4242
    %6004 = vmatprep.subr.bf16.mxu0 0
    %6005 = vmatpush1.bf16.msra.mxu0 %v4241
    %6006 = vmatprep.subr.bf16.mxu0 0
    %6007 = vmatpush1.bf16.msra.mxu0 %v4240
    %6008 = vmatprep.subr.bf16.mxu0 0
    %6009 = vmatpush2.bf16.msra.mxu0 %v4255
    %6010 = vmatprep.subr.bf16.mxu0 0
    %6011 = vmatpush2.bf16.msra.mxu0 %v4254
    %6012 = vmatprep.subr.bf16.mxu0 0
    %6013 = vmatpush2.bf16.msra.mxu0 %v4253
    %6014 = vmatprep.subr.bf16.mxu0 0
    %6015 = vmatpush2.bf16.msra.mxu0 %v4252
    %6016 = vmatprep.subr.bf16.mxu0 0
    %6017 = vmatpush2.bf16.msra.mxu0 %v4251
    %6018 = vmatprep.subr.bf16.mxu0 0
    %6019 = vmatpush2.bf16.msra.mxu0 %v4250
    %6020 = vmatprep.subr.bf16.mxu0 0
    %6021 = vmatpush2.bf16.msra.mxu0 %v4249
    %6022 = vmatprep.subr.bf16.mxu0 0
    %6023 = vmatpush2.bf16.msra.mxu0 %v4248
    %6024 = vmatprep.mubr.bf16.mxu0 %v1574
    %6025 = vmatmul.mubr.bf16.gmra.mxu0 %v1572
    %v6026 = vpop.f32.mrf.mxu0
    %v6027 = vadd.f32 %v5987, %v6026
    %v6028 = vpop.f32.mrf.mxu0
    %v6029 = vpop.f32.mrf.mxu0
    %v6030 = vpop.f32.mrf.mxu0
    %6031 = vdwg.mxu0
    %6032 = vmatprep.subr.bf16.mxu0 0
    %6033 = vmatpush1.bf16.msra.mxu0 %v4263
    %6034 = vmatprep.subr.bf16.mxu0 0
    %6035 = vmatpush1.bf16.msra.mxu0 %v4262
    %6036 = vmatprep.subr.bf16.mxu0 0
    %6037 = vmatpush1.bf16.msra.mxu0 %v4261
    %6038 = vmatprep.subr.bf16.mxu0 0
    %6039 = vmatpush1.bf16.msra.mxu0 %v4260
    %6040 = vmatprep.subr.bf16.mxu0 0
    %6041 = vmatpush1.bf16.msra.mxu0 %v4259
    %6042 = vmatprep.subr.bf16.mxu0 0
    %6043 = vmatpush1.bf16.msra.mxu0 %v4258
    %6044 = vmatprep.subr.bf16.mxu0 0
    %6045 = vmatpush1.bf16.msra.mxu0 %v4257
    %6046 = vmatprep.subr.bf16.mxu0 0
    %6047 = vmatpush1.bf16.msra.mxu0 %v4256
    %6048 = vmatprep.subr.bf16.mxu0 0
    %6049 = vmatpush2.bf16.msra.mxu0 %v4271
    %6050 = vmatprep.subr.bf16.mxu0 0
    %6051 = vmatpush2.bf16.msra.mxu0 %v4270
    %6052 = vmatprep.subr.bf16.mxu0 0
    %6053 = vmatpush2.bf16.msra.mxu0 %v4269
    %6054 = vmatprep.subr.bf16.mxu0 0
    %6055 = vmatpush2.bf16.msra.mxu0 %v4268
    %6056 = vmatprep.subr.bf16.mxu0 0
    %6057 = vmatpush2.bf16.msra.mxu0 %v4267
    %6058 = vmatprep.subr.bf16.mxu0 0
    %6059 = vmatpush2.bf16.msra.mxu0 %v4266
    %6060 = vmatprep.subr.bf16.mxu0 0
    %6061 = vmatpush2.bf16.msra.mxu0 %v4265
    %6062 = vmatprep.subr.bf16.mxu0 0
    %6063 = vmatpush2.bf16.msra.mxu0 %v4264
    %6064 = vmatprep.mubr.bf16.mxu0 %v1571
    %6065 = vmatmul.mubr.bf16.gmra.mxu0 %v1557
    %v6066 = vpop.f32.mrf.mxu0
    %v6067 = vadd.f32 %v6027, %v6066
    %v6068 = vpop.f32.mrf.mxu0
    %v6069 = vpop.f32.mrf.mxu0
    %v6070 = vpop.f32.mrf.mxu0
    %6071 = vdwg.mxu0
    %6072 = vmatprep.subr.bf16.mxu0 0
    %6073 = vmatpush1.bf16.msra.mxu0 %v4279
    %6074 = vmatprep.subr.bf16.mxu0 0
    %6075 = vmatpush1.bf16.msra.mxu0 %v4278
    %6076 = vmatprep.subr.bf16.mxu0 0
    %6077 = vmatpush1.bf16.msra.mxu0 %v4277
    %6078 = vmatprep.subr.bf16.mxu0 0
    %6079 = vmatpush1.bf16.msra.mxu0 %v4276
    %6080 = vmatprep.subr.bf16.mxu0 0
    %6081 = vmatpush1.bf16.msra.mxu0 %v4275
    %6082 = vmatprep.subr.bf16.mxu0 0
    %6083 = vmatpush1.bf16.msra.mxu0 %v4274
    %6084 = vmatprep.subr.bf16.mxu0 0
    %6085 = vmatpush1.bf16.msra.mxu0 %v4273
    %6086 = vmatprep.subr.bf16.mxu0 0
    %6087 = vmatpush1.bf16.msra.mxu0 %v4272
    %6088 = vmatprep.subr.bf16.mxu0 0
    %6089 = vmatpush2.bf16.msra.mxu0 %v4287
    %6090 = vmatprep.subr.bf16.mxu0 0
    %6091 = vmatpush2.bf16.msra.mxu0 %v4286
    %6092 = vmatprep.subr.bf16.mxu0 0
    %6093 = vmatpush2.bf16.msra.mxu0 %v4285
    %6094 = vmatprep.subr.bf16.mxu0 0
    %6095 = vmatpush2.bf16.msra.mxu0 %v4284
    %6096 = vmatprep.subr.bf16.mxu0 0
    %6097 = vmatpush2.bf16.msra.mxu0 %v4283
    %6098 = vmatprep.subr.bf16.mxu0 0
    %6099 = vmatpush2.bf16.msra.mxu0 %v4282
    %6100 = vmatprep.subr.bf16.mxu0 0
    %6101 = vmatpush2.bf16.msra.mxu0 %v4281
    %6102 = vmatprep.subr.bf16.mxu0 0
    %6103 = vmatpush2.bf16.msra.mxu0 %v4280
    %6104 = vmatprep.mubr.bf16.mxu0 %v1575
    %6105 = vmatmul.mubr.bf16.gmra.mxu0 %v1573
    %v6106 = vpop.f32.mrf.mxu0
    %v6107 = vadd.f32 %v6067, %v6106
    %v6108 = vpop.f32.mrf.mxu0
    %v6109 = vpop.f32.mrf.mxu0
    %v6110 = vpop.f32.mrf.mxu0
    %6111 = vdwg.mxu0
    %6112 = vmatprep.subr.bf16.mxu0 0
    %6113 = vmatpush1.bf16.msra.mxu0 %v4295
    %6114 = vmatprep.subr.bf16.mxu0 0
    %6115 = vmatpush1.bf16.msra.mxu0 %v4294
    %6116 = vmatprep.subr.bf16.mxu0 0
    %6117 = vmatpush1.bf16.msra.mxu0 %v4293
    %6118 = vmatprep.subr.bf16.mxu0 0
    %6119 = vmatpush1.bf16.msra.mxu0 %v4292
    %6120 = vmatprep.subr.bf16.mxu0 0
    %6121 = vmatpush1.bf16.msra.mxu0 %v4291
    %6122 = vmatprep.subr.bf16.mxu0 0
    %6123 = vmatpush1.bf16.msra.mxu0 %v4290
    %6124 = vmatprep.subr.bf16.mxu0 0
    %6125 = vmatpush1.bf16.msra.mxu0 %v4289
    %6126 = vmatprep.subr.bf16.mxu0 0
    %6127 = vmatpush1.bf16.msra.mxu0 %v4288
    %6128 = vmatprep.subr.bf16.mxu0 0
    %6129 = vmatpush2.bf16.msra.mxu0 %v4303
    %6130 = vmatprep.subr.bf16.mxu0 0
    %6131 = vmatpush2.bf16.msra.mxu0 %v4302
    %6132 = vmatprep.subr.bf16.mxu0 0
    %6133 = vmatpush2.bf16.msra.mxu0 %v4301
    %6134 = vmatprep.subr.bf16.mxu0 0
    %6135 = vmatpush2.bf16.msra.mxu0 %v4300
    %6136 = vmatprep.subr.bf16.mxu0 0
    %6137 = vmatpush2.bf16.msra.mxu0 %v4299
    %6138 = vmatprep.subr.bf16.mxu0 0
    %6139 = vmatpush2.bf16.msra.mxu0 %v4298
    %6140 = vmatprep.subr.bf16.mxu0 0
    %6141 = vmatpush2.bf16.msra.mxu0 %v4297
    %6142 = vmatprep.subr.bf16.mxu0 0
    %6143 = vmatpush2.bf16.msra.mxu0 %v4296
    %6144 = vmatprep.mubr.bf16.mxu0 %v1597
    %6145 = vmatmul.mubr.bf16.gmra.mxu0 %v1590
    %v6146 = vpop.f32.mrf.mxu0
    %v6147 = vadd.f32 %v6107, %v6146
    %v6148 = vpop.f32.mrf.mxu0
    %v6149 = vpop.f32.mrf.mxu0
    %v6150 = vpop.f32.mrf.mxu0
    %6151 = vdwg.mxu0
    %v6152 = vmax.f32 %v6147, 0.0
    %v6153 = vld [vmem:[#allocation6] sm:$0xff]
    %v6154 = vld [vmem:[#allocation6 + $0x8] sm:$0xff]
    %v6155 = vld [vmem:[#allocation6 + $0x10] sm:$0xff]
    %v6156 = vld [vmem:[#allocation6 + $0x18] sm:$0xff]
    %v6157 = vld [vmem:[#allocation6 + $0x20] sm:$0xff]
    %v6158 = vld [vmem:[#allocation6 + $0x28] sm:$0xff]
    %v6159 = vld [vmem:[#allocation6 + $0x30] sm:$0xff]
    %v6160 = vld [vmem:[#allocation6 + $0x38] sm:$0xff]
    %v6161 = vld [vmem:[#allocation6 + $0x40] sm:$0xff]
    %v6162 = vld [vmem:[#allocation6 + $0x48] sm:$0xff]
    %v6163 = vld [vmem:[#allocation6 + $0x50] sm:$0xff]
    %v6164 = vld [vmem:[#allocation6 + $0x58] sm:$0xff]
    %v6165 = vld [vmem:[#allocation6 + $0x60] sm:$0xff]
    %v6166 = vld [vmem:[#allocation6 + $0x68] sm:$0xff]
    %v6167 = vld [vmem:[#allocation6 + $0x70] sm:$0xff]
    %v6168 = vld [vmem:[#allocation6 + $0x78] sm:$0xff]
    %v6169 = vld [vmem:[#allocation7] sm:$0x1]
    %v6171 = vlaneseq
    %v6172 = vshrl.u32 %v6171, 7
    %v6173 = vsub.s32 0, %v6172
    %v6174 = vrot.slane %v6169, %v6173
    %6176 = vmatprep.subr.mxu0 0.0
    %6177 = vmatpush1.msra.mxu0 %v6168
    %6178 = vmatprep.subr.mxu0 0.0
    %6179 = vmatpush1.msra.mxu0 %v6167
    %6180 = vmatprep.subr.mxu0 0.0
    %6181 = vmatpush1.msra.mxu0 %v6166
    %6182 = vmatprep.subr.mxu0 0.0
    %6183 = vmatpush1.msra.mxu0 %v6165
    %6184 = vmatprep.subr.mxu0 0.0
    %6185 = vmatpush1.msra.mxu0 %v6164
    %6186 = vmatprep.subr.mxu0 0.0
    %6187 = vmatpush1.msra.mxu0 %v6163
    %6188 = vmatprep.subr.mxu0 0.0
    %6189 = vmatpush1.msra.mxu0 %v6162
    %6190 = vmatprep.subr.mxu0 0.0
    %6191 = vmatpush1.msra.mxu0 %v6161
    %6192 = vmatprep.subr.mxu0 0.0
    %6193 = vmatpush1.msra.mxu0 %v6160
    %6194 = vmatprep.subr.mxu0 0.0
    %6195 = vmatpush1.msra.mxu0 %v6159
    %6196 = vmatprep.subr.mxu0 0.0
    %6197 = vmatpush1.msra.mxu0 %v6158
    %6198 = vmatprep.subr.mxu0 0.0
    %6199 = vmatpush1.msra.mxu0 %v6157
    %6200 = vmatprep.subr.mxu0 0.0
    %6201 = vmatpush1.msra.mxu0 %v6156
    %6202 = vmatprep.subr.mxu0 0.0
    %6203 = vmatpush1.msra.mxu0 %v6155
    %6204 = vmatprep.subr.mxu0 0.0
    %6205 = vmatpush1.msra.mxu0 %v6154
    %6206 = vmatprep.subr.mxu0 0.0
    %6207 = vmatpush1.msra.mxu0 %v6153
    %6208 = vmatprep.subr.mxu0 0.0
    %6209 = vmatpush2.msra.mxu0 0.0
    %6210 = vmatprep.subr.mxu0 0.0
    %6211 = vmatpush2.msra.mxu0 0.0
    %6212 = vmatprep.subr.mxu0 0.0
    %6213 = vmatpush2.msra.mxu0 0.0
    %6214 = vmatprep.subr.mxu0 0.0
    %6215 = vmatpush2.msra.mxu0 0.0
    %6216 = vmatprep.subr.mxu0 0.0
    %6217 = vmatpush2.msra.mxu0 0.0
    %6218 = vmatprep.subr.mxu0 0.0
    %6219 = vmatpush2.msra.mxu0 0.0
    %6220 = vmatprep.subr.mxu0 0.0
    %6221 = vmatpush2.msra.mxu0 0.0
    %6222 = vmatprep.subr.mxu0 0.0
    %6223 = vmatpush2.msra.mxu0 0.0
    %6224 = vmatprep.subr.mxu0 0.0
    %6225 = vmatpush2.msra.mxu0 0.0
    %6226 = vmatprep.subr.mxu0 0.0
    %6227 = vmatpush2.msra.mxu0 0.0
    %6228 = vmatprep.subr.mxu0 0.0
    %6229 = vmatpush2.msra.mxu0 0.0
    %6230 = vmatprep.subr.mxu0 0.0
    %6231 = vmatpush2.msra.mxu0 0.0
    %6232 = vmatprep.subr.mxu0 0.0
    %6233 = vmatpush2.msra.mxu0 0.0
    %6234 = vmatprep.subr.mxu0 0.0
    %6235 = vmatpush2.msra.mxu0 0.0
    %6236 = vmatprep.subr.mxu0 0.0
    %6237 = vmatpush2.msra.mxu0 0.0
    %6238 = vmatprep.subr.mxu0 0.0
    %6239 = vmatpush2.msra.mxu0 0.0
    %6240 = vmatprep.mubr.f32.mxu0 0.0
    %6241 = vmatmul.mubr.f32.gmra.mxu0 %v6152
    %v6242 = vpop.f32.mrf.mxu0
    %v6243 = vadd.f32 %v6174, %v6242
    %v6244 = vpop.f32.mrf.mxu0
    %6245 = vdwg.mxu0
    %v6246 = vmax.f32 %v6243, 0.0
    %v6247 = vld [vmem:[#allocation9] sm:$0xff]
    %v6248 = vld [vmem:[#allocation9 + $0x8] sm:$0xff]
    %v6249 = vld [vmem:[#allocation9 + $0x10] sm:$0xff]
    %v6250 = vld [vmem:[#allocation9 + $0x18] sm:$0xff]
    %v6251 = vld [vmem:[#allocation9 + $0x20] sm:$0xff]
    %v6252 = vld [vmem:[#allocation9 + $0x28] sm:$0xff]
    %v6253 = vld [vmem:[#allocation9 + $0x30] sm:$0xff]
    %v6254 = vld [vmem:[#allocation9 + $0x38] sm:$0xff]
    %v6255 = vld [vmem:[#allocation9 + $0x40] sm:$0xff]
    %v6256 = vld [vmem:[#allocation9 + $0x48] sm:$0xff]
    %v6257 = vld [vmem:[#allocation9 + $0x50] sm:$0xff]
    %v6258 = vld [vmem:[#allocation9 + $0x58] sm:$0xff]
    %v6259 = vld [vmem:[#allocation9 + $0x60] sm:$0xff]
    %v6260 = vld [vmem:[#allocation9 + $0x68] sm:$0xff]
    %v6261 = vld [vmem:[#allocation9 + $0x70] sm:$0xff]
    %v6262 = vld [vmem:[#allocation9 + $0x78] sm:$0xff]
    %v6263 = vld [vmem:[#allocation10] sm:$0x1]
    %v6265 = vlaneseq
    %v6266 = vshrl.u32 %v6265, 7
    %v6267 = vsub.s32 0, %v6266
    %v6268 = vrot.slane %v6263, %v6267
    %6270 = vmatprep.subr.mxu0 0.0
    %6271 = vmatpush1.msra.mxu0 %v6262
    %6272 = vmatprep.subr.mxu0 0.0
    %6273 = vmatpush1.msra.mxu0 %v6261
    %6274 = vmatprep.subr.mxu0 0.0
    %6275 = vmatpush1.msra.mxu0 %v6260
    %6276 = vmatprep.subr.mxu0 0.0
    %6277 = vmatpush1.msra.mxu0 %v6259
    %6278 = vmatprep.subr.mxu0 0.0
    %6279 = vmatpush1.msra.mxu0 %v6258
    %6280 = vmatprep.subr.mxu0 0.0
    %6281 = vmatpush1.msra.mxu0 %v6257
    %6282 = vmatprep.subr.mxu0 0.0
    %6283 = vmatpush1.msra.mxu0 %v6256
    %6284 = vmatprep.subr.mxu0 0.0
    %6285 = vmatpush1.msra.mxu0 %v6255
    %6286 = vmatprep.subr.mxu0 0.0
    %6287 = vmatpush1.msra.mxu0 %v6254
    %6288 = vmatprep.subr.mxu0 0.0
    %6289 = vmatpush1.msra.mxu0 %v6253
    %6290 = vmatprep.subr.mxu0 0.0
    %6291 = vmatpush1.msra.mxu0 %v6252
    %6292 = vmatprep.subr.mxu0 0.0
    %6293 = vmatpush1.msra.mxu0 %v6251
    %6294 = vmatprep.subr.mxu0 0.0
    %6295 = vmatpush1.msra.mxu0 %v6250
    %6296 = vmatprep.subr.mxu0 0.0
    %6297 = vmatpush1.msra.mxu0 %v6249
    %6298 = vmatprep.subr.mxu0 0.0
    %6299 = vmatpush1.msra.mxu0 %v6248
    %6300 = vmatprep.subr.mxu0 0.0
    %6301 = vmatpush1.msra.mxu0 %v6247
    %6302 = vmatprep.subr.mxu0 0.0
    %6303 = vmatpush2.msra.mxu0 0.0
    %6304 = vmatprep.subr.mxu0 0.0
    %6305 = vmatpush2.msra.mxu0 0.0
    %6306 = vmatprep.subr.mxu0 0.0
    %6307 = vmatpush2.msra.mxu0 0.0
    %6308 = vmatprep.subr.mxu0 0.0
    %6309 = vmatpush2.msra.mxu0 0.0
    %6310 = vmatprep.subr.mxu0 0.0
    %6311 = vmatpush2.msra.mxu0 0.0
    %6312 = vmatprep.subr.mxu0 0.0
    %6313 = vmatpush2.msra.mxu0 0.0
    %6314 = vmatprep.subr.mxu0 0.0
    %6315 = vmatpush2.msra.mxu0 0.0
    %6316 = vmatprep.subr.mxu0 0.0
    %6317 = vmatpush2.msra.mxu0 0.0
    %6318 = vmatprep.subr.mxu0 0.0
    %6319 = vmatpush2.msra.mxu0 0.0
    %6320 = vmatprep.subr.mxu0 0.0
    %6321 = vmatpush2.msra.mxu0 0.0
    %6322 = vmatprep.subr.mxu0 0.0
    %6323 = vmatpush2.msra.mxu0 0.0
    %6324 = vmatprep.subr.mxu0 0.0
    %6325 = vmatpush2.msra.mxu0 0.0
    %6326 = vmatprep.subr.mxu0 0.0
    %6327 = vmatpush2.msra.mxu0 0.0
    %6328 = vmatprep.subr.mxu0 0.0
    %6329 = vmatpush2.msra.mxu0 0.0
    %6330 = vmatprep.subr.mxu0 0.0
    %6331 = vmatpush2.msra.mxu0 0.0
    %6332 = vmatprep.subr.mxu0 0.0
    %6333 = vmatpush2.msra.mxu0 0.0
    %6334 = vmatprep.mubr.f32.mxu0 0.0
    %6335 = vmatmul.mubr.f32.gmra.mxu0 %v6246
    %v6336 = vpop.f32.mrf.mxu0
    %v6337 = vadd.f32 %v6268, %v6336
    %v6338 = vpop.f32.mrf.mxu0
    %6339 = vdwg.mxu0
    %v6340 = vsub.f32 0.0, %v6337
    %v6341 = vmul.f32 %v6340, 1.442695
    %v6342 = vpow.pop %v6341
    %v6343 = vadd.f32 %v6342, 1.0
    %v6344 = vrcp.pop %v6343
    %v6345 = vmul.f32 1.0, %v6344
    %6346 = vst [vmem:[%s7] sm:$0x3] %v6345
    // Predicated region
    $region54: #{net_forward.3} parent=1 // pred_check
      _
    $region55: #{net_forward.3} parent=1 // pred_check_branch
      %6348 = sbr.rel (0) target = $region57
    $region56: #{net_forward.3} parent=1 // pred_region
      _
    $region57: #{net_forward.3} parent=1 // pred_fallthru
      _
    // Predicated region
    $region58: #{net_forward.3} parent=1 // pred_check
      _
    $region59: #{net_forward.3} parent=1 // pred_check_branch
      %6350 = sbr.rel (0) target = $region61
    $region60: #{net_forward.3} parent=1 // pred_region
      _
    $region61: #{net_forward.3} parent=1 // pred_fallthru
      _
    %6351 = vsyncpa [#allocation3], 1
    %6352 = vsyncpa [#allocation5], 1
    %6353 = vsyncpa [#allocation8], 1
    %6354 = vsyncpa [#allocation11], 1

</llo_original>
